<compile_context>
chip_gen: v7x
topology: tpu7x:2x2x1
jax: 0.10.0
libtpu: 0.0.40
codegen_flags: <defaults>
</compile_context>

<pallas_src>
from math import sqrt

import jax
import jax.numpy as jnp
import numpy as np
from jax.experimental import pallas as pl
from jax.experimental.pallas import tpu as pltpu

# ---------------- problem sizes (small, consistent with the module) ----------
B = 2            # batch
L = 8            # sequence length
DIN = 32         # dim_in
DK = 48          # dim_k  (divisible by num_heads = 6; the module requires it)
DV = 48          # dim_v  (== dim_k: required by the shared LayerNorm / GRU)
NH = 6           # num_heads (module default)
HD = DK // NH    # per-head dim = 8
H = DV           # GRU hidden size == dim_v
NORM_FACT = 1.0 / sqrt(DK // NH)
FC1, FC2, FC3, FC4, FC_OUT = DV * L, 192, 32, 8, 2
LN_EPS = 1e-5
BN_EPS = 1e-5
R = B * L        # rows when batch is folded into the row dimension


# ---------------- shared math (pure jnp, usable inside & outside kernels) ----
def _sigmoid(x):
    return 1.0 / (1.0 + jnp.exp(-x))


def _layernorm(x, gamma, beta):
    mu = jnp.mean(x, axis=-1, keepdims=True)
    var = jnp.mean((x - mu) ** 2, axis=-1, keepdims=True)
    return (x - mu) * jax.lax.rsqrt(var + LN_EPS) * gamma + beta


def _gru_step(h, gxt, whh, bhh):
    """PyTorch GRU cell (gate order r|z|n, b_hn inside the r gate product)."""
    gh = jnp.dot(h, whh, preferred_element_type=jnp.float32) + bhh
    r = _sigmoid(gxt[:, 0:H] + gh[:, 0:H])
    z = _sigmoid(gxt[:, H:2 * H] + gh[:, H:2 * H])
    n = jnp.tanh(gxt[:, 2 * H:3 * H] + r * gh[:, 2 * H:3 * H])
    return (1.0 - z) * n + z * h


# ---------------- the single fused Pallas kernel ------------------------------
def fused_forward_kernel(x_ref,
                         wA_ref, bA_ref,
                         wih_ref, bih_ref, whh_ref, bhh_ref,
                         g_ref, be_ref,
                         wqkv2_ref, wqkv3_ref,
                         w1_ref, b1_ref, s1_ref, t1_ref,
                         w2_ref, b2_ref, s2_ref, t2_ref,
                         w3_ref, b3_ref, s3_ref, t3_ref,
                         w4_ref, b4_ref,
                         o_ref,
                         gru_scr, flat_scr):
    gamma = g_ref[...]
    beta = be_ref[...]

    # ---- conv_A: Conv1d(DIN, DK, kernel_size=1) == per-position linear ------
    x = x_ref[...]                                                    # (R, DIN)
    xa = jnp.dot(x, wA_ref[...], preferred_element_type=jnp.float32) + bA_ref[...]

    # ---- GRU (1 layer, batch_first, h0 = 0) ----------------------------------
    # Input gates for all (b, t) rows in one matmul; only the recurrence loops.
    gx = jnp.dot(xa, wih_ref[...], preferred_element_type=jnp.float32) + bih_ref[...]
    whh = whh_ref[...]
    bhh = bhh_ref[...]
    for b in range(B):                       # static unroll: B=2, L=8
        h_b = jnp.zeros((1, H), jnp.float32)
        for t in range(L):
            gxt = gx[b * L + t:b * L + t + 1, :]                      # (1, 3H)
            h_b = _gru_step(h_b, gxt, whh, bhh)
            gru_scr[b * L + t:b * L + t + 1, :] = h_b
    gru_out = gru_scr[...]                                            # (R, H)

    # ---- MHSA: fused QKV projection + head-batched attention -----------------
    def mhsa(inp2d, wqkv_ref):
        qkv = jnp.dot(inp2d, wqkv_ref[...],
                      preferred_element_type=jnp.float32)             # (R, 2*DK+DV)

        def split_heads(col0, width):
            # -> (NH*B, L, width), batch index = h*B + b
            parts = [qkv[:, col0 + hh * width:col0 + (hh + 1) * width]
                     .reshape(B, L, width) for hh in range(NH)]
            return jnp.concatenate(parts, axis=0)

        q = split_heads(0, HD)
        k = split_heads(DK, HD)
        v = split_heads(2 * DK, HD)
        s = jnp.einsum('bqd,bkd->bqk', q, k,
                       preferred_element_type=jnp.float32) * NORM_FACT
        m = jnp.max(s, axis=-1, keepdims=True)
        e = jnp.exp(s - m)
        denom = jnp.sum(e, axis=-1, keepdims=True)
        p = e * pl.reciprocal(denom, approx=True)   # softmax; attn dropout(0.1)=id
        o = jnp.einsum('bqk,bkd->bqd', p, v, preferred_element_type=jnp.float32)
        # merge heads back to (R, NH*HD), columns in [head, dim] order (PyTorch)
        return jnp.concatenate(
            [o[hh * B:(hh + 1) * B].reshape(R, HD) for hh in range(NH)], axis=1)

    residual = gru_out
    xx = _layernorm(mhsa(gru_out, wqkv2_ref) + residual, gamma, beta)  # dropout=id
    residual = xx
    xx = _layernorm(mhsa(xx, wqkv3_ref) + residual, gamma, beta)       # dropout=id

    # ---- flatten to (B, L*DV) and run the FC head (BN eval folded) -----------
    for b in range(B):
        flat_b = jnp.concatenate(
            [xx[b * L + t:b * L + t + 1, :] for t in range(L)], axis=1)  # (1, FC1)
        flat_scr[b:b + 1, :] = flat_b
    flat = flat_scr[...]                                                 # (B, FC1)

    h1 = jnp.maximum(jnp.dot(flat, w1_ref[...], preferred_element_type=jnp.float32)
                     + b1_ref[...], 0.0) * s1_ref[...] + t1_ref[...]
    h2 = jnp.maximum(jnp.dot(h1, w2_ref[...], preferred_element_type=jnp.float32)
                     + b2_ref[...], 0.0) * s2_ref[...] + t2_ref[...]
    h3 = jnp.maximum(jnp.dot(h2, w3_ref[...], preferred_element_type=jnp.float32)
                     + b3_ref[...], 0.0) * s3_ref[...] + t3_ref[...]
    o_ref[...] = jnp.dot(h3, w4_ref[...], preferred_element_type=jnp.float32) + b4_ref[...]


# ---------------- wrapper ------------------------------------------------------
@jax.jit
def mhsa_layers_forward(x, P):
    """x: (B, L, DIN) float32 -> (B, 2) float32, single fused pallas_call."""
    x2d = x.reshape(R, DIN)                                     # fold batch into rows
    wqkv2 = jnp.concatenate([P['wq2'], P['wk2'], P['wv2']], axis=1)   # (DV, 2*DK+DV)
    wqkv3 = jnp.concatenate([P['wq3'], P['wk3'], P['wv3']], axis=1)
    args = [x2d,
            P['wA'], P['bA'],
            P['wih'], P['bih'], P['whh'], P['bhh'],
            P['g'], P['be'],
            wqkv2, wqkv3,
            P['w1'], P['b1'], P['s1'], P['t1'],
            P['w2'], P['b2'], P['s2'], P['t2'],
            P['w3'], P['b3'], P['s3'], P['t3'],
            P['w4'], P['b4']]
    return pl.pallas_call(
        fused_forward_kernel,
        out_shape=jax.ShapeDtypeStruct((B, FC_OUT), jnp.float32),
        grid_spec=pltpu.PrefetchScalarGridSpec(
            num_scalar_prefetch=0,
            grid=(1,),                       # everything fused into one grid step
            in_specs=[pl.BlockSpec(a.shape, lambda i: (0, 0)) for a in args],
            out_specs=pl.BlockSpec((B, FC_OUT), lambda i: (0, 0)),
            scratch_shapes=[pltpu.VMEM((R, H), jnp.float32),
                            pltpu.VMEM((B, FC1), jnp.float32)],
        ),
        compiler_params=pltpu.CompilerParams(dimension_semantics=("arbitrary",)),
    )(*args)


# ---------------- pure-JAX reference (same math, no Pallas) -------------------
def reference_forward(x, P):
    xa = jnp.einsum('bld,dk->blk', x, P['wA']) + P['bA']          # conv_A (1x1)
    gx = jnp.einsum('blk,kg->blg', xa, P['wih']) + P['bih']       # GRU input gates
    h = jnp.zeros((B, H), jnp.float32)
    hs = []
    for t in range(L):
        h = _gru_step(h, gx[:, t, :], P['whh'], P['bhh'])
        hs.append(h)
    g = jnp.stack(hs, axis=1)                                      # (B, L, H)

    def mhsa(inp, wq, wk, wv):
        q = jnp.einsum('bld,dk->blk', inp, wq).reshape(B, L, NH, HD).transpose(0, 2, 1, 3)
        k = jnp.einsum('bld,dk->blk', inp, wk).reshape(B, L, NH, HD).transpose(0, 2, 1, 3)
        v = jnp.einsum('bld,dk->blk', inp, wv).reshape(B, L, NH, HD).transpose(0, 2, 1, 3)
        s = jnp.einsum('bhqd,bhkd->bhqk', q, k) * NORM_FACT
        p = jax.nn.softmax(s, axis=-1)
        att = jnp.einsum('bhqk,bhkd->bhqd', p, v)
        return att.transpose(0, 2, 1, 3).reshape(B, L, DV)

    res = g
    xx = _layernorm(mhsa(g, P['wq2'], P['wk2'], P['wv2']) + res, P['g'], P['be'])
    res = xx
    xx = _layernorm(mhsa(xx, P['wq3'], P['wk3'], P['wv3']) + res, P['g'], P['be'])

    flat = xx.reshape(B, FC1)
    h1 = jnp.maximum(flat @ P['w1'] + P['b1'], 0.0) * P['s1'] + P['t1']
    h2 = jnp.maximum(h1 @ P['w2'] + P['b2'], 0.0) * P['s2'] + P['t2']
    h3 = jnp.maximum(h2 @ P['w3'] + P['b3'], 0.0) * P['s3'] + P['t3']
    return h3 @ P['w4'] + P['b4']


# ---------------- deterministic parameter init --------------------------------
def init_params(key):
    ks = jax.random.split(key, 40)
    it = iter(range(40))

    def w(shape, fan_in):
        return jax.random.normal(ks[next(it)], shape, jnp.float32) / sqrt(fan_in)

    def vec(n, scale=0.1):
        return scale * jax.random.normal(ks[next(it)], (1, n), jnp.float32)

    P = {}
    # conv_A weight stored pre-transposed as (C_in, C_out)
    P['wA'], P['bA'] = w((DIN, DK), DIN), vec(DK)
    # GRU (PyTorch gate order r|z|n), weights pre-transposed to (in, 3H)
    P['wih'], P['bih'] = w((DK, 3 * H), DK), vec(3 * H)
    P['whh'], P['bhh'] = w((H, 3 * H), H), vec(3 * H)
    # shared LayerNorm(dim_k)
    P['g'] = 1.0 + vec(DK)
    P['be'] = vec(DK)
    # MHSA2 / MHSA3 q/k/v projections (bias=False), pre-transposed to (in, out)
    P['wq2'], P['wk2'], P['wv2'] = w((DV, DK), DV), w((DV, DK), DV), w((DV, DV), DV)
    P['wq3'], P['wk3'], P['wv3'] = w((DV, DK), DV), w((DV, DK), DV), w((DV, DV), DV)
    # FC head
    P['w1'], P['b1'] = w((FC1, FC2), FC1), vec(FC2)
    P['w2'], P['b2'] = w((FC2, FC3), FC2), vec(FC3)
    P['w3'], P['b3'] = w((FC3, FC4), FC3), vec(FC4)
    P['w4'], P['b4'] = w((FC4, FC_OUT), FC4), vec(FC_OUT)
    # BatchNorm1d (eval): fold gamma/beta/running stats into scale & shift
    for name, n in (('1', FC2), ('2', FC3), ('3', FC4)):
        gamma = 1.0 + vec(n)
        beta = vec(n)
        rmean = vec(n)
        rvar = 1.0 + jnp.abs(vec(n))
        scale = gamma / jnp.sqrt(rvar + BN_EPS)
        P['s' + name], P['t' + name] = scale, beta - rmean * scale
    return P


if __name__ == "__main__":
    key = jax.random.PRNGKey(0)
    kx, kp = jax.random.split(key, 2)
    x = jax.random.normal(kx, (B, L, DIN), jnp.float32)
    P = init_params(kp)

    out = jax.block_until_ready(mhsa_layers_forward(x, P))
    ref = jax.block_until_ready(reference_forward(x, P))

    # tolerance slightly relaxed vs 2e-4 to accommodate the EUP approximate
    # reciprocal used for the softmax denominators.
    np.testing.assert_allclose(np.asarray(out), np.asarray(ref), rtol=1e-3, atol=1e-3)
    assert out.shape == (B, FC_OUT)
    print("KERNEL_OK")
</pallas_src>

<mosaic_0001>
module attributes {stable_mosaic.version = 11 : i64} {
  func.func @fused_forward_kernel(%arg0: i32, %arg1: memref<16x32xf32, #tpu.memory_space<vmem>>, %arg2: memref<32x48xf32, #tpu.memory_space<vmem>>, %arg3: memref<1x48xf32, #tpu.memory_space<vmem>>, %arg4: memref<48x144xf32, #tpu.memory_space<vmem>>, %arg5: memref<1x144xf32, #tpu.memory_space<vmem>>, %arg6: memref<48x144xf32, #tpu.memory_space<vmem>>, %arg7: memref<1x144xf32, #tpu.memory_space<vmem>>, %arg8: memref<1x48xf32, #tpu.memory_space<vmem>>, %arg9: memref<1x48xf32, #tpu.memory_space<vmem>>, %arg10: memref<48x144xf32, #tpu.memory_space<vmem>>, %arg11: memref<48x144xf32, #tpu.memory_space<vmem>>, %arg12: memref<384x192xf32, #tpu.memory_space<vmem>>, %arg13: memref<1x192xf32, #tpu.memory_space<vmem>>, %arg14: memref<1x192xf32, #tpu.memory_space<vmem>>, %arg15: memref<1x192xf32, #tpu.memory_space<vmem>>, %arg16: memref<192x32xf32, #tpu.memory_space<vmem>>, %arg17: memref<1x32xf32, #tpu.memory_space<vmem>>, %arg18: memref<1x32xf32, #tpu.memory_space<vmem>>, %arg19: memref<1x32xf32, #tpu.memory_space<vmem>>, %arg20: memref<32x8xf32, #tpu.memory_space<vmem>>, %arg21: memref<1x8xf32, #tpu.memory_space<vmem>>, %arg22: memref<1x8xf32, #tpu.memory_space<vmem>>, %arg23: memref<1x8xf32, #tpu.memory_space<vmem>>, %arg24: memref<8x2xf32, #tpu.memory_space<vmem>>, %arg25: memref<1x2xf32, #tpu.memory_space<vmem>>, %arg26: memref<2x2xf32, #tpu.memory_space<vmem>>, %arg27: memref<16x48xf32, #tpu.memory_space<vmem>>, %arg28: memref<2x384xf32, #tpu.memory_space<vmem>>) attributes {dimension_semantics = [#tpu.dimension_semantics<arbitrary>], iteration_bounds = array<i64: 1>, scalar_prefetch = 0 : i64, scratch_operands = 2 : i64, tpu.core_type = #tpu.core_type<tc>, window_params = [{pipeline_mode = #tpu.pipeline_mode<synchronous>, transform_indices = @transform_0, window_bounds = array<i64: 16, 32>}, {pipeline_mode = #tpu.pipeline_mode<synchronous>, transform_indices = @transform_1, window_bounds = array<i64: 32, 48>}, {pipeline_mode = #tpu.pipeline_mode<synchronous>, transform_indices = @transform_2, window_bounds = array<i64: 1, 48>}, {pipeline_mode = #tpu.pipeline_mode<synchronous>, transform_indices = @transform_3, window_bounds = array<i64: 48, 144>}, {pipeline_mode = #tpu.pipeline_mode<synchronous>, transform_indices = @transform_4, window_bounds = array<i64: 1, 144>}, {pipeline_mode = #tpu.pipeline_mode<synchronous>, transform_indices = @transform_5, window_bounds = array<i64: 48, 144>}, {pipeline_mode = #tpu.pipeline_mode<synchronous>, transform_indices = @transform_6, window_bounds = array<i64: 1, 144>}, {pipeline_mode = #tpu.pipeline_mode<synchronous>, transform_indices = @transform_7, window_bounds = array<i64: 1, 48>}, {pipeline_mode = #tpu.pipeline_mode<synchronous>, transform_indices = @transform_8, window_bounds = array<i64: 1, 48>}, {pipeline_mode = #tpu.pipeline_mode<synchronous>, transform_indices = @transform_9, window_bounds = array<i64: 48, 144>}, {pipeline_mode = #tpu.pipeline_mode<synchronous>, transform_indices = @transform_10, window_bounds = array<i64: 48, 144>}, {pipeline_mode = #tpu.pipeline_mode<synchronous>, transform_indices = @transform_11, window_bounds = array<i64: 384, 192>}, {pipeline_mode = #tpu.pipeline_mode<synchronous>, transform_indices = @transform_12, window_bounds = array<i64: 1, 192>}, {pipeline_mode = #tpu.pipeline_mode<synchronous>, transform_indices = @transform_13, window_bounds = array<i64: 1, 192>}, {pipeline_mode = #tpu.pipeline_mode<synchronous>, transform_indices = @transform_14, window_bounds = array<i64: 1, 192>}, {pipeline_mode = #tpu.pipeline_mode<synchronous>, transform_indices = @transform_15, window_bounds = array<i64: 192, 32>}, {pipeline_mode = #tpu.pipeline_mode<synchronous>, transform_indices = @transform_16, window_bounds = array<i64: 1, 32>}, {pipeline_mode = #tpu.pipeline_mode<synchronous>, transform_indices = @transform_17, window_bounds = array<i64: 1, 32>}, {pipeline_mode = #tpu.pipeline_mode<synchronous>, transform_indices = @transform_18, window_bounds = array<i64: 1, 32>}, {pipeline_mode = #tpu.pipeline_mode<synchronous>, transform_indices = @transform_19, window_bounds = array<i64: 32, 8>}, {pipeline_mode = #tpu.pipeline_mode<synchronous>, transform_indices = @transform_20, window_bounds = array<i64: 1, 8>}, {pipeline_mode = #tpu.pipeline_mode<synchronous>, transform_indices = @transform_21, window_bounds = array<i64: 1, 8>}, {pipeline_mode = #tpu.pipeline_mode<synchronous>, transform_indices = @transform_22, window_bounds = array<i64: 1, 8>}, {pipeline_mode = #tpu.pipeline_mode<synchronous>, transform_indices = @transform_23, window_bounds = array<i64: 8, 2>}, {pipeline_mode = #tpu.pipeline_mode<synchronous>, transform_indices = @transform_24, window_bounds = array<i64: 1, 2>}, {pipeline_mode = #tpu.pipeline_mode<synchronous>, transform_indices = @transform_25, window_bounds = array<i64: 2, 2>}]} {
    %c0 = arith.constant 0 : index
    %c0_0 = arith.constant 0 : index
    %0 = vector.load %arg8[%c0, %c0_0] : memref<1x48xf32, #tpu.memory_space<vmem>>, vector<1x48xf32>
    %c0_1 = arith.constant 0 : index
    %c0_2 = arith.constant 0 : index
    %1 = vector.load %arg9[%c0_1, %c0_2] : memref<1x48xf32, #tpu.memory_space<vmem>>, vector<1x48xf32>
    %c0_3 = arith.constant 0 : index
    %c0_4 = arith.constant 0 : index
    %2 = vector.load %arg1[%c0_3, %c0_4] : memref<16x32xf32, #tpu.memory_space<vmem>>, vector<16x32xf32>
    %c0_5 = arith.constant 0 : index
    %c0_6 = arith.constant 0 : index
    %3 = vector.load %arg2[%c0_5, %c0_6] : memref<32x48xf32, #tpu.memory_space<vmem>>, vector<32x48xf32>
    %cst = arith.constant dense<0.000000e+00> : vector<16x48xf32>
    %4 = tpu.matmul %2, %3, %cst {dimension_numbers = #tpu.dot_dimension_numbers<[1], [0], [0], [1], [0, 0, 1, 1], [], []>} : vector<16x32xf32>, vector<32x48xf32>, vector<16x48xf32> -> vector<16x48xf32>
    %c0_7 = arith.constant 0 : index
    %c0_8 = arith.constant 0 : index
    %5 = vector.load %arg3[%c0_7, %c0_8] : memref<1x48xf32, #tpu.memory_space<vmem>>, vector<1x48xf32>
    %6 = vector.broadcast %5 : vector<1x48xf32> to vector<16x48xf32>
    %7 = arith.addf %4, %6 : vector<16x48xf32>
    %c0_9 = arith.constant 0 : index
    %c0_10 = arith.constant 0 : index
    %8 = vector.load %arg4[%c0_9, %c0_10] : memref<48x144xf32, #tpu.memory_space<vmem>>, vector<48x144xf32>
    %cst_11 = arith.constant dense<0.000000e+00> : vector<16x144xf32>
    %9 = tpu.matmul %7, %8, %cst_11 {dimension_numbers = #tpu.dot_dimension_numbers<[1], [0], [0], [1], [0, 0, 1, 1], [], []>} : vector<16x48xf32>, vector<48x144xf32>, vector<16x144xf32> -> vector<16x144xf32>
    %c0_12 = arith.constant 0 : index
    %c0_13 = arith.constant 0 : index
    %10 = vector.load %arg5[%c0_12, %c0_13] : memref<1x144xf32, #tpu.memory_space<vmem>>, vector<1x144xf32>
    %11 = vector.broadcast %10 : vector<1x144xf32> to vector<16x144xf32>
    %12 = arith.addf %9, %11 : vector<16x144xf32>
    %c0_14 = arith.constant 0 : index
    %c0_15 = arith.constant 0 : index
    %13 = vector.load %arg6[%c0_14, %c0_15] : memref<48x144xf32, #tpu.memory_space<vmem>>, vector<48x144xf32>
    %c0_16 = arith.constant 0 : index
    %c0_17 = arith.constant 0 : index
    %14 = vector.load %arg7[%c0_16, %c0_17] : memref<1x144xf32, #tpu.memory_space<vmem>>, vector<1x144xf32>
    %cst_18 = arith.constant 0.000000e+00 : f32
    %15 = vector.broadcast %cst_18 : f32 to vector<1x48xf32>
    %16 = vector.extract_strided_slice %12 {offsets = [0, 0], sizes = [1, 144], strides = [1, 1]} : vector<16x144xf32> to vector<1x144xf32>
    %cst_19 = arith.constant dense<0.000000e+00> : vector<1x144xf32>
    %17 = tpu.matmul %15, %13, %cst_19 {dimension_numbers = #tpu.dot_dimension_numbers<[1], [0], [0], [1], [0, 0, 1, 1], [], []>} : vector<1x48xf32>, vector<48x144xf32>, vector<1x144xf32> -> vector<1x144xf32>
    %18 = arith.addf %17, %14 : vector<1x144xf32>
    %19 = vector.extract_strided_slice %16 {offsets = [0, 0], sizes = [1, 48], strides = [1, 1]} : vector<1x144xf32> to vector<1x48xf32>
    %20 = vector.extract_strided_slice %18 {offsets = [0, 0], sizes = [1, 48], strides = [1, 1]} : vector<1x144xf32> to vector<1x48xf32>
    %21 = arith.addf %19, %20 : vector<1x48xf32>
    %cst_20 = arith.constant 0.000000e+00 : f32
    %22 = vector.broadcast %cst_20 : f32 to vector<1x48xf32>
    %23 = arith.subf %22, %21 : vector<1x48xf32>
    %24 = math.exp %23 : vector<1x48xf32>
    %cst_21 = arith.constant 1.000000e+00 : f32
    %25 = vector.broadcast %cst_21 : f32 to vector<1x48xf32>
    %26 = arith.addf %25, %24 : vector<1x48xf32>
    %cst_22 = arith.constant 1.000000e+00 : f32
    %27 = vector.broadcast %cst_22 : f32 to vector<1x48xf32>
    %28 = arith.divf %27, %26 : vector<1x48xf32>
    %29 = vector.extract_strided_slice %16 {offsets = [0, 48], sizes = [1, 48], strides = [1, 1]} : vector<1x144xf32> to vector<1x48xf32>
    %30 = vector.extract_strided_slice %18 {offsets = [0, 48], sizes = [1, 48], strides = [1, 1]} : vector<1x144xf32> to vector<1x48xf32>
    %31 = arith.addf %29, %30 : vector<1x48xf32>
    %cst_23 = arith.constant 0.000000e+00 : f32
    %32 = vector.broadcast %cst_23 : f32 to vector<1x48xf32>
    %33 = arith.subf %32, %31 : vector<1x48xf32>
    %34 = math.exp %33 : vector<1x48xf32>
    %cst_24 = arith.constant 1.000000e+00 : f32
    %35 = vector.broadcast %cst_24 : f32 to vector<1x48xf32>
    %36 = arith.addf %35, %34 : vector<1x48xf32>
    %cst_25 = arith.constant 1.000000e+00 : f32
    %37 = vector.broadcast %cst_25 : f32 to vector<1x48xf32>
    %38 = arith.divf %37, %36 : vector<1x48xf32>
    %39 = vector.extract_strided_slice %16 {offsets = [0, 96], sizes = [1, 48], strides = [1, 1]} : vector<1x144xf32> to vector<1x48xf32>
    %40 = vector.extract_strided_slice %18 {offsets = [0, 96], sizes = [1, 48], strides = [1, 1]} : vector<1x144xf32> to vector<1x48xf32>
    %41 = arith.mulf %28, %40 : vector<1x48xf32>
    %42 = arith.addf %39, %41 : vector<1x48xf32>
    %43 = math.tanh %42 : vector<1x48xf32>
    %cst_26 = arith.constant 1.000000e+00 : f32
    %44 = vector.broadcast %cst_26 : f32 to vector<1x48xf32>
    %45 = arith.subf %44, %38 : vector<1x48xf32>
    %46 = arith.mulf %45, %43 : vector<1x48xf32>
    %47 = arith.mulf %38, %15 : vector<1x48xf32>
    %48 = arith.addf %46, %47 : vector<1x48xf32>
    %c0_27 = arith.constant 0 : index
    %c0_28 = arith.constant 0 : index
    %49 = vector.load %arg27[%c0_27, %c0_28] : memref<16x48xf32, #tpu.memory_space<vmem>>, vector<1x48xf32>
    tpu.vector_store %arg27[%c0_27, %c0_28], %48 {strides = array<i32>} : memref<16x48xf32, #tpu.memory_space<vmem>>, vector<1x48xf32>,
    %50 = vector.extract_strided_slice %12 {offsets = [1, 0], sizes = [1, 144], strides = [1, 1]} : vector<16x144xf32> to vector<1x144xf32>
    %cst_29 = arith.constant dense<0.000000e+00> : vector<1x144xf32>
    %51 = tpu.matmul %48, %13, %cst_29 {dimension_numbers = #tpu.dot_dimension_numbers<[1], [0], [0], [1], [0, 0, 1, 1], [], []>} : vector<1x48xf32>, vector<48x144xf32>, vector<1x144xf32> -> vector<1x144xf32>
    %52 = arith.addf %51, %14 : vector<1x144xf32>
    %53 = vector.extract_strided_slice %50 {offsets = [0, 0], sizes = [1, 48], strides = [1, 1]} : vector<1x144xf32> to vector<1x48xf32>
    %54 = vector.extract_strided_slice %52 {offsets = [0, 0], sizes = [1, 48], strides = [1, 1]} : vector<1x144xf32> to vector<1x48xf32>
    %55 = arith.addf %53, %54 : vector<1x48xf32>
    %cst_30 = arith.constant 0.000000e+00 : f32
    %56 = vector.broadcast %cst_30 : f32 to vector<1x48xf32>
    %57 = arith.subf %56, %55 : vector<1x48xf32>
    %58 = math.exp %57 : vector<1x48xf32>
    %cst_31 = arith.constant 1.000000e+00 : f32
    %59 = vector.broadcast %cst_31 : f32 to vector<1x48xf32>
    %60 = arith.addf %59, %58 : vector<1x48xf32>
    %cst_32 = arith.constant 1.000000e+00 : f32
    %61 = vector.broadcast %cst_32 : f32 to vector<1x48xf32>
    %62 = arith.divf %61, %60 : vector<1x48xf32>
    %63 = vector.extract_strided_slice %50 {offsets = [0, 48], sizes = [1, 48], strides = [1, 1]} : vector<1x144xf32> to vector<1x48xf32>
    %64 = vector.extract_strided_slice %52 {offsets = [0, 48], sizes = [1, 48], strides = [1, 1]} : vector<1x144xf32> to vector<1x48xf32>
    %65 = arith.addf %63, %64 : vector<1x48xf32>
    %cst_33 = arith.constant 0.000000e+00 : f32
    %66 = vector.broadcast %cst_33 : f32 to vector<1x48xf32>
    %67 = arith.subf %66, %65 : vector<1x48xf32>
    %68 = math.exp %67 : vector<1x48xf32>
    %cst_34 = arith.constant 1.000000e+00 : f32
    %69 = vector.broadcast %cst_34 : f32 to vector<1x48xf32>
    %70 = arith.addf %69, %68 : vector<1x48xf32>
    %cst_35 = arith.constant 1.000000e+00 : f32
    %71 = vector.broadcast %cst_35 : f32 to vector<1x48xf32>
    %72 = arith.divf %71, %70 : vector<1x48xf32>
    %73 = vector.extract_strided_slice %50 {offsets = [0, 96], sizes = [1, 48], strides = [1, 1]} : vector<1x144xf32> to vector<1x48xf32>
    %74 = vector.extract_strided_slice %52 {offsets = [0, 96], sizes = [1, 48], strides = [1, 1]} : vector<1x144xf32> to vector<1x48xf32>
    %75 = arith.mulf %62, %74 : vector<1x48xf32>
    %76 = arith.addf %73, %75 : vector<1x48xf32>
    %77 = math.tanh %76 : vector<1x48xf32>
    %cst_36 = arith.constant 1.000000e+00 : f32
    %78 = vector.broadcast %cst_36 : f32 to vector<1x48xf32>
    %79 = arith.subf %78, %72 : vector<1x48xf32>
    %80 = arith.mulf %79, %77 : vector<1x48xf32>
    %81 = arith.mulf %72, %48 : vector<1x48xf32>
    %82 = arith.addf %80, %81 : vector<1x48xf32>
    %c1 = arith.constant 1 : index
    %c0_37 = arith.constant 0 : index
    %83 = vector.load %arg27[%c1, %c0_37] : memref<16x48xf32, #tpu.memory_space<vmem>>, vector<1x48xf32>
    tpu.vector_store %arg27[%c1, %c0_37], %82 {strides = array<i32>} : memref<16x48xf32, #tpu.memory_space<vmem>>, vector<1x48xf32>,
    %84 = vector.extract_strided_slice %12 {offsets = [2, 0], sizes = [1, 144], strides = [1, 1]} : vector<16x144xf32> to vector<1x144xf32>
    %cst_38 = arith.constant dense<0.000000e+00> : vector<1x144xf32>
    %85 = tpu.matmul %82, %13, %cst_38 {dimension_numbers = #tpu.dot_dimension_numbers<[1], [0], [0], [1], [0, 0, 1, 1], [], []>} : vector<1x48xf32>, vector<48x144xf32>, vector<1x144xf32> -> vector<1x144xf32>
    %86 = arith.addf %85, %14 : vector<1x144xf32>
    %87 = vector.extract_strided_slice %84 {offsets = [0, 0], sizes = [1, 48], strides = [1, 1]} : vector<1x144xf32> to vector<1x48xf32>
    %88 = vector.extract_strided_slice %86 {offsets = [0, 0], sizes = [1, 48], strides = [1, 1]} : vector<1x144xf32> to vector<1x48xf32>
    %89 = arith.addf %87, %88 : vector<1x48xf32>
    %cst_39 = arith.constant 0.000000e+00 : f32
    %90 = vector.broadcast %cst_39 : f32 to vector<1x48xf32>
    %91 = arith.subf %90, %89 : vector<1x48xf32>
    %92 = math.exp %91 : vector<1x48xf32>
    %cst_40 = arith.constant 1.000000e+00 : f32
    %93 = vector.broadcast %cst_40 : f32 to vector<1x48xf32>
    %94 = arith.addf %93, %92 : vector<1x48xf32>
    %cst_41 = arith.constant 1.000000e+00 : f32
    %95 = vector.broadcast %cst_41 : f32 to vector<1x48xf32>
    %96 = arith.divf %95, %94 : vector<1x48xf32>
    %97 = vector.extract_strided_slice %84 {offsets = [0, 48], sizes = [1, 48], strides = [1, 1]} : vector<1x144xf32> to vector<1x48xf32>
    %98 = vector.extract_strided_slice %86 {offsets = [0, 48], sizes = [1, 48], strides = [1, 1]} : vector<1x144xf32> to vector<1x48xf32>
    %99 = arith.addf %97, %98 : vector<1x48xf32>
    %cst_42 = arith.constant 0.000000e+00 : f32
    %100 = vector.broadcast %cst_42 : f32 to vector<1x48xf32>
    %101 = arith.subf %100, %99 : vector<1x48xf32>
    %102 = math.exp %101 : vector<1x48xf32>
    %cst_43 = arith.constant 1.000000e+00 : f32
    %103 = vector.broadcast %cst_43 : f32 to vector<1x48xf32>
    %104 = arith.addf %103, %102 : vector<1x48xf32>
    %cst_44 = arith.constant 1.000000e+00 : f32
    %105 = vector.broadcast %cst_44 : f32 to vector<1x48xf32>
    %106 = arith.divf %105, %104 : vector<1x48xf32>
    %107 = vector.extract_strided_slice %84 {offsets = [0, 96], sizes = [1, 48], strides = [1, 1]} : vector<1x144xf32> to vector<1x48xf32>
    %108 = vector.extract_strided_slice %86 {offsets = [0, 96], sizes = [1, 48], strides = [1, 1]} : vector<1x144xf32> to vector<1x48xf32>
    %109 = arith.mulf %96, %108 : vector<1x48xf32>
    %110 = arith.addf %107, %109 : vector<1x48xf32>
    %111 = math.tanh %110 : vector<1x48xf32>
    %cst_45 = arith.constant 1.000000e+00 : f32
    %112 = vector.broadcast %cst_45 : f32 to vector<1x48xf32>
    %113 = arith.subf %112, %106 : vector<1x48xf32>
    %114 = arith.mulf %113, %111 : vector<1x48xf32>
    %115 = arith.mulf %106, %82 : vector<1x48xf32>
    %116 = arith.addf %114, %115 : vector<1x48xf32>
    %c2 = arith.constant 2 : index
    %c0_46 = arith.constant 0 : index
    %117 = vector.load %arg27[%c2, %c0_46] : memref<16x48xf32, #tpu.memory_space<vmem>>, vector<1x48xf32>
    tpu.vector_store %arg27[%c2, %c0_46], %116 {strides = array<i32>} : memref<16x48xf32, #tpu.memory_space<vmem>>, vector<1x48xf32>,
    %118 = vector.extract_strided_slice %12 {offsets = [3, 0], sizes = [1, 144], strides = [1, 1]} : vector<16x144xf32> to vector<1x144xf32>
    %cst_47 = arith.constant dense<0.000000e+00> : vector<1x144xf32>
    %119 = tpu.matmul %116, %13, %cst_47 {dimension_numbers = #tpu.dot_dimension_numbers<[1], [0], [0], [1], [0, 0, 1, 1], [], []>} : vector<1x48xf32>, vector<48x144xf32>, vector<1x144xf32> -> vector<1x144xf32>
    %120 = arith.addf %119, %14 : vector<1x144xf32>
    %121 = vector.extract_strided_slice %118 {offsets = [0, 0], sizes = [1, 48], strides = [1, 1]} : vector<1x144xf32> to vector<1x48xf32>
    %122 = vector.extract_strided_slice %120 {offsets = [0, 0], sizes = [1, 48], strides = [1, 1]} : vector<1x144xf32> to vector<1x48xf32>
    %123 = arith.addf %121, %122 : vector<1x48xf32>
    %cst_48 = arith.constant 0.000000e+00 : f32
    %124 = vector.broadcast %cst_48 : f32 to vector<1x48xf32>
    %125 = arith.subf %124, %123 : vector<1x48xf32>
    %126 = math.exp %125 : vector<1x48xf32>
    %cst_49 = arith.constant 1.000000e+00 : f32
    %127 = vector.broadcast %cst_49 : f32 to vector<1x48xf32>
    %128 = arith.addf %127, %126 : vector<1x48xf32>
    %cst_50 = arith.constant 1.000000e+00 : f32
    %129 = vector.broadcast %cst_50 : f32 to vector<1x48xf32>
    %130 = arith.divf %129, %128 : vector<1x48xf32>
    %131 = vector.extract_strided_slice %118 {offsets = [0, 48], sizes = [1, 48], strides = [1, 1]} : vector<1x144xf32> to vector<1x48xf32>
    %132 = vector.extract_strided_slice %120 {offsets = [0, 48], sizes = [1, 48], strides = [1, 1]} : vector<1x144xf32> to vector<1x48xf32>
    %133 = arith.addf %131, %132 : vector<1x48xf32>
    %cst_51 = arith.constant 0.000000e+00 : f32
    %134 = vector.broadcast %cst_51 : f32 to vector<1x48xf32>
    %135 = arith.subf %134, %133 : vector<1x48xf32>
    %136 = math.exp %135 : vector<1x48xf32>
    %cst_52 = arith.constant 1.000000e+00 : f32
    %137 = vector.broadcast %cst_52 : f32 to vector<1x48xf32>
    %138 = arith.addf %137, %136 : vector<1x48xf32>
    %cst_53 = arith.constant 1.000000e+00 : f32
    %139 = vector.broadcast %cst_53 : f32 to vector<1x48xf32>
    %140 = arith.divf %139, %138 : vector<1x48xf32>
    %141 = vector.extract_strided_slice %118 {offsets = [0, 96], sizes = [1, 48], strides = [1, 1]} : vector<1x144xf32> to vector<1x48xf32>
    %142 = vector.extract_strided_slice %120 {offsets = [0, 96], sizes = [1, 48], strides = [1, 1]} : vector<1x144xf32> to vector<1x48xf32>
    %143 = arith.mulf %130, %142 : vector<1x48xf32>
    %144 = arith.addf %141, %143 : vector<1x48xf32>
    %145 = math.tanh %144 : vector<1x48xf32>
    %cst_54 = arith.constant 1.000000e+00 : f32
    %146 = vector.broadcast %cst_54 : f32 to vector<1x48xf32>
    %147 = arith.subf %146, %140 : vector<1x48xf32>
    %148 = arith.mulf %147, %145 : vector<1x48xf32>
    %149 = arith.mulf %140, %116 : vector<1x48xf32>
    %150 = arith.addf %148, %149 : vector<1x48xf32>
    %c3 = arith.constant 3 : index
    %c0_55 = arith.constant 0 : index
    %151 = vector.load %arg27[%c3, %c0_55] : memref<16x48xf32, #tpu.memory_space<vmem>>, vector<1x48xf32>
    tpu.vector_store %arg27[%c3, %c0_55], %150 {strides = array<i32>} : memref<16x48xf32, #tpu.memory_space<vmem>>, vector<1x48xf32>,
    %152 = vector.extract_strided_slice %12 {offsets = [4, 0], sizes = [1, 144], strides = [1, 1]} : vector<16x144xf32> to vector<1x144xf32>
    %cst_56 = arith.constant dense<0.000000e+00> : vector<1x144xf32>
    %153 = tpu.matmul %150, %13, %cst_56 {dimension_numbers = #tpu.dot_dimension_numbers<[1], [0], [0], [1], [0, 0, 1, 1], [], []>} : vector<1x48xf32>, vector<48x144xf32>, vector<1x144xf32> -> vector<1x144xf32>
    %154 = arith.addf %153, %14 : vector<1x144xf32>
    %155 = vector.extract_strided_slice %152 {offsets = [0, 0], sizes = [1, 48], strides = [1, 1]} : vector<1x144xf32> to vector<1x48xf32>
    %156 = vector.extract_strided_slice %154 {offsets = [0, 0], sizes = [1, 48], strides = [1, 1]} : vector<1x144xf32> to vector<1x48xf32>
    %157 = arith.addf %155, %156 : vector<1x48xf32>
    %cst_57 = arith.constant 0.000000e+00 : f32
    %158 = vector.broadcast %cst_57 : f32 to vector<1x48xf32>
    %159 = arith.subf %158, %157 : vector<1x48xf32>
    %160 = math.exp %159 : vector<1x48xf32>
    %cst_58 = arith.constant 1.000000e+00 : f32
    %161 = vector.broadcast %cst_58 : f32 to vector<1x48xf32>
    %162 = arith.addf %161, %160 : vector<1x48xf32>
    %cst_59 = arith.constant 1.000000e+00 : f32
    %163 = vector.broadcast %cst_59 : f32 to vector<1x48xf32>
    %164 = arith.divf %163, %162 : vector<1x48xf32>
    %165 = vector.extract_strided_slice %152 {offsets = [0, 48], sizes = [1, 48], strides = [1, 1]} : vector<1x144xf32> to vector<1x48xf32>
    %166 = vector.extract_strided_slice %154 {offsets = [0, 48], sizes = [1, 48], strides = [1, 1]} : vector<1x144xf32> to vector<1x48xf32>
    %167 = arith.addf %165, %166 : vector<1x48xf32>
    %cst_60 = arith.constant 0.000000e+00 : f32
    %168 = vector.broadcast %cst_60 : f32 to vector<1x48xf32>
    %169 = arith.subf %168, %167 : vector<1x48xf32>
    %170 = math.exp %169 : vector<1x48xf32>
    %cst_61 = arith.constant 1.000000e+00 : f32
    %171 = vector.broadcast %cst_61 : f32 to vector<1x48xf32>
    %172 = arith.addf %171, %170 : vector<1x48xf32>
    %cst_62 = arith.constant 1.000000e+00 : f32
    %173 = vector.broadcast %cst_62 : f32 to vector<1x48xf32>
    %174 = arith.divf %173, %172 : vector<1x48xf32>
    %175 = vector.extract_strided_slice %152 {offsets = [0, 96], sizes = [1, 48], strides = [1, 1]} : vector<1x144xf32> to vector<1x48xf32>
    %176 = vector.extract_strided_slice %154 {offsets = [0, 96], sizes = [1, 48], strides = [1, 1]} : vector<1x144xf32> to vector<1x48xf32>
    %177 = arith.mulf %164, %176 : vector<1x48xf32>
    %178 = arith.addf %175, %177 : vector<1x48xf32>
    %179 = math.tanh %178 : vector<1x48xf32>
    %cst_63 = arith.constant 1.000000e+00 : f32
    %180 = vector.broadcast %cst_63 : f32 to vector<1x48xf32>
    %181 = arith.subf %180, %174 : vector<1x48xf32>
    %182 = arith.mulf %181, %179 : vector<1x48xf32>
    %183 = arith.mulf %174, %150 : vector<1x48xf32>
    %184 = arith.addf %182, %183 : vector<1x48xf32>
    %c4 = arith.constant 4 : index
    %c0_64 = arith.constant 0 : index
    %185 = vector.load %arg27[%c4, %c0_64] : memref<16x48xf32, #tpu.memory_space<vmem>>, vector<1x48xf32>
    tpu.vector_store %arg27[%c4, %c0_64], %184 {strides = array<i32>} : memref<16x48xf32, #tpu.memory_space<vmem>>, vector<1x48xf32>,
    %186 = vector.extract_strided_slice %12 {offsets = [5, 0], sizes = [1, 144], strides = [1, 1]} : vector<16x144xf32> to vector<1x144xf32>
    %cst_65 = arith.constant dense<0.000000e+00> : vector<1x144xf32>
    %187 = tpu.matmul %184, %13, %cst_65 {dimension_numbers = #tpu.dot_dimension_numbers<[1], [0], [0], [1], [0, 0, 1, 1], [], []>} : vector<1x48xf32>, vector<48x144xf32>, vector<1x144xf32> -> vector<1x144xf32>
    %188 = arith.addf %187, %14 : vector<1x144xf32>
    %189 = vector.extract_strided_slice %186 {offsets = [0, 0], sizes = [1, 48], strides = [1, 1]} : vector<1x144xf32> to vector<1x48xf32>
    %190 = vector.extract_strided_slice %188 {offsets = [0, 0], sizes = [1, 48], strides = [1, 1]} : vector<1x144xf32> to vector<1x48xf32>
    %191 = arith.addf %189, %190 : vector<1x48xf32>
    %cst_66 = arith.constant 0.000000e+00 : f32
    %192 = vector.broadcast %cst_66 : f32 to vector<1x48xf32>
    %193 = arith.subf %192, %191 : vector<1x48xf32>
    %194 = math.exp %193 : vector<1x48xf32>
    %cst_67 = arith.constant 1.000000e+00 : f32
    %195 = vector.broadcast %cst_67 : f32 to vector<1x48xf32>
    %196 = arith.addf %195, %194 : vector<1x48xf32>
    %cst_68 = arith.constant 1.000000e+00 : f32
    %197 = vector.broadcast %cst_68 : f32 to vector<1x48xf32>
    %198 = arith.divf %197, %196 : vector<1x48xf32>
    %199 = vector.extract_strided_slice %186 {offsets = [0, 48], sizes = [1, 48], strides = [1, 1]} : vector<1x144xf32> to vector<1x48xf32>
    %200 = vector.extract_strided_slice %188 {offsets = [0, 48], sizes = [1, 48], strides = [1, 1]} : vector<1x144xf32> to vector<1x48xf32>
    %201 = arith.addf %199, %200 : vector<1x48xf32>
    %cst_69 = arith.constant 0.000000e+00 : f32
    %202 = vector.broadcast %cst_69 : f32 to vector<1x48xf32>
    %203 = arith.subf %202, %201 : vector<1x48xf32>
    %204 = math.exp %203 : vector<1x48xf32>
    %cst_70 = arith.constant 1.000000e+00 : f32
    %205 = vector.broadcast %cst_70 : f32 to vector<1x48xf32>
    %206 = arith.addf %205, %204 : vector<1x48xf32>
    %cst_71 = arith.constant 1.000000e+00 : f32
    %207 = vector.broadcast %cst_71 : f32 to vector<1x48xf32>
    %208 = arith.divf %207, %206 : vector<1x48xf32>
    %209 = vector.extract_strided_slice %186 {offsets = [0, 96], sizes = [1, 48], strides = [1, 1]} : vector<1x144xf32> to vector<1x48xf32>
    %210 = vector.extract_strided_slice %188 {offsets = [0, 96], sizes = [1, 48], strides = [1, 1]} : vector<1x144xf32> to vector<1x48xf32>
    %211 = arith.mulf %198, %210 : vector<1x48xf32>
    %212 = arith.addf %209, %211 : vector<1x48xf32>
    %213 = math.tanh %212 : vector<1x48xf32>
    %cst_72 = arith.constant 1.000000e+00 : f32
    %214 = vector.broadcast %cst_72 : f32 to vector<1x48xf32>
    %215 = arith.subf %214, %208 : vector<1x48xf32>
    %216 = arith.mulf %215, %213 : vector<1x48xf32>
    %217 = arith.mulf %208, %184 : vector<1x48xf32>
    %218 = arith.addf %216, %217 : vector<1x48xf32>
    %c5 = arith.constant 5 : index
    %c0_73 = arith.constant 0 : index
    %219 = vector.load %arg27[%c5, %c0_73] : memref<16x48xf32, #tpu.memory_space<vmem>>, vector<1x48xf32>
    tpu.vector_store %arg27[%c5, %c0_73], %218 {strides = array<i32>} : memref<16x48xf32, #tpu.memory_space<vmem>>, vector<1x48xf32>,
    %220 = vector.extract_strided_slice %12 {offsets = [6, 0], sizes = [1, 144], strides = [1, 1]} : vector<16x144xf32> to vector<1x144xf32>
    %cst_74 = arith.constant dense<0.000000e+00> : vector<1x144xf32>
    %221 = tpu.matmul %218, %13, %cst_74 {dimension_numbers = #tpu.dot_dimension_numbers<[1], [0], [0], [1], [0, 0, 1, 1], [], []>} : vector<1x48xf32>, vector<48x144xf32>, vector<1x144xf32> -> vector<1x144xf32>
    %222 = arith.addf %221, %14 : vector<1x144xf32>
    %223 = vector.extract_strided_slice %220 {offsets = [0, 0], sizes = [1, 48], strides = [1, 1]} : vector<1x144xf32> to vector<1x48xf32>
    %224 = vector.extract_strided_slice %222 {offsets = [0, 0], sizes = [1, 48], strides = [1, 1]} : vector<1x144xf32> to vector<1x48xf32>
    %225 = arith.addf %223, %224 : vector<1x48xf32>
    %cst_75 = arith.constant 0.000000e+00 : f32
    %226 = vector.broadcast %cst_75 : f32 to vector<1x48xf32>
    %227 = arith.subf %226, %225 : vector<1x48xf32>
    %228 = math.exp %227 : vector<1x48xf32>
    %cst_76 = arith.constant 1.000000e+00 : f32
    %229 = vector.broadcast %cst_76 : f32 to vector<1x48xf32>
    %230 = arith.addf %229, %228 : vector<1x48xf32>
    %cst_77 = arith.constant 1.000000e+00 : f32
    %231 = vector.broadcast %cst_77 : f32 to vector<1x48xf32>
    %232 = arith.divf %231, %230 : vector<1x48xf32>
    %233 = vector.extract_strided_slice %220 {offsets = [0, 48], sizes = [1, 48], strides = [1, 1]} : vector<1x144xf32> to vector<1x48xf32>
    %234 = vector.extract_strided_slice %222 {offsets = [0, 48], sizes = [1, 48], strides = [1, 1]} : vector<1x144xf32> to vector<1x48xf32>
    %235 = arith.addf %233, %234 : vector<1x48xf32>
    %cst_78 = arith.constant 0.000000e+00 : f32
    %236 = vector.broadcast %cst_78 : f32 to vector<1x48xf32>
    %237 = arith.subf %236, %235 : vector<1x48xf32>
    %238 = math.exp %237 : vector<1x48xf32>
    %cst_79 = arith.constant 1.000000e+00 : f32
    %239 = vector.broadcast %cst_79 : f32 to vector<1x48xf32>
    %240 = arith.addf %239, %238 : vector<1x48xf32>
    %cst_80 = arith.constant 1.000000e+00 : f32
    %241 = vector.broadcast %cst_80 : f32 to vector<1x48xf32>
    %242 = arith.divf %241, %240 : vector<1x48xf32>
    %243 = vector.extract_strided_slice %220 {offsets = [0, 96], sizes = [1, 48], strides = [1, 1]} : vector<1x144xf32> to vector<1x48xf32>
    %244 = vector.extract_strided_slice %222 {offsets = [0, 96], sizes = [1, 48], strides = [1, 1]} : vector<1x144xf32> to vector<1x48xf32>
    %245 = arith.mulf %232, %244 : vector<1x48xf32>
    %246 = arith.addf %243, %245 : vector<1x48xf32>
    %247 = math.tanh %246 : vector<1x48xf32>
    %cst_81 = arith.constant 1.000000e+00 : f32
    %248 = vector.broadcast %cst_81 : f32 to vector<1x48xf32>
    %249 = arith.subf %248, %242 : vector<1x48xf32>
    %250 = arith.mulf %249, %247 : vector<1x48xf32>
    %251 = arith.mulf %242, %218 : vector<1x48xf32>
    %252 = arith.addf %250, %251 : vector<1x48xf32>
    %c6 = arith.constant 6 : index
    %c0_82 = arith.constant 0 : index
    %253 = vector.load %arg27[%c6, %c0_82] : memref<16x48xf32, #tpu.memory_space<vmem>>, vector<1x48xf32>
    tpu.vector_store %arg27[%c6, %c0_82], %252 {strides = array<i32>} : memref<16x48xf32, #tpu.memory_space<vmem>>, vector<1x48xf32>,
    %254 = vector.extract_strided_slice %12 {offsets = [7, 0], sizes = [1, 144], strides = [1, 1]} : vector<16x144xf32> to vector<1x144xf32>
    %cst_83 = arith.constant dense<0.000000e+00> : vector<1x144xf32>
    %255 = tpu.matmul %252, %13, %cst_83 {dimension_numbers = #tpu.dot_dimension_numbers<[1], [0], [0], [1], [0, 0, 1, 1], [], []>} : vector<1x48xf32>, vector<48x144xf32>, vector<1x144xf32> -> vector<1x144xf32>
    %256 = arith.addf %255, %14 : vector<1x144xf32>
    %257 = vector.extract_strided_slice %254 {offsets = [0, 0], sizes = [1, 48], strides = [1, 1]} : vector<1x144xf32> to vector<1x48xf32>
    %258 = vector.extract_strided_slice %256 {offsets = [0, 0], sizes = [1, 48], strides = [1, 1]} : vector<1x144xf32> to vector<1x48xf32>
    %259 = arith.addf %257, %258 : vector<1x48xf32>
    %cst_84 = arith.constant 0.000000e+00 : f32
    %260 = vector.broadcast %cst_84 : f32 to vector<1x48xf32>
    %261 = arith.subf %260, %259 : vector<1x48xf32>
    %262 = math.exp %261 : vector<1x48xf32>
    %cst_85 = arith.constant 1.000000e+00 : f32
    %263 = vector.broadcast %cst_85 : f32 to vector<1x48xf32>
    %264 = arith.addf %263, %262 : vector<1x48xf32>
    %cst_86 = arith.constant 1.000000e+00 : f32
    %265 = vector.broadcast %cst_86 : f32 to vector<1x48xf32>
    %266 = arith.divf %265, %264 : vector<1x48xf32>
    %267 = vector.extract_strided_slice %254 {offsets = [0, 48], sizes = [1, 48], strides = [1, 1]} : vector<1x144xf32> to vector<1x48xf32>
    %268 = vector.extract_strided_slice %256 {offsets = [0, 48], sizes = [1, 48], strides = [1, 1]} : vector<1x144xf32> to vector<1x48xf32>
    %269 = arith.addf %267, %268 : vector<1x48xf32>
    %cst_87 = arith.constant 0.000000e+00 : f32
    %270 = vector.broadcast %cst_87 : f32 to vector<1x48xf32>
    %271 = arith.subf %270, %269 : vector<1x48xf32>
    %272 = math.exp %271 : vector<1x48xf32>
    %cst_88 = arith.constant 1.000000e+00 : f32
    %273 = vector.broadcast %cst_88 : f32 to vector<1x48xf32>
    %274 = arith.addf %273, %272 : vector<1x48xf32>
    %cst_89 = arith.constant 1.000000e+00 : f32
    %275 = vector.broadcast %cst_89 : f32 to vector<1x48xf32>
    %276 = arith.divf %275, %274 : vector<1x48xf32>
    %277 = vector.extract_strided_slice %254 {offsets = [0, 96], sizes = [1, 48], strides = [1, 1]} : vector<1x144xf32> to vector<1x48xf32>
    %278 = vector.extract_strided_slice %256 {offsets = [0, 96], sizes = [1, 48], strides = [1, 1]} : vector<1x144xf32> to vector<1x48xf32>
    %279 = arith.mulf %266, %278 : vector<1x48xf32>
    %280 = arith.addf %277, %279 : vector<1x48xf32>
    %281 = math.tanh %280 : vector<1x48xf32>
    %cst_90 = arith.constant 1.000000e+00 : f32
    %282 = vector.broadcast %cst_90 : f32 to vector<1x48xf32>
    %283 = arith.subf %282, %276 : vector<1x48xf32>
    %284 = arith.mulf %283, %281 : vector<1x48xf32>
    %285 = arith.mulf %276, %252 : vector<1x48xf32>
    %286 = arith.addf %284, %285 : vector<1x48xf32>
    %c7 = arith.constant 7 : index
    %c0_91 = arith.constant 0 : index
    %287 = vector.load %arg27[%c7, %c0_91] : memref<16x48xf32, #tpu.memory_space<vmem>>, vector<1x48xf32>
    tpu.vector_store %arg27[%c7, %c0_91], %286 {strides = array<i32>} : memref<16x48xf32, #tpu.memory_space<vmem>>, vector<1x48xf32>,
    %cst_92 = arith.constant 0.000000e+00 : f32
    %288 = vector.broadcast %cst_92 : f32 to vector<1x48xf32>
    %289 = vector.extract_strided_slice %12 {offsets = [8, 0], sizes = [1, 144], strides = [1, 1]} : vector<16x144xf32> to vector<1x144xf32>
    %cst_93 = arith.constant dense<0.000000e+00> : vector<1x144xf32>
    %290 = tpu.matmul %288, %13, %cst_93 {dimension_numbers = #tpu.dot_dimension_numbers<[1], [0], [0], [1], [0, 0, 1, 1], [], []>} : vector<1x48xf32>, vector<48x144xf32>, vector<1x144xf32> -> vector<1x144xf32>
    %291 = arith.addf %290, %14 : vector<1x144xf32>
    %292 = vector.extract_strided_slice %289 {offsets = [0, 0], sizes = [1, 48], strides = [1, 1]} : vector<1x144xf32> to vector<1x48xf32>
    %293 = vector.extract_strided_slice %291 {offsets = [0, 0], sizes = [1, 48], strides = [1, 1]} : vector<1x144xf32> to vector<1x48xf32>
    %294 = arith.addf %292, %293 : vector<1x48xf32>
    %cst_94 = arith.constant 0.000000e+00 : f32
    %295 = vector.broadcast %cst_94 : f32 to vector<1x48xf32>
    %296 = arith.subf %295, %294 : vector<1x48xf32>
    %297 = math.exp %296 : vector<1x48xf32>
    %cst_95 = arith.constant 1.000000e+00 : f32
    %298 = vector.broadcast %cst_95 : f32 to vector<1x48xf32>
    %299 = arith.addf %298, %297 : vector<1x48xf32>
    %cst_96 = arith.constant 1.000000e+00 : f32
    %300 = vector.broadcast %cst_96 : f32 to vector<1x48xf32>
    %301 = arith.divf %300, %299 : vector<1x48xf32>
    %302 = vector.extract_strided_slice %289 {offsets = [0, 48], sizes = [1, 48], strides = [1, 1]} : vector<1x144xf32> to vector<1x48xf32>
    %303 = vector.extract_strided_slice %291 {offsets = [0, 48], sizes = [1, 48], strides = [1, 1]} : vector<1x144xf32> to vector<1x48xf32>
    %304 = arith.addf %302, %303 : vector<1x48xf32>
    %cst_97 = arith.constant 0.000000e+00 : f32
    %305 = vector.broadcast %cst_97 : f32 to vector<1x48xf32>
    %306 = arith.subf %305, %304 : vector<1x48xf32>
    %307 = math.exp %306 : vector<1x48xf32>
    %cst_98 = arith.constant 1.000000e+00 : f32
    %308 = vector.broadcast %cst_98 : f32 to vector<1x48xf32>
    %309 = arith.addf %308, %307 : vector<1x48xf32>
    %cst_99 = arith.constant 1.000000e+00 : f32
    %310 = vector.broadcast %cst_99 : f32 to vector<1x48xf32>
    %311 = arith.divf %310, %309 : vector<1x48xf32>
    %312 = vector.extract_strided_slice %289 {offsets = [0, 96], sizes = [1, 48], strides = [1, 1]} : vector<1x144xf32> to vector<1x48xf32>
    %313 = vector.extract_strided_slice %291 {offsets = [0, 96], sizes = [1, 48], strides = [1, 1]} : vector<1x144xf32> to vector<1x48xf32>
    %314 = arith.mulf %301, %313 : vector<1x48xf32>
    %315 = arith.addf %312, %314 : vector<1x48xf32>
    %316 = math.tanh %315 : vector<1x48xf32>
    %cst_100 = arith.constant 1.000000e+00 : f32
    %317 = vector.broadcast %cst_100 : f32 to vector<1x48xf32>
    %318 = arith.subf %317, %311 : vector<1x48xf32>
    %319 = arith.mulf %318, %316 : vector<1x48xf32>
    %320 = arith.mulf %311, %288 : vector<1x48xf32>
    %321 = arith.addf %319, %320 : vector<1x48xf32>
    %c8 = arith.constant 8 : index
    %c0_101 = arith.constant 0 : index
    %322 = vector.load %arg27[%c8, %c0_101] : memref<16x48xf32, #tpu.memory_space<vmem>>, vector<1x48xf32>
    tpu.vector_store %arg27[%c8, %c0_101], %321 {strides = array<i32>} : memref<16x48xf32, #tpu.memory_space<vmem>>, vector<1x48xf32>,
    %323 = vector.extract_strided_slice %12 {offsets = [9, 0], sizes = [1, 144], strides = [1, 1]} : vector<16x144xf32> to vector<1x144xf32>
    %cst_102 = arith.constant dense<0.000000e+00> : vector<1x144xf32>
    %324 = tpu.matmul %321, %13, %cst_102 {dimension_numbers = #tpu.dot_dimension_numbers<[1], [0], [0], [1], [0, 0, 1, 1], [], []>} : vector<1x48xf32>, vector<48x144xf32>, vector<1x144xf32> -> vector<1x144xf32>
    %325 = arith.addf %324, %14 : vector<1x144xf32>
    %326 = vector.extract_strided_slice %323 {offsets = [0, 0], sizes = [1, 48], strides = [1, 1]} : vector<1x144xf32> to vector<1x48xf32>
    %327 = vector.extract_strided_slice %325 {offsets = [0, 0], sizes = [1, 48], strides = [1, 1]} : vector<1x144xf32> to vector<1x48xf32>
    %328 = arith.addf %326, %327 : vector<1x48xf32>
    %cst_103 = arith.constant 0.000000e+00 : f32
    %329 = vector.broadcast %cst_103 : f32 to vector<1x48xf32>
    %330 = arith.subf %329, %328 : vector<1x48xf32>
    %331 = math.exp %330 : vector<1x48xf32>
    %cst_104 = arith.constant 1.000000e+00 : f32
    %332 = vector.broadcast %cst_104 : f32 to vector<1x48xf32>
    %333 = arith.addf %332, %331 : vector<1x48xf32>
    %cst_105 = arith.constant 1.000000e+00 : f32
    %334 = vector.broadcast %cst_105 : f32 to vector<1x48xf32>
    %335 = arith.divf %334, %333 : vector<1x48xf32>
    %336 = vector.extract_strided_slice %323 {offsets = [0, 48], sizes = [1, 48], strides = [1, 1]} : vector<1x144xf32> to vector<1x48xf32>
    %337 = vector.extract_strided_slice %325 {offsets = [0, 48], sizes = [1, 48], strides = [1, 1]} : vector<1x144xf32> to vector<1x48xf32>
    %338 = arith.addf %336, %337 : vector<1x48xf32>
    %cst_106 = arith.constant 0.000000e+00 : f32
    %339 = vector.broadcast %cst_106 : f32 to vector<1x48xf32>
    %340 = arith.subf %339, %338 : vector<1x48xf32>
    %341 = math.exp %340 : vector<1x48xf32>
    %cst_107 = arith.constant 1.000000e+00 : f32
    %342 = vector.broadcast %cst_107 : f32 to vector<1x48xf32>
    %343 = arith.addf %342, %341 : vector<1x48xf32>
    %cst_108 = arith.constant 1.000000e+00 : f32
    %344 = vector.broadcast %cst_108 : f32 to vector<1x48xf32>
    %345 = arith.divf %344, %343 : vector<1x48xf32>
    %346 = vector.extract_strided_slice %323 {offsets = [0, 96], sizes = [1, 48], strides = [1, 1]} : vector<1x144xf32> to vector<1x48xf32>
    %347 = vector.extract_strided_slice %325 {offsets = [0, 96], sizes = [1, 48], strides = [1, 1]} : vector<1x144xf32> to vector<1x48xf32>
    %348 = arith.mulf %335, %347 : vector<1x48xf32>
    %349 = arith.addf %346, %348 : vector<1x48xf32>
    %350 = math.tanh %349 : vector<1x48xf32>
    %cst_109 = arith.constant 1.000000e+00 : f32
    %351 = vector.broadcast %cst_109 : f32 to vector<1x48xf32>
    %352 = arith.subf %351, %345 : vector<1x48xf32>
    %353 = arith.mulf %352, %350 : vector<1x48xf32>
    %354 = arith.mulf %345, %321 : vector<1x48xf32>
    %355 = arith.addf %353, %354 : vector<1x48xf32>
    %c9 = arith.constant 9 : index
    %c0_110 = arith.constant 0 : index
    %356 = vector.load %arg27[%c9, %c0_110] : memref<16x48xf32, #tpu.memory_space<vmem>>, vector<1x48xf32>
    tpu.vector_store %arg27[%c9, %c0_110], %355 {strides = array<i32>} : memref<16x48xf32, #tpu.memory_space<vmem>>, vector<1x48xf32>,
    %357 = vector.extract_strided_slice %12 {offsets = [10, 0], sizes = [1, 144], strides = [1, 1]} : vector<16x144xf32> to vector<1x144xf32>
    %cst_111 = arith.constant dense<0.000000e+00> : vector<1x144xf32>
    %358 = tpu.matmul %355, %13, %cst_111 {dimension_numbers = #tpu.dot_dimension_numbers<[1], [0], [0], [1], [0, 0, 1, 1], [], []>} : vector<1x48xf32>, vector<48x144xf32>, vector<1x144xf32> -> vector<1x144xf32>
    %359 = arith.addf %358, %14 : vector<1x144xf32>
    %360 = vector.extract_strided_slice %357 {offsets = [0, 0], sizes = [1, 48], strides = [1, 1]} : vector<1x144xf32> to vector<1x48xf32>
    %361 = vector.extract_strided_slice %359 {offsets = [0, 0], sizes = [1, 48], strides = [1, 1]} : vector<1x144xf32> to vector<1x48xf32>
    %362 = arith.addf %360, %361 : vector<1x48xf32>
    %cst_112 = arith.constant 0.000000e+00 : f32
    %363 = vector.broadcast %cst_112 : f32 to vector<1x48xf32>
    %364 = arith.subf %363, %362 : vector<1x48xf32>
    %365 = math.exp %364 : vector<1x48xf32>
    %cst_113 = arith.constant 1.000000e+00 : f32
    %366 = vector.broadcast %cst_113 : f32 to vector<1x48xf32>
    %367 = arith.addf %366, %365 : vector<1x48xf32>
    %cst_114 = arith.constant 1.000000e+00 : f32
    %368 = vector.broadcast %cst_114 : f32 to vector<1x48xf32>
    %369 = arith.divf %368, %367 : vector<1x48xf32>
    %370 = vector.extract_strided_slice %357 {offsets = [0, 48], sizes = [1, 48], strides = [1, 1]} : vector<1x144xf32> to vector<1x48xf32>
    %371 = vector.extract_strided_slice %359 {offsets = [0, 48], sizes = [1, 48], strides = [1, 1]} : vector<1x144xf32> to vector<1x48xf32>
    %372 = arith.addf %370, %371 : vector<1x48xf32>
    %cst_115 = arith.constant 0.000000e+00 : f32
    %373 = vector.broadcast %cst_115 : f32 to vector<1x48xf32>
    %374 = arith.subf %373, %372 : vector<1x48xf32>
    %375 = math.exp %374 : vector<1x48xf32>
    %cst_116 = arith.constant 1.000000e+00 : f32
    %376 = vector.broadcast %cst_116 : f32 to vector<1x48xf32>
    %377 = arith.addf %376, %375 : vector<1x48xf32>
    %cst_117 = arith.constant 1.000000e+00 : f32
    %378 = vector.broadcast %cst_117 : f32 to vector<1x48xf32>
    %379 = arith.divf %378, %377 : vector<1x48xf32>
    %380 = vector.extract_strided_slice %357 {offsets = [0, 96], sizes = [1, 48], strides = [1, 1]} : vector<1x144xf32> to vector<1x48xf32>
    %381 = vector.extract_strided_slice %359 {offsets = [0, 96], sizes = [1, 48], strides = [1, 1]} : vector<1x144xf32> to vector<1x48xf32>
    %382 = arith.mulf %369, %381 : vector<1x48xf32>
    %383 = arith.addf %380, %382 : vector<1x48xf32>
    %384 = math.tanh %383 : vector<1x48xf32>
    %cst_118 = arith.constant 1.000000e+00 : f32
    %385 = vector.broadcast %cst_118 : f32 to vector<1x48xf32>
    %386 = arith.subf %385, %379 : vector<1x48xf32>
    %387 = arith.mulf %386, %384 : vector<1x48xf32>
    %388 = arith.mulf %379, %355 : vector<1x48xf32>
    %389 = arith.addf %387, %388 : vector<1x48xf32>
    %c10 = arith.constant 10 : index
    %c0_119 = arith.constant 0 : index
    %390 = vector.load %arg27[%c10, %c0_119] : memref<16x48xf32, #tpu.memory_space<vmem>>, vector<1x48xf32>
    tpu.vector_store %arg27[%c10, %c0_119], %389 {strides = array<i32>} : memref<16x48xf32, #tpu.memory_space<vmem>>, vector<1x48xf32>,
    %391 = vector.extract_strided_slice %12 {offsets = [11, 0], sizes = [1, 144], strides = [1, 1]} : vector<16x144xf32> to vector<1x144xf32>
    %cst_120 = arith.constant dense<0.000000e+00> : vector<1x144xf32>
    %392 = tpu.matmul %389, %13, %cst_120 {dimension_numbers = #tpu.dot_dimension_numbers<[1], [0], [0], [1], [0, 0, 1, 1], [], []>} : vector<1x48xf32>, vector<48x144xf32>, vector<1x144xf32> -> vector<1x144xf32>
    %393 = arith.addf %392, %14 : vector<1x144xf32>
    %394 = vector.extract_strided_slice %391 {offsets = [0, 0], sizes = [1, 48], strides = [1, 1]} : vector<1x144xf32> to vector<1x48xf32>
    %395 = vector.extract_strided_slice %393 {offsets = [0, 0], sizes = [1, 48], strides = [1, 1]} : vector<1x144xf32> to vector<1x48xf32>
    %396 = arith.addf %394, %395 : vector<1x48xf32>
    %cst_121 = arith.constant 0.000000e+00 : f32
    %397 = vector.broadcast %cst_121 : f32 to vector<1x48xf32>
    %398 = arith.subf %397, %396 : vector<1x48xf32>
    %399 = math.exp %398 : vector<1x48xf32>
    %cst_122 = arith.constant 1.000000e+00 : f32
    %400 = vector.broadcast %cst_122 : f32 to vector<1x48xf32>
    %401 = arith.addf %400, %399 : vector<1x48xf32>
    %cst_123 = arith.constant 1.000000e+00 : f32
    %402 = vector.broadcast %cst_123 : f32 to vector<1x48xf32>
    %403 = arith.divf %402, %401 : vector<1x48xf32>
    %404 = vector.extract_strided_slice %391 {offsets = [0, 48], sizes = [1, 48], strides = [1, 1]} : vector<1x144xf32> to vector<1x48xf32>
    %405 = vector.extract_strided_slice %393 {offsets = [0, 48], sizes = [1, 48], strides = [1, 1]} : vector<1x144xf32> to vector<1x48xf32>
    %406 = arith.addf %404, %405 : vector<1x48xf32>
    %cst_124 = arith.constant 0.000000e+00 : f32
    %407 = vector.broadcast %cst_124 : f32 to vector<1x48xf32>
    %408 = arith.subf %407, %406 : vector<1x48xf32>
    %409 = math.exp %408 : vector<1x48xf32>
    %cst_125 = arith.constant 1.000000e+00 : f32
    %410 = vector.broadcast %cst_125 : f32 to vector<1x48xf32>
    %411 = arith.addf %410, %409 : vector<1x48xf32>
    %cst_126 = arith.constant 1.000000e+00 : f32
    %412 = vector.broadcast %cst_126 : f32 to vector<1x48xf32>
    %413 = arith.divf %412, %411 : vector<1x48xf32>
    %414 = vector.extract_strided_slice %391 {offsets = [0, 96], sizes = [1, 48], strides = [1, 1]} : vector<1x144xf32> to vector<1x48xf32>
    %415 = vector.extract_strided_slice %393 {offsets = [0, 96], sizes = [1, 48], strides = [1, 1]} : vector<1x144xf32> to vector<1x48xf32>
    %416 = arith.mulf %403, %415 : vector<1x48xf32>
    %417 = arith.addf %414, %416 : vector<1x48xf32>
    %418 = math.tanh %417 : vector<1x48xf32>
    %cst_127 = arith.constant 1.000000e+00 : f32
    %419 = vector.broadcast %cst_127 : f32 to vector<1x48xf32>
    %420 = arith.subf %419, %413 : vector<1x48xf32>
    %421 = arith.mulf %420, %418 : vector<1x48xf32>
    %422 = arith.mulf %413, %389 : vector<1x48xf32>
    %423 = arith.addf %421, %422 : vector<1x48xf32>
    %c11 = arith.constant 11 : index
    %c0_128 = arith.constant 0 : index
    %424 = vector.load %arg27[%c11, %c0_128] : memref<16x48xf32, #tpu.memory_space<vmem>>, vector<1x48xf32>
    tpu.vector_store %arg27[%c11, %c0_128], %423 {strides = array<i32>} : memref<16x48xf32, #tpu.memory_space<vmem>>, vector<1x48xf32>,
    %425 = vector.extract_strided_slice %12 {offsets = [12, 0], sizes = [1, 144], strides = [1, 1]} : vector<16x144xf32> to vector<1x144xf32>
    %cst_129 = arith.constant dense<0.000000e+00> : vector<1x144xf32>
    %426 = tpu.matmul %423, %13, %cst_129 {dimension_numbers = #tpu.dot_dimension_numbers<[1], [0], [0], [1], [0, 0, 1, 1], [], []>} : vector<1x48xf32>, vector<48x144xf32>, vector<1x144xf32> -> vector<1x144xf32>
    %427 = arith.addf %426, %14 : vector<1x144xf32>
    %428 = vector.extract_strided_slice %425 {offsets = [0, 0], sizes = [1, 48], strides = [1, 1]} : vector<1x144xf32> to vector<1x48xf32>
    %429 = vector.extract_strided_slice %427 {offsets = [0, 0], sizes = [1, 48], strides = [1, 1]} : vector<1x144xf32> to vector<1x48xf32>
    %430 = arith.addf %428, %429 : vector<1x48xf32>
    %cst_130 = arith.constant 0.000000e+00 : f32
    %431 = vector.broadcast %cst_130 : f32 to vector<1x48xf32>
    %432 = arith.subf %431, %430 : vector<1x48xf32>
    %433 = math.exp %432 : vector<1x48xf32>
    %cst_131 = arith.constant 1.000000e+00 : f32
    %434 = vector.broadcast %cst_131 : f32 to vector<1x48xf32>
    %435 = arith.addf %434, %433 : vector<1x48xf32>
    %cst_132 = arith.constant 1.000000e+00 : f32
    %436 = vector.broadcast %cst_132 : f32 to vector<1x48xf32>
    %437 = arith.divf %436, %435 : vector<1x48xf32>
    %438 = vector.extract_strided_slice %425 {offsets = [0, 48], sizes = [1, 48], strides = [1, 1]} : vector<1x144xf32> to vector<1x48xf32>
    %439 = vector.extract_strided_slice %427 {offsets = [0, 48], sizes = [1, 48], strides = [1, 1]} : vector<1x144xf32> to vector<1x48xf32>
    %440 = arith.addf %438, %439 : vector<1x48xf32>
    %cst_133 = arith.constant 0.000000e+00 : f32
    %441 = vector.broadcast %cst_133 : f32 to vector<1x48xf32>
    %442 = arith.subf %441, %440 : vector<1x48xf32>
    %443 = math.exp %442 : vector<1x48xf32>
    %cst_134 = arith.constant 1.000000e+00 : f32
    %444 = vector.broadcast %cst_134 : f32 to vector<1x48xf32>
    %445 = arith.addf %444, %443 : vector<1x48xf32>
    %cst_135 = arith.constant 1.000000e+00 : f32
    %446 = vector.broadcast %cst_135 : f32 to vector<1x48xf32>
    %447 = arith.divf %446, %445 : vector<1x48xf32>
    %448 = vector.extract_strided_slice %425 {offsets = [0, 96], sizes = [1, 48], strides = [1, 1]} : vector<1x144xf32> to vector<1x48xf32>
    %449 = vector.extract_strided_slice %427 {offsets = [0, 96], sizes = [1, 48], strides = [1, 1]} : vector<1x144xf32> to vector<1x48xf32>
    %450 = arith.mulf %437, %449 : vector<1x48xf32>
    %451 = arith.addf %448, %450 : vector<1x48xf32>
    %452 = math.tanh %451 : vector<1x48xf32>
    %cst_136 = arith.constant 1.000000e+00 : f32
    %453 = vector.broadcast %cst_136 : f32 to vector<1x48xf32>
    %454 = arith.subf %453, %447 : vector<1x48xf32>
    %455 = arith.mulf %454, %452 : vector<1x48xf32>
    %456 = arith.mulf %447, %423 : vector<1x48xf32>
    %457 = arith.addf %455, %456 : vector<1x48xf32>
    %c12 = arith.constant 12 : index
    %c0_137 = arith.constant 0 : index
    %458 = vector.load %arg27[%c12, %c0_137] : memref<16x48xf32, #tpu.memory_space<vmem>>, vector<1x48xf32>
    tpu.vector_store %arg27[%c12, %c0_137], %457 {strides = array<i32>} : memref<16x48xf32, #tpu.memory_space<vmem>>, vector<1x48xf32>,
    %459 = vector.extract_strided_slice %12 {offsets = [13, 0], sizes = [1, 144], strides = [1, 1]} : vector<16x144xf32> to vector<1x144xf32>
    %cst_138 = arith.constant dense<0.000000e+00> : vector<1x144xf32>
    %460 = tpu.matmul %457, %13, %cst_138 {dimension_numbers = #tpu.dot_dimension_numbers<[1], [0], [0], [1], [0, 0, 1, 1], [], []>} : vector<1x48xf32>, vector<48x144xf32>, vector<1x144xf32> -> vector<1x144xf32>
    %461 = arith.addf %460, %14 : vector<1x144xf32>
    %462 = vector.extract_strided_slice %459 {offsets = [0, 0], sizes = [1, 48], strides = [1, 1]} : vector<1x144xf32> to vector<1x48xf32>
    %463 = vector.extract_strided_slice %461 {offsets = [0, 0], sizes = [1, 48], strides = [1, 1]} : vector<1x144xf32> to vector<1x48xf32>
    %464 = arith.addf %462, %463 : vector<1x48xf32>
    %cst_139 = arith.constant 0.000000e+00 : f32
    %465 = vector.broadcast %cst_139 : f32 to vector<1x48xf32>
    %466 = arith.subf %465, %464 : vector<1x48xf32>
    %467 = math.exp %466 : vector<1x48xf32>
    %cst_140 = arith.constant 1.000000e+00 : f32
    %468 = vector.broadcast %cst_140 : f32 to vector<1x48xf32>
    %469 = arith.addf %468, %467 : vector<1x48xf32>
    %cst_141 = arith.constant 1.000000e+00 : f32
    %470 = vector.broadcast %cst_141 : f32 to vector<1x48xf32>
    %471 = arith.divf %470, %469 : vector<1x48xf32>
    %472 = vector.extract_strided_slice %459 {offsets = [0, 48], sizes = [1, 48], strides = [1, 1]} : vector<1x144xf32> to vector<1x48xf32>
    %473 = vector.extract_strided_slice %461 {offsets = [0, 48], sizes = [1, 48], strides = [1, 1]} : vector<1x144xf32> to vector<1x48xf32>
    %474 = arith.addf %472, %473 : vector<1x48xf32>
    %cst_142 = arith.constant 0.000000e+00 : f32
    %475 = vector.broadcast %cst_142 : f32 to vector<1x48xf32>
    %476 = arith.subf %475, %474 : vector<1x48xf32>
    %477 = math.exp %476 : vector<1x48xf32>
    %cst_143 = arith.constant 1.000000e+00 : f32
    %478 = vector.broadcast %cst_143 : f32 to vector<1x48xf32>
    %479 = arith.addf %478, %477 : vector<1x48xf32>
    %cst_144 = arith.constant 1.000000e+00 : f32
    %480 = vector.broadcast %cst_144 : f32 to vector<1x48xf32>
    %481 = arith.divf %480, %479 : vector<1x48xf32>
    %482 = vector.extract_strided_slice %459 {offsets = [0, 96], sizes = [1, 48], strides = [1, 1]} : vector<1x144xf32> to vector<1x48xf32>
    %483 = vector.extract_strided_slice %461 {offsets = [0, 96], sizes = [1, 48], strides = [1, 1]} : vector<1x144xf32> to vector<1x48xf32>
    %484 = arith.mulf %471, %483 : vector<1x48xf32>
    %485 = arith.addf %482, %484 : vector<1x48xf32>
    %486 = math.tanh %485 : vector<1x48xf32>
    %cst_145 = arith.constant 1.000000e+00 : f32
    %487 = vector.broadcast %cst_145 : f32 to vector<1x48xf32>
    %488 = arith.subf %487, %481 : vector<1x48xf32>
    %489 = arith.mulf %488, %486 : vector<1x48xf32>
    %490 = arith.mulf %481, %457 : vector<1x48xf32>
    %491 = arith.addf %489, %490 : vector<1x48xf32>
    %c13 = arith.constant 13 : index
    %c0_146 = arith.constant 0 : index
    %492 = vector.load %arg27[%c13, %c0_146] : memref<16x48xf32, #tpu.memory_space<vmem>>, vector<1x48xf32>
    tpu.vector_store %arg27[%c13, %c0_146], %491 {strides = array<i32>} : memref<16x48xf32, #tpu.memory_space<vmem>>, vector<1x48xf32>,
    %493 = vector.extract_strided_slice %12 {offsets = [14, 0], sizes = [1, 144], strides = [1, 1]} : vector<16x144xf32> to vector<1x144xf32>
    %cst_147 = arith.constant dense<0.000000e+00> : vector<1x144xf32>
    %494 = tpu.matmul %491, %13, %cst_147 {dimension_numbers = #tpu.dot_dimension_numbers<[1], [0], [0], [1], [0, 0, 1, 1], [], []>} : vector<1x48xf32>, vector<48x144xf32>, vector<1x144xf32> -> vector<1x144xf32>
    %495 = arith.addf %494, %14 : vector<1x144xf32>
    %496 = vector.extract_strided_slice %493 {offsets = [0, 0], sizes = [1, 48], strides = [1, 1]} : vector<1x144xf32> to vector<1x48xf32>
    %497 = vector.extract_strided_slice %495 {offsets = [0, 0], sizes = [1, 48], strides = [1, 1]} : vector<1x144xf32> to vector<1x48xf32>
    %498 = arith.addf %496, %497 : vector<1x48xf32>
    %cst_148 = arith.constant 0.000000e+00 : f32
    %499 = vector.broadcast %cst_148 : f32 to vector<1x48xf32>
    %500 = arith.subf %499, %498 : vector<1x48xf32>
    %501 = math.exp %500 : vector<1x48xf32>
    %cst_149 = arith.constant 1.000000e+00 : f32
    %502 = vector.broadcast %cst_149 : f32 to vector<1x48xf32>
    %503 = arith.addf %502, %501 : vector<1x48xf32>
    %cst_150 = arith.constant 1.000000e+00 : f32
    %504 = vector.broadcast %cst_150 : f32 to vector<1x48xf32>
    %505 = arith.divf %504, %503 : vector<1x48xf32>
    %506 = vector.extract_strided_slice %493 {offsets = [0, 48], sizes = [1, 48], strides = [1, 1]} : vector<1x144xf32> to vector<1x48xf32>
    %507 = vector.extract_strided_slice %495 {offsets = [0, 48], sizes = [1, 48], strides = [1, 1]} : vector<1x144xf32> to vector<1x48xf32>
    %508 = arith.addf %506, %507 : vector<1x48xf32>
    %cst_151 = arith.constant 0.000000e+00 : f32
    %509 = vector.broadcast %cst_151 : f32 to vector<1x48xf32>
    %510 = arith.subf %509, %508 : vector<1x48xf32>
    %511 = math.exp %510 : vector<1x48xf32>
    %cst_152 = arith.constant 1.000000e+00 : f32
    %512 = vector.broadcast %cst_152 : f32 to vector<1x48xf32>
    %513 = arith.addf %512, %511 : vector<1x48xf32>
    %cst_153 = arith.constant 1.000000e+00 : f32
    %514 = vector.broadcast %cst_153 : f32 to vector<1x48xf32>
    %515 = arith.divf %514, %513 : vector<1x48xf32>
    %516 = vector.extract_strided_slice %493 {offsets = [0, 96], sizes = [1, 48], strides = [1, 1]} : vector<1x144xf32> to vector<1x48xf32>
    %517 = vector.extract_strided_slice %495 {offsets = [0, 96], sizes = [1, 48], strides = [1, 1]} : vector<1x144xf32> to vector<1x48xf32>
    %518 = arith.mulf %505, %517 : vector<1x48xf32>
    %519 = arith.addf %516, %518 : vector<1x48xf32>
    %520 = math.tanh %519 : vector<1x48xf32>
    %cst_154 = arith.constant 1.000000e+00 : f32
    %521 = vector.broadcast %cst_154 : f32 to vector<1x48xf32>
    %522 = arith.subf %521, %515 : vector<1x48xf32>
    %523 = arith.mulf %522, %520 : vector<1x48xf32>
    %524 = arith.mulf %515, %491 : vector<1x48xf32>
    %525 = arith.addf %523, %524 : vector<1x48xf32>
    %c14 = arith.constant 14 : index
    %c0_155 = arith.constant 0 : index
    %526 = vector.load %arg27[%c14, %c0_155] : memref<16x48xf32, #tpu.memory_space<vmem>>, vector<1x48xf32>
    tpu.vector_store %arg27[%c14, %c0_155], %525 {strides = array<i32>} : memref<16x48xf32, #tpu.memory_space<vmem>>, vector<1x48xf32>,
    %527 = vector.extract_strided_slice %12 {offsets = [15, 0], sizes = [1, 144], strides = [1, 1]} : vector<16x144xf32> to vector<1x144xf32>
    %cst_156 = arith.constant dense<0.000000e+00> : vector<1x144xf32>
    %528 = tpu.matmul %525, %13, %cst_156 {dimension_numbers = #tpu.dot_dimension_numbers<[1], [0], [0], [1], [0, 0, 1, 1], [], []>} : vector<1x48xf32>, vector<48x144xf32>, vector<1x144xf32> -> vector<1x144xf32>
    %529 = arith.addf %528, %14 : vector<1x144xf32>
    %530 = vector.extract_strided_slice %527 {offsets = [0, 0], sizes = [1, 48], strides = [1, 1]} : vector<1x144xf32> to vector<1x48xf32>
    %531 = vector.extract_strided_slice %529 {offsets = [0, 0], sizes = [1, 48], strides = [1, 1]} : vector<1x144xf32> to vector<1x48xf32>
    %532 = arith.addf %530, %531 : vector<1x48xf32>
    %cst_157 = arith.constant 0.000000e+00 : f32
    %533 = vector.broadcast %cst_157 : f32 to vector<1x48xf32>
    %534 = arith.subf %533, %532 : vector<1x48xf32>
    %535 = math.exp %534 : vector<1x48xf32>
    %cst_158 = arith.constant 1.000000e+00 : f32
    %536 = vector.broadcast %cst_158 : f32 to vector<1x48xf32>
    %537 = arith.addf %536, %535 : vector<1x48xf32>
    %cst_159 = arith.constant 1.000000e+00 : f32
    %538 = vector.broadcast %cst_159 : f32 to vector<1x48xf32>
    %539 = arith.divf %538, %537 : vector<1x48xf32>
    %540 = vector.extract_strided_slice %527 {offsets = [0, 48], sizes = [1, 48], strides = [1, 1]} : vector<1x144xf32> to vector<1x48xf32>
    %541 = vector.extract_strided_slice %529 {offsets = [0, 48], sizes = [1, 48], strides = [1, 1]} : vector<1x144xf32> to vector<1x48xf32>
    %542 = arith.addf %540, %541 : vector<1x48xf32>
    %cst_160 = arith.constant 0.000000e+00 : f32
    %543 = vector.broadcast %cst_160 : f32 to vector<1x48xf32>
    %544 = arith.subf %543, %542 : vector<1x48xf32>
    %545 = math.exp %544 : vector<1x48xf32>
    %cst_161 = arith.constant 1.000000e+00 : f32
    %546 = vector.broadcast %cst_161 : f32 to vector<1x48xf32>
    %547 = arith.addf %546, %545 : vector<1x48xf32>
    %cst_162 = arith.constant 1.000000e+00 : f32
    %548 = vector.broadcast %cst_162 : f32 to vector<1x48xf32>
    %549 = arith.divf %548, %547 : vector<1x48xf32>
    %550 = vector.extract_strided_slice %527 {offsets = [0, 96], sizes = [1, 48], strides = [1, 1]} : vector<1x144xf32> to vector<1x48xf32>
    %551 = vector.extract_strided_slice %529 {offsets = [0, 96], sizes = [1, 48], strides = [1, 1]} : vector<1x144xf32> to vector<1x48xf32>
    %552 = arith.mulf %539, %551 : vector<1x48xf32>
    %553 = arith.addf %550, %552 : vector<1x48xf32>
    %554 = math.tanh %553 : vector<1x48xf32>
    %cst_163 = arith.constant 1.000000e+00 : f32
    %555 = vector.broadcast %cst_163 : f32 to vector<1x48xf32>
    %556 = arith.subf %555, %549 : vector<1x48xf32>
    %557 = arith.mulf %556, %554 : vector<1x48xf32>
    %558 = arith.mulf %549, %525 : vector<1x48xf32>
    %559 = arith.addf %557, %558 : vector<1x48xf32>
    %c15 = arith.constant 15 : index
    %c0_164 = arith.constant 0 : index
    %560 = vector.load %arg27[%c15, %c0_164] : memref<16x48xf32, #tpu.memory_space<vmem>>, vector<1x48xf32>
    tpu.vector_store %arg27[%c15, %c0_164], %559 {strides = array<i32>} : memref<16x48xf32, #tpu.memory_space<vmem>>, vector<1x48xf32>,
    %c0_165 = arith.constant 0 : index
    %c0_166 = arith.constant 0 : index
    %561 = vector.load %arg27[%c0_165, %c0_166] : memref<16x48xf32, #tpu.memory_space<vmem>>, vector<16x48xf32>
    %c0_167 = arith.constant 0 : index
    %c0_168 = arith.constant 0 : index
    %562 = vector.load %arg10[%c0_167, %c0_168] : memref<48x144xf32, #tpu.memory_space<vmem>>, vector<48x144xf32>
    %cst_169 = arith.constant dense<0.000000e+00> : vector<16x144xf32>
    %563 = tpu.matmul %561, %562, %cst_169 {dimension_numbers = #tpu.dot_dimension_numbers<[1], [0], [0], [1], [0, 0, 1, 1], [], []>} : vector<16x48xf32>, vector<48x144xf32>, vector<16x144xf32> -> vector<16x144xf32>
    %564 = vector.extract_strided_slice %563 {offsets = [0, 0], sizes = [16, 8], strides = [1, 1]} : vector<16x144xf32> to vector<16x8xf32>
    %565 = vector.shape_cast %564 : vector<16x8xf32> to vector<2x8x8xf32>
    %566 = vector.extract_strided_slice %563 {offsets = [0, 8], sizes = [16, 8], strides = [1, 1]} : vector<16x144xf32> to vector<16x8xf32>
    %567 = vector.shape_cast %566 : vector<16x8xf32> to vector<2x8x8xf32>
    %568 = vector.extract_strided_slice %563 {offsets = [0, 16], sizes = [16, 8], strides = [1, 1]} : vector<16x144xf32> to vector<16x8xf32>
    %569 = vector.shape_cast %568 : vector<16x8xf32> to vector<2x8x8xf32>
    %570 = vector.extract_strided_slice %563 {offsets = [0, 24], sizes = [16, 8], strides = [1, 1]} : vector<16x144xf32> to vector<16x8xf32>
    %571 = vector.shape_cast %570 : vector<16x8xf32> to vector<2x8x8xf32>
    %572 = vector.extract_strided_slice %563 {offsets = [0, 32], sizes = [16, 8], strides = [1, 1]} : vector<16x144xf32> to vector<16x8xf32>
    %573 = vector.shape_cast %572 : vector<16x8xf32> to vector<2x8x8xf32>
    %574 = vector.extract_strided_slice %563 {offsets = [0, 40], sizes = [16, 8], strides = [1, 1]} : vector<16x144xf32> to vector<16x8xf32>
    %575 = vector.shape_cast %574 : vector<16x8xf32> to vector<2x8x8xf32>
    %576 = tpu.concatenate %565, %567, %569, %571, %573, %575 in 0 : vector<2x8x8xf32>, vector<2x8x8xf32>, vector<2x8x8xf32>, vector<2x8x8xf32>, vector<2x8x8xf32>, vector<2x8x8xf32> -> vector<12x8x8xf32>
    %577 = vector.extract_strided_slice %563 {offsets = [0, 48], sizes = [16, 8], strides = [1, 1]} : vector<16x144xf32> to vector<16x8xf32>
    %578 = vector.shape_cast %577 : vector<16x8xf32> to vector<2x8x8xf32>
    %579 = vector.extract_strided_slice %563 {offsets = [0, 56], sizes = [16, 8], strides = [1, 1]} : vector<16x144xf32> to vector<16x8xf32>
    %580 = vector.shape_cast %579 : vector<16x8xf32> to vector<2x8x8xf32>
    %581 = vector.extract_strided_slice %563 {offsets = [0, 64], sizes = [16, 8], strides = [1, 1]} : vector<16x144xf32> to vector<16x8xf32>
    %582 = vector.shape_cast %581 : vector<16x8xf32> to vector<2x8x8xf32>
    %583 = vector.extract_strided_slice %563 {offsets = [0, 72], sizes = [16, 8], strides = [1, 1]} : vector<16x144xf32> to vector<16x8xf32>
    %584 = vector.shape_cast %583 : vector<16x8xf32> to vector<2x8x8xf32>
    %585 = vector.extract_strided_slice %563 {offsets = [0, 80], sizes = [16, 8], strides = [1, 1]} : vector<16x144xf32> to vector<16x8xf32>
    %586 = vector.shape_cast %585 : vector<16x8xf32> to vector<2x8x8xf32>
    %587 = vector.extract_strided_slice %563 {offsets = [0, 88], sizes = [16, 8], strides = [1, 1]} : vector<16x144xf32> to vector<16x8xf32>
    %588 = vector.shape_cast %587 : vector<16x8xf32> to vector<2x8x8xf32>
    %589 = tpu.concatenate %578, %580, %582, %584, %586, %588 in 0 : vector<2x8x8xf32>, vector<2x8x8xf32>, vector<2x8x8xf32>, vector<2x8x8xf32>, vector<2x8x8xf32>, vector<2x8x8xf32> -> vector<12x8x8xf32>
    %590 = vector.extract_strided_slice %563 {offsets = [0, 96], sizes = [16, 8], strides = [1, 1]} : vector<16x144xf32> to vector<16x8xf32>
    %591 = vector.shape_cast %590 : vector<16x8xf32> to vector<2x8x8xf32>
    %592 = vector.extract_strided_slice %563 {offsets = [0, 104], sizes = [16, 8], strides = [1, 1]} : vector<16x144xf32> to vector<16x8xf32>
    %593 = vector.shape_cast %592 : vector<16x8xf32> to vector<2x8x8xf32>
    %594 = vector.extract_strided_slice %563 {offsets = [0, 112], sizes = [16, 8], strides = [1, 1]} : vector<16x144xf32> to vector<16x8xf32>
    %595 = vector.shape_cast %594 : vector<16x8xf32> to vector<2x8x8xf32>
    %596 = vector.extract_strided_slice %563 {offsets = [0, 120], sizes = [16, 8], strides = [1, 1]} : vector<16x144xf32> to vector<16x8xf32>
    %597 = vector.shape_cast %596 : vector<16x8xf32> to vector<2x8x8xf32>
    %598 = vector.extract_strided_slice %563 {offsets = [0, 128], sizes = [16, 8], strides = [1, 1]} : vector<16x144xf32> to vector<16x8xf32>
    %599 = vector.shape_cast %598 : vector<16x8xf32> to vector<2x8x8xf32>
    %600 = vector.extract_strided_slice %563 {offsets = [0, 136], sizes = [16, 8], strides = [1, 1]} : vector<16x144xf32> to vector<16x8xf32>
    %601 = vector.shape_cast %600 : vector<16x8xf32> to vector<2x8x8xf32>
    %602 = tpu.concatenate %591, %593, %595, %597, %599, %601 in 0 : vector<2x8x8xf32>, vector<2x8x8xf32>, vector<2x8x8xf32>, vector<2x8x8xf32>, vector<2x8x8xf32>, vector<2x8x8xf32> -> vector<12x8x8xf32>
    "tpu.trace_start"() <{level = 10 : i32, message = "bqd,bkd->bqk"}> : () -> ()
    %cst_170 = arith.constant dense<0.000000e+00> : vector<12x8x8xf32>
    %603 = tpu.matmul %576, %589, %cst_170 {dimension_numbers = #tpu.dot_dimension_numbers<[2], [2], [1], [1], [0, 0, 0, 1, 1, 1], [0], [0]>} : vector<12x8x8xf32>, vector<12x8x8xf32>, vector<12x8x8xf32> -> vector<12x8x8xf32>
    "tpu.trace_stop"() : () -> ()
    %cst_171 = arith.constant 0.353553385 : f32
    %604 = vector.broadcast %cst_171 : f32 to vector<12x8x8xf32>
    %605 = arith.mulf %603, %604 : vector<12x8x8xf32>
    %cst_172 = arith.constant dense<0xFF800000> : vector<12x8xf32>
    %606 = vector.multi_reduction <maximumf>, %605, %cst_172 [2] : vector<12x8x8xf32> to vector<12x8xf32>
    %607 = vector.shape_cast %606 : vector<12x8xf32> to vector<12x8x1xf32>
    %608 = vector.broadcast %607 : vector<12x8x1xf32> to vector<12x8x8xf32>
    %609 = arith.subf %605, %608 : vector<12x8x8xf32>
    %610 = math.exp %609 : vector<12x8x8xf32>
    %cst_173 = arith.constant dense<0.000000e+00> : vector<12x8xf32>
    %611 = vector.multi_reduction <add>, %610, %cst_173 [2] : vector<12x8x8xf32> to vector<12x8xf32>
    %612 = vector.shape_cast %611 : vector<12x8xf32> to vector<12x8x1xf32>
    %613 = tpu.reciprocal %612 {approx = true} : vector<12x8x1xf32> -> vector<12x8x1xf32>
    %614 = vector.broadcast %613 : vector<12x8x1xf32> to vector<12x8x8xf32>
    %615 = arith.mulf %610, %614 : vector<12x8x8xf32>
    "tpu.trace_start"() <{level = 10 : i32, message = "bqk,bkd->bqd"}> : () -> ()
    %cst_174 = arith.constant dense<0.000000e+00> : vector<12x8x8xf32>
    %616 = tpu.matmul %615, %602, %cst_174 {dimension_numbers = #tpu.dot_dimension_numbers<[2], [1], [1], [2], [0, 0, 0, 1, 1, 2], [0], [0]>} : vector<12x8x8xf32>, vector<12x8x8xf32>, vector<12x8x8xf32> -> vector<12x8x8xf32>
    "tpu.trace_stop"() : () -> ()
    %617 = vector.extract_strided_slice %616 {offsets = [0, 0, 0], sizes = [2, 8, 8], strides = [1, 1, 1]} : vector<12x8x8xf32> to vector<2x8x8xf32>
    %618 = vector.shape_cast %617 : vector<2x8x8xf32> to vector<16x8xf32>
    %619 = vector.extract_strided_slice %616 {offsets = [2, 0, 0], sizes = [2, 8, 8], strides = [1, 1, 1]} : vector<12x8x8xf32> to vector<2x8x8xf32>
    %620 = vector.shape_cast %619 : vector<2x8x8xf32> to vector<16x8xf32>
    %621 = vector.extract_strided_slice %616 {offsets = [4, 0, 0], sizes = [2, 8, 8], strides = [1, 1, 1]} : vector<12x8x8xf32> to vector<2x8x8xf32>
    %622 = vector.shape_cast %621 : vector<2x8x8xf32> to vector<16x8xf32>
    %623 = vector.extract_strided_slice %616 {offsets = [6, 0, 0], sizes = [2, 8, 8], strides = [1, 1, 1]} : vector<12x8x8xf32> to vector<2x8x8xf32>
    %624 = vector.shape_cast %623 : vector<2x8x8xf32> to vector<16x8xf32>
    %625 = vector.extract_strided_slice %616 {offsets = [8, 0, 0], sizes = [2, 8, 8], strides = [1, 1, 1]} : vector<12x8x8xf32> to vector<2x8x8xf32>
    %626 = vector.shape_cast %625 : vector<2x8x8xf32> to vector<16x8xf32>
    %627 = vector.extract_strided_slice %616 {offsets = [10, 0, 0], sizes = [2, 8, 8], strides = [1, 1, 1]} : vector<12x8x8xf32> to vector<2x8x8xf32>
    %628 = vector.shape_cast %627 : vector<2x8x8xf32> to vector<16x8xf32>
    %629 = tpu.concatenate %618, %620, %622, %624, %626, %628 in 1 : vector<16x8xf32>, vector<16x8xf32>, vector<16x8xf32>, vector<16x8xf32>, vector<16x8xf32>, vector<16x8xf32> -> vector<16x48xf32>
    %630 = arith.addf %629, %561 : vector<16x48xf32>
    %cst_175 = arith.constant dense<0.000000e+00> : vector<16xf32>
    %631 = vector.multi_reduction <add>, %630, %cst_175 [1] : vector<16x48xf32> to vector<16xf32>
    %632 = vector.shape_cast %631 : vector<16xf32> to vector<16x1xf32>
    %cst_176 = arith.constant 4.800000e+01 : f32
    %633 = vector.broadcast %cst_176 : f32 to vector<16x1xf32>
    %634 = arith.divf %632, %633 : vector<16x1xf32>
    %635 = vector.broadcast %634 : vector<16x1xf32> to vector<16x48xf32>
    %636 = arith.subf %630, %635 : vector<16x48xf32>
    %637 = arith.mulf %636, %636 : vector<16x48xf32>
    %cst_177 = arith.constant dense<0.000000e+00> : vector<16xf32>
    %638 = vector.multi_reduction <add>, %637, %cst_177 [1] : vector<16x48xf32> to vector<16xf32>
    %639 = vector.shape_cast %638 : vector<16xf32> to vector<16x1xf32>
    %cst_178 = arith.constant 4.800000e+01 : f32
    %640 = vector.broadcast %cst_178 : f32 to vector<16x1xf32>
    %641 = arith.divf %639, %640 : vector<16x1xf32>
    %642 = vector.broadcast %634 : vector<16x1xf32> to vector<16x48xf32>
    %643 = arith.subf %630, %642 : vector<16x48xf32>
    %cst_179 = arith.constant 9.99999974E-6 : f32
    %644 = vector.broadcast %cst_179 : f32 to vector<16x1xf32>
    %645 = arith.addf %641, %644 : vector<16x1xf32>
    %646 = math.rsqrt %645 : vector<16x1xf32>
    %647 = vector.broadcast %646 : vector<16x1xf32> to vector<16x48xf32>
    %648 = arith.mulf %643, %647 : vector<16x48xf32>
    %649 = vector.broadcast %0 : vector<1x48xf32> to vector<16x48xf32>
    %650 = arith.mulf %648, %649 : vector<16x48xf32>
    %651 = vector.broadcast %1 : vector<1x48xf32> to vector<16x48xf32>
    %652 = arith.addf %650, %651 : vector<16x48xf32>
    %c0_180 = arith.constant 0 : index
    %c0_181 = arith.constant 0 : index
    %653 = vector.load %arg11[%c0_180, %c0_181] : memref<48x144xf32, #tpu.memory_space<vmem>>, vector<48x144xf32>
    %cst_182 = arith.constant dense<0.000000e+00> : vector<16x144xf32>
    %654 = tpu.matmul %652, %653, %cst_182 {dimension_numbers = #tpu.dot_dimension_numbers<[1], [0], [0], [1], [0, 0, 1, 1], [], []>} : vector<16x48xf32>, vector<48x144xf32>, vector<16x144xf32> -> vector<16x144xf32>
    %655 = vector.extract_strided_slice %654 {offsets = [0, 0], sizes = [16, 8], strides = [1, 1]} : vector<16x144xf32> to vector<16x8xf32>
    %656 = vector.shape_cast %655 : vector<16x8xf32> to vector<2x8x8xf32>
    %657 = vector.extract_strided_slice %654 {offsets = [0, 8], sizes = [16, 8], strides = [1, 1]} : vector<16x144xf32> to vector<16x8xf32>
    %658 = vector.shape_cast %657 : vector<16x8xf32> to vector<2x8x8xf32>
    %659 = vector.extract_strided_slice %654 {offsets = [0, 16], sizes = [16, 8], strides = [1, 1]} : vector<16x144xf32> to vector<16x8xf32>
    %660 = vector.shape_cast %659 : vector<16x8xf32> to vector<2x8x8xf32>
    %661 = vector.extract_strided_slice %654 {offsets = [0, 24], sizes = [16, 8], strides = [1, 1]} : vector<16x144xf32> to vector<16x8xf32>
    %662 = vector.shape_cast %661 : vector<16x8xf32> to vector<2x8x8xf32>
    %663 = vector.extract_strided_slice %654 {offsets = [0, 32], sizes = [16, 8], strides = [1, 1]} : vector<16x144xf32> to vector<16x8xf32>
    %664 = vector.shape_cast %663 : vector<16x8xf32> to vector<2x8x8xf32>
    %665 = vector.extract_strided_slice %654 {offsets = [0, 40], sizes = [16, 8], strides = [1, 1]} : vector<16x144xf32> to vector<16x8xf32>
    %666 = vector.shape_cast %665 : vector<16x8xf32> to vector<2x8x8xf32>
    %667 = tpu.concatenate %656, %658, %660, %662, %664, %666 in 0 : vector<2x8x8xf32>, vector<2x8x8xf32>, vector<2x8x8xf32>, vector<2x8x8xf32>, vector<2x8x8xf32>, vector<2x8x8xf32> -> vector<12x8x8xf32>
    %668 = vector.extract_strided_slice %654 {offsets = [0, 48], sizes = [16, 8], strides = [1, 1]} : vector<16x144xf32> to vector<16x8xf32>
    %669 = vector.shape_cast %668 : vector<16x8xf32> to vector<2x8x8xf32>
    %670 = vector.extract_strided_slice %654 {offsets = [0, 56], sizes = [16, 8], strides = [1, 1]} : vector<16x144xf32> to vector<16x8xf32>
    %671 = vector.shape_cast %670 : vector<16x8xf32> to vector<2x8x8xf32>
    %672 = vector.extract_strided_slice %654 {offsets = [0, 64], sizes = [16, 8], strides = [1, 1]} : vector<16x144xf32> to vector<16x8xf32>
    %673 = vector.shape_cast %672 : vector<16x8xf32> to vector<2x8x8xf32>
    %674 = vector.extract_strided_slice %654 {offsets = [0, 72], sizes = [16, 8], strides = [1, 1]} : vector<16x144xf32> to vector<16x8xf32>
    %675 = vector.shape_cast %674 : vector<16x8xf32> to vector<2x8x8xf32>
    %676 = vector.extract_strided_slice %654 {offsets = [0, 80], sizes = [16, 8], strides = [1, 1]} : vector<16x144xf32> to vector<16x8xf32>
    %677 = vector.shape_cast %676 : vector<16x8xf32> to vector<2x8x8xf32>
    %678 = vector.extract_strided_slice %654 {offsets = [0, 88], sizes = [16, 8], strides = [1, 1]} : vector<16x144xf32> to vector<16x8xf32>
    %679 = vector.shape_cast %678 : vector<16x8xf32> to vector<2x8x8xf32>
    %680 = tpu.concatenate %669, %671, %673, %675, %677, %679 in 0 : vector<2x8x8xf32>, vector<2x8x8xf32>, vector<2x8x8xf32>, vector<2x8x8xf32>, vector<2x8x8xf32>, vector<2x8x8xf32> -> vector<12x8x8xf32>
    %681 = vector.extract_strided_slice %654 {offsets = [0, 96], sizes = [16, 8], strides = [1, 1]} : vector<16x144xf32> to vector<16x8xf32>
    %682 = vector.shape_cast %681 : vector<16x8xf32> to vector<2x8x8xf32>
    %683 = vector.extract_strided_slice %654 {offsets = [0, 104], sizes = [16, 8], strides = [1, 1]} : vector<16x144xf32> to vector<16x8xf32>
    %684 = vector.shape_cast %683 : vector<16x8xf32> to vector<2x8x8xf32>
    %685 = vector.extract_strided_slice %654 {offsets = [0, 112], sizes = [16, 8], strides = [1, 1]} : vector<16x144xf32> to vector<16x8xf32>
    %686 = vector.shape_cast %685 : vector<16x8xf32> to vector<2x8x8xf32>
    %687 = vector.extract_strided_slice %654 {offsets = [0, 120], sizes = [16, 8], strides = [1, 1]} : vector<16x144xf32> to vector<16x8xf32>
    %688 = vector.shape_cast %687 : vector<16x8xf32> to vector<2x8x8xf32>
    %689 = vector.extract_strided_slice %654 {offsets = [0, 128], sizes = [16, 8], strides = [1, 1]} : vector<16x144xf32> to vector<16x8xf32>
    %690 = vector.shape_cast %689 : vector<16x8xf32> to vector<2x8x8xf32>
    %691 = vector.extract_strided_slice %654 {offsets = [0, 136], sizes = [16, 8], strides = [1, 1]} : vector<16x144xf32> to vector<16x8xf32>
    %692 = vector.shape_cast %691 : vector<16x8xf32> to vector<2x8x8xf32>
    %693 = tpu.concatenate %682, %684, %686, %688, %690, %692 in 0 : vector<2x8x8xf32>, vector<2x8x8xf32>, vector<2x8x8xf32>, vector<2x8x8xf32>, vector<2x8x8xf32>, vector<2x8x8xf32> -> vector<12x8x8xf32>
    "tpu.trace_start"() <{level = 10 : i32, message = "bqd,bkd->bqk"}> : () -> ()
    %cst_183 = arith.constant dense<0.000000e+00> : vector<12x8x8xf32>
    %694 = tpu.matmul %667, %680, %cst_183 {dimension_numbers = #tpu.dot_dimension_numbers<[2], [2], [1], [1], [0, 0, 0, 1, 1, 1], [0], [0]>} : vector<12x8x8xf32>, vector<12x8x8xf32>, vector<12x8x8xf32> -> vector<12x8x8xf32>
    "tpu.trace_stop"() : () -> ()
    %cst_184 = arith.constant 0.353553385 : f32
    %695 = vector.broadcast %cst_184 : f32 to vector<12x8x8xf32>
    %696 = arith.mulf %694, %695 : vector<12x8x8xf32>
    %cst_185 = arith.constant dense<0xFF800000> : vector<12x8xf32>
    %697 = vector.multi_reduction <maximumf>, %696, %cst_185 [2] : vector<12x8x8xf32> to vector<12x8xf32>
    %698 = vector.shape_cast %697 : vector<12x8xf32> to vector<12x8x1xf32>
    %699 = vector.broadcast %698 : vector<12x8x1xf32> to vector<12x8x8xf32>
    %700 = arith.subf %696, %699 : vector<12x8x8xf32>
    %701 = math.exp %700 : vector<12x8x8xf32>
    %cst_186 = arith.constant dense<0.000000e+00> : vector<12x8xf32>
    %702 = vector.multi_reduction <add>, %701, %cst_186 [2] : vector<12x8x8xf32> to vector<12x8xf32>
    %703 = vector.shape_cast %702 : vector<12x8xf32> to vector<12x8x1xf32>
    %704 = tpu.reciprocal %703 {approx = true} : vector<12x8x1xf32> -> vector<12x8x1xf32>
    %705 = vector.broadcast %704 : vector<12x8x1xf32> to vector<12x8x8xf32>
    %706 = arith.mulf %701, %705 : vector<12x8x8xf32>
    "tpu.trace_start"() <{level = 10 : i32, message = "bqk,bkd->bqd"}> : () -> ()
    %cst_187 = arith.constant dense<0.000000e+00> : vector<12x8x8xf32>
    %707 = tpu.matmul %706, %693, %cst_187 {dimension_numbers = #tpu.dot_dimension_numbers<[2], [1], [1], [2], [0, 0, 0, 1, 1, 2], [0], [0]>} : vector<12x8x8xf32>, vector<12x8x8xf32>, vector<12x8x8xf32> -> vector<12x8x8xf32>
    "tpu.trace_stop"() : () -> ()
    %708 = vector.extract_strided_slice %707 {offsets = [0, 0, 0], sizes = [2, 8, 8], strides = [1, 1, 1]} : vector<12x8x8xf32> to vector<2x8x8xf32>
    %709 = vector.shape_cast %708 : vector<2x8x8xf32> to vector<16x8xf32>
    %710 = vector.extract_strided_slice %707 {offsets = [2, 0, 0], sizes = [2, 8, 8], strides = [1, 1, 1]} : vector<12x8x8xf32> to vector<2x8x8xf32>
    %711 = vector.shape_cast %710 : vector<2x8x8xf32> to vector<16x8xf32>
    %712 = vector.extract_strided_slice %707 {offsets = [4, 0, 0], sizes = [2, 8, 8], strides = [1, 1, 1]} : vector<12x8x8xf32> to vector<2x8x8xf32>
    %713 = vector.shape_cast %712 : vector<2x8x8xf32> to vector<16x8xf32>
    %714 = vector.extract_strided_slice %707 {offsets = [6, 0, 0], sizes = [2, 8, 8], strides = [1, 1, 1]} : vector<12x8x8xf32> to vector<2x8x8xf32>
    %715 = vector.shape_cast %714 : vector<2x8x8xf32> to vector<16x8xf32>
    %716 = vector.extract_strided_slice %707 {offsets = [8, 0, 0], sizes = [2, 8, 8], strides = [1, 1, 1]} : vector<12x8x8xf32> to vector<2x8x8xf32>
    %717 = vector.shape_cast %716 : vector<2x8x8xf32> to vector<16x8xf32>
    %718 = vector.extract_strided_slice %707 {offsets = [10, 0, 0], sizes = [2, 8, 8], strides = [1, 1, 1]} : vector<12x8x8xf32> to vector<2x8x8xf32>
    %719 = vector.shape_cast %718 : vector<2x8x8xf32> to vector<16x8xf32>
    %720 = tpu.concatenate %709, %711, %713, %715, %717, %719 in 1 : vector<16x8xf32>, vector<16x8xf32>, vector<16x8xf32>, vector<16x8xf32>, vector<16x8xf32>, vector<16x8xf32> -> vector<16x48xf32>
    %721 = arith.addf %720, %652 : vector<16x48xf32>
    %cst_188 = arith.constant dense<0.000000e+00> : vector<16xf32>
    %722 = vector.multi_reduction <add>, %721, %cst_188 [1] : vector<16x48xf32> to vector<16xf32>
    %723 = vector.shape_cast %722 : vector<16xf32> to vector<16x1xf32>
    %cst_189 = arith.constant 4.800000e+01 : f32
    %724 = vector.broadcast %cst_189 : f32 to vector<16x1xf32>
    %725 = arith.divf %723, %724 : vector<16x1xf32>
    %726 = vector.broadcast %725 : vector<16x1xf32> to vector<16x48xf32>
    %727 = arith.subf %721, %726 : vector<16x48xf32>
    %728 = arith.mulf %727, %727 : vector<16x48xf32>
    %cst_190 = arith.constant dense<0.000000e+00> : vector<16xf32>
    %729 = vector.multi_reduction <add>, %728, %cst_190 [1] : vector<16x48xf32> to vector<16xf32>
    %730 = vector.shape_cast %729 : vector<16xf32> to vector<16x1xf32>
    %cst_191 = arith.constant 4.800000e+01 : f32
    %731 = vector.broadcast %cst_191 : f32 to vector<16x1xf32>
    %732 = arith.divf %730, %731 : vector<16x1xf32>
    %733 = vector.broadcast %725 : vector<16x1xf32> to vector<16x48xf32>
    %734 = arith.subf %721, %733 : vector<16x48xf32>
    %cst_192 = arith.constant 9.99999974E-6 : f32
    %735 = vector.broadcast %cst_192 : f32 to vector<16x1xf32>
    %736 = arith.addf %732, %735 : vector<16x1xf32>
    %737 = math.rsqrt %736 : vector<16x1xf32>
    %738 = vector.broadcast %737 : vector<16x1xf32> to vector<16x48xf32>
    %739 = arith.mulf %734, %738 : vector<16x48xf32>
    %740 = vector.broadcast %0 : vector<1x48xf32> to vector<16x48xf32>
    %741 = arith.mulf %739, %740 : vector<16x48xf32>
    %742 = vector.broadcast %1 : vector<1x48xf32> to vector<16x48xf32>
    %743 = arith.addf %741, %742 : vector<16x48xf32>
    %744 = vector.extract_strided_slice %743 {offsets = [0, 0], sizes = [1, 48], strides = [1, 1]} : vector<16x48xf32> to vector<1x48xf32>
    %745 = vector.extract_strided_slice %743 {offsets = [1, 0], sizes = [1, 48], strides = [1, 1]} : vector<16x48xf32> to vector<1x48xf32>
    %746 = vector.extract_strided_slice %743 {offsets = [2, 0], sizes = [1, 48], strides = [1, 1]} : vector<16x48xf32> to vector<1x48xf32>
    %747 = vector.extract_strided_slice %743 {offsets = [3, 0], sizes = [1, 48], strides = [1, 1]} : vector<16x48xf32> to vector<1x48xf32>
    %748 = vector.extract_strided_slice %743 {offsets = [4, 0], sizes = [1, 48], strides = [1, 1]} : vector<16x48xf32> to vector<1x48xf32>
    %749 = vector.extract_strided_slice %743 {offsets = [5, 0], sizes = [1, 48], strides = [1, 1]} : vector<16x48xf32> to vector<1x48xf32>
    %750 = vector.extract_strided_slice %743 {offsets = [6, 0], sizes = [1, 48], strides = [1, 1]} : vector<16x48xf32> to vector<1x48xf32>
    %751 = vector.extract_strided_slice %743 {offsets = [7, 0], sizes = [1, 48], strides = [1, 1]} : vector<16x48xf32> to vector<1x48xf32>
    %752 = tpu.concatenate %744, %745, %746, %747, %748, %749, %750, %751 in 1 : vector<1x48xf32>, vector<1x48xf32>, vector<1x48xf32>, vector<1x48xf32>, vector<1x48xf32>, vector<1x48xf32>, vector<1x48xf32>, vector<1x48xf32> -> vector<1x384xf32>
    %c0_193 = arith.constant 0 : index
    %c0_194 = arith.constant 0 : index
    %753 = vector.load %arg28[%c0_193, %c0_194] : memref<2x384xf32, #tpu.memory_space<vmem>>, vector<1x384xf32>
    tpu.vector_store %arg28[%c0_193, %c0_194], %752 {strides = array<i32>} : memref<2x384xf32, #tpu.memory_space<vmem>>, vector<1x384xf32>,
    %754 = vector.extract_strided_slice %743 {offsets = [8, 0], sizes = [1, 48], strides = [1, 1]} : vector<16x48xf32> to vector<1x48xf32>
    %755 = vector.extract_strided_slice %743 {offsets = [9, 0], sizes = [1, 48], strides = [1, 1]} : vector<16x48xf32> to vector<1x48xf32>
    %756 = vector.extract_strided_slice %743 {offsets = [10, 0], sizes = [1, 48], strides = [1, 1]} : vector<16x48xf32> to vector<1x48xf32>
    %757 = vector.extract_strided_slice %743 {offsets = [11, 0], sizes = [1, 48], strides = [1, 1]} : vector<16x48xf32> to vector<1x48xf32>
    %758 = vector.extract_strided_slice %743 {offsets = [12, 0], sizes = [1, 48], strides = [1, 1]} : vector<16x48xf32> to vector<1x48xf32>
    %759 = vector.extract_strided_slice %743 {offsets = [13, 0], sizes = [1, 48], strides = [1, 1]} : vector<16x48xf32> to vector<1x48xf32>
    %760 = vector.extract_strided_slice %743 {offsets = [14, 0], sizes = [1, 48], strides = [1, 1]} : vector<16x48xf32> to vector<1x48xf32>
    %761 = vector.extract_strided_slice %743 {offsets = [15, 0], sizes = [1, 48], strides = [1, 1]} : vector<16x48xf32> to vector<1x48xf32>
    %762 = tpu.concatenate %754, %755, %756, %757, %758, %759, %760, %761 in 1 : vector<1x48xf32>, vector<1x48xf32>, vector<1x48xf32>, vector<1x48xf32>, vector<1x48xf32>, vector<1x48xf32>, vector<1x48xf32>, vector<1x48xf32> -> vector<1x384xf32>
    %c1_195 = arith.constant 1 : index
    %c0_196 = arith.constant 0 : index
    %763 = vector.load %arg28[%c1_195, %c0_196] : memref<2x384xf32, #tpu.memory_space<vmem>>, vector<1x384xf32>
    tpu.vector_store %arg28[%c1_195, %c0_196], %762 {strides = array<i32>} : memref<2x384xf32, #tpu.memory_space<vmem>>, vector<1x384xf32>,
    %c0_197 = arith.constant 0 : index
    %c0_198 = arith.constant 0 : index
    %764 = vector.load %arg28[%c0_197, %c0_198] : memref<2x384xf32, #tpu.memory_space<vmem>>, vector<2x384xf32>
    %c0_199 = arith.constant 0 : index
    %c0_200 = arith.constant 0 : index
    %765 = vector.load %arg12[%c0_199, %c0_200] : memref<384x192xf32, #tpu.memory_space<vmem>>, vector<384x192xf32>
    %cst_201 = arith.constant dense<0.000000e+00> : vector<2x192xf32>
    %766 = tpu.matmul %764, %765, %cst_201 {dimension_numbers = #tpu.dot_dimension_numbers<[1], [0], [0], [1], [0, 0, 1, 1], [], []>} : vector<2x384xf32>, vector<384x192xf32>, vector<2x192xf32> -> vector<2x192xf32>
    %c0_202 = arith.constant 0 : index
    %c0_203 = arith.constant 0 : index
    %767 = vector.load %arg13[%c0_202, %c0_203] : memref<1x192xf32, #tpu.memory_space<vmem>>, vector<1x192xf32>
    %768 = vector.broadcast %767 : vector<1x192xf32> to vector<2x192xf32>
    %769 = arith.addf %766, %768 : vector<2x192xf32>
    %cst_204 = arith.constant 0.000000e+00 : f32
    %770 = vector.broadcast %cst_204 : f32 to vector<2x192xf32>
    %771 = arith.maximumf %769, %770 : vector<2x192xf32>
    %c0_205 = arith.constant 0 : index
    %c0_206 = arith.constant 0 : index
    %772 = vector.load %arg14[%c0_205, %c0_206] : memref<1x192xf32, #tpu.memory_space<vmem>>, vector<1x192xf32>
    %773 = vector.broadcast %772 : vector<1x192xf32> to vector<2x192xf32>
    %774 = arith.mulf %771, %773 : vector<2x192xf32>
    %c0_207 = arith.constant 0 : index
    %c0_208 = arith.constant 0 : index
    %775 = vector.load %arg15[%c0_207, %c0_208] : memref<1x192xf32, #tpu.memory_space<vmem>>, vector<1x192xf32>
    %776 = vector.broadcast %775 : vector<1x192xf32> to vector<2x192xf32>
    %777 = arith.addf %774, %776 : vector<2x192xf32>
    %c0_209 = arith.constant 0 : index
    %c0_210 = arith.constant 0 : index
    %778 = vector.load %arg16[%c0_209, %c0_210] : memref<192x32xf32, #tpu.memory_space<vmem>>, vector<192x32xf32>
    %cst_211 = arith.constant dense<0.000000e+00> : vector<2x32xf32>
    %779 = tpu.matmul %777, %778, %cst_211 {dimension_numbers = #tpu.dot_dimension_numbers<[1], [0], [0], [1], [0, 0, 1, 1], [], []>} : vector<2x192xf32>, vector<192x32xf32>, vector<2x32xf32> -> vector<2x32xf32>
    %c0_212 = arith.constant 0 : index
    %c0_213 = arith.constant 0 : index
    %780 = vector.load %arg17[%c0_212, %c0_213] : memref<1x32xf32, #tpu.memory_space<vmem>>, vector<1x32xf32>
    %781 = vector.broadcast %780 : vector<1x32xf32> to vector<2x32xf32>
    %782 = arith.addf %779, %781 : vector<2x32xf32>
    %cst_214 = arith.constant 0.000000e+00 : f32
    %783 = vector.broadcast %cst_214 : f32 to vector<2x32xf32>
    %784 = arith.maximumf %782, %783 : vector<2x32xf32>
    %c0_215 = arith.constant 0 : index
    %c0_216 = arith.constant 0 : index
    %785 = vector.load %arg18[%c0_215, %c0_216] : memref<1x32xf32, #tpu.memory_space<vmem>>, vector<1x32xf32>
    %786 = vector.broadcast %785 : vector<1x32xf32> to vector<2x32xf32>
    %787 = arith.mulf %784, %786 : vector<2x32xf32>
    %c0_217 = arith.constant 0 : index
    %c0_218 = arith.constant 0 : index
    %788 = vector.load %arg19[%c0_217, %c0_218] : memref<1x32xf32, #tpu.memory_space<vmem>>, vector<1x32xf32>
    %789 = vector.broadcast %788 : vector<1x32xf32> to vector<2x32xf32>
    %790 = arith.addf %787, %789 : vector<2x32xf32>
    %c0_219 = arith.constant 0 : index
    %c0_220 = arith.constant 0 : index
    %791 = vector.load %arg20[%c0_219, %c0_220] : memref<32x8xf32, #tpu.memory_space<vmem>>, vector<32x8xf32>
    %cst_221 = arith.constant dense<0.000000e+00> : vector<2x8xf32>
    %792 = tpu.matmul %790, %791, %cst_221 {dimension_numbers = #tpu.dot_dimension_numbers<[1], [0], [0], [1], [0, 0, 1, 1], [], []>} : vector<2x32xf32>, vector<32x8xf32>, vector<2x8xf32> -> vector<2x8xf32>
    %c0_222 = arith.constant 0 : index
    %c0_223 = arith.constant 0 : index
    %793 = vector.load %arg21[%c0_222, %c0_223] : memref<1x8xf32, #tpu.memory_space<vmem>>, vector<1x8xf32>
    %794 = vector.broadcast %793 : vector<1x8xf32> to vector<2x8xf32>
    %795 = arith.addf %792, %794 : vector<2x8xf32>
    %cst_224 = arith.constant 0.000000e+00 : f32
    %796 = vector.broadcast %cst_224 : f32 to vector<2x8xf32>
    %797 = arith.maximumf %795, %796 : vector<2x8xf32>
    %c0_225 = arith.constant 0 : index
    %c0_226 = arith.constant 0 : index
    %798 = vector.load %arg22[%c0_225, %c0_226] : memref<1x8xf32, #tpu.memory_space<vmem>>, vector<1x8xf32>
    %799 = vector.broadcast %798 : vector<1x8xf32> to vector<2x8xf32>
    %800 = arith.mulf %797, %799 : vector<2x8xf32>
    %c0_227 = arith.constant 0 : index
    %c0_228 = arith.constant 0 : index
    %801 = vector.load %arg23[%c0_227, %c0_228] : memref<1x8xf32, #tpu.memory_space<vmem>>, vector<1x8xf32>
    %802 = vector.broadcast %801 : vector<1x8xf32> to vector<2x8xf32>
    %803 = arith.addf %800, %802 : vector<2x8xf32>
    %c0_229 = arith.constant 0 : index
    %c0_230 = arith.constant 0 : index
    %804 = vector.load %arg24[%c0_229, %c0_230] : memref<8x2xf32, #tpu.memory_space<vmem>>, vector<8x2xf32>
    %cst_231 = arith.constant dense<0.000000e+00> : vector<2x2xf32>
    %805 = tpu.matmul %803, %804, %cst_231 {dimension_numbers = #tpu.dot_dimension_numbers<[1], [0], [0], [1], [0, 0, 1, 1], [], []>} : vector<2x8xf32>, vector<8x2xf32>, vector<2x2xf32> -> vector<2x2xf32>
    %c0_232 = arith.constant 0 : index
    %c0_233 = arith.constant 0 : index
    %806 = vector.load %arg25[%c0_232, %c0_233] : memref<1x2xf32, #tpu.memory_space<vmem>>, vector<1x2xf32>
    %807 = vector.broadcast %806 : vector<1x2xf32> to vector<2x2xf32>
    %808 = arith.addf %805, %807 : vector<2x2xf32>
    %c0_234 = arith.constant 0 : index
    %c0_235 = arith.constant 0 : index
    %809 = vector.load %arg26[%c0_234, %c0_235] : memref<2x2xf32, #tpu.memory_space<vmem>>, vector<2x2xf32>
    tpu.vector_store %arg26[%c0_234, %c0_235], %808 {strides = array<i32>} : memref<2x2xf32, #tpu.memory_space<vmem>>, vector<2x2xf32>,
    return
  }
  func.func @transform_0(%arg0: i32) -> (i32, i32) {
    %c0_i32 = arith.constant 0 : i32
    %c0_i32_0 = arith.constant 0 : i32
    %c0_i32_1 = arith.constant 0 : i32
    return %c0_i32, %c0_i32_0 : i32, i32
  }
  func.func @transform_1(%arg0: i32) -> (i32, i32) {
    %c0_i32 = arith.constant 0 : i32
    %c0_i32_0 = arith.constant 0 : i32
    %c0_i32_1 = arith.constant 0 : i32
    return %c0_i32, %c0_i32_0 : i32, i32
  }
  func.func @transform_2(%arg0: i32) -> (i32, i32) {
    %c0_i32 = arith.constant 0 : i32
    %c0_i32_0 = arith.constant 0 : i32
    %c0_i32_1 = arith.constant 0 : i32
    return %c0_i32, %c0_i32_0 : i32, i32
  }
  func.func @transform_3(%arg0: i32) -> (i32, i32) {
    %c0_i32 = arith.constant 0 : i32
    %c0_i32_0 = arith.constant 0 : i32
    %c0_i32_1 = arith.constant 0 : i32
    return %c0_i32, %c0_i32_0 : i32, i32
  }
  func.func @transform_4(%arg0: i32) -> (i32, i32) {
    %c0_i32 = arith.constant 0 : i32
    %c0_i32_0 = arith.constant 0 : i32
    %c0_i32_1 = arith.constant 0 : i32
    return %c0_i32, %c0_i32_0 : i32, i32
  }
  func.func @transform_5(%arg0: i32) -> (i32, i32) {
    %c0_i32 = arith.constant 0 : i32
    %c0_i32_0 = arith.constant 0 : i32
    %c0_i32_1 = arith.constant 0 : i32
    return %c0_i32, %c0_i32_0 : i32, i32
  }
  func.func @transform_6(%arg0: i32) -> (i32, i32) {
    %c0_i32 = arith.constant 0 : i32
    %c0_i32_0 = arith.constant 0 : i32
    %c0_i32_1 = arith.constant 0 : i32
    return %c0_i32, %c0_i32_0 : i32, i32
  }
  func.func @transform_7(%arg0: i32) -> (i32, i32) {
    %c0_i32 = arith.constant 0 : i32
    %c0_i32_0 = arith.constant 0 : i32
    %c0_i32_1 = arith.constant 0 : i32
    return %c0_i32, %c0_i32_0 : i32, i32
  }
  func.func @transform_8(%arg0: i32) -> (i32, i32) {
    %c0_i32 = arith.constant 0 : i32
    %c0_i32_0 = arith.constant 0 : i32
    %c0_i32_1 = arith.constant 0 : i32
    return %c0_i32, %c0_i32_0 : i32, i32
  }
  func.func @transform_9(%arg0: i32) -> (i32, i32) {
    %c0_i32 = arith.constant 0 : i32
    %c0_i32_0 = arith.constant 0 : i32
    %c0_i32_1 = arith.constant 0 : i32
    return %c0_i32, %c0_i32_0 : i32, i32
  }
  func.func @transform_10(%arg0: i32) -> (i32, i32) {
    %c0_i32 = arith.constant 0 : i32
    %c0_i32_0 = arith.constant 0 : i32
    %c0_i32_1 = arith.constant 0 : i32
    return %c0_i32, %c0_i32_0 : i32, i32
  }
  func.func @transform_11(%arg0: i32) -> (i32, i32) {
    %c0_i32 = arith.constant 0 : i32
    %c0_i32_0 = arith.constant 0 : i32
    %c0_i32_1 = arith.constant 0 : i32
    return %c0_i32, %c0_i32_0 : i32, i32
  }
  func.func @transform_12(%arg0: i32) -> (i32, i32) {
    %c0_i32 = arith.constant 0 : i32
    %c0_i32_0 = arith.constant 0 : i32
    %c0_i32_1 = arith.constant 0 : i32
    return %c0_i32, %c0_i32_0 : i32, i32
  }
  func.func @transform_13(%arg0: i32) -> (i32, i32) {
    %c0_i32 = arith.constant 0 : i32
    %c0_i32_0 = arith.constant 0 : i32
    %c0_i32_1 = arith.constant 0 : i32
    return %c0_i32, %c0_i32_0 : i32, i32
  }
  func.func @transform_14(%arg0: i32) -> (i32, i32) {
    %c0_i32 = arith.constant 0 : i32
    %c0_i32_0 = arith.constant 0 : i32
    %c0_i32_1 = arith.constant 0 : i32
    return %c0_i32, %c0_i32_0 : i32, i32
  }
  func.func @transform_15(%arg0: i32) -> (i32, i32) {
    %c0_i32 = arith.constant 0 : i32
    %c0_i32_0 = arith.constant 0 : i32
    %c0_i32_1 = arith.constant 0 : i32
    return %c0_i32, %c0_i32_0 : i32, i32
  }
  func.func @transform_16(%arg0: i32) -> (i32, i32) {
    %c0_i32 = arith.constant 0 : i32
    %c0_i32_0 = arith.constant 0 : i32
    %c0_i32_1 = arith.constant 0 : i32
    return %c0_i32, %c0_i32_0 : i32, i32
  }
  func.func @transform_17(%arg0: i32) -> (i32, i32) {
    %c0_i32 = arith.constant 0 : i32
    %c0_i32_0 = arith.constant 0 : i32
    %c0_i32_1 = arith.constant 0 : i32
    return %c0_i32, %c0_i32_0 : i32, i32
  }
  func.func @transform_18(%arg0: i32) -> (i32, i32) {
    %c0_i32 = arith.constant 0 : i32
    %c0_i32_0 = arith.constant 0 : i32
    %c0_i32_1 = arith.constant 0 : i32
    return %c0_i32, %c0_i32_0 : i32, i32
  }
  func.func @transform_19(%arg0: i32) -> (i32, i32) {
    %c0_i32 = arith.constant 0 : i32
    %c0_i32_0 = arith.constant 0 : i32
    %c0_i32_1 = arith.constant 0 : i32
    return %c0_i32, %c0_i32_0 : i32, i32
  }
  func.func @transform_20(%arg0: i32) -> (i32, i32) {
    %c0_i32 = arith.constant 0 : i32
    %c0_i32_0 = arith.constant 0 : i32
    %c0_i32_1 = arith.constant 0 : i32
    return %c0_i32, %c0_i32_0 : i32, i32
  }
  func.func @transform_21(%arg0: i32) -> (i32, i32) {
    %c0_i32 = arith.constant 0 : i32
    %c0_i32_0 = arith.constant 0 : i32
    %c0_i32_1 = arith.constant 0 : i32
    return %c0_i32, %c0_i32_0 : i32, i32
  }
  func.func @transform_22(%arg0: i32) -> (i32, i32) {
    %c0_i32 = arith.constant 0 : i32
    %c0_i32_0 = arith.constant 0 : i32
    %c0_i32_1 = arith.constant 0 : i32
    return %c0_i32, %c0_i32_0 : i32, i32
  }
  func.func @transform_23(%arg0: i32) -> (i32, i32) {
    %c0_i32 = arith.constant 0 : i32
    %c0_i32_0 = arith.constant 0 : i32
    %c0_i32_1 = arith.constant 0 : i32
    return %c0_i32, %c0_i32_0 : i32, i32
  }
  func.func @transform_24(%arg0: i32) -> (i32, i32) {
    %c0_i32 = arith.constant 0 : i32
    %c0_i32_0 = arith.constant 0 : i32
    %c0_i32_1 = arith.constant 0 : i32
    return %c0_i32, %c0_i32_0 : i32, i32
  }
  func.func @transform_25(%arg0: i32) -> (i32, i32) {
    %c0_i32 = arith.constant 0 : i32
    %c0_i32_0 = arith.constant 0 : i32
    %c0_i32_1 = arith.constant 0 : i32
    return %c0_i32, %c0_i32_0 : i32, i32
  }
}

</mosaic_0001>

<llo_original>
// kernel: mhsa_layers_forward.1
$region0: #{mhsa_layers_forward.1}
  #allocation0 [shape = 'u32[]', space=smem, size = 0x4, offset = 0x4, fixed_abs, tag = 'smem constant byte address 0x4 - core index']
  #allocation1 [shape = 'u32[144,128]{1,0:T(1,128)}', space=vmem, size = 0x12000, scoped, tag = 'internal scratch']
  #allocation2 [shape = 'f32[16,48]{1,0:T(8,128)}', space=vmem, size = 0x2000, scoped, tag = 'scratch operand']
  #allocation3 [shape = 'f32[2,384]{1,0:T(2,128)}', space=vmem, size = 0xc00, scoped, tag = 'scratch operand']
  %s0 = inlined_call_operand.vmem [shape: f32[16,32], index: 0, kind: input, shape index: {}]
  %s1 = inlined_call_operand.vmem [shape: f32[32,48], index: 1, kind: input, shape index: {}]
  %s2 = inlined_call_operand.vmem [shape: f32[1,48], index: 2, kind: input, shape index: {}]
  %s3 = inlined_call_operand.vmem [shape: f32[48,144], index: 3, kind: input, shape index: {}]
  %s4 = inlined_call_operand.vmem [shape: f32[1,144], index: 4, kind: input, shape index: {}]
  %s5 = inlined_call_operand.vmem [shape: f32[48,144], index: 5, kind: input, shape index: {}]
  %s6 = inlined_call_operand.vmem [shape: f32[1,144], index: 6, kind: input, shape index: {}]
  %s7 = inlined_call_operand.vmem [shape: f32[1,48], index: 7, kind: input, shape index: {}]
  %s8 = inlined_call_operand.vmem [shape: f32[1,48], index: 8, kind: input, shape index: {}]
  %s9 = inlined_call_operand.vmem [shape: f32[48,144], index: 9, kind: input, shape index: {}]
  %s10 = inlined_call_operand.vmem [shape: f32[48,144], index: 10, kind: input, shape index: {}]
  %s11 = inlined_call_operand.vmem [shape: f32[384,192], index: 11, kind: input, shape index: {}]
  %s12 = inlined_call_operand.vmem [shape: f32[1,192], index: 12, kind: input, shape index: {}]
  %s13 = inlined_call_operand.vmem [shape: f32[1,192], index: 13, kind: input, shape index: {}]
  %s14 = inlined_call_operand.vmem [shape: f32[1,192], index: 14, kind: input, shape index: {}]
  %s15 = inlined_call_operand.vmem [shape: f32[192,32], index: 15, kind: input, shape index: {}]
  %s16 = inlined_call_operand.vmem [shape: f32[1,32], index: 16, kind: input, shape index: {}]
  %s17 = inlined_call_operand.vmem [shape: f32[1,32], index: 17, kind: input, shape index: {}]
  %s18 = inlined_call_operand.vmem [shape: f32[1,32], index: 18, kind: input, shape index: {}]
  %s19 = inlined_call_operand.vmem [shape: f32[32,8], index: 19, kind: input, shape index: {}]
  %s20 = inlined_call_operand.vmem [shape: f32[1,8], index: 20, kind: input, shape index: {}]
  %s21 = inlined_call_operand.vmem [shape: f32[1,8], index: 21, kind: input, shape index: {}]
  %s22 = inlined_call_operand.vmem [shape: f32[1,8], index: 22, kind: input, shape index: {}]
  %s23 = inlined_call_operand.vmem [shape: f32[8,2], index: 23, kind: input, shape index: {}]
  %s24 = inlined_call_operand.vmem [shape: f32[1,2], index: 24, kind: input, shape index: {}]
  %s25 = inlined_call_operand.hbm [shape: f32[2,2], index: 25, kind: output, shape index: {}]
  %s26 = sld [smem:[#allocation0]]
  $region110: #{mhsa_layers_forward.1} parent=0
    _
  %s28 = ssub.s32 1, %s26
  %s29 = scalar_select 0, %s28, %s26
  $region1: #{mhsa_layers_forward.1} parent=0
    #allocation4 [shape = 'u8[1024]{0}', space=vmem, size = 0x400, scoped, tag = 'output window, operand 0, single buffered']
    #allocation5 [shape = 's32[1]{0}', space=sflag, size = 0x4, scoped, tag = 'scoped memory for mhsa_layers_forward.1']
    %30 = vsyncpa [#allocation5], 0
    // Predicated region
    $region2: #{mhsa_layers_forward.1} parent=1 // pred_check
      _
    $region3: #{mhsa_layers_forward.1} parent=1 // pred_check_branch
      %32 = sbr.rel (0) target = $region5
    $region4: #{mhsa_layers_forward.1} parent=1 // pred_region
      _
    $region5: #{mhsa_layers_forward.1} parent=1 // pred_fallthru
      _
    // Predicated region
    $region6: #{mhsa_layers_forward.1} parent=1 // pred_check
      _
    $region7: #{mhsa_layers_forward.1} parent=1 // pred_check_branch
      %34 = sbr.rel (0) target = $region9
    $region8: #{mhsa_layers_forward.1} parent=1 // pred_region
      _
    $region9: #{mhsa_layers_forward.1} parent=1 // pred_fallthru
      _
    // Predicated region
    $region10: #{mhsa_layers_forward.1} parent=1 // pred_check
      _
    $region11: #{mhsa_layers_forward.1} parent=1 // pred_check_branch
      %36 = sbr.rel (0) target = $region13
    $region12: #{mhsa_layers_forward.1} parent=1 // pred_region
      _
    $region13: #{mhsa_layers_forward.1} parent=1 // pred_fallthru
      _
    // Predicated region
    $region14: #{mhsa_layers_forward.1} parent=1 // pred_check
      _
    $region15: #{mhsa_layers_forward.1} parent=1 // pred_check_branch
      %38 = sbr.rel (0) target = $region17
    $region16: #{mhsa_layers_forward.1} parent=1 // pred_region
      _
    $region17: #{mhsa_layers_forward.1} parent=1 // pred_fallthru
      _
    // Predicated region
    $region18: #{mhsa_layers_forward.1} parent=1 // pred_check
      _
    $region19: #{mhsa_layers_forward.1} parent=1 // pred_check_branch
      %40 = sbr.rel (0) target = $region21
    $region20: #{mhsa_layers_forward.1} parent=1 // pred_region
      _
    $region21: #{mhsa_layers_forward.1} parent=1 // pred_fallthru
      _
    // Predicated region
    $region22: #{mhsa_layers_forward.1} parent=1 // pred_check
      _
    $region23: #{mhsa_layers_forward.1} parent=1 // pred_check_branch
      %42 = sbr.rel (0) target = $region25
    $region24: #{mhsa_layers_forward.1} parent=1 // pred_region
      _
    $region25: #{mhsa_layers_forward.1} parent=1 // pred_fallthru
      _
    // Predicated region
    $region26: #{mhsa_layers_forward.1} parent=1 // pred_check
      _
    $region27: #{mhsa_layers_forward.1} parent=1 // pred_check_branch
      %44 = sbr.rel (0) target = $region29
    $region28: #{mhsa_layers_forward.1} parent=1 // pred_region
      _
    $region29: #{mhsa_layers_forward.1} parent=1 // pred_fallthru
      _
    // Predicated region
    $region30: #{mhsa_layers_forward.1} parent=1 // pred_check
      _
    $region31: #{mhsa_layers_forward.1} parent=1 // pred_check_branch
      %46 = sbr.rel (0) target = $region33
    $region32: #{mhsa_layers_forward.1} parent=1 // pred_region
      _
    $region33: #{mhsa_layers_forward.1} parent=1 // pred_fallthru
      _
    // Predicated region
    $region34: #{mhsa_layers_forward.1} parent=1 // pred_check
      _
    $region35: #{mhsa_layers_forward.1} parent=1 // pred_check_branch
      %48 = sbr.rel (0) target = $region37
    $region36: #{mhsa_layers_forward.1} parent=1 // pred_region
      _
    $region37: #{mhsa_layers_forward.1} parent=1 // pred_fallthru
      _
    // Predicated region
    $region38: #{mhsa_layers_forward.1} parent=1 // pred_check
      _
    $region39: #{mhsa_layers_forward.1} parent=1 // pred_check_branch
      %50 = sbr.rel (0) target = $region41
    $region40: #{mhsa_layers_forward.1} parent=1 // pred_region
      _
    $region41: #{mhsa_layers_forward.1} parent=1 // pred_fallthru
      _
    // Predicated region
    $region42: #{mhsa_layers_forward.1} parent=1 // pred_check
      _
    $region43: #{mhsa_layers_forward.1} parent=1 // pred_check_branch
      %52 = sbr.rel (0) target = $region45
    $region44: #{mhsa_layers_forward.1} parent=1 // pred_region
      _
    $region45: #{mhsa_layers_forward.1} parent=1 // pred_fallthru
      _
    // Predicated region
    $region46: #{mhsa_layers_forward.1} parent=1 // pred_check
      _
    $region47: #{mhsa_layers_forward.1} parent=1 // pred_check_branch
      %54 = sbr.rel (0) target = $region49
    $region48: #{mhsa_layers_forward.1} parent=1 // pred_region
      _
    $region49: #{mhsa_layers_forward.1} parent=1 // pred_fallthru
      _
    // Predicated region
    $region50: #{mhsa_layers_forward.1} parent=1 // pred_check
      _
    $region51: #{mhsa_layers_forward.1} parent=1 // pred_check_branch
      %56 = sbr.rel (0) target = $region53
    $region52: #{mhsa_layers_forward.1} parent=1 // pred_region
      _
    $region53: #{mhsa_layers_forward.1} parent=1 // pred_fallthru
      _
    // Predicated region
    $region54: #{mhsa_layers_forward.1} parent=1 // pred_check
      _
    $region55: #{mhsa_layers_forward.1} parent=1 // pred_check_branch
      %58 = sbr.rel (0) target = $region57
    $region56: #{mhsa_layers_forward.1} parent=1 // pred_region
      _
    $region57: #{mhsa_layers_forward.1} parent=1 // pred_fallthru
      _
    // Predicated region
    $region58: #{mhsa_layers_forward.1} parent=1 // pred_check
      _
    $region59: #{mhsa_layers_forward.1} parent=1 // pred_check_branch
      %60 = sbr.rel (0) target = $region61
    $region60: #{mhsa_layers_forward.1} parent=1 // pred_region
      _
    $region61: #{mhsa_layers_forward.1} parent=1 // pred_fallthru
      _
    // Predicated region
    $region62: #{mhsa_layers_forward.1} parent=1 // pred_check
      _
    $region63: #{mhsa_layers_forward.1} parent=1 // pred_check_branch
      %62 = sbr.rel (0) target = $region65
    $region64: #{mhsa_layers_forward.1} parent=1 // pred_region
      _
    $region65: #{mhsa_layers_forward.1} parent=1 // pred_fallthru
      _
    // Predicated region
    $region66: #{mhsa_layers_forward.1} parent=1 // pred_check
      _
    $region67: #{mhsa_layers_forward.1} parent=1 // pred_check_branch
      %64 = sbr.rel (0) target = $region69
    $region68: #{mhsa_layers_forward.1} parent=1 // pred_region
      _
    $region69: #{mhsa_layers_forward.1} parent=1 // pred_fallthru
      _
    // Predicated region
    $region70: #{mhsa_layers_forward.1} parent=1 // pred_check
      _
    $region71: #{mhsa_layers_forward.1} parent=1 // pred_check_branch
      %66 = sbr.rel (0) target = $region73
    $region72: #{mhsa_layers_forward.1} parent=1 // pred_region
      _
    $region73: #{mhsa_layers_forward.1} parent=1 // pred_fallthru
      _
    // Predicated region
    $region74: #{mhsa_layers_forward.1} parent=1 // pred_check
      _
    $region75: #{mhsa_layers_forward.1} parent=1 // pred_check_branch
      %68 = sbr.rel (0) target = $region77
    $region76: #{mhsa_layers_forward.1} parent=1 // pred_region
      _
    $region77: #{mhsa_layers_forward.1} parent=1 // pred_fallthru
      _
    // Predicated region
    $region78: #{mhsa_layers_forward.1} parent=1 // pred_check
      _
    $region79: #{mhsa_layers_forward.1} parent=1 // pred_check_branch
      %70 = sbr.rel (0) target = $region81
    $region80: #{mhsa_layers_forward.1} parent=1 // pred_region
      _
    $region81: #{mhsa_layers_forward.1} parent=1 // pred_fallthru
      _
    // Predicated region
    $region82: #{mhsa_layers_forward.1} parent=1 // pred_check
      _
    $region83: #{mhsa_layers_forward.1} parent=1 // pred_check_branch
      %72 = sbr.rel (0) target = $region85
    $region84: #{mhsa_layers_forward.1} parent=1 // pred_region
      _
    $region85: #{mhsa_layers_forward.1} parent=1 // pred_fallthru
      _
    // Predicated region
    $region86: #{mhsa_layers_forward.1} parent=1 // pred_check
      _
    $region87: #{mhsa_layers_forward.1} parent=1 // pred_check_branch
      %74 = sbr.rel (0) target = $region89
    $region88: #{mhsa_layers_forward.1} parent=1 // pred_region
      _
    $region89: #{mhsa_layers_forward.1} parent=1 // pred_fallthru
      _
    // Predicated region
    $region90: #{mhsa_layers_forward.1} parent=1 // pred_check
      _
    $region91: #{mhsa_layers_forward.1} parent=1 // pred_check_branch
      %76 = sbr.rel (0) target = $region93
    $region92: #{mhsa_layers_forward.1} parent=1 // pred_region
      _
    $region93: #{mhsa_layers_forward.1} parent=1 // pred_fallthru
      _
    // Predicated region
    $region94: #{mhsa_layers_forward.1} parent=1 // pred_check
      _
    $region95: #{mhsa_layers_forward.1} parent=1 // pred_check_branch
      %78 = sbr.rel (0) target = $region97
    $region96: #{mhsa_layers_forward.1} parent=1 // pred_region
      _
    $region97: #{mhsa_layers_forward.1} parent=1 // pred_fallthru
      _
    // Predicated region
    $region98: #{mhsa_layers_forward.1} parent=1 // pred_check
      _
    $region99: #{mhsa_layers_forward.1} parent=1 // pred_check_branch
      %80 = sbr.rel (0) target = $region101
    $region100: #{mhsa_layers_forward.1} parent=1 // pred_region
      _
    $region101: #{mhsa_layers_forward.1} parent=1 // pred_fallthru
      _
    %v81 = vld [vmem:[%s7] sm:$0x1]
    %v82 = vld [vmem:[%s8] sm:$0x1]
    %v83 = vld [vmem:[%s0] sm:$0xff]
    %v84 = vld [vmem:[%s0 + $0x8] sm:$0xff]
    %v85 = vld [vmem:[%s1] sm:$0xff]
    %v86 = vld [vmem:[%s1 + $0x8] sm:$0xff]
    %v87 = vld [vmem:[%s1 + $0x10] sm:$0xff]
    %v88 = vld [vmem:[%s1 + $0x18] sm:$0xff]
    %v89 = vld [vmem:[%s2] sm:$0x1]
    %v91 = vlaneseq
    %v92 = vshrl.u32 %v91, 7
    %v93 = vsub.s32 0, %v92
    %v94 = vrot.slane %v89, %v93
    %vm96 = vcmask 261120
    %v98 = vsel %vm96, %v83, 0
    %v101 = vsel %vm96, %v84, 0
    %103 = vmatprep.subr.mxu0 0.0
    %104 = vmatpush1.msra.mxu0 %v85
    %105 = vmatprep.subr.mxu0 0.0
    %106 = vmatpush1.msra.mxu0 %v86
    %107 = vmatprep.subr.mxu0 0.0
    %108 = vmatpush1.msra.mxu0 %v87
    %109 = vmatprep.subr.mxu0 0.0
    %110 = vmatpush1.msra.mxu0 %v88
    %111 = vmatprep.subr.mxu0 0.0
    %112 = vmatpush1.msra.mxu0 0.0
    %113 = vmatprep.subr.mxu0 0.0
    %114 = vmatpush1.msra.mxu0 0.0
    %115 = vmatprep.subr.mxu0 0.0
    %116 = vmatpush1.msra.mxu0 0.0
    %117 = vmatprep.subr.mxu0 0.0
    %118 = vmatpush1.msra.mxu0 0.0
    %119 = vmatprep.subr.mxu0 0.0
    %120 = vmatpush1.msra.mxu0 0.0
    %121 = vmatprep.subr.mxu0 0.0
    %122 = vmatpush1.msra.mxu0 0.0
    %123 = vmatprep.subr.mxu0 0.0
    %124 = vmatpush1.msra.mxu0 0.0
    %125 = vmatprep.subr.mxu0 0.0
    %126 = vmatpush1.msra.mxu0 0.0
    %127 = vmatprep.subr.mxu0 0.0
    %128 = vmatpush1.msra.mxu0 0.0
    %129 = vmatprep.subr.mxu0 0.0
    %130 = vmatpush1.msra.mxu0 0.0
    %131 = vmatprep.subr.mxu0 0.0
    %132 = vmatpush1.msra.mxu0 0.0
    %133 = vmatprep.subr.mxu0 0.0
    %134 = vmatpush1.msra.mxu0 0.0
    %135 = vmatprep.subr.mxu0 0.0
    %136 = vmatpush1.msra.mxu0 0.0
    %137 = vmatprep.subr.mxu0 0.0
    %138 = vmatpush1.msra.mxu0 0.0
    %139 = vmatprep.subr.mxu0 0.0
    %140 = vmatpush1.msra.mxu0 0.0
    %141 = vmatprep.subr.mxu0 0.0
    %142 = vmatpush1.msra.mxu0 0.0
    %143 = vmatprep.subr.mxu0 0.0
    %144 = vmatpush1.msra.mxu0 0.0
    %145 = vmatprep.subr.mxu0 0.0
    %146 = vmatpush1.msra.mxu0 0.0
    %147 = vmatprep.subr.mxu0 0.0
    %148 = vmatpush1.msra.mxu0 0.0
    %149 = vmatprep.subr.mxu0 0.0
    %150 = vmatpush1.msra.mxu0 0.0
    %151 = vmatprep.subr.mxu0 0.0
    %152 = vmatpush1.msra.mxu0 0.0
    %153 = vmatprep.subr.mxu0 0.0
    %154 = vmatpush1.msra.mxu0 0.0
    %155 = vmatprep.subr.mxu0 0.0
    %156 = vmatpush1.msra.mxu0 0.0
    %157 = vmatprep.subr.mxu0 0.0
    %158 = vmatpush1.msra.mxu0 0.0
    %159 = vmatprep.subr.mxu0 0.0
    %160 = vmatpush1.msra.mxu0 0.0
    %161 = vmatprep.subr.mxu0 0.0
    %162 = vmatpush1.msra.mxu0 0.0
    %163 = vmatprep.subr.mxu0 0.0
    %164 = vmatpush1.msra.mxu0 0.0
    %165 = vmatprep.subr.mxu0 0.0
    %166 = vmatpush1.msra.mxu0 0.0
    %167 = vmatprep.mubr.f32.mxu0 0.0
    %168 = vmatmul.mubr.f32.gmra.mrb[0].mxu0 %v98
    %v169 = vpop.f32.mrb[0].mxu0
    %v170 = vadd.f32 %v94, %v169
    %v171 = vpop.f32.mrb[0].mxu0
    %172 = vmatprep.mubr.f32.mxu0 0.0
    %173 = vmatmul.mubr.f32.gmra.mrb[0].mxu0 %v101
    %v174 = vpop.f32.mrb[0].mxu0
    %v175 = vadd.f32 %v94, %v174
    %v176 = vpop.f32.mrb[0].mxu0
    %177 = vdwg.mxu0
    %v178 = vld [vmem:[%s3] sm:$0xff]
    %v179 = vld [vmem:[%s3 + $0x8] sm:$0xff]
    %v180 = vld [vmem:[%s3 + $0x10] sm:$0xff]
    %v181 = vld [vmem:[%s3 + $0x18] sm:$0xff]
    %v182 = vld [vmem:[%s3 + $0x20] sm:$0xff]
    %v183 = vld [vmem:[%s3 + $0x28] sm:$0xff]
    %v184 = vld [vmem:[%s3 + $0x30] sm:$0xff]
    %v185 = vld [vmem:[%s3 + $0x38] sm:$0xff]
    %v186 = vld [vmem:[%s3 + $0x40] sm:$0xff]
    %v187 = vld [vmem:[%s3 + $0x48] sm:$0xff]
    %v188 = vld [vmem:[%s3 + $0x50] sm:$0xff]
    %v189 = vld [vmem:[%s3 + $0x58] sm:$0xff]
    %v190 = vld [vmem:[%s4] sm:$0x3]
    %v192 = vlaneseq
    %v193 = vshrl.u32 %v192, 7
    %v194 = vsub.s32 0, %v193
    %v195 = vrot.slane %v190, %v194
    %v196 = vlaneseq
    %v197 = vshrl.u32 %v196, 7
    %v198 = vsub.s32 1, %v197
    %v199 = vrot.slane %v190, %v198
    %vm202 = vcmask 392192
    %v204 = vsel %vm202, %v170, 0
    %v207 = vsel %vm202, %v175, 0
    %209 = vmatprep.subr.mxu0 %v179
    %210 = vmatpush1.msra.mxu0 %v178
    %211 = vmatprep.subr.mxu0 %v181
    %212 = vmatpush1.msra.mxu0 %v180
    %213 = vmatprep.subr.mxu0 %v183
    %214 = vmatpush1.msra.mxu0 %v182
    %215 = vmatprep.subr.mxu0 %v185
    %216 = vmatpush1.msra.mxu0 %v184
    %217 = vmatprep.subr.mxu0 %v187
    %218 = vmatpush1.msra.mxu0 %v186
    %219 = vmatprep.subr.mxu0 %v189
    %220 = vmatpush1.msra.mxu0 %v188
    %221 = vmatprep.subr.mxu0 0.0
    %222 = vmatpush1.msra.mxu0 0.0
    %223 = vmatprep.subr.mxu0 0.0
    %224 = vmatpush1.msra.mxu0 0.0
    %225 = vmatprep.subr.mxu0 0.0
    %226 = vmatpush1.msra.mxu0 0.0
    %227 = vmatprep.subr.mxu0 0.0
    %228 = vmatpush1.msra.mxu0 0.0
    %229 = vmatprep.subr.mxu0 0.0
    %230 = vmatpush1.msra.mxu0 0.0
    %231 = vmatprep.subr.mxu0 0.0
    %232 = vmatpush1.msra.mxu0 0.0
    %233 = vmatprep.subr.mxu0 0.0
    %234 = vmatpush1.msra.mxu0 0.0
    %235 = vmatprep.subr.mxu0 0.0
    %236 = vmatpush1.msra.mxu0 0.0
    %237 = vmatprep.subr.mxu0 0.0
    %238 = vmatpush1.msra.mxu0 0.0
    %239 = vmatprep.subr.mxu0 0.0
    %240 = vmatpush1.msra.mxu0 0.0
    %241 = vmatprep.subr.mxu0 0.0
    %242 = vmatpush1.msra.mxu0 0.0
    %243 = vmatprep.subr.mxu0 0.0
    %244 = vmatpush1.msra.mxu0 0.0
    %245 = vmatprep.subr.mxu0 0.0
    %246 = vmatpush1.msra.mxu0 0.0
    %247 = vmatprep.subr.mxu0 0.0
    %248 = vmatpush1.msra.mxu0 0.0
    %249 = vmatprep.subr.mxu0 0.0
    %250 = vmatpush1.msra.mxu0 0.0
    %251 = vmatprep.subr.mxu0 0.0
    %252 = vmatpush1.msra.mxu0 0.0
    %253 = vmatprep.subr.mxu0 0.0
    %254 = vmatpush1.msra.mxu0 0.0
    %255 = vmatprep.subr.mxu0 0.0
    %256 = vmatpush1.msra.mxu0 0.0
    %257 = vmatprep.subr.mxu0 0.0
    %258 = vmatpush1.msra.mxu0 0.0
    %259 = vmatprep.subr.mxu0 0.0
    %260 = vmatpush1.msra.mxu0 0.0
    %261 = vmatprep.subr.mxu0 0.0
    %262 = vmatpush1.msra.mxu0 0.0
    %263 = vmatprep.subr.mxu0 0.0
    %264 = vmatpush1.msra.mxu0 0.0
    %265 = vmatprep.subr.mxu0 0.0
    %266 = vmatpush1.msra.mxu0 0.0
    %267 = vmatprep.subr.mxu0 0.0
    %268 = vmatpush1.msra.mxu0 0.0
    %269 = vmatprep.subr.mxu0 0.0
    %270 = vmatpush1.msra.mxu0 0.0
    %271 = vmatprep.subr.mxu0 0.0
    %272 = vmatpush1.msra.mxu0 0.0
    %273 = vmatprep.mubr.f32.mxu0 0.0
    %274 = vmatmul.mubr.f32.gmra.mrb[0].mxu0 %v204
    %v275 = vpop.f32.mrb[0].mxu0
    %v276 = vadd.f32 %v195, %v275
    %v277 = vpop.f32.mrb[0].mxu0
    %v278 = vadd.f32 %v199, %v277
    %279 = vmatprep.mubr.f32.mxu0 0.0
    %280 = vmatmul.mubr.f32.gmra.mrb[0].mxu0 %v207
    %v281 = vpop.f32.mrb[0].mxu0
    %v282 = vadd.f32 %v195, %v281
    %v283 = vpop.f32.mrb[0].mxu0
    %v284 = vadd.f32 %v199, %v283
    %285 = vdwg.mxu0
    %v286 = vld [vmem:[%s5] sm:$0xff]
    %v287 = vld [vmem:[%s5 + $0x8] sm:$0xff]
    %v288 = vld [vmem:[%s5 + $0x10] sm:$0xff]
    %v289 = vld [vmem:[%s5 + $0x18] sm:$0xff]
    %v290 = vld [vmem:[%s5 + $0x20] sm:$0xff]
    %v291 = vld [vmem:[%s5 + $0x28] sm:$0xff]
    %v292 = vld [vmem:[%s5 + $0x30] sm:$0xff]
    %v293 = vld [vmem:[%s5 + $0x38] sm:$0xff]
    %v294 = vld [vmem:[%s5 + $0x40] sm:$0xff]
    %v295 = vld [vmem:[%s5 + $0x48] sm:$0xff]
    %v296 = vld [vmem:[%s5 + $0x50] sm:$0xff]
    %v297 = vld [vmem:[%s5 + $0x58] sm:$0xff]
    %v298 = vld [vmem:[%s6] sm:$0x3]
    %v300 = vlaneseq
    %v301 = vshrl.u32 %v300, 7
    %v302 = vsub.s32 0, %v301
    %v303 = vrot.slane %v298, %v302
    %v304 = vlaneseq
    %v305 = vshrl.u32 %v304, 7
    %v306 = vsub.s32 1, %v305
    %v307 = vrot.slane %v298, %v306
    %v311 = vsel %vm202, 0.0, 0
    %313 = vmatprep.subr.mxu0 %v287
    %314 = vmatpush1.msra.mxu0 %v286
    %315 = vmatprep.subr.mxu0 %v289
    %316 = vmatpush1.msra.mxu0 %v288
    %317 = vmatprep.subr.mxu0 %v291
    %318 = vmatpush1.msra.mxu0 %v290
    %319 = vmatprep.subr.mxu0 %v293
    %320 = vmatpush1.msra.mxu0 %v292
    %321 = vmatprep.subr.mxu0 %v295
    %322 = vmatpush1.msra.mxu0 %v294
    %323 = vmatprep.subr.mxu0 %v297
    %324 = vmatpush1.msra.mxu0 %v296
    %325 = vmatprep.subr.mxu0 0.0
    %326 = vmatpush1.msra.mxu0 0.0
    %327 = vmatprep.subr.mxu0 0.0
    %328 = vmatpush1.msra.mxu0 0.0
    %329 = vmatprep.subr.mxu0 0.0
    %330 = vmatpush1.msra.mxu0 0.0
    %331 = vmatprep.subr.mxu0 0.0
    %332 = vmatpush1.msra.mxu0 0.0
    %333 = vmatprep.subr.mxu0 0.0
    %334 = vmatpush1.msra.mxu0 0.0
    %335 = vmatprep.subr.mxu0 0.0
    %336 = vmatpush1.msra.mxu0 0.0
    %337 = vmatprep.subr.mxu0 0.0
    %338 = vmatpush1.msra.mxu0 0.0
    %339 = vmatprep.subr.mxu0 0.0
    %340 = vmatpush1.msra.mxu0 0.0
    %341 = vmatprep.subr.mxu0 0.0
    %342 = vmatpush1.msra.mxu0 0.0
    %343 = vmatprep.subr.mxu0 0.0
    %344 = vmatpush1.msra.mxu0 0.0
    %345 = vmatprep.subr.mxu0 0.0
    %346 = vmatpush1.msra.mxu0 0.0
    %347 = vmatprep.subr.mxu0 0.0
    %348 = vmatpush1.msra.mxu0 0.0
    %349 = vmatprep.subr.mxu0 0.0
    %350 = vmatpush1.msra.mxu0 0.0
    %351 = vmatprep.subr.mxu0 0.0
    %352 = vmatpush1.msra.mxu0 0.0
    %353 = vmatprep.subr.mxu0 0.0
    %354 = vmatpush1.msra.mxu0 0.0
    %355 = vmatprep.subr.mxu0 0.0
    %356 = vmatpush1.msra.mxu0 0.0
    %357 = vmatprep.subr.mxu0 0.0
    %358 = vmatpush1.msra.mxu0 0.0
    %359 = vmatprep.subr.mxu0 0.0
    %360 = vmatpush1.msra.mxu0 0.0
    %361 = vmatprep.subr.mxu0 0.0
    %362 = vmatpush1.msra.mxu0 0.0
    %363 = vmatprep.subr.mxu0 0.0
    %364 = vmatpush1.msra.mxu0 0.0
    %365 = vmatprep.subr.mxu0 0.0
    %366 = vmatpush1.msra.mxu0 0.0
    %367 = vmatprep.subr.mxu0 0.0
    %368 = vmatpush1.msra.mxu0 0.0
    %369 = vmatprep.subr.mxu0 0.0
    %370 = vmatpush1.msra.mxu0 0.0
    %371 = vmatprep.subr.mxu0 0.0
    %372 = vmatpush1.msra.mxu0 0.0
    %373 = vmatprep.subr.mxu0 0.0
    %374 = vmatpush1.msra.mxu0 0.0
    %375 = vmatprep.subr.mxu0 0.0
    %376 = vmatpush1.msra.mxu0 0.0
    %377 = vmatprep.mubr.f32.mxu0 0.0
    %378 = vmatmul.mubr.f32.gmra.mrb[0].mxu0 %v311
    %v379 = vpop.f32.mrb[0].mxu0
    %v380 = vadd.f32 %v303, %v379
    %v381 = vpop.f32.mrb[0].mxu0
    %v382 = vadd.f32 %v307, %v381
    %383 = vdwg.mxu0
    %v384 = vadd.f32 %v276, %v380
    %v385 = vsub.f32 0.0, %v384
    %v386 = vmul.f32 %v385, 1.442695
    %v387 = vpow.pop %v386
    %v388 = vadd.f32 %v387, 1.0
    %v389 = vrcp.pop %v388
    %v390 = vmul.f32 1.0, %v389
    %393 = vrot.lane.b32.xlu0 %v380, 32
    %v394 = vpop.permute.xlu0 %393
    %395 = vrot.lane.b32.xlu0 %v382, 32
    %v396 = vpop.permute.xlu0 %395
    %v397 = vsel %vm96, %v394, %v396
    %v399 = vmul.f32 %v390, %v397
    %401 = vrot.lane.b32.xlu0 %v399, 96
    %v402 = vpop.permute.xlu0 %401
    %v404 = vadd.f32 %v276, %v402
    %v405 = vadd.f32 %v278, %v402
    %v406 = vtanh.pop %v404
    %v407 = vtanh.pop %v405
    %v408 = vsub.f32 1.0, %v390
    %411 = vrot.lane.b32.xlu0 %v406, 80
    %v412 = vpop.permute.xlu0 %411
    %413 = vrot.lane.b32.xlu0 %v407, 80
    %v414 = vpop.permute.xlu0 %413
    %vm415 = vcmask 654336
    %v416 = vsel %vm415, %v412, %v414
    %v418 = vmul.f32 %v408, %v416
    %v419 = vmul.f32 %v390, 0.0
    %v420 = vadd.f32 %v418, %v419
    %422 = vrot.lane.b32.xlu0 %v420, 80
    %v423 = vpop.permute.xlu0 %422
    %vm425 = vcmask 385024
    %426 = vst.msk [vmem:[#allocation2] sm:$0x1] %vm425, %v423
    %v427 = vsel %vm202, %v423, 0
    %429 = vmatprep.subr.mxu0 %v287
    %430 = vmatpush1.msra.mxu0 %v286
    %431 = vmatprep.subr.mxu0 %v289
    %432 = vmatpush1.msra.mxu0 %v288
    %433 = vmatprep.subr.mxu0 %v291
    %434 = vmatpush1.msra.mxu0 %v290
    %435 = vmatprep.subr.mxu0 %v293
    %436 = vmatpush1.msra.mxu0 %v292
    %437 = vmatprep.subr.mxu0 %v295
    %438 = vmatpush1.msra.mxu0 %v294
    %439 = vmatprep.subr.mxu0 %v297
    %440 = vmatpush1.msra.mxu0 %v296
    %441 = vmatprep.subr.mxu0 0.0
    %442 = vmatpush1.msra.mxu0 0.0
    %443 = vmatprep.subr.mxu0 0.0
    %444 = vmatpush1.msra.mxu0 0.0
    %445 = vmatprep.subr.mxu0 0.0
    %446 = vmatpush1.msra.mxu0 0.0
    %447 = vmatprep.subr.mxu0 0.0
    %448 = vmatpush1.msra.mxu0 0.0
    %449 = vmatprep.subr.mxu0 0.0
    %450 = vmatpush1.msra.mxu0 0.0
    %451 = vmatprep.subr.mxu0 0.0
    %452 = vmatpush1.msra.mxu0 0.0
    %453 = vmatprep.subr.mxu0 0.0
    %454 = vmatpush1.msra.mxu0 0.0
    %455 = vmatprep.subr.mxu0 0.0
    %456 = vmatpush1.msra.mxu0 0.0
    %457 = vmatprep.subr.mxu0 0.0
    %458 = vmatpush1.msra.mxu0 0.0
    %459 = vmatprep.subr.mxu0 0.0
    %460 = vmatpush1.msra.mxu0 0.0
    %461 = vmatprep.subr.mxu0 0.0
    %462 = vmatpush1.msra.mxu0 0.0
    %463 = vmatprep.subr.mxu0 0.0
    %464 = vmatpush1.msra.mxu0 0.0
    %465 = vmatprep.subr.mxu0 0.0
    %466 = vmatpush1.msra.mxu0 0.0
    %467 = vmatprep.subr.mxu0 0.0
    %468 = vmatpush1.msra.mxu0 0.0
    %469 = vmatprep.subr.mxu0 0.0
    %470 = vmatpush1.msra.mxu0 0.0
    %471 = vmatprep.subr.mxu0 0.0
    %472 = vmatpush1.msra.mxu0 0.0
    %473 = vmatprep.subr.mxu0 0.0
    %474 = vmatpush1.msra.mxu0 0.0
    %475 = vmatprep.subr.mxu0 0.0
    %476 = vmatpush1.msra.mxu0 0.0
    %477 = vmatprep.subr.mxu0 0.0
    %478 = vmatpush1.msra.mxu0 0.0
    %479 = vmatprep.subr.mxu0 0.0
    %480 = vmatpush1.msra.mxu0 0.0
    %481 = vmatprep.subr.mxu0 0.0
    %482 = vmatpush1.msra.mxu0 0.0
    %483 = vmatprep.subr.mxu0 0.0
    %484 = vmatpush1.msra.mxu0 0.0
    %485 = vmatprep.subr.mxu0 0.0
    %486 = vmatpush1.msra.mxu0 0.0
    %487 = vmatprep.subr.mxu0 0.0
    %488 = vmatpush1.msra.mxu0 0.0
    %489 = vmatprep.subr.mxu0 0.0
    %490 = vmatpush1.msra.mxu0 0.0
    %491 = vmatprep.subr.mxu0 0.0
    %492 = vmatpush1.msra.mxu0 0.0
    %493 = vmatprep.mubr.f32.mxu0 0.0
    %494 = vmatmul.mubr.f32.gmra.mrb[0].mxu0 %v427
    %v495 = vpop.f32.mrb[0].mxu0
    %v496 = vadd.f32 %v303, %v495
    %v497 = vpop.f32.mrb[0].mxu0
    %v498 = vadd.f32 %v307, %v497
    %499 = vdwg.mxu0
    %v501 = vrot.slane %v496, 7
    %v503 = vadd.f32 %v276, %v501
    %v504 = vsub.f32 0.0, %v503
    %v505 = vmul.f32 %v504, 1.442695
    %v506 = vpow.pop %v505
    %v507 = vadd.f32 %v506, 1.0
    %v508 = vrcp.pop %v507
    %v509 = vmul.f32 1.0, %v508
    %v511 = vrot.slane %v498, 7
    %512 = vrot.lane.b32.xlu0 %v501, 32
    %v513 = vpop.permute.xlu0 %512
    %514 = vrot.lane.b32.xlu0 %v511, 32
    %v515 = vpop.permute.xlu0 %514
    %v516 = vsel %vm96, %v513, %v515
    %v518 = vmul.f32 %v509, %v516
    %520 = vrot.lane.b32.xlu0 %v518, 96
    %v521 = vpop.permute.xlu0 %520
    %v523 = vadd.f32 %v276, %v521
    %v524 = vadd.f32 %v278, %v521
    %v525 = vtanh.pop %v523
    %v526 = vtanh.pop %v524
    %v527 = vsub.f32 1.0, %v509
    %530 = vrot.lane.b32.xlu0 %v525, 80
    %v531 = vpop.permute.xlu0 %530
    %532 = vrot.lane.b32.xlu0 %v526, 80
    %v533 = vpop.permute.xlu0 %532
    %v534 = vsel %vm415, %v531, %v533
    %v536 = vmul.f32 %v527, %v534
    %v537 = vrot.slane %v420, 7
    %v539 = vmul.f32 %v509, %v537
    %v540 = vadd.f32 %v536, %v539
    %542 = vrot.lane.b32.xlu0 %v540, 80
    %v543 = vpop.permute.xlu0 %542
    %vm545 = vcmask 386049
    %546 = vst.msk [vmem:[#allocation2] sm:$0x2] %vm545, %v543
    %v547 = vrot.slane %v540, 1
    %548 = vrot.lane.b32.xlu0 %v547, 80
    %v549 = vpop.permute.xlu0 %548
    %v550 = vsel %vm202, %v549, 0
    %552 = vmatprep.subr.mxu0 %v287
    %553 = vmatpush1.msra.mxu0 %v286
    %554 = vmatprep.subr.mxu0 %v289
    %555 = vmatpush1.msra.mxu0 %v288
    %556 = vmatprep.subr.mxu0 %v291
    %557 = vmatpush1.msra.mxu0 %v290
    %558 = vmatprep.subr.mxu0 %v293
    %559 = vmatpush1.msra.mxu0 %v292
    %560 = vmatprep.subr.mxu0 %v295
    %561 = vmatpush1.msra.mxu0 %v294
    %562 = vmatprep.subr.mxu0 %v297
    %563 = vmatpush1.msra.mxu0 %v296
    %564 = vmatprep.subr.mxu0 0.0
    %565 = vmatpush1.msra.mxu0 0.0
    %566 = vmatprep.subr.mxu0 0.0
    %567 = vmatpush1.msra.mxu0 0.0
    %568 = vmatprep.subr.mxu0 0.0
    %569 = vmatpush1.msra.mxu0 0.0
    %570 = vmatprep.subr.mxu0 0.0
    %571 = vmatpush1.msra.mxu0 0.0
    %572 = vmatprep.subr.mxu0 0.0
    %573 = vmatpush1.msra.mxu0 0.0
    %574 = vmatprep.subr.mxu0 0.0
    %575 = vmatpush1.msra.mxu0 0.0
    %576 = vmatprep.subr.mxu0 0.0
    %577 = vmatpush1.msra.mxu0 0.0
    %578 = vmatprep.subr.mxu0 0.0
    %579 = vmatpush1.msra.mxu0 0.0
    %580 = vmatprep.subr.mxu0 0.0
    %581 = vmatpush1.msra.mxu0 0.0
    %582 = vmatprep.subr.mxu0 0.0
    %583 = vmatpush1.msra.mxu0 0.0
    %584 = vmatprep.subr.mxu0 0.0
    %585 = vmatpush1.msra.mxu0 0.0
    %586 = vmatprep.subr.mxu0 0.0
    %587 = vmatpush1.msra.mxu0 0.0
    %588 = vmatprep.subr.mxu0 0.0
    %589 = vmatpush1.msra.mxu0 0.0
    %590 = vmatprep.subr.mxu0 0.0
    %591 = vmatpush1.msra.mxu0 0.0
    %592 = vmatprep.subr.mxu0 0.0
    %593 = vmatpush1.msra.mxu0 0.0
    %594 = vmatprep.subr.mxu0 0.0
    %595 = vmatpush1.msra.mxu0 0.0
    %596 = vmatprep.subr.mxu0 0.0
    %597 = vmatpush1.msra.mxu0 0.0
    %598 = vmatprep.subr.mxu0 0.0
    %599 = vmatpush1.msra.mxu0 0.0
    %600 = vmatprep.subr.mxu0 0.0
    %601 = vmatpush1.msra.mxu0 0.0
    %602 = vmatprep.subr.mxu0 0.0
    %603 = vmatpush1.msra.mxu0 0.0
    %604 = vmatprep.subr.mxu0 0.0
    %605 = vmatpush1.msra.mxu0 0.0
    %606 = vmatprep.subr.mxu0 0.0
    %607 = vmatpush1.msra.mxu0 0.0
    %608 = vmatprep.subr.mxu0 0.0
    %609 = vmatpush1.msra.mxu0 0.0
    %610 = vmatprep.subr.mxu0 0.0
    %611 = vmatpush1.msra.mxu0 0.0
    %612 = vmatprep.subr.mxu0 0.0
    %613 = vmatpush1.msra.mxu0 0.0
    %614 = vmatprep.subr.mxu0 0.0
    %615 = vmatpush1.msra.mxu0 0.0
    %616 = vmatprep.mubr.f32.mxu0 0.0
    %617 = vmatmul.mubr.f32.gmra.mrb[0].mxu0 %v550
    %v618 = vpop.f32.mrb[0].mxu0
    %v619 = vadd.f32 %v303, %v618
    %v620 = vpop.f32.mrb[0].mxu0
    %v621 = vadd.f32 %v307, %v620
    %622 = vdwg.mxu0
    %v624 = vrot.slane %v619, 6
    %v626 = vadd.f32 %v276, %v624
    %v627 = vsub.f32 0.0, %v626
    %v628 = vmul.f32 %v627, 1.442695
    %v629 = vpow.pop %v628
    %v630 = vadd.f32 %v629, 1.0
    %v631 = vrcp.pop %v630
    %v632 = vmul.f32 1.0, %v631
    %v634 = vrot.slane %v621, 6
    %635 = vrot.lane.b32.xlu0 %v624, 32
    %v636 = vpop.permute.xlu0 %635
    %637 = vrot.lane.b32.xlu0 %v634, 32
    %v638 = vpop.permute.xlu0 %637
    %v639 = vsel %vm96, %v636, %v638
    %v641 = vmul.f32 %v632, %v639
    %643 = vrot.lane.b32.xlu0 %v641, 96
    %v644 = vpop.permute.xlu0 %643
    %v646 = vadd.f32 %v276, %v644
    %v647 = vadd.f32 %v278, %v644
    %v648 = vtanh.pop %v646
    %v649 = vtanh.pop %v647
    %v650 = vsub.f32 1.0, %v632
    %653 = vrot.lane.b32.xlu0 %v648, 80
    %v654 = vpop.permute.xlu0 %653
    %655 = vrot.lane.b32.xlu0 %v649, 80
    %v656 = vpop.permute.xlu0 %655
    %v657 = vsel %vm415, %v654, %v656
    %v659 = vmul.f32 %v650, %v657
    %v660 = vrot.slane %v540, 7
    %v662 = vmul.f32 %v632, %v660
    %v663 = vadd.f32 %v659, %v662
    %665 = vrot.lane.b32.xlu0 %v663, 80
    %v666 = vpop.permute.xlu0 %665
    %vm668 = vcmask 387074
    %669 = vst.msk [vmem:[#allocation2] sm:$0x4] %vm668, %v666
    %v670 = vrot.slane %v663, 2
    %671 = vrot.lane.b32.xlu0 %v670, 80
    %v672 = vpop.permute.xlu0 %671
    %v673 = vsel %vm202, %v672, 0
    %675 = vmatprep.subr.mxu0 %v287
    %676 = vmatpush1.msra.mxu0 %v286
    %677 = vmatprep.subr.mxu0 %v289
    %678 = vmatpush1.msra.mxu0 %v288
    %679 = vmatprep.subr.mxu0 %v291
    %680 = vmatpush1.msra.mxu0 %v290
    %681 = vmatprep.subr.mxu0 %v293
    %682 = vmatpush1.msra.mxu0 %v292
    %683 = vmatprep.subr.mxu0 %v295
    %684 = vmatpush1.msra.mxu0 %v294
    %685 = vmatprep.subr.mxu0 %v297
    %686 = vmatpush1.msra.mxu0 %v296
    %687 = vmatprep.subr.mxu0 0.0
    %688 = vmatpush1.msra.mxu0 0.0
    %689 = vmatprep.subr.mxu0 0.0
    %690 = vmatpush1.msra.mxu0 0.0
    %691 = vmatprep.subr.mxu0 0.0
    %692 = vmatpush1.msra.mxu0 0.0
    %693 = vmatprep.subr.mxu0 0.0
    %694 = vmatpush1.msra.mxu0 0.0
    %695 = vmatprep.subr.mxu0 0.0
    %696 = vmatpush1.msra.mxu0 0.0
    %697 = vmatprep.subr.mxu0 0.0
    %698 = vmatpush1.msra.mxu0 0.0
    %699 = vmatprep.subr.mxu0 0.0
    %700 = vmatpush1.msra.mxu0 0.0
    %701 = vmatprep.subr.mxu0 0.0
    %702 = vmatpush1.msra.mxu0 0.0
    %703 = vmatprep.subr.mxu0 0.0
    %704 = vmatpush1.msra.mxu0 0.0
    %705 = vmatprep.subr.mxu0 0.0
    %706 = vmatpush1.msra.mxu0 0.0
    %707 = vmatprep.subr.mxu0 0.0
    %708 = vmatpush1.msra.mxu0 0.0
    %709 = vmatprep.subr.mxu0 0.0
    %710 = vmatpush1.msra.mxu0 0.0
    %711 = vmatprep.subr.mxu0 0.0
    %712 = vmatpush1.msra.mxu0 0.0
    %713 = vmatprep.subr.mxu0 0.0
    %714 = vmatpush1.msra.mxu0 0.0
    %715 = vmatprep.subr.mxu0 0.0
    %716 = vmatpush1.msra.mxu0 0.0
    %717 = vmatprep.subr.mxu0 0.0
    %718 = vmatpush1.msra.mxu0 0.0
    %719 = vmatprep.subr.mxu0 0.0
    %720 = vmatpush1.msra.mxu0 0.0
    %721 = vmatprep.subr.mxu0 0.0
    %722 = vmatpush1.msra.mxu0 0.0
    %723 = vmatprep.subr.mxu0 0.0
    %724 = vmatpush1.msra.mxu0 0.0
    %725 = vmatprep.subr.mxu0 0.0
    %726 = vmatpush1.msra.mxu0 0.0
    %727 = vmatprep.subr.mxu0 0.0
    %728 = vmatpush1.msra.mxu0 0.0
    %729 = vmatprep.subr.mxu0 0.0
    %730 = vmatpush1.msra.mxu0 0.0
    %731 = vmatprep.subr.mxu0 0.0
    %732 = vmatpush1.msra.mxu0 0.0
    %733 = vmatprep.subr.mxu0 0.0
    %734 = vmatpush1.msra.mxu0 0.0
    %735 = vmatprep.subr.mxu0 0.0
    %736 = vmatpush1.msra.mxu0 0.0
    %737 = vmatprep.subr.mxu0 0.0
    %738 = vmatpush1.msra.mxu0 0.0
    %739 = vmatprep.mubr.f32.mxu0 0.0
    %740 = vmatmul.mubr.f32.gmra.mrb[0].mxu0 %v673
    %v741 = vpop.f32.mrb[0].mxu0
    %v742 = vadd.f32 %v303, %v741
    %v743 = vpop.f32.mrb[0].mxu0
    %v744 = vadd.f32 %v307, %v743
    %745 = vdwg.mxu0
    %v747 = vrot.slane %v742, 5
    %v749 = vadd.f32 %v276, %v747
    %v750 = vsub.f32 0.0, %v749
    %v751 = vmul.f32 %v750, 1.442695
    %v752 = vpow.pop %v751
    %v753 = vadd.f32 %v752, 1.0
    %v754 = vrcp.pop %v753
    %v755 = vmul.f32 1.0, %v754
    %v757 = vrot.slane %v744, 5
    %758 = vrot.lane.b32.xlu0 %v747, 32
    %v759 = vpop.permute.xlu0 %758
    %760 = vrot.lane.b32.xlu0 %v757, 32
    %v761 = vpop.permute.xlu0 %760
    %v762 = vsel %vm96, %v759, %v761
    %v764 = vmul.f32 %v755, %v762
    %766 = vrot.lane.b32.xlu0 %v764, 96
    %v767 = vpop.permute.xlu0 %766
    %v769 = vadd.f32 %v276, %v767
    %v770 = vadd.f32 %v278, %v767
    %v771 = vtanh.pop %v769
    %v772 = vtanh.pop %v770
    %v773 = vsub.f32 1.0, %v755
    %776 = vrot.lane.b32.xlu0 %v771, 80
    %v777 = vpop.permute.xlu0 %776
    %778 = vrot.lane.b32.xlu0 %v772, 80
    %v779 = vpop.permute.xlu0 %778
    %v780 = vsel %vm415, %v777, %v779
    %v782 = vmul.f32 %v773, %v780
    %v783 = vrot.slane %v663, 7
    %v785 = vmul.f32 %v755, %v783
    %v786 = vadd.f32 %v782, %v785
    %788 = vrot.lane.b32.xlu0 %v786, 80
    %v789 = vpop.permute.xlu0 %788
    %vm791 = vcmask 388099
    %792 = vst.msk [vmem:[#allocation2] sm:$0x8] %vm791, %v789
    %v793 = vrot.slane %v786, 3
    %794 = vrot.lane.b32.xlu0 %v793, 80
    %v795 = vpop.permute.xlu0 %794
    %v796 = vsel %vm202, %v795, 0
    %798 = vmatprep.subr.mxu0 %v287
    %799 = vmatpush1.msra.mxu0 %v286
    %800 = vmatprep.subr.mxu0 %v289
    %801 = vmatpush1.msra.mxu0 %v288
    %802 = vmatprep.subr.mxu0 %v291
    %803 = vmatpush1.msra.mxu0 %v290
    %804 = vmatprep.subr.mxu0 %v293
    %805 = vmatpush1.msra.mxu0 %v292
    %806 = vmatprep.subr.mxu0 %v295
    %807 = vmatpush1.msra.mxu0 %v294
    %808 = vmatprep.subr.mxu0 %v297
    %809 = vmatpush1.msra.mxu0 %v296
    %810 = vmatprep.subr.mxu0 0.0
    %811 = vmatpush1.msra.mxu0 0.0
    %812 = vmatprep.subr.mxu0 0.0
    %813 = vmatpush1.msra.mxu0 0.0
    %814 = vmatprep.subr.mxu0 0.0
    %815 = vmatpush1.msra.mxu0 0.0
    %816 = vmatprep.subr.mxu0 0.0
    %817 = vmatpush1.msra.mxu0 0.0
    %818 = vmatprep.subr.mxu0 0.0
    %819 = vmatpush1.msra.mxu0 0.0
    %820 = vmatprep.subr.mxu0 0.0
    %821 = vmatpush1.msra.mxu0 0.0
    %822 = vmatprep.subr.mxu0 0.0
    %823 = vmatpush1.msra.mxu0 0.0
    %824 = vmatprep.subr.mxu0 0.0
    %825 = vmatpush1.msra.mxu0 0.0
    %826 = vmatprep.subr.mxu0 0.0
    %827 = vmatpush1.msra.mxu0 0.0
    %828 = vmatprep.subr.mxu0 0.0
    %829 = vmatpush1.msra.mxu0 0.0
    %830 = vmatprep.subr.mxu0 0.0
    %831 = vmatpush1.msra.mxu0 0.0
    %832 = vmatprep.subr.mxu0 0.0
    %833 = vmatpush1.msra.mxu0 0.0
    %834 = vmatprep.subr.mxu0 0.0
    %835 = vmatpush1.msra.mxu0 0.0
    %836 = vmatprep.subr.mxu0 0.0
    %837 = vmatpush1.msra.mxu0 0.0
    %838 = vmatprep.subr.mxu0 0.0
    %839 = vmatpush1.msra.mxu0 0.0
    %840 = vmatprep.subr.mxu0 0.0
    %841 = vmatpush1.msra.mxu0 0.0
    %842 = vmatprep.subr.mxu0 0.0
    %843 = vmatpush1.msra.mxu0 0.0
    %844 = vmatprep.subr.mxu0 0.0
    %845 = vmatpush1.msra.mxu0 0.0
    %846 = vmatprep.subr.mxu0 0.0
    %847 = vmatpush1.msra.mxu0 0.0
    %848 = vmatprep.subr.mxu0 0.0
    %849 = vmatpush1.msra.mxu0 0.0
    %850 = vmatprep.subr.mxu0 0.0
    %851 = vmatpush1.msra.mxu0 0.0
    %852 = vmatprep.subr.mxu0 0.0
    %853 = vmatpush1.msra.mxu0 0.0
    %854 = vmatprep.subr.mxu0 0.0
    %855 = vmatpush1.msra.mxu0 0.0
    %856 = vmatprep.subr.mxu0 0.0
    %857 = vmatpush1.msra.mxu0 0.0
    %858 = vmatprep.subr.mxu0 0.0
    %859 = vmatpush1.msra.mxu0 0.0
    %860 = vmatprep.subr.mxu0 0.0
    %861 = vmatpush1.msra.mxu0 0.0
    %862 = vmatprep.mubr.f32.mxu0 0.0
    %863 = vmatmul.mubr.f32.gmra.mrb[0].mxu0 %v796
    %v864 = vpop.f32.mrb[0].mxu0
    %v865 = vadd.f32 %v303, %v864
    %v866 = vpop.f32.mrb[0].mxu0
    %v867 = vadd.f32 %v307, %v866
    %868 = vdwg.mxu0
    %v870 = vrot.slane %v865, 4
    %v872 = vadd.f32 %v276, %v870
    %v873 = vsub.f32 0.0, %v872
    %v874 = vmul.f32 %v873, 1.442695
    %v875 = vpow.pop %v874
    %v876 = vadd.f32 %v875, 1.0
    %v877 = vrcp.pop %v876
    %v878 = vmul.f32 1.0, %v877
    %v880 = vrot.slane %v867, 4
    %881 = vrot.lane.b32.xlu0 %v870, 32
    %v882 = vpop.permute.xlu0 %881
    %883 = vrot.lane.b32.xlu0 %v880, 32
    %v884 = vpop.permute.xlu0 %883
    %v885 = vsel %vm96, %v882, %v884
    %v887 = vmul.f32 %v878, %v885
    %889 = vrot.lane.b32.xlu0 %v887, 96
    %v890 = vpop.permute.xlu0 %889
    %v892 = vadd.f32 %v276, %v890
    %v893 = vadd.f32 %v278, %v890
    %v894 = vtanh.pop %v892
    %v895 = vtanh.pop %v893
    %v896 = vsub.f32 1.0, %v878
    %899 = vrot.lane.b32.xlu0 %v894, 80
    %v900 = vpop.permute.xlu0 %899
    %901 = vrot.lane.b32.xlu0 %v895, 80
    %v902 = vpop.permute.xlu0 %901
    %v903 = vsel %vm415, %v900, %v902
    %v905 = vmul.f32 %v896, %v903
    %v906 = vrot.slane %v786, 7
    %v908 = vmul.f32 %v878, %v906
    %v909 = vadd.f32 %v905, %v908
    %911 = vrot.lane.b32.xlu0 %v909, 80
    %v912 = vpop.permute.xlu0 %911
    %vm914 = vcmask 389124
    %915 = vst.msk [vmem:[#allocation2] sm:$0x10] %vm914, %v912
    %v916 = vrot.slane %v909, 4
    %917 = vrot.lane.b32.xlu0 %v916, 80
    %v918 = vpop.permute.xlu0 %917
    %v919 = vsel %vm202, %v918, 0
    %921 = vmatprep.subr.mxu0 %v287
    %922 = vmatpush1.msra.mxu0 %v286
    %923 = vmatprep.subr.mxu0 %v289
    %924 = vmatpush1.msra.mxu0 %v288
    %925 = vmatprep.subr.mxu0 %v291
    %926 = vmatpush1.msra.mxu0 %v290
    %927 = vmatprep.subr.mxu0 %v293
    %928 = vmatpush1.msra.mxu0 %v292
    %929 = vmatprep.subr.mxu0 %v295
    %930 = vmatpush1.msra.mxu0 %v294
    %931 = vmatprep.subr.mxu0 %v297
    %932 = vmatpush1.msra.mxu0 %v296
    %933 = vmatprep.subr.mxu0 0.0
    %934 = vmatpush1.msra.mxu0 0.0
    %935 = vmatprep.subr.mxu0 0.0
    %936 = vmatpush1.msra.mxu0 0.0
    %937 = vmatprep.subr.mxu0 0.0
    %938 = vmatpush1.msra.mxu0 0.0
    %939 = vmatprep.subr.mxu0 0.0
    %940 = vmatpush1.msra.mxu0 0.0
    %941 = vmatprep.subr.mxu0 0.0
    %942 = vmatpush1.msra.mxu0 0.0
    %943 = vmatprep.subr.mxu0 0.0
    %944 = vmatpush1.msra.mxu0 0.0
    %945 = vmatprep.subr.mxu0 0.0
    %946 = vmatpush1.msra.mxu0 0.0
    %947 = vmatprep.subr.mxu0 0.0
    %948 = vmatpush1.msra.mxu0 0.0
    %949 = vmatprep.subr.mxu0 0.0
    %950 = vmatpush1.msra.mxu0 0.0
    %951 = vmatprep.subr.mxu0 0.0
    %952 = vmatpush1.msra.mxu0 0.0
    %953 = vmatprep.subr.mxu0 0.0
    %954 = vmatpush1.msra.mxu0 0.0
    %955 = vmatprep.subr.mxu0 0.0
    %956 = vmatpush1.msra.mxu0 0.0
    %957 = vmatprep.subr.mxu0 0.0
    %958 = vmatpush1.msra.mxu0 0.0
    %959 = vmatprep.subr.mxu0 0.0
    %960 = vmatpush1.msra.mxu0 0.0
    %961 = vmatprep.subr.mxu0 0.0
    %962 = vmatpush1.msra.mxu0 0.0
    %963 = vmatprep.subr.mxu0 0.0
    %964 = vmatpush1.msra.mxu0 0.0
    %965 = vmatprep.subr.mxu0 0.0
    %966 = vmatpush1.msra.mxu0 0.0
    %967 = vmatprep.subr.mxu0 0.0
    %968 = vmatpush1.msra.mxu0 0.0
    %969 = vmatprep.subr.mxu0 0.0
    %970 = vmatpush1.msra.mxu0 0.0
    %971 = vmatprep.subr.mxu0 0.0
    %972 = vmatpush1.msra.mxu0 0.0
    %973 = vmatprep.subr.mxu0 0.0
    %974 = vmatpush1.msra.mxu0 0.0
    %975 = vmatprep.subr.mxu0 0.0
    %976 = vmatpush1.msra.mxu0 0.0
    %977 = vmatprep.subr.mxu0 0.0
    %978 = vmatpush1.msra.mxu0 0.0
    %979 = vmatprep.subr.mxu0 0.0
    %980 = vmatpush1.msra.mxu0 0.0
    %981 = vmatprep.subr.mxu0 0.0
    %982 = vmatpush1.msra.mxu0 0.0
    %983 = vmatprep.subr.mxu0 0.0
    %984 = vmatpush1.msra.mxu0 0.0
    %985 = vmatprep.mubr.f32.mxu0 0.0
    %986 = vmatmul.mubr.f32.gmra.mrb[0].mxu0 %v919
    %v987 = vpop.f32.mrb[0].mxu0
    %v988 = vadd.f32 %v303, %v987
    %v989 = vpop.f32.mrb[0].mxu0
    %v990 = vadd.f32 %v307, %v989
    %991 = vdwg.mxu0
    %v993 = vrot.slane %v988, 3
    %v995 = vadd.f32 %v276, %v993
    %v996 = vsub.f32 0.0, %v995
    %v997 = vmul.f32 %v996, 1.442695
    %v998 = vpow.pop %v997
    %v999 = vadd.f32 %v998, 1.0
    %v1000 = vrcp.pop %v999
    %v1001 = vmul.f32 1.0, %v1000
    %v1003 = vrot.slane %v990, 3
    %1004 = vrot.lane.b32.xlu0 %v993, 32
    %v1005 = vpop.permute.xlu0 %1004
    %1006 = vrot.lane.b32.xlu0 %v1003, 32
    %v1007 = vpop.permute.xlu0 %1006
    %v1008 = vsel %vm96, %v1005, %v1007
    %v1010 = vmul.f32 %v1001, %v1008
    %1012 = vrot.lane.b32.xlu0 %v1010, 96
    %v1013 = vpop.permute.xlu0 %1012
    %v1015 = vadd.f32 %v276, %v1013
    %v1016 = vadd.f32 %v278, %v1013
    %v1017 = vtanh.pop %v1015
    %v1018 = vtanh.pop %v1016
    %v1019 = vsub.f32 1.0, %v1001
    %1022 = vrot.lane.b32.xlu0 %v1017, 80
    %v1023 = vpop.permute.xlu0 %1022
    %1024 = vrot.lane.b32.xlu0 %v1018, 80
    %v1025 = vpop.permute.xlu0 %1024
    %v1026 = vsel %vm415, %v1023, %v1025
    %v1028 = vmul.f32 %v1019, %v1026
    %v1029 = vrot.slane %v909, 7
    %v1031 = vmul.f32 %v1001, %v1029
    %v1032 = vadd.f32 %v1028, %v1031
    %1034 = vrot.lane.b32.xlu0 %v1032, 80
    %v1035 = vpop.permute.xlu0 %1034
    %vm1037 = vcmask 390149
    %1038 = vst.msk [vmem:[#allocation2] sm:$0x20] %vm1037, %v1035
    %v1039 = vrot.slane %v1032, 5
    %1040 = vrot.lane.b32.xlu0 %v1039, 80
    %v1041 = vpop.permute.xlu0 %1040
    %v1042 = vsel %vm202, %v1041, 0
    %1044 = vmatprep.subr.mxu0 %v287
    %1045 = vmatpush1.msra.mxu0 %v286
    %1046 = vmatprep.subr.mxu0 %v289
    %1047 = vmatpush1.msra.mxu0 %v288
    %1048 = vmatprep.subr.mxu0 %v291
    %1049 = vmatpush1.msra.mxu0 %v290
    %1050 = vmatprep.subr.mxu0 %v293
    %1051 = vmatpush1.msra.mxu0 %v292
    %1052 = vmatprep.subr.mxu0 %v295
    %1053 = vmatpush1.msra.mxu0 %v294
    %1054 = vmatprep.subr.mxu0 %v297
    %1055 = vmatpush1.msra.mxu0 %v296
    %1056 = vmatprep.subr.mxu0 0.0
    %1057 = vmatpush1.msra.mxu0 0.0
    %1058 = vmatprep.subr.mxu0 0.0
    %1059 = vmatpush1.msra.mxu0 0.0
    %1060 = vmatprep.subr.mxu0 0.0
    %1061 = vmatpush1.msra.mxu0 0.0
    %1062 = vmatprep.subr.mxu0 0.0
    %1063 = vmatpush1.msra.mxu0 0.0
    %1064 = vmatprep.subr.mxu0 0.0
    %1065 = vmatpush1.msra.mxu0 0.0
    %1066 = vmatprep.subr.mxu0 0.0
    %1067 = vmatpush1.msra.mxu0 0.0
    %1068 = vmatprep.subr.mxu0 0.0
    %1069 = vmatpush1.msra.mxu0 0.0
    %1070 = vmatprep.subr.mxu0 0.0
    %1071 = vmatpush1.msra.mxu0 0.0
    %1072 = vmatprep.subr.mxu0 0.0
    %1073 = vmatpush1.msra.mxu0 0.0
    %1074 = vmatprep.subr.mxu0 0.0
    %1075 = vmatpush1.msra.mxu0 0.0
    %1076 = vmatprep.subr.mxu0 0.0
    %1077 = vmatpush1.msra.mxu0 0.0
    %1078 = vmatprep.subr.mxu0 0.0
    %1079 = vmatpush1.msra.mxu0 0.0
    %1080 = vmatprep.subr.mxu0 0.0
    %1081 = vmatpush1.msra.mxu0 0.0
    %1082 = vmatprep.subr.mxu0 0.0
    %1083 = vmatpush1.msra.mxu0 0.0
    %1084 = vmatprep.subr.mxu0 0.0
    %1085 = vmatpush1.msra.mxu0 0.0
    %1086 = vmatprep.subr.mxu0 0.0
    %1087 = vmatpush1.msra.mxu0 0.0
    %1088 = vmatprep.subr.mxu0 0.0
    %1089 = vmatpush1.msra.mxu0 0.0
    %1090 = vmatprep.subr.mxu0 0.0
    %1091 = vmatpush1.msra.mxu0 0.0
    %1092 = vmatprep.subr.mxu0 0.0
    %1093 = vmatpush1.msra.mxu0 0.0
    %1094 = vmatprep.subr.mxu0 0.0
    %1095 = vmatpush1.msra.mxu0 0.0
    %1096 = vmatprep.subr.mxu0 0.0
    %1097 = vmatpush1.msra.mxu0 0.0
    %1098 = vmatprep.subr.mxu0 0.0
    %1099 = vmatpush1.msra.mxu0 0.0
    %1100 = vmatprep.subr.mxu0 0.0
    %1101 = vmatpush1.msra.mxu0 0.0
    %1102 = vmatprep.subr.mxu0 0.0
    %1103 = vmatpush1.msra.mxu0 0.0
    %1104 = vmatprep.subr.mxu0 0.0
    %1105 = vmatpush1.msra.mxu0 0.0
    %1106 = vmatprep.subr.mxu0 0.0
    %1107 = vmatpush1.msra.mxu0 0.0
    %1108 = vmatprep.mubr.f32.mxu0 0.0
    %1109 = vmatmul.mubr.f32.gmra.mrb[0].mxu0 %v1042
    %v1110 = vpop.f32.mrb[0].mxu0
    %v1111 = vadd.f32 %v303, %v1110
    %v1112 = vpop.f32.mrb[0].mxu0
    %v1113 = vadd.f32 %v307, %v1112
    %1114 = vdwg.mxu0
    %v1116 = vrot.slane %v1111, 2
    %v1118 = vadd.f32 %v276, %v1116
    %v1119 = vsub.f32 0.0, %v1118
    %v1120 = vmul.f32 %v1119, 1.442695
    %v1121 = vpow.pop %v1120
    %v1122 = vadd.f32 %v1121, 1.0
    %v1123 = vrcp.pop %v1122
    %v1124 = vmul.f32 1.0, %v1123
    %v1126 = vrot.slane %v1113, 2
    %1127 = vrot.lane.b32.xlu0 %v1116, 32
    %v1128 = vpop.permute.xlu0 %1127
    %1129 = vrot.lane.b32.xlu0 %v1126, 32
    %v1130 = vpop.permute.xlu0 %1129
    %v1131 = vsel %vm96, %v1128, %v1130
    %v1133 = vmul.f32 %v1124, %v1131
    %1135 = vrot.lane.b32.xlu0 %v1133, 96
    %v1136 = vpop.permute.xlu0 %1135
    %v1138 = vadd.f32 %v276, %v1136
    %v1139 = vadd.f32 %v278, %v1136
    %v1140 = vtanh.pop %v1138
    %v1141 = vtanh.pop %v1139
    %v1142 = vsub.f32 1.0, %v1124
    %1145 = vrot.lane.b32.xlu0 %v1140, 80
    %v1146 = vpop.permute.xlu0 %1145
    %1147 = vrot.lane.b32.xlu0 %v1141, 80
    %v1148 = vpop.permute.xlu0 %1147
    %v1149 = vsel %vm415, %v1146, %v1148
    %v1151 = vmul.f32 %v1142, %v1149
    %v1152 = vrot.slane %v1032, 7
    %v1154 = vmul.f32 %v1124, %v1152
    %v1155 = vadd.f32 %v1151, %v1154
    %1157 = vrot.lane.b32.xlu0 %v1155, 80
    %v1158 = vpop.permute.xlu0 %1157
    %vm1160 = vcmask 391174
    %1161 = vst.msk [vmem:[#allocation2] sm:$0x40] %vm1160, %v1158
    %v1162 = vrot.slane %v1155, 6
    %1163 = vrot.lane.b32.xlu0 %v1162, 80
    %v1164 = vpop.permute.xlu0 %1163
    %v1165 = vsel %vm202, %v1164, 0
    %1167 = vmatprep.subr.mxu0 %v287
    %1168 = vmatpush1.msra.mxu0 %v286
    %1169 = vmatprep.subr.mxu0 %v289
    %1170 = vmatpush1.msra.mxu0 %v288
    %1171 = vmatprep.subr.mxu0 %v291
    %1172 = vmatpush1.msra.mxu0 %v290
    %1173 = vmatprep.subr.mxu0 %v293
    %1174 = vmatpush1.msra.mxu0 %v292
    %1175 = vmatprep.subr.mxu0 %v295
    %1176 = vmatpush1.msra.mxu0 %v294
    %1177 = vmatprep.subr.mxu0 %v297
    %1178 = vmatpush1.msra.mxu0 %v296
    %1179 = vmatprep.subr.mxu0 0.0
    %1180 = vmatpush1.msra.mxu0 0.0
    %1181 = vmatprep.subr.mxu0 0.0
    %1182 = vmatpush1.msra.mxu0 0.0
    %1183 = vmatprep.subr.mxu0 0.0
    %1184 = vmatpush1.msra.mxu0 0.0
    %1185 = vmatprep.subr.mxu0 0.0
    %1186 = vmatpush1.msra.mxu0 0.0
    %1187 = vmatprep.subr.mxu0 0.0
    %1188 = vmatpush1.msra.mxu0 0.0
    %1189 = vmatprep.subr.mxu0 0.0
    %1190 = vmatpush1.msra.mxu0 0.0
    %1191 = vmatprep.subr.mxu0 0.0
    %1192 = vmatpush1.msra.mxu0 0.0
    %1193 = vmatprep.subr.mxu0 0.0
    %1194 = vmatpush1.msra.mxu0 0.0
    %1195 = vmatprep.subr.mxu0 0.0
    %1196 = vmatpush1.msra.mxu0 0.0
    %1197 = vmatprep.subr.mxu0 0.0
    %1198 = vmatpush1.msra.mxu0 0.0
    %1199 = vmatprep.subr.mxu0 0.0
    %1200 = vmatpush1.msra.mxu0 0.0
    %1201 = vmatprep.subr.mxu0 0.0
    %1202 = vmatpush1.msra.mxu0 0.0
    %1203 = vmatprep.subr.mxu0 0.0
    %1204 = vmatpush1.msra.mxu0 0.0
    %1205 = vmatprep.subr.mxu0 0.0
    %1206 = vmatpush1.msra.mxu0 0.0
    %1207 = vmatprep.subr.mxu0 0.0
    %1208 = vmatpush1.msra.mxu0 0.0
    %1209 = vmatprep.subr.mxu0 0.0
    %1210 = vmatpush1.msra.mxu0 0.0
    %1211 = vmatprep.subr.mxu0 0.0
    %1212 = vmatpush1.msra.mxu0 0.0
    %1213 = vmatprep.subr.mxu0 0.0
    %1214 = vmatpush1.msra.mxu0 0.0
    %1215 = vmatprep.subr.mxu0 0.0
    %1216 = vmatpush1.msra.mxu0 0.0
    %1217 = vmatprep.subr.mxu0 0.0
    %1218 = vmatpush1.msra.mxu0 0.0
    %1219 = vmatprep.subr.mxu0 0.0
    %1220 = vmatpush1.msra.mxu0 0.0
    %1221 = vmatprep.subr.mxu0 0.0
    %1222 = vmatpush1.msra.mxu0 0.0
    %1223 = vmatprep.subr.mxu0 0.0
    %1224 = vmatpush1.msra.mxu0 0.0
    %1225 = vmatprep.subr.mxu0 0.0
    %1226 = vmatpush1.msra.mxu0 0.0
    %1227 = vmatprep.subr.mxu0 0.0
    %1228 = vmatpush1.msra.mxu0 0.0
    %1229 = vmatprep.subr.mxu0 0.0
    %1230 = vmatpush1.msra.mxu0 0.0
    %1231 = vmatprep.mubr.f32.mxu0 0.0
    %1232 = vmatmul.mubr.f32.gmra.mrb[0].mxu0 %v1165
    %v1233 = vpop.f32.mrb[0].mxu0
    %v1234 = vadd.f32 %v303, %v1233
    %v1235 = vpop.f32.mrb[0].mxu0
    %v1236 = vadd.f32 %v307, %v1235
    %1237 = vdwg.mxu0
    %v1239 = vrot.slane %v1234, 1
    %v1241 = vadd.f32 %v276, %v1239
    %v1242 = vsub.f32 0.0, %v1241
    %v1243 = vmul.f32 %v1242, 1.442695
    %v1244 = vpow.pop %v1243
    %v1245 = vadd.f32 %v1244, 1.0
    %v1246 = vrcp.pop %v1245
    %v1247 = vmul.f32 1.0, %v1246
    %v1249 = vrot.slane %v1236, 1
    %1250 = vrot.lane.b32.xlu0 %v1239, 32
    %v1251 = vpop.permute.xlu0 %1250
    %1252 = vrot.lane.b32.xlu0 %v1249, 32
    %v1253 = vpop.permute.xlu0 %1252
    %v1254 = vsel %vm96, %v1251, %v1253
    %v1256 = vmul.f32 %v1247, %v1254
    %1258 = vrot.lane.b32.xlu0 %v1256, 96
    %v1259 = vpop.permute.xlu0 %1258
    %v1261 = vadd.f32 %v276, %v1259
    %v1262 = vadd.f32 %v278, %v1259
    %v1263 = vtanh.pop %v1261
    %v1264 = vtanh.pop %v1262
    %v1265 = vsub.f32 1.0, %v1247
    %1268 = vrot.lane.b32.xlu0 %v1263, 80
    %v1269 = vpop.permute.xlu0 %1268
    %1270 = vrot.lane.b32.xlu0 %v1264, 80
    %v1271 = vpop.permute.xlu0 %1270
    %v1272 = vsel %vm415, %v1269, %v1271
    %v1274 = vmul.f32 %v1265, %v1272
    %v1275 = vrot.slane %v1155, 7
    %v1277 = vmul.f32 %v1247, %v1275
    %v1278 = vadd.f32 %v1274, %v1277
    %1280 = vrot.lane.b32.xlu0 %v1278, 80
    %v1281 = vpop.permute.xlu0 %1280
    %vm1283 = vcmask 392199
    %1284 = vst.msk [vmem:[#allocation2] sm:$0x80] %vm1283, %v1281
    %v1285 = vadd.f32 %v282, %v380
    %v1286 = vsub.f32 0.0, %v1285
    %v1287 = vmul.f32 %v1286, 1.442695
    %v1288 = vpow.pop %v1287
    %v1289 = vadd.f32 %v1288, 1.0
    %v1290 = vrcp.pop %v1289
    %v1291 = vmul.f32 1.0, %v1290
    %v1292 = vmul.f32 %v1291, %v397
    %1294 = vrot.lane.b32.xlu0 %v1292, 96
    %v1295 = vpop.permute.xlu0 %1294
    %v1297 = vadd.f32 %v282, %v1295
    %v1298 = vadd.f32 %v284, %v1295
    %v1299 = vtanh.pop %v1297
    %v1300 = vtanh.pop %v1298
    %v1301 = vsub.f32 1.0, %v1291
    %1304 = vrot.lane.b32.xlu0 %v1299, 80
    %v1305 = vpop.permute.xlu0 %1304
    %1306 = vrot.lane.b32.xlu0 %v1300, 80
    %v1307 = vpop.permute.xlu0 %1306
    %v1308 = vsel %vm415, %v1305, %v1307
    %v1310 = vmul.f32 %v1301, %v1308
    %v1311 = vmul.f32 %v1291, 0.0
    %v1312 = vadd.f32 %v1310, %v1311
    %1314 = vrot.lane.b32.xlu0 %v1312, 80
    %v1315 = vpop.permute.xlu0 %1314
    %1317 = vst.msk [vmem:[#allocation2 + $0x8] sm:$0x1] %vm425, %v1315
    %v1318 = vsel %vm202, %v1315, 0
    %1320 = vmatprep.subr.mxu0 %v287
    %1321 = vmatpush1.msra.mxu0 %v286
    %1322 = vmatprep.subr.mxu0 %v289
    %1323 = vmatpush1.msra.mxu0 %v288
    %1324 = vmatprep.subr.mxu0 %v291
    %1325 = vmatpush1.msra.mxu0 %v290
    %1326 = vmatprep.subr.mxu0 %v293
    %1327 = vmatpush1.msra.mxu0 %v292
    %1328 = vmatprep.subr.mxu0 %v295
    %1329 = vmatpush1.msra.mxu0 %v294
    %1330 = vmatprep.subr.mxu0 %v297
    %1331 = vmatpush1.msra.mxu0 %v296
    %1332 = vmatprep.subr.mxu0 0.0
    %1333 = vmatpush1.msra.mxu0 0.0
    %1334 = vmatprep.subr.mxu0 0.0
    %1335 = vmatpush1.msra.mxu0 0.0
    %1336 = vmatprep.subr.mxu0 0.0
    %1337 = vmatpush1.msra.mxu0 0.0
    %1338 = vmatprep.subr.mxu0 0.0
    %1339 = vmatpush1.msra.mxu0 0.0
    %1340 = vmatprep.subr.mxu0 0.0
    %1341 = vmatpush1.msra.mxu0 0.0
    %1342 = vmatprep.subr.mxu0 0.0
    %1343 = vmatpush1.msra.mxu0 0.0
    %1344 = vmatprep.subr.mxu0 0.0
    %1345 = vmatpush1.msra.mxu0 0.0
    %1346 = vmatprep.subr.mxu0 0.0
    %1347 = vmatpush1.msra.mxu0 0.0
    %1348 = vmatprep.subr.mxu0 0.0
    %1349 = vmatpush1.msra.mxu0 0.0
    %1350 = vmatprep.subr.mxu0 0.0
    %1351 = vmatpush1.msra.mxu0 0.0
    %1352 = vmatprep.subr.mxu0 0.0
    %1353 = vmatpush1.msra.mxu0 0.0
    %1354 = vmatprep.subr.mxu0 0.0
    %1355 = vmatpush1.msra.mxu0 0.0
    %1356 = vmatprep.subr.mxu0 0.0
    %1357 = vmatpush1.msra.mxu0 0.0
    %1358 = vmatprep.subr.mxu0 0.0
    %1359 = vmatpush1.msra.mxu0 0.0
    %1360 = vmatprep.subr.mxu0 0.0
    %1361 = vmatpush1.msra.mxu0 0.0
    %1362 = vmatprep.subr.mxu0 0.0
    %1363 = vmatpush1.msra.mxu0 0.0
    %1364 = vmatprep.subr.mxu0 0.0
    %1365 = vmatpush1.msra.mxu0 0.0
    %1366 = vmatprep.subr.mxu0 0.0
    %1367 = vmatpush1.msra.mxu0 0.0
    %1368 = vmatprep.subr.mxu0 0.0
    %1369 = vmatpush1.msra.mxu0 0.0
    %1370 = vmatprep.subr.mxu0 0.0
    %1371 = vmatpush1.msra.mxu0 0.0
    %1372 = vmatprep.subr.mxu0 0.0
    %1373 = vmatpush1.msra.mxu0 0.0
    %1374 = vmatprep.subr.mxu0 0.0
    %1375 = vmatpush1.msra.mxu0 0.0
    %1376 = vmatprep.subr.mxu0 0.0
    %1377 = vmatpush1.msra.mxu0 0.0
    %1378 = vmatprep.subr.mxu0 0.0
    %1379 = vmatpush1.msra.mxu0 0.0
    %1380 = vmatprep.subr.mxu0 0.0
    %1381 = vmatpush1.msra.mxu0 0.0
    %1382 = vmatprep.subr.mxu0 0.0
    %1383 = vmatpush1.msra.mxu0 0.0
    %1384 = vmatprep.mubr.f32.mxu0 0.0
    %1385 = vmatmul.mubr.f32.gmra.mrb[0].mxu0 %v1318
    %v1386 = vpop.f32.mrb[0].mxu0
    %v1387 = vadd.f32 %v303, %v1386
    %v1388 = vpop.f32.mrb[0].mxu0
    %v1389 = vadd.f32 %v307, %v1388
    %1390 = vdwg.mxu0
    %v1392 = vrot.slane %v1387, 7
    %v1394 = vadd.f32 %v282, %v1392
    %v1395 = vsub.f32 0.0, %v1394
    %v1396 = vmul.f32 %v1395, 1.442695
    %v1397 = vpow.pop %v1396
    %v1398 = vadd.f32 %v1397, 1.0
    %v1399 = vrcp.pop %v1398
    %v1400 = vmul.f32 1.0, %v1399
    %v1402 = vrot.slane %v1389, 7
    %1403 = vrot.lane.b32.xlu0 %v1392, 32
    %v1404 = vpop.permute.xlu0 %1403
    %1405 = vrot.lane.b32.xlu0 %v1402, 32
    %v1406 = vpop.permute.xlu0 %1405
    %v1407 = vsel %vm96, %v1404, %v1406
    %v1409 = vmul.f32 %v1400, %v1407
    %1411 = vrot.lane.b32.xlu0 %v1409, 96
    %v1412 = vpop.permute.xlu0 %1411
    %v1414 = vadd.f32 %v282, %v1412
    %v1415 = vadd.f32 %v284, %v1412
    %v1416 = vtanh.pop %v1414
    %v1417 = vtanh.pop %v1415
    %v1418 = vsub.f32 1.0, %v1400
    %1421 = vrot.lane.b32.xlu0 %v1416, 80
    %v1422 = vpop.permute.xlu0 %1421
    %1423 = vrot.lane.b32.xlu0 %v1417, 80
    %v1424 = vpop.permute.xlu0 %1423
    %v1425 = vsel %vm415, %v1422, %v1424
    %v1427 = vmul.f32 %v1418, %v1425
    %v1428 = vrot.slane %v1312, 7
    %v1430 = vmul.f32 %v1400, %v1428
    %v1431 = vadd.f32 %v1427, %v1430
    %1433 = vrot.lane.b32.xlu0 %v1431, 80
    %v1434 = vpop.permute.xlu0 %1433
    %1436 = vst.msk [vmem:[#allocation2 + $0x8] sm:$0x2] %vm545, %v1434
    %v1437 = vrot.slane %v1431, 1
    %1438 = vrot.lane.b32.xlu0 %v1437, 80
    %v1439 = vpop.permute.xlu0 %1438
    %v1440 = vsel %vm202, %v1439, 0
    %1442 = vmatprep.subr.mxu0 %v287
    %1443 = vmatpush1.msra.mxu0 %v286
    %1444 = vmatprep.subr.mxu0 %v289
    %1445 = vmatpush1.msra.mxu0 %v288
    %1446 = vmatprep.subr.mxu0 %v291
    %1447 = vmatpush1.msra.mxu0 %v290
    %1448 = vmatprep.subr.mxu0 %v293
    %1449 = vmatpush1.msra.mxu0 %v292
    %1450 = vmatprep.subr.mxu0 %v295
    %1451 = vmatpush1.msra.mxu0 %v294
    %1452 = vmatprep.subr.mxu0 %v297
    %1453 = vmatpush1.msra.mxu0 %v296
    %1454 = vmatprep.subr.mxu0 0.0
    %1455 = vmatpush1.msra.mxu0 0.0
    %1456 = vmatprep.subr.mxu0 0.0
    %1457 = vmatpush1.msra.mxu0 0.0
    %1458 = vmatprep.subr.mxu0 0.0
    %1459 = vmatpush1.msra.mxu0 0.0
    %1460 = vmatprep.subr.mxu0 0.0
    %1461 = vmatpush1.msra.mxu0 0.0
    %1462 = vmatprep.subr.mxu0 0.0
    %1463 = vmatpush1.msra.mxu0 0.0
    %1464 = vmatprep.subr.mxu0 0.0
    %1465 = vmatpush1.msra.mxu0 0.0
    %1466 = vmatprep.subr.mxu0 0.0
    %1467 = vmatpush1.msra.mxu0 0.0
    %1468 = vmatprep.subr.mxu0 0.0
    %1469 = vmatpush1.msra.mxu0 0.0
    %1470 = vmatprep.subr.mxu0 0.0
    %1471 = vmatpush1.msra.mxu0 0.0
    %1472 = vmatprep.subr.mxu0 0.0
    %1473 = vmatpush1.msra.mxu0 0.0
    %1474 = vmatprep.subr.mxu0 0.0
    %1475 = vmatpush1.msra.mxu0 0.0
    %1476 = vmatprep.subr.mxu0 0.0
    %1477 = vmatpush1.msra.mxu0 0.0
    %1478 = vmatprep.subr.mxu0 0.0
    %1479 = vmatpush1.msra.mxu0 0.0
    %1480 = vmatprep.subr.mxu0 0.0
    %1481 = vmatpush1.msra.mxu0 0.0
    %1482 = vmatprep.subr.mxu0 0.0
    %1483 = vmatpush1.msra.mxu0 0.0
    %1484 = vmatprep.subr.mxu0 0.0
    %1485 = vmatpush1.msra.mxu0 0.0
    %1486 = vmatprep.subr.mxu0 0.0
    %1487 = vmatpush1.msra.mxu0 0.0
    %1488 = vmatprep.subr.mxu0 0.0
    %1489 = vmatpush1.msra.mxu0 0.0
    %1490 = vmatprep.subr.mxu0 0.0
    %1491 = vmatpush1.msra.mxu0 0.0
    %1492 = vmatprep.subr.mxu0 0.0
    %1493 = vmatpush1.msra.mxu0 0.0
    %1494 = vmatprep.subr.mxu0 0.0
    %1495 = vmatpush1.msra.mxu0 0.0
    %1496 = vmatprep.subr.mxu0 0.0
    %1497 = vmatpush1.msra.mxu0 0.0
    %1498 = vmatprep.subr.mxu0 0.0
    %1499 = vmatpush1.msra.mxu0 0.0
    %1500 = vmatprep.subr.mxu0 0.0
    %1501 = vmatpush1.msra.mxu0 0.0
    %1502 = vmatprep.subr.mxu0 0.0
    %1503 = vmatpush1.msra.mxu0 0.0
    %1504 = vmatprep.subr.mxu0 0.0
    %1505 = vmatpush1.msra.mxu0 0.0
    %1506 = vmatprep.mubr.f32.mxu0 0.0
    %1507 = vmatmul.mubr.f32.gmra.mrb[0].mxu0 %v1440
    %v1508 = vpop.f32.mrb[0].mxu0
    %v1509 = vadd.f32 %v303, %v1508
    %v1510 = vpop.f32.mrb[0].mxu0
    %v1511 = vadd.f32 %v307, %v1510
    %1512 = vdwg.mxu0
    %v1514 = vrot.slane %v1509, 6
    %v1516 = vadd.f32 %v282, %v1514
    %v1517 = vsub.f32 0.0, %v1516
    %v1518 = vmul.f32 %v1517, 1.442695
    %v1519 = vpow.pop %v1518
    %v1520 = vadd.f32 %v1519, 1.0
    %v1521 = vrcp.pop %v1520
    %v1522 = vmul.f32 1.0, %v1521
    %v1524 = vrot.slane %v1511, 6
    %1525 = vrot.lane.b32.xlu0 %v1514, 32
    %v1526 = vpop.permute.xlu0 %1525
    %1527 = vrot.lane.b32.xlu0 %v1524, 32
    %v1528 = vpop.permute.xlu0 %1527
    %v1529 = vsel %vm96, %v1526, %v1528
    %v1531 = vmul.f32 %v1522, %v1529
    %1533 = vrot.lane.b32.xlu0 %v1531, 96
    %v1534 = vpop.permute.xlu0 %1533
    %v1536 = vadd.f32 %v282, %v1534
    %v1537 = vadd.f32 %v284, %v1534
    %v1538 = vtanh.pop %v1536
    %v1539 = vtanh.pop %v1537
    %v1540 = vsub.f32 1.0, %v1522
    %1543 = vrot.lane.b32.xlu0 %v1538, 80
    %v1544 = vpop.permute.xlu0 %1543
    %1545 = vrot.lane.b32.xlu0 %v1539, 80
    %v1546 = vpop.permute.xlu0 %1545
    %v1547 = vsel %vm415, %v1544, %v1546
    %v1549 = vmul.f32 %v1540, %v1547
    %v1550 = vrot.slane %v1431, 7
    %v1552 = vmul.f32 %v1522, %v1550
    %v1553 = vadd.f32 %v1549, %v1552
    %1555 = vrot.lane.b32.xlu0 %v1553, 80
    %v1556 = vpop.permute.xlu0 %1555
    %1558 = vst.msk [vmem:[#allocation2 + $0x8] sm:$0x4] %vm668, %v1556
    %v1559 = vrot.slane %v1553, 2
    %1560 = vrot.lane.b32.xlu0 %v1559, 80
    %v1561 = vpop.permute.xlu0 %1560
    %v1562 = vsel %vm202, %v1561, 0
    %1564 = vmatprep.subr.mxu0 %v287
    %1565 = vmatpush1.msra.mxu0 %v286
    %1566 = vmatprep.subr.mxu0 %v289
    %1567 = vmatpush1.msra.mxu0 %v288
    %1568 = vmatprep.subr.mxu0 %v291
    %1569 = vmatpush1.msra.mxu0 %v290
    %1570 = vmatprep.subr.mxu0 %v293
    %1571 = vmatpush1.msra.mxu0 %v292
    %1572 = vmatprep.subr.mxu0 %v295
    %1573 = vmatpush1.msra.mxu0 %v294
    %1574 = vmatprep.subr.mxu0 %v297
    %1575 = vmatpush1.msra.mxu0 %v296
    %1576 = vmatprep.subr.mxu0 0.0
    %1577 = vmatpush1.msra.mxu0 0.0
    %1578 = vmatprep.subr.mxu0 0.0
    %1579 = vmatpush1.msra.mxu0 0.0
    %1580 = vmatprep.subr.mxu0 0.0
    %1581 = vmatpush1.msra.mxu0 0.0
    %1582 = vmatprep.subr.mxu0 0.0
    %1583 = vmatpush1.msra.mxu0 0.0
    %1584 = vmatprep.subr.mxu0 0.0
    %1585 = vmatpush1.msra.mxu0 0.0
    %1586 = vmatprep.subr.mxu0 0.0
    %1587 = vmatpush1.msra.mxu0 0.0
    %1588 = vmatprep.subr.mxu0 0.0
    %1589 = vmatpush1.msra.mxu0 0.0
    %1590 = vmatprep.subr.mxu0 0.0
    %1591 = vmatpush1.msra.mxu0 0.0
    %1592 = vmatprep.subr.mxu0 0.0
    %1593 = vmatpush1.msra.mxu0 0.0
    %1594 = vmatprep.subr.mxu0 0.0
    %1595 = vmatpush1.msra.mxu0 0.0
    %1596 = vmatprep.subr.mxu0 0.0
    %1597 = vmatpush1.msra.mxu0 0.0
    %1598 = vmatprep.subr.mxu0 0.0
    %1599 = vmatpush1.msra.mxu0 0.0
    %1600 = vmatprep.subr.mxu0 0.0
    %1601 = vmatpush1.msra.mxu0 0.0
    %1602 = vmatprep.subr.mxu0 0.0
    %1603 = vmatpush1.msra.mxu0 0.0
    %1604 = vmatprep.subr.mxu0 0.0
    %1605 = vmatpush1.msra.mxu0 0.0
    %1606 = vmatprep.subr.mxu0 0.0
    %1607 = vmatpush1.msra.mxu0 0.0
    %1608 = vmatprep.subr.mxu0 0.0
    %1609 = vmatpush1.msra.mxu0 0.0
    %1610 = vmatprep.subr.mxu0 0.0
    %1611 = vmatpush1.msra.mxu0 0.0
    %1612 = vmatprep.subr.mxu0 0.0
    %1613 = vmatpush1.msra.mxu0 0.0
    %1614 = vmatprep.subr.mxu0 0.0
    %1615 = vmatpush1.msra.mxu0 0.0
    %1616 = vmatprep.subr.mxu0 0.0
    %1617 = vmatpush1.msra.mxu0 0.0
    %1618 = vmatprep.subr.mxu0 0.0
    %1619 = vmatpush1.msra.mxu0 0.0
    %1620 = vmatprep.subr.mxu0 0.0
    %1621 = vmatpush1.msra.mxu0 0.0
    %1622 = vmatprep.subr.mxu0 0.0
    %1623 = vmatpush1.msra.mxu0 0.0
    %1624 = vmatprep.subr.mxu0 0.0
    %1625 = vmatpush1.msra.mxu0 0.0
    %1626 = vmatprep.subr.mxu0 0.0
    %1627 = vmatpush1.msra.mxu0 0.0
    %1628 = vmatprep.mubr.f32.mxu0 0.0
    %1629 = vmatmul.mubr.f32.gmra.mrb[0].mxu0 %v1562
    %v1630 = vpop.f32.mrb[0].mxu0
    %v1631 = vadd.f32 %v303, %v1630
    %v1632 = vpop.f32.mrb[0].mxu0
    %v1633 = vadd.f32 %v307, %v1632
    %1634 = vdwg.mxu0
    %v1636 = vrot.slane %v1631, 5
    %v1638 = vadd.f32 %v282, %v1636
    %v1639 = vsub.f32 0.0, %v1638
    %v1640 = vmul.f32 %v1639, 1.442695
    %v1641 = vpow.pop %v1640
    %v1642 = vadd.f32 %v1641, 1.0
    %v1643 = vrcp.pop %v1642
    %v1644 = vmul.f32 1.0, %v1643
    %v1646 = vrot.slane %v1633, 5
    %1647 = vrot.lane.b32.xlu0 %v1636, 32
    %v1648 = vpop.permute.xlu0 %1647
    %1649 = vrot.lane.b32.xlu0 %v1646, 32
    %v1650 = vpop.permute.xlu0 %1649
    %v1651 = vsel %vm96, %v1648, %v1650
    %v1653 = vmul.f32 %v1644, %v1651
    %1655 = vrot.lane.b32.xlu0 %v1653, 96
    %v1656 = vpop.permute.xlu0 %1655
    %v1658 = vadd.f32 %v282, %v1656
    %v1659 = vadd.f32 %v284, %v1656
    %v1660 = vtanh.pop %v1658
    %v1661 = vtanh.pop %v1659
    %v1662 = vsub.f32 1.0, %v1644
    %1665 = vrot.lane.b32.xlu0 %v1660, 80
    %v1666 = vpop.permute.xlu0 %1665
    %1667 = vrot.lane.b32.xlu0 %v1661, 80
    %v1668 = vpop.permute.xlu0 %1667
    %v1669 = vsel %vm415, %v1666, %v1668
    %v1671 = vmul.f32 %v1662, %v1669
    %v1672 = vrot.slane %v1553, 7
    %v1674 = vmul.f32 %v1644, %v1672
    %v1675 = vadd.f32 %v1671, %v1674
    %1677 = vrot.lane.b32.xlu0 %v1675, 80
    %v1678 = vpop.permute.xlu0 %1677
    %1680 = vst.msk [vmem:[#allocation2 + $0x8] sm:$0x8] %vm791, %v1678
    %v1681 = vrot.slane %v1675, 3
    %1682 = vrot.lane.b32.xlu0 %v1681, 80
    %v1683 = vpop.permute.xlu0 %1682
    %v1684 = vsel %vm202, %v1683, 0
    %1686 = vmatprep.subr.mxu0 %v287
    %1687 = vmatpush1.msra.mxu0 %v286
    %1688 = vmatprep.subr.mxu0 %v289
    %1689 = vmatpush1.msra.mxu0 %v288
    %1690 = vmatprep.subr.mxu0 %v291
    %1691 = vmatpush1.msra.mxu0 %v290
    %1692 = vmatprep.subr.mxu0 %v293
    %1693 = vmatpush1.msra.mxu0 %v292
    %1694 = vmatprep.subr.mxu0 %v295
    %1695 = vmatpush1.msra.mxu0 %v294
    %1696 = vmatprep.subr.mxu0 %v297
    %1697 = vmatpush1.msra.mxu0 %v296
    %1698 = vmatprep.subr.mxu0 0.0
    %1699 = vmatpush1.msra.mxu0 0.0
    %1700 = vmatprep.subr.mxu0 0.0
    %1701 = vmatpush1.msra.mxu0 0.0
    %1702 = vmatprep.subr.mxu0 0.0
    %1703 = vmatpush1.msra.mxu0 0.0
    %1704 = vmatprep.subr.mxu0 0.0
    %1705 = vmatpush1.msra.mxu0 0.0
    %1706 = vmatprep.subr.mxu0 0.0
    %1707 = vmatpush1.msra.mxu0 0.0
    %1708 = vmatprep.subr.mxu0 0.0
    %1709 = vmatpush1.msra.mxu0 0.0
    %1710 = vmatprep.subr.mxu0 0.0
    %1711 = vmatpush1.msra.mxu0 0.0
    %1712 = vmatprep.subr.mxu0 0.0
    %1713 = vmatpush1.msra.mxu0 0.0
    %1714 = vmatprep.subr.mxu0 0.0
    %1715 = vmatpush1.msra.mxu0 0.0
    %1716 = vmatprep.subr.mxu0 0.0
    %1717 = vmatpush1.msra.mxu0 0.0
    %1718 = vmatprep.subr.mxu0 0.0
    %1719 = vmatpush1.msra.mxu0 0.0
    %1720 = vmatprep.subr.mxu0 0.0
    %1721 = vmatpush1.msra.mxu0 0.0
    %1722 = vmatprep.subr.mxu0 0.0
    %1723 = vmatpush1.msra.mxu0 0.0
    %1724 = vmatprep.subr.mxu0 0.0
    %1725 = vmatpush1.msra.mxu0 0.0
    %1726 = vmatprep.subr.mxu0 0.0
    %1727 = vmatpush1.msra.mxu0 0.0
    %1728 = vmatprep.subr.mxu0 0.0
    %1729 = vmatpush1.msra.mxu0 0.0
    %1730 = vmatprep.subr.mxu0 0.0
    %1731 = vmatpush1.msra.mxu0 0.0
    %1732 = vmatprep.subr.mxu0 0.0
    %1733 = vmatpush1.msra.mxu0 0.0
    %1734 = vmatprep.subr.mxu0 0.0
    %1735 = vmatpush1.msra.mxu0 0.0
    %1736 = vmatprep.subr.mxu0 0.0
    %1737 = vmatpush1.msra.mxu0 0.0
    %1738 = vmatprep.subr.mxu0 0.0
    %1739 = vmatpush1.msra.mxu0 0.0
    %1740 = vmatprep.subr.mxu0 0.0
    %1741 = vmatpush1.msra.mxu0 0.0
    %1742 = vmatprep.subr.mxu0 0.0
    %1743 = vmatpush1.msra.mxu0 0.0
    %1744 = vmatprep.subr.mxu0 0.0
    %1745 = vmatpush1.msra.mxu0 0.0
    %1746 = vmatprep.subr.mxu0 0.0
    %1747 = vmatpush1.msra.mxu0 0.0
    %1748 = vmatprep.subr.mxu0 0.0
    %1749 = vmatpush1.msra.mxu0 0.0
    %1750 = vmatprep.mubr.f32.mxu0 0.0
    %1751 = vmatmul.mubr.f32.gmra.mrb[0].mxu0 %v1684
    %v1752 = vpop.f32.mrb[0].mxu0
    %v1753 = vadd.f32 %v303, %v1752
    %v1754 = vpop.f32.mrb[0].mxu0
    %v1755 = vadd.f32 %v307, %v1754
    %1756 = vdwg.mxu0
    %v1758 = vrot.slane %v1753, 4
    %v1760 = vadd.f32 %v282, %v1758
    %v1761 = vsub.f32 0.0, %v1760
    %v1762 = vmul.f32 %v1761, 1.442695
    %v1763 = vpow.pop %v1762
    %v1764 = vadd.f32 %v1763, 1.0
    %v1765 = vrcp.pop %v1764
    %v1766 = vmul.f32 1.0, %v1765
    %v1768 = vrot.slane %v1755, 4
    %1769 = vrot.lane.b32.xlu0 %v1758, 32
    %v1770 = vpop.permute.xlu0 %1769
    %1771 = vrot.lane.b32.xlu0 %v1768, 32
    %v1772 = vpop.permute.xlu0 %1771
    %v1773 = vsel %vm96, %v1770, %v1772
    %v1775 = vmul.f32 %v1766, %v1773
    %1777 = vrot.lane.b32.xlu0 %v1775, 96
    %v1778 = vpop.permute.xlu0 %1777
    %v1780 = vadd.f32 %v282, %v1778
    %v1781 = vadd.f32 %v284, %v1778
    %v1782 = vtanh.pop %v1780
    %v1783 = vtanh.pop %v1781
    %v1784 = vsub.f32 1.0, %v1766
    %1787 = vrot.lane.b32.xlu0 %v1782, 80
    %v1788 = vpop.permute.xlu0 %1787
    %1789 = vrot.lane.b32.xlu0 %v1783, 80
    %v1790 = vpop.permute.xlu0 %1789
    %v1791 = vsel %vm415, %v1788, %v1790
    %v1793 = vmul.f32 %v1784, %v1791
    %v1794 = vrot.slane %v1675, 7
    %v1796 = vmul.f32 %v1766, %v1794
    %v1797 = vadd.f32 %v1793, %v1796
    %1799 = vrot.lane.b32.xlu0 %v1797, 80
    %v1800 = vpop.permute.xlu0 %1799
    %1802 = vst.msk [vmem:[#allocation2 + $0x8] sm:$0x10] %vm914, %v1800
    %v1803 = vrot.slane %v1797, 4
    %1804 = vrot.lane.b32.xlu0 %v1803, 80
    %v1805 = vpop.permute.xlu0 %1804
    %v1806 = vsel %vm202, %v1805, 0
    %1808 = vmatprep.subr.mxu0 %v287
    %1809 = vmatpush1.msra.mxu0 %v286
    %1810 = vmatprep.subr.mxu0 %v289
    %1811 = vmatpush1.msra.mxu0 %v288
    %1812 = vmatprep.subr.mxu0 %v291
    %1813 = vmatpush1.msra.mxu0 %v290
    %1814 = vmatprep.subr.mxu0 %v293
    %1815 = vmatpush1.msra.mxu0 %v292
    %1816 = vmatprep.subr.mxu0 %v295
    %1817 = vmatpush1.msra.mxu0 %v294
    %1818 = vmatprep.subr.mxu0 %v297
    %1819 = vmatpush1.msra.mxu0 %v296
    %1820 = vmatprep.subr.mxu0 0.0
    %1821 = vmatpush1.msra.mxu0 0.0
    %1822 = vmatprep.subr.mxu0 0.0
    %1823 = vmatpush1.msra.mxu0 0.0
    %1824 = vmatprep.subr.mxu0 0.0
    %1825 = vmatpush1.msra.mxu0 0.0
    %1826 = vmatprep.subr.mxu0 0.0
    %1827 = vmatpush1.msra.mxu0 0.0
    %1828 = vmatprep.subr.mxu0 0.0
    %1829 = vmatpush1.msra.mxu0 0.0
    %1830 = vmatprep.subr.mxu0 0.0
    %1831 = vmatpush1.msra.mxu0 0.0
    %1832 = vmatprep.subr.mxu0 0.0
    %1833 = vmatpush1.msra.mxu0 0.0
    %1834 = vmatprep.subr.mxu0 0.0
    %1835 = vmatpush1.msra.mxu0 0.0
    %1836 = vmatprep.subr.mxu0 0.0
    %1837 = vmatpush1.msra.mxu0 0.0
    %1838 = vmatprep.subr.mxu0 0.0
    %1839 = vmatpush1.msra.mxu0 0.0
    %1840 = vmatprep.subr.mxu0 0.0
    %1841 = vmatpush1.msra.mxu0 0.0
    %1842 = vmatprep.subr.mxu0 0.0
    %1843 = vmatpush1.msra.mxu0 0.0
    %1844 = vmatprep.subr.mxu0 0.0
    %1845 = vmatpush1.msra.mxu0 0.0
    %1846 = vmatprep.subr.mxu0 0.0
    %1847 = vmatpush1.msra.mxu0 0.0
    %1848 = vmatprep.subr.mxu0 0.0
    %1849 = vmatpush1.msra.mxu0 0.0
    %1850 = vmatprep.subr.mxu0 0.0
    %1851 = vmatpush1.msra.mxu0 0.0
    %1852 = vmatprep.subr.mxu0 0.0
    %1853 = vmatpush1.msra.mxu0 0.0
    %1854 = vmatprep.subr.mxu0 0.0
    %1855 = vmatpush1.msra.mxu0 0.0
    %1856 = vmatprep.subr.mxu0 0.0
    %1857 = vmatpush1.msra.mxu0 0.0
    %1858 = vmatprep.subr.mxu0 0.0
    %1859 = vmatpush1.msra.mxu0 0.0
    %1860 = vmatprep.subr.mxu0 0.0
    %1861 = vmatpush1.msra.mxu0 0.0
    %1862 = vmatprep.subr.mxu0 0.0
    %1863 = vmatpush1.msra.mxu0 0.0
    %1864 = vmatprep.subr.mxu0 0.0
    %1865 = vmatpush1.msra.mxu0 0.0
    %1866 = vmatprep.subr.mxu0 0.0
    %1867 = vmatpush1.msra.mxu0 0.0
    %1868 = vmatprep.subr.mxu0 0.0
    %1869 = vmatpush1.msra.mxu0 0.0
    %1870 = vmatprep.subr.mxu0 0.0
    %1871 = vmatpush1.msra.mxu0 0.0
    %1872 = vmatprep.mubr.f32.mxu0 0.0
    %1873 = vmatmul.mubr.f32.gmra.mrb[0].mxu0 %v1806
    %v1874 = vpop.f32.mrb[0].mxu0
    %v1875 = vadd.f32 %v303, %v1874
    %v1876 = vpop.f32.mrb[0].mxu0
    %v1877 = vadd.f32 %v307, %v1876
    %1878 = vdwg.mxu0
    %v1880 = vrot.slane %v1875, 3
    %v1882 = vadd.f32 %v282, %v1880
    %v1883 = vsub.f32 0.0, %v1882
    %v1884 = vmul.f32 %v1883, 1.442695
    %v1885 = vpow.pop %v1884
    %v1886 = vadd.f32 %v1885, 1.0
    %v1887 = vrcp.pop %v1886
    %v1888 = vmul.f32 1.0, %v1887
    %v1890 = vrot.slane %v1877, 3
    %1891 = vrot.lane.b32.xlu0 %v1880, 32
    %v1892 = vpop.permute.xlu0 %1891
    %1893 = vrot.lane.b32.xlu0 %v1890, 32
    %v1894 = vpop.permute.xlu0 %1893
    %v1895 = vsel %vm96, %v1892, %v1894
    %v1897 = vmul.f32 %v1888, %v1895
    %1899 = vrot.lane.b32.xlu0 %v1897, 96
    %v1900 = vpop.permute.xlu0 %1899
    %v1902 = vadd.f32 %v282, %v1900
    %v1903 = vadd.f32 %v284, %v1900
    %v1904 = vtanh.pop %v1902
    %v1905 = vtanh.pop %v1903
    %v1906 = vsub.f32 1.0, %v1888
    %1909 = vrot.lane.b32.xlu0 %v1904, 80
    %v1910 = vpop.permute.xlu0 %1909
    %1911 = vrot.lane.b32.xlu0 %v1905, 80
    %v1912 = vpop.permute.xlu0 %1911
    %v1913 = vsel %vm415, %v1910, %v1912
    %v1915 = vmul.f32 %v1906, %v1913
    %v1916 = vrot.slane %v1797, 7
    %v1918 = vmul.f32 %v1888, %v1916
    %v1919 = vadd.f32 %v1915, %v1918
    %1921 = vrot.lane.b32.xlu0 %v1919, 80
    %v1922 = vpop.permute.xlu0 %1921
    %1924 = vst.msk [vmem:[#allocation2 + $0x8] sm:$0x20] %vm1037, %v1922
    %v1925 = vrot.slane %v1919, 5
    %1926 = vrot.lane.b32.xlu0 %v1925, 80
    %v1927 = vpop.permute.xlu0 %1926
    %v1928 = vsel %vm202, %v1927, 0
    %1930 = vmatprep.subr.mxu0 %v287
    %1931 = vmatpush1.msra.mxu0 %v286
    %1932 = vmatprep.subr.mxu0 %v289
    %1933 = vmatpush1.msra.mxu0 %v288
    %1934 = vmatprep.subr.mxu0 %v291
    %1935 = vmatpush1.msra.mxu0 %v290
    %1936 = vmatprep.subr.mxu0 %v293
    %1937 = vmatpush1.msra.mxu0 %v292
    %1938 = vmatprep.subr.mxu0 %v295
    %1939 = vmatpush1.msra.mxu0 %v294
    %1940 = vmatprep.subr.mxu0 %v297
    %1941 = vmatpush1.msra.mxu0 %v296
    %1942 = vmatprep.subr.mxu0 0.0
    %1943 = vmatpush1.msra.mxu0 0.0
    %1944 = vmatprep.subr.mxu0 0.0
    %1945 = vmatpush1.msra.mxu0 0.0
    %1946 = vmatprep.subr.mxu0 0.0
    %1947 = vmatpush1.msra.mxu0 0.0
    %1948 = vmatprep.subr.mxu0 0.0
    %1949 = vmatpush1.msra.mxu0 0.0
    %1950 = vmatprep.subr.mxu0 0.0
    %1951 = vmatpush1.msra.mxu0 0.0
    %1952 = vmatprep.subr.mxu0 0.0
    %1953 = vmatpush1.msra.mxu0 0.0
    %1954 = vmatprep.subr.mxu0 0.0
    %1955 = vmatpush1.msra.mxu0 0.0
    %1956 = vmatprep.subr.mxu0 0.0
    %1957 = vmatpush1.msra.mxu0 0.0
    %1958 = vmatprep.subr.mxu0 0.0
    %1959 = vmatpush1.msra.mxu0 0.0
    %1960 = vmatprep.subr.mxu0 0.0
    %1961 = vmatpush1.msra.mxu0 0.0
    %1962 = vmatprep.subr.mxu0 0.0
    %1963 = vmatpush1.msra.mxu0 0.0
    %1964 = vmatprep.subr.mxu0 0.0
    %1965 = vmatpush1.msra.mxu0 0.0
    %1966 = vmatprep.subr.mxu0 0.0
    %1967 = vmatpush1.msra.mxu0 0.0
    %1968 = vmatprep.subr.mxu0 0.0
    %1969 = vmatpush1.msra.mxu0 0.0
    %1970 = vmatprep.subr.mxu0 0.0
    %1971 = vmatpush1.msra.mxu0 0.0
    %1972 = vmatprep.subr.mxu0 0.0
    %1973 = vmatpush1.msra.mxu0 0.0
    %1974 = vmatprep.subr.mxu0 0.0
    %1975 = vmatpush1.msra.mxu0 0.0
    %1976 = vmatprep.subr.mxu0 0.0
    %1977 = vmatpush1.msra.mxu0 0.0
    %1978 = vmatprep.subr.mxu0 0.0
    %1979 = vmatpush1.msra.mxu0 0.0
    %1980 = vmatprep.subr.mxu0 0.0
    %1981 = vmatpush1.msra.mxu0 0.0
    %1982 = vmatprep.subr.mxu0 0.0
    %1983 = vmatpush1.msra.mxu0 0.0
    %1984 = vmatprep.subr.mxu0 0.0
    %1985 = vmatpush1.msra.mxu0 0.0
    %1986 = vmatprep.subr.mxu0 0.0
    %1987 = vmatpush1.msra.mxu0 0.0
    %1988 = vmatprep.subr.mxu0 0.0
    %1989 = vmatpush1.msra.mxu0 0.0
    %1990 = vmatprep.subr.mxu0 0.0
    %1991 = vmatpush1.msra.mxu0 0.0
    %1992 = vmatprep.subr.mxu0 0.0
    %1993 = vmatpush1.msra.mxu0 0.0
    %1994 = vmatprep.mubr.f32.mxu0 0.0
    %1995 = vmatmul.mubr.f32.gmra.mrb[0].mxu0 %v1928
    %v1996 = vpop.f32.mrb[0].mxu0
    %v1997 = vadd.f32 %v303, %v1996
    %v1998 = vpop.f32.mrb[0].mxu0
    %v1999 = vadd.f32 %v307, %v1998
    %2000 = vdwg.mxu0
    %v2002 = vrot.slane %v1997, 2
    %v2004 = vadd.f32 %v282, %v2002
    %v2005 = vsub.f32 0.0, %v2004
    %v2006 = vmul.f32 %v2005, 1.442695
    %v2007 = vpow.pop %v2006
    %v2008 = vadd.f32 %v2007, 1.0
    %v2009 = vrcp.pop %v2008
    %v2010 = vmul.f32 1.0, %v2009
    %v2012 = vrot.slane %v1999, 2
    %2013 = vrot.lane.b32.xlu0 %v2002, 32
    %v2014 = vpop.permute.xlu0 %2013
    %2015 = vrot.lane.b32.xlu0 %v2012, 32
    %v2016 = vpop.permute.xlu0 %2015
    %v2017 = vsel %vm96, %v2014, %v2016
    %v2019 = vmul.f32 %v2010, %v2017
    %2021 = vrot.lane.b32.xlu0 %v2019, 96
    %v2022 = vpop.permute.xlu0 %2021
    %v2024 = vadd.f32 %v282, %v2022
    %v2025 = vadd.f32 %v284, %v2022
    %v2026 = vtanh.pop %v2024
    %v2027 = vtanh.pop %v2025
    %v2028 = vsub.f32 1.0, %v2010
    %2031 = vrot.lane.b32.xlu0 %v2026, 80
    %v2032 = vpop.permute.xlu0 %2031
    %2033 = vrot.lane.b32.xlu0 %v2027, 80
    %v2034 = vpop.permute.xlu0 %2033
    %v2035 = vsel %vm415, %v2032, %v2034
    %v2037 = vmul.f32 %v2028, %v2035
    %v2038 = vrot.slane %v1919, 7
    %v2040 = vmul.f32 %v2010, %v2038
    %v2041 = vadd.f32 %v2037, %v2040
    %2043 = vrot.lane.b32.xlu0 %v2041, 80
    %v2044 = vpop.permute.xlu0 %2043
    %2046 = vst.msk [vmem:[#allocation2 + $0x8] sm:$0x40] %vm1160, %v2044
    %v2047 = vrot.slane %v2041, 6
    %2048 = vrot.lane.b32.xlu0 %v2047, 80
    %v2049 = vpop.permute.xlu0 %2048
    %v2050 = vsel %vm202, %v2049, 0
    %2052 = vmatprep.subr.mxu0 %v287
    %2053 = vmatpush1.msra.mxu0 %v286
    %2054 = vmatprep.subr.mxu0 %v289
    %2055 = vmatpush1.msra.mxu0 %v288
    %2056 = vmatprep.subr.mxu0 %v291
    %2057 = vmatpush1.msra.mxu0 %v290
    %2058 = vmatprep.subr.mxu0 %v293
    %2059 = vmatpush1.msra.mxu0 %v292
    %2060 = vmatprep.subr.mxu0 %v295
    %2061 = vmatpush1.msra.mxu0 %v294
    %2062 = vmatprep.subr.mxu0 %v297
    %2063 = vmatpush1.msra.mxu0 %v296
    %2064 = vmatprep.subr.mxu0 0.0
    %2065 = vmatpush1.msra.mxu0 0.0
    %2066 = vmatprep.subr.mxu0 0.0
    %2067 = vmatpush1.msra.mxu0 0.0
    %2068 = vmatprep.subr.mxu0 0.0
    %2069 = vmatpush1.msra.mxu0 0.0
    %2070 = vmatprep.subr.mxu0 0.0
    %2071 = vmatpush1.msra.mxu0 0.0
    %2072 = vmatprep.subr.mxu0 0.0
    %2073 = vmatpush1.msra.mxu0 0.0
    %2074 = vmatprep.subr.mxu0 0.0
    %2075 = vmatpush1.msra.mxu0 0.0
    %2076 = vmatprep.subr.mxu0 0.0
    %2077 = vmatpush1.msra.mxu0 0.0
    %2078 = vmatprep.subr.mxu0 0.0
    %2079 = vmatpush1.msra.mxu0 0.0
    %2080 = vmatprep.subr.mxu0 0.0
    %2081 = vmatpush1.msra.mxu0 0.0
    %2082 = vmatprep.subr.mxu0 0.0
    %2083 = vmatpush1.msra.mxu0 0.0
    %2084 = vmatprep.subr.mxu0 0.0
    %2085 = vmatpush1.msra.mxu0 0.0
    %2086 = vmatprep.subr.mxu0 0.0
    %2087 = vmatpush1.msra.mxu0 0.0
    %2088 = vmatprep.subr.mxu0 0.0
    %2089 = vmatpush1.msra.mxu0 0.0
    %2090 = vmatprep.subr.mxu0 0.0
    %2091 = vmatpush1.msra.mxu0 0.0
    %2092 = vmatprep.subr.mxu0 0.0
    %2093 = vmatpush1.msra.mxu0 0.0
    %2094 = vmatprep.subr.mxu0 0.0
    %2095 = vmatpush1.msra.mxu0 0.0
    %2096 = vmatprep.subr.mxu0 0.0
    %2097 = vmatpush1.msra.mxu0 0.0
    %2098 = vmatprep.subr.mxu0 0.0
    %2099 = vmatpush1.msra.mxu0 0.0
    %2100 = vmatprep.subr.mxu0 0.0
    %2101 = vmatpush1.msra.mxu0 0.0
    %2102 = vmatprep.subr.mxu0 0.0
    %2103 = vmatpush1.msra.mxu0 0.0
    %2104 = vmatprep.subr.mxu0 0.0
    %2105 = vmatpush1.msra.mxu0 0.0
    %2106 = vmatprep.subr.mxu0 0.0
    %2107 = vmatpush1.msra.mxu0 0.0
    %2108 = vmatprep.subr.mxu0 0.0
    %2109 = vmatpush1.msra.mxu0 0.0
    %2110 = vmatprep.subr.mxu0 0.0
    %2111 = vmatpush1.msra.mxu0 0.0
    %2112 = vmatprep.subr.mxu0 0.0
    %2113 = vmatpush1.msra.mxu0 0.0
    %2114 = vmatprep.subr.mxu0 0.0
    %2115 = vmatpush1.msra.mxu0 0.0
    %2116 = vmatprep.mubr.f32.mxu0 0.0
    %2117 = vmatmul.mubr.f32.gmra.mrb[0].mxu0 %v2050
    %v2118 = vpop.f32.mrb[0].mxu0
    %v2119 = vadd.f32 %v303, %v2118
    %v2120 = vpop.f32.mrb[0].mxu0
    %v2121 = vadd.f32 %v307, %v2120
    %2122 = vdwg.mxu0
    %v2124 = vrot.slane %v2119, 1
    %v2126 = vadd.f32 %v282, %v2124
    %v2127 = vsub.f32 0.0, %v2126
    %v2128 = vmul.f32 %v2127, 1.442695
    %v2129 = vpow.pop %v2128
    %v2130 = vadd.f32 %v2129, 1.0
    %v2131 = vrcp.pop %v2130
    %v2132 = vmul.f32 1.0, %v2131
    %v2134 = vrot.slane %v2121, 1
    %2135 = vrot.lane.b32.xlu0 %v2124, 32
    %v2136 = vpop.permute.xlu0 %2135
    %2137 = vrot.lane.b32.xlu0 %v2134, 32
    %v2138 = vpop.permute.xlu0 %2137
    %v2139 = vsel %vm96, %v2136, %v2138
    %v2141 = vmul.f32 %v2132, %v2139
    %2143 = vrot.lane.b32.xlu0 %v2141, 96
    %v2144 = vpop.permute.xlu0 %2143
    %v2146 = vadd.f32 %v282, %v2144
    %v2147 = vadd.f32 %v284, %v2144
    %v2148 = vtanh.pop %v2146
    %v2149 = vtanh.pop %v2147
    %v2150 = vsub.f32 1.0, %v2132
    %2153 = vrot.lane.b32.xlu0 %v2148, 80
    %v2154 = vpop.permute.xlu0 %2153
    %2155 = vrot.lane.b32.xlu0 %v2149, 80
    %v2156 = vpop.permute.xlu0 %2155
    %v2157 = vsel %vm415, %v2154, %v2156
    %v2159 = vmul.f32 %v2150, %v2157
    %v2160 = vrot.slane %v2041, 7
    %v2162 = vmul.f32 %v2132, %v2160
    %v2163 = vadd.f32 %v2159, %v2162
    %2165 = vrot.lane.b32.xlu0 %v2163, 80
    %v2166 = vpop.permute.xlu0 %2165
    %2168 = vst.msk [vmem:[#allocation2 + $0x8] sm:$0x80] %vm1283, %v2166
    %v2169 = vld [vmem:[#allocation2] sm:$0xff]
    %v2170 = vld [vmem:[#allocation2 + $0x8] sm:$0xff]
    %v2171 = vld [vmem:[%s9] sm:$0xff]
    %v2172 = vld [vmem:[%s9 + $0x8] sm:$0xff]
    %v2173 = vld [vmem:[%s9 + $0x10] sm:$0xff]
    %v2174 = vld [vmem:[%s9 + $0x18] sm:$0xff]
    %v2175 = vld [vmem:[%s9 + $0x20] sm:$0xff]
    %v2176 = vld [vmem:[%s9 + $0x28] sm:$0xff]
    %v2177 = vld [vmem:[%s9 + $0x30] sm:$0xff]
    %v2178 = vld [vmem:[%s9 + $0x38] sm:$0xff]
    %v2179 = vld [vmem:[%s9 + $0x40] sm:$0xff]
    %v2180 = vld [vmem:[%s9 + $0x48] sm:$0xff]
    %v2181 = vld [vmem:[%s9 + $0x50] sm:$0xff]
    %v2182 = vld [vmem:[%s9 + $0x58] sm:$0xff]
    %v2184 = vsel %vm202, %v2169, 0
    %v2187 = vsel %vm202, %v2170, 0
    %2189 = vmatprep.subr.mxu0 %v2172
    %2190 = vmatpush1.msra.mxu0 %v2171
    %2191 = vmatprep.subr.mxu0 %v2174
    %2192 = vmatpush1.msra.mxu0 %v2173
    %2193 = vmatprep.subr.mxu0 %v2176
    %2194 = vmatpush1.msra.mxu0 %v2175
    %2195 = vmatprep.subr.mxu0 %v2178
    %2196 = vmatpush1.msra.mxu0 %v2177
    %2197 = vmatprep.subr.mxu0 %v2180
    %2198 = vmatpush1.msra.mxu0 %v2179
    %2199 = vmatprep.subr.mxu0 %v2182
    %2200 = vmatpush1.msra.mxu0 %v2181
    %2201 = vmatprep.subr.mxu0 0.0
    %2202 = vmatpush1.msra.mxu0 0.0
    %2203 = vmatprep.subr.mxu0 0.0
    %2204 = vmatpush1.msra.mxu0 0.0
    %2205 = vmatprep.subr.mxu0 0.0
    %2206 = vmatpush1.msra.mxu0 0.0
    %2207 = vmatprep.subr.mxu0 0.0
    %2208 = vmatpush1.msra.mxu0 0.0
    %2209 = vmatprep.subr.mxu0 0.0
    %2210 = vmatpush1.msra.mxu0 0.0
    %2211 = vmatprep.subr.mxu0 0.0
    %2212 = vmatpush1.msra.mxu0 0.0
    %2213 = vmatprep.subr.mxu0 0.0
    %2214 = vmatpush1.msra.mxu0 0.0
    %2215 = vmatprep.subr.mxu0 0.0
    %2216 = vmatpush1.msra.mxu0 0.0
    %2217 = vmatprep.subr.mxu0 0.0
    %2218 = vmatpush1.msra.mxu0 0.0
    %2219 = vmatprep.subr.mxu0 0.0
    %2220 = vmatpush1.msra.mxu0 0.0
    %2221 = vmatprep.subr.mxu0 0.0
    %2222 = vmatpush1.msra.mxu0 0.0
    %2223 = vmatprep.subr.mxu0 0.0
    %2224 = vmatpush1.msra.mxu0 0.0
    %2225 = vmatprep.subr.mxu0 0.0
    %2226 = vmatpush1.msra.mxu0 0.0
    %2227 = vmatprep.subr.mxu0 0.0
    %2228 = vmatpush1.msra.mxu0 0.0
    %2229 = vmatprep.subr.mxu0 0.0
    %2230 = vmatpush1.msra.mxu0 0.0
    %2231 = vmatprep.subr.mxu0 0.0
    %2232 = vmatpush1.msra.mxu0 0.0
    %2233 = vmatprep.subr.mxu0 0.0
    %2234 = vmatpush1.msra.mxu0 0.0
    %2235 = vmatprep.subr.mxu0 0.0
    %2236 = vmatpush1.msra.mxu0 0.0
    %2237 = vmatprep.subr.mxu0 0.0
    %2238 = vmatpush1.msra.mxu0 0.0
    %2239 = vmatprep.subr.mxu0 0.0
    %2240 = vmatpush1.msra.mxu0 0.0
    %2241 = vmatprep.subr.mxu0 0.0
    %2242 = vmatpush1.msra.mxu0 0.0
    %2243 = vmatprep.subr.mxu0 0.0
    %2244 = vmatpush1.msra.mxu0 0.0
    %2245 = vmatprep.subr.mxu0 0.0
    %2246 = vmatpush1.msra.mxu0 0.0
    %2247 = vmatprep.subr.mxu0 0.0
    %2248 = vmatpush1.msra.mxu0 0.0
    %2249 = vmatprep.subr.mxu0 0.0
    %2250 = vmatpush1.msra.mxu0 0.0
    %2251 = vmatprep.subr.mxu0 0.0
    %2252 = vmatpush1.msra.mxu0 0.0
    %2253 = vmatprep.mubr.f32.mxu0 0.0
    %2254 = vmatmul.mubr.f32.gmra.mrb[0].mxu0 %v2184
    %v2255 = vpop.f32.mrb[0].mxu0
    %v2256 = vadd.f32 0.0, %v2255
    %v2257 = vpop.f32.mrb[0].mxu0
    %v2258 = vadd.f32 0.0, %v2257
    %2259 = vmatprep.mubr.f32.mxu0 0.0
    %2260 = vmatmul.mubr.f32.gmra.mrb[0].mxu0 %v2187
    %v2261 = vpop.f32.mrb[0].mxu0
    %v2262 = vadd.f32 0.0, %v2261
    %v2263 = vpop.f32.mrb[0].mxu0
    %v2264 = vadd.f32 0.0, %v2263
    %2265 = vdwg.mxu0
    %2268 = vrot.lane.b32.xlu0 %v2256, 120
    %v2269 = vpop.permute.xlu0 %2268
    %2270 = vrot.lane.b32.xlu0 %v2262, 120
    %v2271 = vpop.permute.xlu0 %2270
    %2272 = vrot.lane.b32.xlu0 %v2256, 112
    %v2273 = vpop.permute.xlu0 %2272
    %2274 = vrot.lane.b32.xlu0 %v2262, 112
    %v2275 = vpop.permute.xlu0 %2274
    %2276 = vrot.lane.b32.xlu0 %v2256, 104
    %v2277 = vpop.permute.xlu0 %2276
    %2278 = vrot.lane.b32.xlu0 %v2262, 104
    %v2279 = vpop.permute.xlu0 %2278
    %2280 = vrot.lane.b32.xlu0 %v2256, 96
    %v2281 = vpop.permute.xlu0 %2280
    %2282 = vrot.lane.b32.xlu0 %v2262, 96
    %v2283 = vpop.permute.xlu0 %2282
    %2284 = vrot.lane.b32.xlu0 %v2256, 88
    %v2285 = vpop.permute.xlu0 %2284
    %2286 = vrot.lane.b32.xlu0 %v2262, 88
    %v2287 = vpop.permute.xlu0 %2286
    %2290 = vrot.lane.b32.xlu0 %v2258, 96
    %v2291 = vpop.permute.xlu0 %2290
    %2292 = vrot.lane.b32.xlu0 %v2264, 96
    %v2293 = vpop.permute.xlu0 %2292
    %2294 = vrot.lane.b32.xlu0 %v2258, 88
    %v2295 = vpop.permute.xlu0 %2294
    %2296 = vrot.lane.b32.xlu0 %v2264, 88
    %v2297 = vpop.permute.xlu0 %2296
    %2298 = vrot.lane.b32.xlu0 %v2256, 80
    %v2299 = vpop.permute.xlu0 %2298
    %vm2300 = vcmask 64512
    %v2301 = vsel %vm2300, %v2256, 0
    %v2303 = vsel %vm2300, %v2299, 0
    %2305 = vmatprep.subr.mxu0 0.0
    %2306 = vmatpush1.xpose.msra.mxu0 %v2303
    %2307 = vmatprep.subr.mxu0 0.0
    %2308 = vmatpush1.xpose.msra.mxu0 0.0
    %2309 = vmatprep.subr.mxu0 0.0
    %2310 = vmatpush1.xpose.msra.mxu0 0.0
    %2311 = vmatprep.subr.mxu0 0.0
    %2312 = vmatpush1.xpose.msra.mxu0 0.0
    %2313 = vmatprep.subr.mxu0 0.0
    %2314 = vmatpush1.xpose.msra.mxu0 0.0
    %2315 = vmatprep.subr.mxu0 0.0
    %2316 = vmatpush1.xpose.msra.mxu0 0.0
    %2317 = vmatprep.subr.mxu0 0.0
    %2318 = vmatpush1.xpose.msra.mxu0 0.0
    %2319 = vmatprep.subr.mxu0 0.0
    %2320 = vmatpush1.xpose.msra.mxu0 0.0
    %2321 = vmatprep.subr.mxu0 0.0
    %2322 = vmatpush1.xpose.msra.mxu0 0.0
    %2323 = vmatprep.subr.mxu0 0.0
    %2324 = vmatpush1.xpose.msra.mxu0 0.0
    %2325 = vmatprep.subr.mxu0 0.0
    %2326 = vmatpush1.xpose.msra.mxu0 0.0
    %2327 = vmatprep.subr.mxu0 0.0
    %2328 = vmatpush1.xpose.msra.mxu0 0.0
    %2329 = vmatprep.subr.mxu0 0.0
    %2330 = vmatpush1.xpose.msra.mxu0 0.0
    %2331 = vmatprep.subr.mxu0 0.0
    %2332 = vmatpush1.xpose.msra.mxu0 0.0
    %2333 = vmatprep.subr.mxu0 0.0
    %2334 = vmatpush1.xpose.msra.mxu0 0.0
    %2335 = vmatprep.subr.mxu0 0.0
    %2336 = vmatpush1.xpose.msra.mxu0 0.0
    %2337 = vmatprep.subr.mxu0 0.0
    %2338 = vmatpush1.xpose.msra.mxu0 0.0
    %2339 = vmatprep.subr.mxu0 0.0
    %2340 = vmatpush1.xpose.msra.mxu0 0.0
    %2341 = vmatprep.subr.mxu0 0.0
    %2342 = vmatpush1.xpose.msra.mxu0 0.0
    %2343 = vmatprep.subr.mxu0 0.0
    %2344 = vmatpush1.xpose.msra.mxu0 0.0
    %2345 = vmatprep.subr.mxu0 0.0
    %2346 = vmatpush1.xpose.msra.mxu0 0.0
    %2347 = vmatprep.subr.mxu0 0.0
    %2348 = vmatpush1.xpose.msra.mxu0 0.0
    %2349 = vmatprep.subr.mxu0 0.0
    %2350 = vmatpush1.xpose.msra.mxu0 0.0
    %2351 = vmatprep.subr.mxu0 0.0
    %2352 = vmatpush1.xpose.msra.mxu0 0.0
    %2353 = vmatprep.subr.mxu0 0.0
    %2354 = vmatpush1.xpose.msra.mxu0 0.0
    %2355 = vmatprep.subr.mxu0 0.0
    %2356 = vmatpush1.xpose.msra.mxu0 0.0
    %2357 = vmatprep.subr.mxu0 0.0
    %2358 = vmatpush1.xpose.msra.mxu0 0.0
    %2359 = vmatprep.subr.mxu0 0.0
    %2360 = vmatpush1.xpose.msra.mxu0 0.0
    %2361 = vmatprep.subr.mxu0 0.0
    %2362 = vmatpush1.xpose.msra.mxu0 0.0
    %2363 = vmatprep.subr.mxu0 0.0
    %2364 = vmatpush1.xpose.msra.mxu0 0.0
    %2365 = vmatprep.subr.mxu0 0.0
    %2366 = vmatpush1.xpose.msra.mxu0 0.0
    %2367 = vmatprep.subr.mxu0 0.0
    %2368 = vmatpush1.xpose.msra.mxu0 0.0
    %2369 = vmatprep.mubr.f32.mxu0 0.0
    %2370 = vmatmul.mubr.f32.gmra.mrb[0].mxu0 %v2301
    %v2371 = vpop.f32.mrb[0].mxu0
    %v2372 = vadd.f32 0.0, %v2371
    %v2373 = vpop.f32.mrb[0].mxu0
    %2374 = vdwg.mxu0
    %2375 = vrot.lane.b32.xlu0 %v2262, 80
    %v2376 = vpop.permute.xlu0 %2375
    %v2377 = vsel %vm2300, %v2262, 0
    %v2379 = vsel %vm2300, %v2376, 0
    %2381 = vmatprep.subr.mxu0 0.0
    %2382 = vmatpush1.xpose.msra.mxu0 %v2379
    %2383 = vmatprep.subr.mxu0 0.0
    %2384 = vmatpush1.xpose.msra.mxu0 0.0
    %2385 = vmatprep.subr.mxu0 0.0
    %2386 = vmatpush1.xpose.msra.mxu0 0.0
    %2387 = vmatprep.subr.mxu0 0.0
    %2388 = vmatpush1.xpose.msra.mxu0 0.0
    %2389 = vmatprep.subr.mxu0 0.0
    %2390 = vmatpush1.xpose.msra.mxu0 0.0
    %2391 = vmatprep.subr.mxu0 0.0
    %2392 = vmatpush1.xpose.msra.mxu0 0.0
    %2393 = vmatprep.subr.mxu0 0.0
    %2394 = vmatpush1.xpose.msra.mxu0 0.0
    %2395 = vmatprep.subr.mxu0 0.0
    %2396 = vmatpush1.xpose.msra.mxu0 0.0
    %2397 = vmatprep.subr.mxu0 0.0
    %2398 = vmatpush1.xpose.msra.mxu0 0.0
    %2399 = vmatprep.subr.mxu0 0.0
    %2400 = vmatpush1.xpose.msra.mxu0 0.0
    %2401 = vmatprep.subr.mxu0 0.0
    %2402 = vmatpush1.xpose.msra.mxu0 0.0
    %2403 = vmatprep.subr.mxu0 0.0
    %2404 = vmatpush1.xpose.msra.mxu0 0.0
    %2405 = vmatprep.subr.mxu0 0.0
    %2406 = vmatpush1.xpose.msra.mxu0 0.0
    %2407 = vmatprep.subr.mxu0 0.0
    %2408 = vmatpush1.xpose.msra.mxu0 0.0
    %2409 = vmatprep.subr.mxu0 0.0
    %2410 = vmatpush1.xpose.msra.mxu0 0.0
    %2411 = vmatprep.subr.mxu0 0.0
    %2412 = vmatpush1.xpose.msra.mxu0 0.0
    %2413 = vmatprep.subr.mxu0 0.0
    %2414 = vmatpush1.xpose.msra.mxu0 0.0
    %2415 = vmatprep.subr.mxu0 0.0
    %2416 = vmatpush1.xpose.msra.mxu0 0.0
    %2417 = vmatprep.subr.mxu0 0.0
    %2418 = vmatpush1.xpose.msra.mxu0 0.0
    %2419 = vmatprep.subr.mxu0 0.0
    %2420 = vmatpush1.xpose.msra.mxu0 0.0
    %2421 = vmatprep.subr.mxu0 0.0
    %2422 = vmatpush1.xpose.msra.mxu0 0.0
    %2423 = vmatprep.subr.mxu0 0.0
    %2424 = vmatpush1.xpose.msra.mxu0 0.0
    %2425 = vmatprep.subr.mxu0 0.0
    %2426 = vmatpush1.xpose.msra.mxu0 0.0
    %2427 = vmatprep.subr.mxu0 0.0
    %2428 = vmatpush1.xpose.msra.mxu0 0.0
    %2429 = vmatprep.subr.mxu0 0.0
    %2430 = vmatpush1.xpose.msra.mxu0 0.0
    %2431 = vmatprep.subr.mxu0 0.0
    %2432 = vmatpush1.xpose.msra.mxu0 0.0
    %2433 = vmatprep.subr.mxu0 0.0
    %2434 = vmatpush1.xpose.msra.mxu0 0.0
    %2435 = vmatprep.subr.mxu0 0.0
    %2436 = vmatpush1.xpose.msra.mxu0 0.0
    %2437 = vmatprep.subr.mxu0 0.0
    %2438 = vmatpush1.xpose.msra.mxu0 0.0
    %2439 = vmatprep.subr.mxu0 0.0
    %2440 = vmatpush1.xpose.msra.mxu0 0.0
    %2441 = vmatprep.subr.mxu0 0.0
    %2442 = vmatpush1.xpose.msra.mxu0 0.0
    %2443 = vmatprep.subr.mxu0 0.0
    %2444 = vmatpush1.xpose.msra.mxu0 0.0
    %2445 = vmatprep.mubr.f32.mxu0 0.0
    %2446 = vmatmul.mubr.f32.gmra.mrb[0].mxu0 %v2377
    %v2447 = vpop.f32.mrb[0].mxu0
    %v2448 = vadd.f32 0.0, %v2447
    %v2449 = vpop.f32.mrb[0].mxu0
    %2450 = vdwg.mxu0
    %2451 = vrot.lane.b32.xlu0 %v2269, 80
    %v2452 = vpop.permute.xlu0 %2451
    %v2453 = vsel %vm2300, %v2269, 0
    %v2455 = vsel %vm2300, %v2452, 0
    %2457 = vmatprep.subr.mxu0 0.0
    %2458 = vmatpush1.xpose.msra.mxu0 %v2455
    %2459 = vmatprep.subr.mxu0 0.0
    %2460 = vmatpush1.xpose.msra.mxu0 0.0
    %2461 = vmatprep.subr.mxu0 0.0
    %2462 = vmatpush1.xpose.msra.mxu0 0.0
    %2463 = vmatprep.subr.mxu0 0.0
    %2464 = vmatpush1.xpose.msra.mxu0 0.0
    %2465 = vmatprep.subr.mxu0 0.0
    %2466 = vmatpush1.xpose.msra.mxu0 0.0
    %2467 = vmatprep.subr.mxu0 0.0
    %2468 = vmatpush1.xpose.msra.mxu0 0.0
    %2469 = vmatprep.subr.mxu0 0.0
    %2470 = vmatpush1.xpose.msra.mxu0 0.0
    %2471 = vmatprep.subr.mxu0 0.0
    %2472 = vmatpush1.xpose.msra.mxu0 0.0
    %2473 = vmatprep.subr.mxu0 0.0
    %2474 = vmatpush1.xpose.msra.mxu0 0.0
    %2475 = vmatprep.subr.mxu0 0.0
    %2476 = vmatpush1.xpose.msra.mxu0 0.0
    %2477 = vmatprep.subr.mxu0 0.0
    %2478 = vmatpush1.xpose.msra.mxu0 0.0
    %2479 = vmatprep.subr.mxu0 0.0
    %2480 = vmatpush1.xpose.msra.mxu0 0.0
    %2481 = vmatprep.subr.mxu0 0.0
    %2482 = vmatpush1.xpose.msra.mxu0 0.0
    %2483 = vmatprep.subr.mxu0 0.0
    %2484 = vmatpush1.xpose.msra.mxu0 0.0
    %2485 = vmatprep.subr.mxu0 0.0
    %2486 = vmatpush1.xpose.msra.mxu0 0.0
    %2487 = vmatprep.subr.mxu0 0.0
    %2488 = vmatpush1.xpose.msra.mxu0 0.0
    %2489 = vmatprep.subr.mxu0 0.0
    %2490 = vmatpush1.xpose.msra.mxu0 0.0
    %2491 = vmatprep.subr.mxu0 0.0
    %2492 = vmatpush1.xpose.msra.mxu0 0.0
    %2493 = vmatprep.subr.mxu0 0.0
    %2494 = vmatpush1.xpose.msra.mxu0 0.0
    %2495 = vmatprep.subr.mxu0 0.0
    %2496 = vmatpush1.xpose.msra.mxu0 0.0
    %2497 = vmatprep.subr.mxu0 0.0
    %2498 = vmatpush1.xpose.msra.mxu0 0.0
    %2499 = vmatprep.subr.mxu0 0.0
    %2500 = vmatpush1.xpose.msra.mxu0 0.0
    %2501 = vmatprep.subr.mxu0 0.0
    %2502 = vmatpush1.xpose.msra.mxu0 0.0
    %2503 = vmatprep.subr.mxu0 0.0
    %2504 = vmatpush1.xpose.msra.mxu0 0.0
    %2505 = vmatprep.subr.mxu0 0.0
    %2506 = vmatpush1.xpose.msra.mxu0 0.0
    %2507 = vmatprep.subr.mxu0 0.0
    %2508 = vmatpush1.xpose.msra.mxu0 0.0
    %2509 = vmatprep.subr.mxu0 0.0
    %2510 = vmatpush1.xpose.msra.mxu0 0.0
    %2511 = vmatprep.subr.mxu0 0.0
    %2512 = vmatpush1.xpose.msra.mxu0 0.0
    %2513 = vmatprep.subr.mxu0 0.0
    %2514 = vmatpush1.xpose.msra.mxu0 0.0
    %2515 = vmatprep.subr.mxu0 0.0
    %2516 = vmatpush1.xpose.msra.mxu0 0.0
    %2517 = vmatprep.subr.mxu0 0.0
    %2518 = vmatpush1.xpose.msra.mxu0 0.0
    %2519 = vmatprep.subr.mxu0 0.0
    %2520 = vmatpush1.xpose.msra.mxu0 0.0
    %2521 = vmatprep.mubr.f32.mxu0 0.0
    %2522 = vmatmul.mubr.f32.gmra.mrb[0].mxu0 %v2453
    %v2523 = vpop.f32.mrb[0].mxu0
    %v2524 = vadd.f32 0.0, %v2523
    %v2525 = vpop.f32.mrb[0].mxu0
    %2526 = vdwg.mxu0
    %2527 = vrot.lane.b32.xlu0 %v2271, 80
    %v2528 = vpop.permute.xlu0 %2527
    %v2529 = vsel %vm2300, %v2271, 0
    %v2531 = vsel %vm2300, %v2528, 0
    %2533 = vmatprep.subr.mxu0 0.0
    %2534 = vmatpush1.xpose.msra.mxu0 %v2531
    %2535 = vmatprep.subr.mxu0 0.0
    %2536 = vmatpush1.xpose.msra.mxu0 0.0
    %2537 = vmatprep.subr.mxu0 0.0
    %2538 = vmatpush1.xpose.msra.mxu0 0.0
    %2539 = vmatprep.subr.mxu0 0.0
    %2540 = vmatpush1.xpose.msra.mxu0 0.0
    %2541 = vmatprep.subr.mxu0 0.0
    %2542 = vmatpush1.xpose.msra.mxu0 0.0
    %2543 = vmatprep.subr.mxu0 0.0
    %2544 = vmatpush1.xpose.msra.mxu0 0.0
    %2545 = vmatprep.subr.mxu0 0.0
    %2546 = vmatpush1.xpose.msra.mxu0 0.0
    %2547 = vmatprep.subr.mxu0 0.0
    %2548 = vmatpush1.xpose.msra.mxu0 0.0
    %2549 = vmatprep.subr.mxu0 0.0
    %2550 = vmatpush1.xpose.msra.mxu0 0.0
    %2551 = vmatprep.subr.mxu0 0.0
    %2552 = vmatpush1.xpose.msra.mxu0 0.0
    %2553 = vmatprep.subr.mxu0 0.0
    %2554 = vmatpush1.xpose.msra.mxu0 0.0
    %2555 = vmatprep.subr.mxu0 0.0
    %2556 = vmatpush1.xpose.msra.mxu0 0.0
    %2557 = vmatprep.subr.mxu0 0.0
    %2558 = vmatpush1.xpose.msra.mxu0 0.0
    %2559 = vmatprep.subr.mxu0 0.0
    %2560 = vmatpush1.xpose.msra.mxu0 0.0
    %2561 = vmatprep.subr.mxu0 0.0
    %2562 = vmatpush1.xpose.msra.mxu0 0.0
    %2563 = vmatprep.subr.mxu0 0.0
    %2564 = vmatpush1.xpose.msra.mxu0 0.0
    %2565 = vmatprep.subr.mxu0 0.0
    %2566 = vmatpush1.xpose.msra.mxu0 0.0
    %2567 = vmatprep.subr.mxu0 0.0
    %2568 = vmatpush1.xpose.msra.mxu0 0.0
    %2569 = vmatprep.subr.mxu0 0.0
    %2570 = vmatpush1.xpose.msra.mxu0 0.0
    %2571 = vmatprep.subr.mxu0 0.0
    %2572 = vmatpush1.xpose.msra.mxu0 0.0
    %2573 = vmatprep.subr.mxu0 0.0
    %2574 = vmatpush1.xpose.msra.mxu0 0.0
    %2575 = vmatprep.subr.mxu0 0.0
    %2576 = vmatpush1.xpose.msra.mxu0 0.0
    %2577 = vmatprep.subr.mxu0 0.0
    %2578 = vmatpush1.xpose.msra.mxu0 0.0
    %2579 = vmatprep.subr.mxu0 0.0
    %2580 = vmatpush1.xpose.msra.mxu0 0.0
    %2581 = vmatprep.subr.mxu0 0.0
    %2582 = vmatpush1.xpose.msra.mxu0 0.0
    %2583 = vmatprep.subr.mxu0 0.0
    %2584 = vmatpush1.xpose.msra.mxu0 0.0
    %2585 = vmatprep.subr.mxu0 0.0
    %2586 = vmatpush1.xpose.msra.mxu0 0.0
    %2587 = vmatprep.subr.mxu0 0.0
    %2588 = vmatpush1.xpose.msra.mxu0 0.0
    %2589 = vmatprep.subr.mxu0 0.0
    %2590 = vmatpush1.xpose.msra.mxu0 0.0
    %2591 = vmatprep.subr.mxu0 0.0
    %2592 = vmatpush1.xpose.msra.mxu0 0.0
    %2593 = vmatprep.subr.mxu0 0.0
    %2594 = vmatpush1.xpose.msra.mxu0 0.0
    %2595 = vmatprep.subr.mxu0 0.0
    %2596 = vmatpush1.xpose.msra.mxu0 0.0
    %2597 = vmatprep.mubr.f32.mxu0 0.0
    %2598 = vmatmul.mubr.f32.gmra.mrb[0].mxu0 %v2529
    %v2599 = vpop.f32.mrb[0].mxu0
    %v2600 = vadd.f32 0.0, %v2599
    %v2601 = vpop.f32.mrb[0].mxu0
    %2602 = vdwg.mxu0
    %2603 = vrot.lane.b32.xlu0 %v2273, 80
    %v2604 = vpop.permute.xlu0 %2603
    %v2605 = vsel %vm2300, %v2273, 0
    %v2607 = vsel %vm2300, %v2604, 0
    %2609 = vmatprep.subr.mxu0 0.0
    %2610 = vmatpush1.xpose.msra.mxu0 %v2607
    %2611 = vmatprep.subr.mxu0 0.0
    %2612 = vmatpush1.xpose.msra.mxu0 0.0
    %2613 = vmatprep.subr.mxu0 0.0
    %2614 = vmatpush1.xpose.msra.mxu0 0.0
    %2615 = vmatprep.subr.mxu0 0.0
    %2616 = vmatpush1.xpose.msra.mxu0 0.0
    %2617 = vmatprep.subr.mxu0 0.0
    %2618 = vmatpush1.xpose.msra.mxu0 0.0
    %2619 = vmatprep.subr.mxu0 0.0
    %2620 = vmatpush1.xpose.msra.mxu0 0.0
    %2621 = vmatprep.subr.mxu0 0.0
    %2622 = vmatpush1.xpose.msra.mxu0 0.0
    %2623 = vmatprep.subr.mxu0 0.0
    %2624 = vmatpush1.xpose.msra.mxu0 0.0
    %2625 = vmatprep.subr.mxu0 0.0
    %2626 = vmatpush1.xpose.msra.mxu0 0.0
    %2627 = vmatprep.subr.mxu0 0.0
    %2628 = vmatpush1.xpose.msra.mxu0 0.0
    %2629 = vmatprep.subr.mxu0 0.0
    %2630 = vmatpush1.xpose.msra.mxu0 0.0
    %2631 = vmatprep.subr.mxu0 0.0
    %2632 = vmatpush1.xpose.msra.mxu0 0.0
    %2633 = vmatprep.subr.mxu0 0.0
    %2634 = vmatpush1.xpose.msra.mxu0 0.0
    %2635 = vmatprep.subr.mxu0 0.0
    %2636 = vmatpush1.xpose.msra.mxu0 0.0
    %2637 = vmatprep.subr.mxu0 0.0
    %2638 = vmatpush1.xpose.msra.mxu0 0.0
    %2639 = vmatprep.subr.mxu0 0.0
    %2640 = vmatpush1.xpose.msra.mxu0 0.0
    %2641 = vmatprep.subr.mxu0 0.0
    %2642 = vmatpush1.xpose.msra.mxu0 0.0
    %2643 = vmatprep.subr.mxu0 0.0
    %2644 = vmatpush1.xpose.msra.mxu0 0.0
    %2645 = vmatprep.subr.mxu0 0.0
    %2646 = vmatpush1.xpose.msra.mxu0 0.0
    %2647 = vmatprep.subr.mxu0 0.0
    %2648 = vmatpush1.xpose.msra.mxu0 0.0
    %2649 = vmatprep.subr.mxu0 0.0
    %2650 = vmatpush1.xpose.msra.mxu0 0.0
    %2651 = vmatprep.subr.mxu0 0.0
    %2652 = vmatpush1.xpose.msra.mxu0 0.0
    %2653 = vmatprep.subr.mxu0 0.0
    %2654 = vmatpush1.xpose.msra.mxu0 0.0
    %2655 = vmatprep.subr.mxu0 0.0
    %2656 = vmatpush1.xpose.msra.mxu0 0.0
    %2657 = vmatprep.subr.mxu0 0.0
    %2658 = vmatpush1.xpose.msra.mxu0 0.0
    %2659 = vmatprep.subr.mxu0 0.0
    %2660 = vmatpush1.xpose.msra.mxu0 0.0
    %2661 = vmatprep.subr.mxu0 0.0
    %2662 = vmatpush1.xpose.msra.mxu0 0.0
    %2663 = vmatprep.subr.mxu0 0.0
    %2664 = vmatpush1.xpose.msra.mxu0 0.0
    %2665 = vmatprep.subr.mxu0 0.0
    %2666 = vmatpush1.xpose.msra.mxu0 0.0
    %2667 = vmatprep.subr.mxu0 0.0
    %2668 = vmatpush1.xpose.msra.mxu0 0.0
    %2669 = vmatprep.subr.mxu0 0.0
    %2670 = vmatpush1.xpose.msra.mxu0 0.0
    %2671 = vmatprep.subr.mxu0 0.0
    %2672 = vmatpush1.xpose.msra.mxu0 0.0
    %2673 = vmatprep.mubr.f32.mxu0 0.0
    %2674 = vmatmul.mubr.f32.gmra.mrb[0].mxu0 %v2605
    %v2675 = vpop.f32.mrb[0].mxu0
    %v2676 = vadd.f32 0.0, %v2675
    %v2677 = vpop.f32.mrb[0].mxu0
    %2678 = vdwg.mxu0
    %2679 = vrot.lane.b32.xlu0 %v2275, 80
    %v2680 = vpop.permute.xlu0 %2679
    %v2681 = vsel %vm2300, %v2275, 0
    %v2683 = vsel %vm2300, %v2680, 0
    %2685 = vmatprep.subr.mxu0 0.0
    %2686 = vmatpush1.xpose.msra.mxu0 %v2683
    %2687 = vmatprep.subr.mxu0 0.0
    %2688 = vmatpush1.xpose.msra.mxu0 0.0
    %2689 = vmatprep.subr.mxu0 0.0
    %2690 = vmatpush1.xpose.msra.mxu0 0.0
    %2691 = vmatprep.subr.mxu0 0.0
    %2692 = vmatpush1.xpose.msra.mxu0 0.0
    %2693 = vmatprep.subr.mxu0 0.0
    %2694 = vmatpush1.xpose.msra.mxu0 0.0
    %2695 = vmatprep.subr.mxu0 0.0
    %2696 = vmatpush1.xpose.msra.mxu0 0.0
    %2697 = vmatprep.subr.mxu0 0.0
    %2698 = vmatpush1.xpose.msra.mxu0 0.0
    %2699 = vmatprep.subr.mxu0 0.0
    %2700 = vmatpush1.xpose.msra.mxu0 0.0
    %2701 = vmatprep.subr.mxu0 0.0
    %2702 = vmatpush1.xpose.msra.mxu0 0.0
    %2703 = vmatprep.subr.mxu0 0.0
    %2704 = vmatpush1.xpose.msra.mxu0 0.0
    %2705 = vmatprep.subr.mxu0 0.0
    %2706 = vmatpush1.xpose.msra.mxu0 0.0
    %2707 = vmatprep.subr.mxu0 0.0
    %2708 = vmatpush1.xpose.msra.mxu0 0.0
    %2709 = vmatprep.subr.mxu0 0.0
    %2710 = vmatpush1.xpose.msra.mxu0 0.0
    %2711 = vmatprep.subr.mxu0 0.0
    %2712 = vmatpush1.xpose.msra.mxu0 0.0
    %2713 = vmatprep.subr.mxu0 0.0
    %2714 = vmatpush1.xpose.msra.mxu0 0.0
    %2715 = vmatprep.subr.mxu0 0.0
    %2716 = vmatpush1.xpose.msra.mxu0 0.0
    %2717 = vmatprep.subr.mxu0 0.0
    %2718 = vmatpush1.xpose.msra.mxu0 0.0
    %2719 = vmatprep.subr.mxu0 0.0
    %2720 = vmatpush1.xpose.msra.mxu0 0.0
    %2721 = vmatprep.subr.mxu0 0.0
    %2722 = vmatpush1.xpose.msra.mxu0 0.0
    %2723 = vmatprep.subr.mxu0 0.0
    %2724 = vmatpush1.xpose.msra.mxu0 0.0
    %2725 = vmatprep.subr.mxu0 0.0
    %2726 = vmatpush1.xpose.msra.mxu0 0.0
    %2727 = vmatprep.subr.mxu0 0.0
    %2728 = vmatpush1.xpose.msra.mxu0 0.0
    %2729 = vmatprep.subr.mxu0 0.0
    %2730 = vmatpush1.xpose.msra.mxu0 0.0
    %2731 = vmatprep.subr.mxu0 0.0
    %2732 = vmatpush1.xpose.msra.mxu0 0.0
    %2733 = vmatprep.subr.mxu0 0.0
    %2734 = vmatpush1.xpose.msra.mxu0 0.0
    %2735 = vmatprep.subr.mxu0 0.0
    %2736 = vmatpush1.xpose.msra.mxu0 0.0
    %2737 = vmatprep.subr.mxu0 0.0
    %2738 = vmatpush1.xpose.msra.mxu0 0.0
    %2739 = vmatprep.subr.mxu0 0.0
    %2740 = vmatpush1.xpose.msra.mxu0 0.0
    %2741 = vmatprep.subr.mxu0 0.0
    %2742 = vmatpush1.xpose.msra.mxu0 0.0
    %2743 = vmatprep.subr.mxu0 0.0
    %2744 = vmatpush1.xpose.msra.mxu0 0.0
    %2745 = vmatprep.subr.mxu0 0.0
    %2746 = vmatpush1.xpose.msra.mxu0 0.0
    %2747 = vmatprep.subr.mxu0 0.0
    %2748 = vmatpush1.xpose.msra.mxu0 0.0
    %2749 = vmatprep.mubr.f32.mxu0 0.0
    %2750 = vmatmul.mubr.f32.gmra.mrb[0].mxu0 %v2681
    %v2751 = vpop.f32.mrb[0].mxu0
    %v2752 = vadd.f32 0.0, %v2751
    %v2753 = vpop.f32.mrb[0].mxu0
    %2754 = vdwg.mxu0
    %2755 = vrot.lane.b32.xlu0 %v2277, 80
    %v2756 = vpop.permute.xlu0 %2755
    %v2757 = vsel %vm2300, %v2277, 0
    %v2759 = vsel %vm2300, %v2756, 0
    %2761 = vmatprep.subr.mxu0 0.0
    %2762 = vmatpush1.xpose.msra.mxu0 %v2759
    %2763 = vmatprep.subr.mxu0 0.0
    %2764 = vmatpush1.xpose.msra.mxu0 0.0
    %2765 = vmatprep.subr.mxu0 0.0
    %2766 = vmatpush1.xpose.msra.mxu0 0.0
    %2767 = vmatprep.subr.mxu0 0.0
    %2768 = vmatpush1.xpose.msra.mxu0 0.0
    %2769 = vmatprep.subr.mxu0 0.0
    %2770 = vmatpush1.xpose.msra.mxu0 0.0
    %2771 = vmatprep.subr.mxu0 0.0
    %2772 = vmatpush1.xpose.msra.mxu0 0.0
    %2773 = vmatprep.subr.mxu0 0.0
    %2774 = vmatpush1.xpose.msra.mxu0 0.0
    %2775 = vmatprep.subr.mxu0 0.0
    %2776 = vmatpush1.xpose.msra.mxu0 0.0
    %2777 = vmatprep.subr.mxu0 0.0
    %2778 = vmatpush1.xpose.msra.mxu0 0.0
    %2779 = vmatprep.subr.mxu0 0.0
    %2780 = vmatpush1.xpose.msra.mxu0 0.0
    %2781 = vmatprep.subr.mxu0 0.0
    %2782 = vmatpush1.xpose.msra.mxu0 0.0
    %2783 = vmatprep.subr.mxu0 0.0
    %2784 = vmatpush1.xpose.msra.mxu0 0.0
    %2785 = vmatprep.subr.mxu0 0.0
    %2786 = vmatpush1.xpose.msra.mxu0 0.0
    %2787 = vmatprep.subr.mxu0 0.0
    %2788 = vmatpush1.xpose.msra.mxu0 0.0
    %2789 = vmatprep.subr.mxu0 0.0
    %2790 = vmatpush1.xpose.msra.mxu0 0.0
    %2791 = vmatprep.subr.mxu0 0.0
    %2792 = vmatpush1.xpose.msra.mxu0 0.0
    %2793 = vmatprep.subr.mxu0 0.0
    %2794 = vmatpush1.xpose.msra.mxu0 0.0
    %2795 = vmatprep.subr.mxu0 0.0
    %2796 = vmatpush1.xpose.msra.mxu0 0.0
    %2797 = vmatprep.subr.mxu0 0.0
    %2798 = vmatpush1.xpose.msra.mxu0 0.0
    %2799 = vmatprep.subr.mxu0 0.0
    %2800 = vmatpush1.xpose.msra.mxu0 0.0
    %2801 = vmatprep.subr.mxu0 0.0
    %2802 = vmatpush1.xpose.msra.mxu0 0.0
    %2803 = vmatprep.subr.mxu0 0.0
    %2804 = vmatpush1.xpose.msra.mxu0 0.0
    %2805 = vmatprep.subr.mxu0 0.0
    %2806 = vmatpush1.xpose.msra.mxu0 0.0
    %2807 = vmatprep.subr.mxu0 0.0
    %2808 = vmatpush1.xpose.msra.mxu0 0.0
    %2809 = vmatprep.subr.mxu0 0.0
    %2810 = vmatpush1.xpose.msra.mxu0 0.0
    %2811 = vmatprep.subr.mxu0 0.0
    %2812 = vmatpush1.xpose.msra.mxu0 0.0
    %2813 = vmatprep.subr.mxu0 0.0
    %2814 = vmatpush1.xpose.msra.mxu0 0.0
    %2815 = vmatprep.subr.mxu0 0.0
    %2816 = vmatpush1.xpose.msra.mxu0 0.0
    %2817 = vmatprep.subr.mxu0 0.0
    %2818 = vmatpush1.xpose.msra.mxu0 0.0
    %2819 = vmatprep.subr.mxu0 0.0
    %2820 = vmatpush1.xpose.msra.mxu0 0.0
    %2821 = vmatprep.subr.mxu0 0.0
    %2822 = vmatpush1.xpose.msra.mxu0 0.0
    %2823 = vmatprep.subr.mxu0 0.0
    %2824 = vmatpush1.xpose.msra.mxu0 0.0
    %2825 = vmatprep.mubr.f32.mxu0 0.0
    %2826 = vmatmul.mubr.f32.gmra.mrb[0].mxu0 %v2757
    %v2827 = vpop.f32.mrb[0].mxu0
    %v2828 = vadd.f32 0.0, %v2827
    %v2829 = vpop.f32.mrb[0].mxu0
    %2830 = vdwg.mxu0
    %2831 = vrot.lane.b32.xlu0 %v2279, 80
    %v2832 = vpop.permute.xlu0 %2831
    %v2833 = vsel %vm2300, %v2279, 0
    %v2835 = vsel %vm2300, %v2832, 0
    %2837 = vmatprep.subr.mxu0 0.0
    %2838 = vmatpush1.xpose.msra.mxu0 %v2835
    %2839 = vmatprep.subr.mxu0 0.0
    %2840 = vmatpush1.xpose.msra.mxu0 0.0
    %2841 = vmatprep.subr.mxu0 0.0
    %2842 = vmatpush1.xpose.msra.mxu0 0.0
    %2843 = vmatprep.subr.mxu0 0.0
    %2844 = vmatpush1.xpose.msra.mxu0 0.0
    %2845 = vmatprep.subr.mxu0 0.0
    %2846 = vmatpush1.xpose.msra.mxu0 0.0
    %2847 = vmatprep.subr.mxu0 0.0
    %2848 = vmatpush1.xpose.msra.mxu0 0.0
    %2849 = vmatprep.subr.mxu0 0.0
    %2850 = vmatpush1.xpose.msra.mxu0 0.0
    %2851 = vmatprep.subr.mxu0 0.0
    %2852 = vmatpush1.xpose.msra.mxu0 0.0
    %2853 = vmatprep.subr.mxu0 0.0
    %2854 = vmatpush1.xpose.msra.mxu0 0.0
    %2855 = vmatprep.subr.mxu0 0.0
    %2856 = vmatpush1.xpose.msra.mxu0 0.0
    %2857 = vmatprep.subr.mxu0 0.0
    %2858 = vmatpush1.xpose.msra.mxu0 0.0
    %2859 = vmatprep.subr.mxu0 0.0
    %2860 = vmatpush1.xpose.msra.mxu0 0.0
    %2861 = vmatprep.subr.mxu0 0.0
    %2862 = vmatpush1.xpose.msra.mxu0 0.0
    %2863 = vmatprep.subr.mxu0 0.0
    %2864 = vmatpush1.xpose.msra.mxu0 0.0
    %2865 = vmatprep.subr.mxu0 0.0
    %2866 = vmatpush1.xpose.msra.mxu0 0.0
    %2867 = vmatprep.subr.mxu0 0.0
    %2868 = vmatpush1.xpose.msra.mxu0 0.0
    %2869 = vmatprep.subr.mxu0 0.0
    %2870 = vmatpush1.xpose.msra.mxu0 0.0
    %2871 = vmatprep.subr.mxu0 0.0
    %2872 = vmatpush1.xpose.msra.mxu0 0.0
    %2873 = vmatprep.subr.mxu0 0.0
    %2874 = vmatpush1.xpose.msra.mxu0 0.0
    %2875 = vmatprep.subr.mxu0 0.0
    %2876 = vmatpush1.xpose.msra.mxu0 0.0
    %2877 = vmatprep.subr.mxu0 0.0
    %2878 = vmatpush1.xpose.msra.mxu0 0.0
    %2879 = vmatprep.subr.mxu0 0.0
    %2880 = vmatpush1.xpose.msra.mxu0 0.0
    %2881 = vmatprep.subr.mxu0 0.0
    %2882 = vmatpush1.xpose.msra.mxu0 0.0
    %2883 = vmatprep.subr.mxu0 0.0
    %2884 = vmatpush1.xpose.msra.mxu0 0.0
    %2885 = vmatprep.subr.mxu0 0.0
    %2886 = vmatpush1.xpose.msra.mxu0 0.0
    %2887 = vmatprep.subr.mxu0 0.0
    %2888 = vmatpush1.xpose.msra.mxu0 0.0
    %2889 = vmatprep.subr.mxu0 0.0
    %2890 = vmatpush1.xpose.msra.mxu0 0.0
    %2891 = vmatprep.subr.mxu0 0.0
    %2892 = vmatpush1.xpose.msra.mxu0 0.0
    %2893 = vmatprep.subr.mxu0 0.0
    %2894 = vmatpush1.xpose.msra.mxu0 0.0
    %2895 = vmatprep.subr.mxu0 0.0
    %2896 = vmatpush1.xpose.msra.mxu0 0.0
    %2897 = vmatprep.subr.mxu0 0.0
    %2898 = vmatpush1.xpose.msra.mxu0 0.0
    %2899 = vmatprep.subr.mxu0 0.0
    %2900 = vmatpush1.xpose.msra.mxu0 0.0
    %2901 = vmatprep.mubr.f32.mxu0 0.0
    %2902 = vmatmul.mubr.f32.gmra.mrb[0].mxu0 %v2833
    %v2903 = vpop.f32.mrb[0].mxu0
    %v2904 = vadd.f32 0.0, %v2903
    %v2905 = vpop.f32.mrb[0].mxu0
    %2906 = vdwg.mxu0
    %2907 = vrot.lane.b32.xlu0 %v2281, 80
    %v2908 = vpop.permute.xlu0 %2907
    %v2909 = vsel %vm2300, %v2281, 0
    %v2911 = vsel %vm2300, %v2908, 0
    %2913 = vmatprep.subr.mxu0 0.0
    %2914 = vmatpush1.xpose.msra.mxu0 %v2911
    %2915 = vmatprep.subr.mxu0 0.0
    %2916 = vmatpush1.xpose.msra.mxu0 0.0
    %2917 = vmatprep.subr.mxu0 0.0
    %2918 = vmatpush1.xpose.msra.mxu0 0.0
    %2919 = vmatprep.subr.mxu0 0.0
    %2920 = vmatpush1.xpose.msra.mxu0 0.0
    %2921 = vmatprep.subr.mxu0 0.0
    %2922 = vmatpush1.xpose.msra.mxu0 0.0
    %2923 = vmatprep.subr.mxu0 0.0
    %2924 = vmatpush1.xpose.msra.mxu0 0.0
    %2925 = vmatprep.subr.mxu0 0.0
    %2926 = vmatpush1.xpose.msra.mxu0 0.0
    %2927 = vmatprep.subr.mxu0 0.0
    %2928 = vmatpush1.xpose.msra.mxu0 0.0
    %2929 = vmatprep.subr.mxu0 0.0
    %2930 = vmatpush1.xpose.msra.mxu0 0.0
    %2931 = vmatprep.subr.mxu0 0.0
    %2932 = vmatpush1.xpose.msra.mxu0 0.0
    %2933 = vmatprep.subr.mxu0 0.0
    %2934 = vmatpush1.xpose.msra.mxu0 0.0
    %2935 = vmatprep.subr.mxu0 0.0
    %2936 = vmatpush1.xpose.msra.mxu0 0.0
    %2937 = vmatprep.subr.mxu0 0.0
    %2938 = vmatpush1.xpose.msra.mxu0 0.0
    %2939 = vmatprep.subr.mxu0 0.0
    %2940 = vmatpush1.xpose.msra.mxu0 0.0
    %2941 = vmatprep.subr.mxu0 0.0
    %2942 = vmatpush1.xpose.msra.mxu0 0.0
    %2943 = vmatprep.subr.mxu0 0.0
    %2944 = vmatpush1.xpose.msra.mxu0 0.0
    %2945 = vmatprep.subr.mxu0 0.0
    %2946 = vmatpush1.xpose.msra.mxu0 0.0
    %2947 = vmatprep.subr.mxu0 0.0
    %2948 = vmatpush1.xpose.msra.mxu0 0.0
    %2949 = vmatprep.subr.mxu0 0.0
    %2950 = vmatpush1.xpose.msra.mxu0 0.0
    %2951 = vmatprep.subr.mxu0 0.0
    %2952 = vmatpush1.xpose.msra.mxu0 0.0
    %2953 = vmatprep.subr.mxu0 0.0
    %2954 = vmatpush1.xpose.msra.mxu0 0.0
    %2955 = vmatprep.subr.mxu0 0.0
    %2956 = vmatpush1.xpose.msra.mxu0 0.0
    %2957 = vmatprep.subr.mxu0 0.0
    %2958 = vmatpush1.xpose.msra.mxu0 0.0
    %2959 = vmatprep.subr.mxu0 0.0
    %2960 = vmatpush1.xpose.msra.mxu0 0.0
    %2961 = vmatprep.subr.mxu0 0.0
    %2962 = vmatpush1.xpose.msra.mxu0 0.0
    %2963 = vmatprep.subr.mxu0 0.0
    %2964 = vmatpush1.xpose.msra.mxu0 0.0
    %2965 = vmatprep.subr.mxu0 0.0
    %2966 = vmatpush1.xpose.msra.mxu0 0.0
    %2967 = vmatprep.subr.mxu0 0.0
    %2968 = vmatpush1.xpose.msra.mxu0 0.0
    %2969 = vmatprep.subr.mxu0 0.0
    %2970 = vmatpush1.xpose.msra.mxu0 0.0
    %2971 = vmatprep.subr.mxu0 0.0
    %2972 = vmatpush1.xpose.msra.mxu0 0.0
    %2973 = vmatprep.subr.mxu0 0.0
    %2974 = vmatpush1.xpose.msra.mxu0 0.0
    %2975 = vmatprep.subr.mxu0 0.0
    %2976 = vmatpush1.xpose.msra.mxu0 0.0
    %2977 = vmatprep.mubr.f32.mxu0 0.0
    %2978 = vmatmul.mubr.f32.gmra.mrb[0].mxu0 %v2909
    %v2979 = vpop.f32.mrb[0].mxu0
    %v2980 = vadd.f32 0.0, %v2979
    %v2981 = vpop.f32.mrb[0].mxu0
    %2982 = vdwg.mxu0
    %2983 = vrot.lane.b32.xlu0 %v2283, 80
    %v2984 = vpop.permute.xlu0 %2983
    %v2985 = vsel %vm2300, %v2283, 0
    %v2987 = vsel %vm2300, %v2984, 0
    %2989 = vmatprep.subr.mxu0 0.0
    %2990 = vmatpush1.xpose.msra.mxu0 %v2987
    %2991 = vmatprep.subr.mxu0 0.0
    %2992 = vmatpush1.xpose.msra.mxu0 0.0
    %2993 = vmatprep.subr.mxu0 0.0
    %2994 = vmatpush1.xpose.msra.mxu0 0.0
    %2995 = vmatprep.subr.mxu0 0.0
    %2996 = vmatpush1.xpose.msra.mxu0 0.0
    %2997 = vmatprep.subr.mxu0 0.0
    %2998 = vmatpush1.xpose.msra.mxu0 0.0
    %2999 = vmatprep.subr.mxu0 0.0
    %3000 = vmatpush1.xpose.msra.mxu0 0.0
    %3001 = vmatprep.subr.mxu0 0.0
    %3002 = vmatpush1.xpose.msra.mxu0 0.0
    %3003 = vmatprep.subr.mxu0 0.0
    %3004 = vmatpush1.xpose.msra.mxu0 0.0
    %3005 = vmatprep.subr.mxu0 0.0
    %3006 = vmatpush1.xpose.msra.mxu0 0.0
    %3007 = vmatprep.subr.mxu0 0.0
    %3008 = vmatpush1.xpose.msra.mxu0 0.0
    %3009 = vmatprep.subr.mxu0 0.0
    %3010 = vmatpush1.xpose.msra.mxu0 0.0
    %3011 = vmatprep.subr.mxu0 0.0
    %3012 = vmatpush1.xpose.msra.mxu0 0.0
    %3013 = vmatprep.subr.mxu0 0.0
    %3014 = vmatpush1.xpose.msra.mxu0 0.0
    %3015 = vmatprep.subr.mxu0 0.0
    %3016 = vmatpush1.xpose.msra.mxu0 0.0
    %3017 = vmatprep.subr.mxu0 0.0
    %3018 = vmatpush1.xpose.msra.mxu0 0.0
    %3019 = vmatprep.subr.mxu0 0.0
    %3020 = vmatpush1.xpose.msra.mxu0 0.0
    %3021 = vmatprep.subr.mxu0 0.0
    %3022 = vmatpush1.xpose.msra.mxu0 0.0
    %3023 = vmatprep.subr.mxu0 0.0
    %3024 = vmatpush1.xpose.msra.mxu0 0.0
    %3025 = vmatprep.subr.mxu0 0.0
    %3026 = vmatpush1.xpose.msra.mxu0 0.0
    %3027 = vmatprep.subr.mxu0 0.0
    %3028 = vmatpush1.xpose.msra.mxu0 0.0
    %3029 = vmatprep.subr.mxu0 0.0
    %3030 = vmatpush1.xpose.msra.mxu0 0.0
    %3031 = vmatprep.subr.mxu0 0.0
    %3032 = vmatpush1.xpose.msra.mxu0 0.0
    %3033 = vmatprep.subr.mxu0 0.0
    %3034 = vmatpush1.xpose.msra.mxu0 0.0
    %3035 = vmatprep.subr.mxu0 0.0
    %3036 = vmatpush1.xpose.msra.mxu0 0.0
    %3037 = vmatprep.subr.mxu0 0.0
    %3038 = vmatpush1.xpose.msra.mxu0 0.0
    %3039 = vmatprep.subr.mxu0 0.0
    %3040 = vmatpush1.xpose.msra.mxu0 0.0
    %3041 = vmatprep.subr.mxu0 0.0
    %3042 = vmatpush1.xpose.msra.mxu0 0.0
    %3043 = vmatprep.subr.mxu0 0.0
    %3044 = vmatpush1.xpose.msra.mxu0 0.0
    %3045 = vmatprep.subr.mxu0 0.0
    %3046 = vmatpush1.xpose.msra.mxu0 0.0
    %3047 = vmatprep.subr.mxu0 0.0
    %3048 = vmatpush1.xpose.msra.mxu0 0.0
    %3049 = vmatprep.subr.mxu0 0.0
    %3050 = vmatpush1.xpose.msra.mxu0 0.0
    %3051 = vmatprep.subr.mxu0 0.0
    %3052 = vmatpush1.xpose.msra.mxu0 0.0
    %3053 = vmatprep.mubr.f32.mxu0 0.0
    %3054 = vmatmul.mubr.f32.gmra.mrb[0].mxu0 %v2985
    %v3055 = vpop.f32.mrb[0].mxu0
    %v3056 = vadd.f32 0.0, %v3055
    %v3057 = vpop.f32.mrb[0].mxu0
    %3058 = vdwg.mxu0
    %3059 = vrot.lane.b32.xlu0 %v2285, 80
    %v3060 = vpop.permute.xlu0 %3059
    %v3061 = vsel %vm2300, %v2285, 0
    %v3063 = vsel %vm2300, %v3060, 0
    %3065 = vmatprep.subr.mxu0 0.0
    %3066 = vmatpush1.xpose.msra.mxu0 %v3063
    %3067 = vmatprep.subr.mxu0 0.0
    %3068 = vmatpush1.xpose.msra.mxu0 0.0
    %3069 = vmatprep.subr.mxu0 0.0
    %3070 = vmatpush1.xpose.msra.mxu0 0.0
    %3071 = vmatprep.subr.mxu0 0.0
    %3072 = vmatpush1.xpose.msra.mxu0 0.0
    %3073 = vmatprep.subr.mxu0 0.0
    %3074 = vmatpush1.xpose.msra.mxu0 0.0
    %3075 = vmatprep.subr.mxu0 0.0
    %3076 = vmatpush1.xpose.msra.mxu0 0.0
    %3077 = vmatprep.subr.mxu0 0.0
    %3078 = vmatpush1.xpose.msra.mxu0 0.0
    %3079 = vmatprep.subr.mxu0 0.0
    %3080 = vmatpush1.xpose.msra.mxu0 0.0
    %3081 = vmatprep.subr.mxu0 0.0
    %3082 = vmatpush1.xpose.msra.mxu0 0.0
    %3083 = vmatprep.subr.mxu0 0.0
    %3084 = vmatpush1.xpose.msra.mxu0 0.0
    %3085 = vmatprep.subr.mxu0 0.0
    %3086 = vmatpush1.xpose.msra.mxu0 0.0
    %3087 = vmatprep.subr.mxu0 0.0
    %3088 = vmatpush1.xpose.msra.mxu0 0.0
    %3089 = vmatprep.subr.mxu0 0.0
    %3090 = vmatpush1.xpose.msra.mxu0 0.0
    %3091 = vmatprep.subr.mxu0 0.0
    %3092 = vmatpush1.xpose.msra.mxu0 0.0
    %3093 = vmatprep.subr.mxu0 0.0
    %3094 = vmatpush1.xpose.msra.mxu0 0.0
    %3095 = vmatprep.subr.mxu0 0.0
    %3096 = vmatpush1.xpose.msra.mxu0 0.0
    %3097 = vmatprep.subr.mxu0 0.0
    %3098 = vmatpush1.xpose.msra.mxu0 0.0
    %3099 = vmatprep.subr.mxu0 0.0
    %3100 = vmatpush1.xpose.msra.mxu0 0.0
    %3101 = vmatprep.subr.mxu0 0.0
    %3102 = vmatpush1.xpose.msra.mxu0 0.0
    %3103 = vmatprep.subr.mxu0 0.0
    %3104 = vmatpush1.xpose.msra.mxu0 0.0
    %3105 = vmatprep.subr.mxu0 0.0
    %3106 = vmatpush1.xpose.msra.mxu0 0.0
    %3107 = vmatprep.subr.mxu0 0.0
    %3108 = vmatpush1.xpose.msra.mxu0 0.0
    %3109 = vmatprep.subr.mxu0 0.0
    %3110 = vmatpush1.xpose.msra.mxu0 0.0
    %3111 = vmatprep.subr.mxu0 0.0
    %3112 = vmatpush1.xpose.msra.mxu0 0.0
    %3113 = vmatprep.subr.mxu0 0.0
    %3114 = vmatpush1.xpose.msra.mxu0 0.0
    %3115 = vmatprep.subr.mxu0 0.0
    %3116 = vmatpush1.xpose.msra.mxu0 0.0
    %3117 = vmatprep.subr.mxu0 0.0
    %3118 = vmatpush1.xpose.msra.mxu0 0.0
    %3119 = vmatprep.subr.mxu0 0.0
    %3120 = vmatpush1.xpose.msra.mxu0 0.0
    %3121 = vmatprep.subr.mxu0 0.0
    %3122 = vmatpush1.xpose.msra.mxu0 0.0
    %3123 = vmatprep.subr.mxu0 0.0
    %3124 = vmatpush1.xpose.msra.mxu0 0.0
    %3125 = vmatprep.subr.mxu0 0.0
    %3126 = vmatpush1.xpose.msra.mxu0 0.0
    %3127 = vmatprep.subr.mxu0 0.0
    %3128 = vmatpush1.xpose.msra.mxu0 0.0
    %3129 = vmatprep.mubr.f32.mxu0 0.0
    %3130 = vmatmul.mubr.f32.gmra.mrb[0].mxu0 %v3061
    %v3131 = vpop.f32.mrb[0].mxu0
    %v3132 = vadd.f32 0.0, %v3131
    %v3133 = vpop.f32.mrb[0].mxu0
    %3134 = vdwg.mxu0
    %3135 = vrot.lane.b32.xlu0 %v2287, 80
    %v3136 = vpop.permute.xlu0 %3135
    %v3137 = vsel %vm2300, %v2287, 0
    %v3139 = vsel %vm2300, %v3136, 0
    %3141 = vmatprep.subr.mxu0 0.0
    %3142 = vmatpush1.xpose.msra.mxu0 %v3139
    %3143 = vmatprep.subr.mxu0 0.0
    %3144 = vmatpush1.xpose.msra.mxu0 0.0
    %3145 = vmatprep.subr.mxu0 0.0
    %3146 = vmatpush1.xpose.msra.mxu0 0.0
    %3147 = vmatprep.subr.mxu0 0.0
    %3148 = vmatpush1.xpose.msra.mxu0 0.0
    %3149 = vmatprep.subr.mxu0 0.0
    %3150 = vmatpush1.xpose.msra.mxu0 0.0
    %3151 = vmatprep.subr.mxu0 0.0
    %3152 = vmatpush1.xpose.msra.mxu0 0.0
    %3153 = vmatprep.subr.mxu0 0.0
    %3154 = vmatpush1.xpose.msra.mxu0 0.0
    %3155 = vmatprep.subr.mxu0 0.0
    %3156 = vmatpush1.xpose.msra.mxu0 0.0
    %3157 = vmatprep.subr.mxu0 0.0
    %3158 = vmatpush1.xpose.msra.mxu0 0.0
    %3159 = vmatprep.subr.mxu0 0.0
    %3160 = vmatpush1.xpose.msra.mxu0 0.0
    %3161 = vmatprep.subr.mxu0 0.0
    %3162 = vmatpush1.xpose.msra.mxu0 0.0
    %3163 = vmatprep.subr.mxu0 0.0
    %3164 = vmatpush1.xpose.msra.mxu0 0.0
    %3165 = vmatprep.subr.mxu0 0.0
    %3166 = vmatpush1.xpose.msra.mxu0 0.0
    %3167 = vmatprep.subr.mxu0 0.0
    %3168 = vmatpush1.xpose.msra.mxu0 0.0
    %3169 = vmatprep.subr.mxu0 0.0
    %3170 = vmatpush1.xpose.msra.mxu0 0.0
    %3171 = vmatprep.subr.mxu0 0.0
    %3172 = vmatpush1.xpose.msra.mxu0 0.0
    %3173 = vmatprep.subr.mxu0 0.0
    %3174 = vmatpush1.xpose.msra.mxu0 0.0
    %3175 = vmatprep.subr.mxu0 0.0
    %3176 = vmatpush1.xpose.msra.mxu0 0.0
    %3177 = vmatprep.subr.mxu0 0.0
    %3178 = vmatpush1.xpose.msra.mxu0 0.0
    %3179 = vmatprep.subr.mxu0 0.0
    %3180 = vmatpush1.xpose.msra.mxu0 0.0
    %3181 = vmatprep.subr.mxu0 0.0
    %3182 = vmatpush1.xpose.msra.mxu0 0.0
    %3183 = vmatprep.subr.mxu0 0.0
    %3184 = vmatpush1.xpose.msra.mxu0 0.0
    %3185 = vmatprep.subr.mxu0 0.0
    %3186 = vmatpush1.xpose.msra.mxu0 0.0
    %3187 = vmatprep.subr.mxu0 0.0
    %3188 = vmatpush1.xpose.msra.mxu0 0.0
    %3189 = vmatprep.subr.mxu0 0.0
    %3190 = vmatpush1.xpose.msra.mxu0 0.0
    %3191 = vmatprep.subr.mxu0 0.0
    %3192 = vmatpush1.xpose.msra.mxu0 0.0
    %3193 = vmatprep.subr.mxu0 0.0
    %3194 = vmatpush1.xpose.msra.mxu0 0.0
    %3195 = vmatprep.subr.mxu0 0.0
    %3196 = vmatpush1.xpose.msra.mxu0 0.0
    %3197 = vmatprep.subr.mxu0 0.0
    %3198 = vmatpush1.xpose.msra.mxu0 0.0
    %3199 = vmatprep.subr.mxu0 0.0
    %3200 = vmatpush1.xpose.msra.mxu0 0.0
    %3201 = vmatprep.subr.mxu0 0.0
    %3202 = vmatpush1.xpose.msra.mxu0 0.0
    %3203 = vmatprep.subr.mxu0 0.0
    %3204 = vmatpush1.xpose.msra.mxu0 0.0
    %3205 = vmatprep.mubr.f32.mxu0 0.0
    %3206 = vmatmul.mubr.f32.gmra.mrb[0].mxu0 %v3137
    %v3207 = vpop.f32.mrb[0].mxu0
    %v3208 = vadd.f32 0.0, %v3207
    %v3209 = vpop.f32.mrb[0].mxu0
    %3210 = vdwg.mxu0
    %v3211 = vmul.f32 %v2372, 0.35355338
    %v3212 = vmul.f32 %v2448, 0.35355338
    %v3213 = vmul.f32 %v2524, 0.35355338
    %v3214 = vmul.f32 %v2600, 0.35355338
    %v3215 = vmul.f32 %v2676, 0.35355338
    %v3216 = vmul.f32 %v2752, 0.35355338
    %v3217 = vmul.f32 %v2828, 0.35355338
    %v3218 = vmul.f32 %v2904, 0.35355338
    %v3219 = vmul.f32 %v2980, 0.35355338
    %v3220 = vmul.f32 %v3056, 0.35355338
    %v3221 = vmul.f32 %v3132, 0.35355338
    %v3222 = vmul.f32 %v3208, 0.35355338
    %v3223 = vsel %vm2300, %v3211, -inf
    %3224 = vmax.xlane.f32.xlu0 %v3223
    %v3225 = vpop.xlane.xlu0 %3224
    %v3226 = vsel %vm2300, %v3212, -inf
    %3227 = vmax.xlane.f32.xlu0 %v3226
    %v3228 = vpop.xlane.xlu0 %3227
    %v3229 = vsel %vm2300, %v3213, -inf
    %3230 = vmax.xlane.f32.xlu0 %v3229
    %v3231 = vpop.xlane.xlu0 %3230
    %v3232 = vsel %vm2300, %v3214, -inf
    %3233 = vmax.xlane.f32.xlu0 %v3232
    %v3234 = vpop.xlane.xlu0 %3233
    %v3235 = vsel %vm2300, %v3215, -inf
    %3236 = vmax.xlane.f32.xlu0 %v3235
    %v3237 = vpop.xlane.xlu0 %3236
    %v3238 = vsel %vm2300, %v3216, -inf
    %3239 = vmax.xlane.f32.xlu0 %v3238
    %v3240 = vpop.xlane.xlu0 %3239
    %v3241 = vsel %vm2300, %v3217, -inf
    %3242 = vmax.xlane.f32.xlu0 %v3241
    %v3243 = vpop.xlane.xlu0 %3242
    %v3244 = vsel %vm2300, %v3218, -inf
    %3245 = vmax.xlane.f32.xlu0 %v3244
    %v3246 = vpop.xlane.xlu0 %3245
    %v3247 = vsel %vm2300, %v3219, -inf
    %3248 = vmax.xlane.f32.xlu0 %v3247
    %v3249 = vpop.xlane.xlu0 %3248
    %v3250 = vsel %vm2300, %v3220, -inf
    %3251 = vmax.xlane.f32.xlu0 %v3250
    %v3252 = vpop.xlane.xlu0 %3251
    %v3253 = vsel %vm2300, %v3221, -inf
    %3254 = vmax.xlane.f32.xlu0 %v3253
    %v3255 = vpop.xlane.xlu0 %3254
    %v3256 = vsel %vm2300, %v3222, -inf
    %3257 = vmax.xlane.f32.xlu0 %v3256
    %v3258 = vpop.xlane.xlu0 %3257
    %v3259 = vsub.f32 %v3211, %v3225
    %v3260 = vsub.f32 %v3212, %v3228
    %v3261 = vsub.f32 %v3213, %v3231
    %v3262 = vsub.f32 %v3214, %v3234
    %v3263 = vsub.f32 %v3215, %v3237
    %v3264 = vsub.f32 %v3216, %v3240
    %v3265 = vsub.f32 %v3217, %v3243
    %v3266 = vsub.f32 %v3218, %v3246
    %v3267 = vsub.f32 %v3219, %v3249
    %v3268 = vsub.f32 %v3220, %v3252
    %v3269 = vsub.f32 %v3221, %v3255
    %v3270 = vsub.f32 %v3222, %v3258
    %v3271 = vmul.f32 %v3259, 1.442695
    %v3272 = vpow.pop %v3271
    %v3273 = vmul.f32 %v3260, 1.442695
    %v3274 = vpow.pop %v3273
    %v3275 = vmul.f32 %v3261, 1.442695
    %v3276 = vpow.pop %v3275
    %v3277 = vmul.f32 %v3262, 1.442695
    %v3278 = vpow.pop %v3277
    %v3279 = vmul.f32 %v3263, 1.442695
    %v3280 = vpow.pop %v3279
    %v3281 = vmul.f32 %v3264, 1.442695
    %v3282 = vpow.pop %v3281
    %v3283 = vmul.f32 %v3265, 1.442695
    %v3284 = vpow.pop %v3283
    %v3285 = vmul.f32 %v3266, 1.442695
    %v3286 = vpow.pop %v3285
    %v3287 = vmul.f32 %v3267, 1.442695
    %v3288 = vpow.pop %v3287
    %v3289 = vmul.f32 %v3268, 1.442695
    %v3290 = vpow.pop %v3289
    %v3291 = vmul.f32 %v3269, 1.442695
    %v3292 = vpow.pop %v3291
    %v3293 = vmul.f32 %v3270, 1.442695
    %v3294 = vpow.pop %v3293
    %v3295 = vsel %vm2300, %v3272, 0.0
    %3296 = vadd.xlane.f32.xlu0 %v3295
    %v3297 = vpop.xlane.xlu0 %3296
    %v3298 = vsel %vm2300, %v3274, 0.0
    %3299 = vadd.xlane.f32.xlu0 %v3298
    %v3300 = vpop.xlane.xlu0 %3299
    %v3301 = vsel %vm2300, %v3276, 0.0
    %3302 = vadd.xlane.f32.xlu0 %v3301
    %v3303 = vpop.xlane.xlu0 %3302
    %v3304 = vsel %vm2300, %v3278, 0.0
    %3305 = vadd.xlane.f32.xlu0 %v3304
    %v3306 = vpop.xlane.xlu0 %3305
    %v3307 = vsel %vm2300, %v3280, 0.0
    %3308 = vadd.xlane.f32.xlu0 %v3307
    %v3309 = vpop.xlane.xlu0 %3308
    %v3310 = vsel %vm2300, %v3282, 0.0
    %3311 = vadd.xlane.f32.xlu0 %v3310
    %v3312 = vpop.xlane.xlu0 %3311
    %v3313 = vsel %vm2300, %v3284, 0.0
    %3314 = vadd.xlane.f32.xlu0 %v3313
    %v3315 = vpop.xlane.xlu0 %3314
    %v3316 = vsel %vm2300, %v3286, 0.0
    %3317 = vadd.xlane.f32.xlu0 %v3316
    %v3318 = vpop.xlane.xlu0 %3317
    %v3319 = vsel %vm2300, %v3288, 0.0
    %3320 = vadd.xlane.f32.xlu0 %v3319
    %v3321 = vpop.xlane.xlu0 %3320
    %v3322 = vsel %vm2300, %v3290, 0.0
    %3323 = vadd.xlane.f32.xlu0 %v3322
    %v3324 = vpop.xlane.xlu0 %3323
    %v3325 = vsel %vm2300, %v3292, 0.0
    %3326 = vadd.xlane.f32.xlu0 %v3325
    %v3327 = vpop.xlane.xlu0 %3326
    %v3328 = vsel %vm2300, %v3294, 0.0
    %3329 = vadd.xlane.f32.xlu0 %v3328
    %v3330 = vpop.xlane.xlu0 %3329
    %v3331 = vrcp.pop %v3297
    %v3332 = vrcp.pop %v3300
    %v3333 = vrcp.pop %v3303
    %v3334 = vrcp.pop %v3306
    %v3335 = vrcp.pop %v3309
    %v3336 = vrcp.pop %v3312
    %v3337 = vrcp.pop %v3315
    %v3338 = vrcp.pop %v3318
    %v3339 = vrcp.pop %v3321
    %v3340 = vrcp.pop %v3324
    %v3341 = vrcp.pop %v3327
    %v3342 = vrcp.pop %v3330
    %v3343 = vmul.f32 %v3272, %v3331
    %v3344 = vmul.f32 %v3274, %v3332
    %v3345 = vmul.f32 %v3276, %v3333
    %v3346 = vmul.f32 %v3278, %v3334
    %v3347 = vmul.f32 %v3280, %v3335
    %v3348 = vmul.f32 %v3282, %v3336
    %v3349 = vmul.f32 %v3284, %v3337
    %v3350 = vmul.f32 %v3286, %v3338
    %v3351 = vmul.f32 %v3288, %v3339
    %v3352 = vmul.f32 %v3290, %v3340
    %v3353 = vmul.f32 %v3292, %v3341
    %v3354 = vmul.f32 %v3294, %v3342
    %3355 = vrot.lane.b32.xlu0 %v2256, 32
    %v3356 = vpop.permute.xlu0 %3355
    %v3359 = vsel %vm2300, %v3343, 0
    %3361 = vmatprep.subr.mxu0 0.0
    %3362 = vmatpush1.msra.mxu0 %v3356
    %3363 = vmatprep.subr.mxu0 0.0
    %3364 = vmatpush1.msra.mxu0 0.0
    %3365 = vmatprep.subr.mxu0 0.0
    %3366 = vmatpush1.msra.mxu0 0.0
    %3367 = vmatprep.subr.mxu0 0.0
    %3368 = vmatpush1.msra.mxu0 0.0
    %3369 = vmatprep.subr.mxu0 0.0
    %3370 = vmatpush1.msra.mxu0 0.0
    %3371 = vmatprep.subr.mxu0 0.0
    %3372 = vmatpush1.msra.mxu0 0.0
    %3373 = vmatprep.subr.mxu0 0.0
    %3374 = vmatpush1.msra.mxu0 0.0
    %3375 = vmatprep.subr.mxu0 0.0
    %3376 = vmatpush1.msra.mxu0 0.0
    %3377 = vmatprep.subr.mxu0 0.0
    %3378 = vmatpush1.msra.mxu0 0.0
    %3379 = vmatprep.subr.mxu0 0.0
    %3380 = vmatpush1.msra.mxu0 0.0
    %3381 = vmatprep.subr.mxu0 0.0
    %3382 = vmatpush1.msra.mxu0 0.0
    %3383 = vmatprep.subr.mxu0 0.0
    %3384 = vmatpush1.msra.mxu0 0.0
    %3385 = vmatprep.subr.mxu0 0.0
    %3386 = vmatpush1.msra.mxu0 0.0
    %3387 = vmatprep.subr.mxu0 0.0
    %3388 = vmatpush1.msra.mxu0 0.0
    %3389 = vmatprep.subr.mxu0 0.0
    %3390 = vmatpush1.msra.mxu0 0.0
    %3391 = vmatprep.subr.mxu0 0.0
    %3392 = vmatpush1.msra.mxu0 0.0
    %3393 = vmatprep.subr.mxu0 0.0
    %3394 = vmatpush1.msra.mxu0 0.0
    %3395 = vmatprep.subr.mxu0 0.0
    %3396 = vmatpush1.msra.mxu0 0.0
    %3397 = vmatprep.subr.mxu0 0.0
    %3398 = vmatpush1.msra.mxu0 0.0
    %3399 = vmatprep.subr.mxu0 0.0
    %3400 = vmatpush1.msra.mxu0 0.0
    %3401 = vmatprep.subr.mxu0 0.0
    %3402 = vmatpush1.msra.mxu0 0.0
    %3403 = vmatprep.subr.mxu0 0.0
    %3404 = vmatpush1.msra.mxu0 0.0
    %3405 = vmatprep.subr.mxu0 0.0
    %3406 = vmatpush1.msra.mxu0 0.0
    %3407 = vmatprep.subr.mxu0 0.0
    %3408 = vmatpush1.msra.mxu0 0.0
    %3409 = vmatprep.subr.mxu0 0.0
    %3410 = vmatpush1.msra.mxu0 0.0
    %3411 = vmatprep.subr.mxu0 0.0
    %3412 = vmatpush1.msra.mxu0 0.0
    %3413 = vmatprep.subr.mxu0 0.0
    %3414 = vmatpush1.msra.mxu0 0.0
    %3415 = vmatprep.subr.mxu0 0.0
    %3416 = vmatpush1.msra.mxu0 0.0
    %3417 = vmatprep.subr.mxu0 0.0
    %3418 = vmatpush1.msra.mxu0 0.0
    %3419 = vmatprep.subr.mxu0 0.0
    %3420 = vmatpush1.msra.mxu0 0.0
    %3421 = vmatprep.subr.mxu0 0.0
    %3422 = vmatpush1.msra.mxu0 0.0
    %3423 = vmatprep.subr.mxu0 0.0
    %3424 = vmatpush1.msra.mxu0 0.0
    %3425 = vmatprep.mubr.f32.mxu0 0.0
    %3426 = vmatmul.mubr.f32.gmra.mrb[0].mxu0 %v3359
    %v3427 = vpop.f32.mrb[0].mxu0
    %v3428 = vadd.f32 0.0, %v3427
    %v3429 = vpop.f32.mrb[0].mxu0
    %3430 = vdwg.mxu0
    %3431 = vrot.lane.b32.xlu0 %v2262, 32
    %v3432 = vpop.permute.xlu0 %3431
    %v3435 = vsel %vm2300, %v3344, 0
    %3437 = vmatprep.subr.mxu0 0.0
    %3438 = vmatpush1.msra.mxu0 %v3432
    %3439 = vmatprep.subr.mxu0 0.0
    %3440 = vmatpush1.msra.mxu0 0.0
    %3441 = vmatprep.subr.mxu0 0.0
    %3442 = vmatpush1.msra.mxu0 0.0
    %3443 = vmatprep.subr.mxu0 0.0
    %3444 = vmatpush1.msra.mxu0 0.0
    %3445 = vmatprep.subr.mxu0 0.0
    %3446 = vmatpush1.msra.mxu0 0.0
    %3447 = vmatprep.subr.mxu0 0.0
    %3448 = vmatpush1.msra.mxu0 0.0
    %3449 = vmatprep.subr.mxu0 0.0
    %3450 = vmatpush1.msra.mxu0 0.0
    %3451 = vmatprep.subr.mxu0 0.0
    %3452 = vmatpush1.msra.mxu0 0.0
    %3453 = vmatprep.subr.mxu0 0.0
    %3454 = vmatpush1.msra.mxu0 0.0
    %3455 = vmatprep.subr.mxu0 0.0
    %3456 = vmatpush1.msra.mxu0 0.0
    %3457 = vmatprep.subr.mxu0 0.0
    %3458 = vmatpush1.msra.mxu0 0.0
    %3459 = vmatprep.subr.mxu0 0.0
    %3460 = vmatpush1.msra.mxu0 0.0
    %3461 = vmatprep.subr.mxu0 0.0
    %3462 = vmatpush1.msra.mxu0 0.0
    %3463 = vmatprep.subr.mxu0 0.0
    %3464 = vmatpush1.msra.mxu0 0.0
    %3465 = vmatprep.subr.mxu0 0.0
    %3466 = vmatpush1.msra.mxu0 0.0
    %3467 = vmatprep.subr.mxu0 0.0
    %3468 = vmatpush1.msra.mxu0 0.0
    %3469 = vmatprep.subr.mxu0 0.0
    %3470 = vmatpush1.msra.mxu0 0.0
    %3471 = vmatprep.subr.mxu0 0.0
    %3472 = vmatpush1.msra.mxu0 0.0
    %3473 = vmatprep.subr.mxu0 0.0
    %3474 = vmatpush1.msra.mxu0 0.0
    %3475 = vmatprep.subr.mxu0 0.0
    %3476 = vmatpush1.msra.mxu0 0.0
    %3477 = vmatprep.subr.mxu0 0.0
    %3478 = vmatpush1.msra.mxu0 0.0
    %3479 = vmatprep.subr.mxu0 0.0
    %3480 = vmatpush1.msra.mxu0 0.0
    %3481 = vmatprep.subr.mxu0 0.0
    %3482 = vmatpush1.msra.mxu0 0.0
    %3483 = vmatprep.subr.mxu0 0.0
    %3484 = vmatpush1.msra.mxu0 0.0
    %3485 = vmatprep.subr.mxu0 0.0
    %3486 = vmatpush1.msra.mxu0 0.0
    %3487 = vmatprep.subr.mxu0 0.0
    %3488 = vmatpush1.msra.mxu0 0.0
    %3489 = vmatprep.subr.mxu0 0.0
    %3490 = vmatpush1.msra.mxu0 0.0
    %3491 = vmatprep.subr.mxu0 0.0
    %3492 = vmatpush1.msra.mxu0 0.0
    %3493 = vmatprep.subr.mxu0 0.0
    %3494 = vmatpush1.msra.mxu0 0.0
    %3495 = vmatprep.subr.mxu0 0.0
    %3496 = vmatpush1.msra.mxu0 0.0
    %3497 = vmatprep.subr.mxu0 0.0
    %3498 = vmatpush1.msra.mxu0 0.0
    %3499 = vmatprep.subr.mxu0 0.0
    %3500 = vmatpush1.msra.mxu0 0.0
    %3501 = vmatprep.mubr.f32.mxu0 0.0
    %3502 = vmatmul.mubr.f32.gmra.mrb[0].mxu0 %v3435
    %v3503 = vpop.f32.mrb[0].mxu0
    %v3504 = vadd.f32 0.0, %v3503
    %v3505 = vpop.f32.mrb[0].mxu0
    %3506 = vdwg.mxu0
    %3507 = vrot.lane.b32.xlu0 %v2269, 32
    %v3508 = vpop.permute.xlu0 %3507
    %v3511 = vsel %vm2300, %v3345, 0
    %3513 = vmatprep.subr.mxu0 0.0
    %3514 = vmatpush1.msra.mxu0 %v3508
    %3515 = vmatprep.subr.mxu0 0.0
    %3516 = vmatpush1.msra.mxu0 0.0
    %3517 = vmatprep.subr.mxu0 0.0
    %3518 = vmatpush1.msra.mxu0 0.0
    %3519 = vmatprep.subr.mxu0 0.0
    %3520 = vmatpush1.msra.mxu0 0.0
    %3521 = vmatprep.subr.mxu0 0.0
    %3522 = vmatpush1.msra.mxu0 0.0
    %3523 = vmatprep.subr.mxu0 0.0
    %3524 = vmatpush1.msra.mxu0 0.0
    %3525 = vmatprep.subr.mxu0 0.0
    %3526 = vmatpush1.msra.mxu0 0.0
    %3527 = vmatprep.subr.mxu0 0.0
    %3528 = vmatpush1.msra.mxu0 0.0
    %3529 = vmatprep.subr.mxu0 0.0
    %3530 = vmatpush1.msra.mxu0 0.0
    %3531 = vmatprep.subr.mxu0 0.0
    %3532 = vmatpush1.msra.mxu0 0.0
    %3533 = vmatprep.subr.mxu0 0.0
    %3534 = vmatpush1.msra.mxu0 0.0
    %3535 = vmatprep.subr.mxu0 0.0
    %3536 = vmatpush1.msra.mxu0 0.0
    %3537 = vmatprep.subr.mxu0 0.0
    %3538 = vmatpush1.msra.mxu0 0.0
    %3539 = vmatprep.subr.mxu0 0.0
    %3540 = vmatpush1.msra.mxu0 0.0
    %3541 = vmatprep.subr.mxu0 0.0
    %3542 = vmatpush1.msra.mxu0 0.0
    %3543 = vmatprep.subr.mxu0 0.0
    %3544 = vmatpush1.msra.mxu0 0.0
    %3545 = vmatprep.subr.mxu0 0.0
    %3546 = vmatpush1.msra.mxu0 0.0
    %3547 = vmatprep.subr.mxu0 0.0
    %3548 = vmatpush1.msra.mxu0 0.0
    %3549 = vmatprep.subr.mxu0 0.0
    %3550 = vmatpush1.msra.mxu0 0.0
    %3551 = vmatprep.subr.mxu0 0.0
    %3552 = vmatpush1.msra.mxu0 0.0
    %3553 = vmatprep.subr.mxu0 0.0
    %3554 = vmatpush1.msra.mxu0 0.0
    %3555 = vmatprep.subr.mxu0 0.0
    %3556 = vmatpush1.msra.mxu0 0.0
    %3557 = vmatprep.subr.mxu0 0.0
    %3558 = vmatpush1.msra.mxu0 0.0
    %3559 = vmatprep.subr.mxu0 0.0
    %3560 = vmatpush1.msra.mxu0 0.0
    %3561 = vmatprep.subr.mxu0 0.0
    %3562 = vmatpush1.msra.mxu0 0.0
    %3563 = vmatprep.subr.mxu0 0.0
    %3564 = vmatpush1.msra.mxu0 0.0
    %3565 = vmatprep.subr.mxu0 0.0
    %3566 = vmatpush1.msra.mxu0 0.0
    %3567 = vmatprep.subr.mxu0 0.0
    %3568 = vmatpush1.msra.mxu0 0.0
    %3569 = vmatprep.subr.mxu0 0.0
    %3570 = vmatpush1.msra.mxu0 0.0
    %3571 = vmatprep.subr.mxu0 0.0
    %3572 = vmatpush1.msra.mxu0 0.0
    %3573 = vmatprep.subr.mxu0 0.0
    %3574 = vmatpush1.msra.mxu0 0.0
    %3575 = vmatprep.subr.mxu0 0.0
    %3576 = vmatpush1.msra.mxu0 0.0
    %3577 = vmatprep.mubr.f32.mxu0 0.0
    %3578 = vmatmul.mubr.f32.gmra.mrb[0].mxu0 %v3511
    %v3579 = vpop.f32.mrb[0].mxu0
    %v3580 = vadd.f32 0.0, %v3579
    %v3581 = vpop.f32.mrb[0].mxu0
    %3582 = vdwg.mxu0
    %3583 = vrot.lane.b32.xlu0 %v2271, 32
    %v3584 = vpop.permute.xlu0 %3583
    %v3587 = vsel %vm2300, %v3346, 0
    %3589 = vmatprep.subr.mxu0 0.0
    %3590 = vmatpush1.msra.mxu0 %v3584
    %3591 = vmatprep.subr.mxu0 0.0
    %3592 = vmatpush1.msra.mxu0 0.0
    %3593 = vmatprep.subr.mxu0 0.0
    %3594 = vmatpush1.msra.mxu0 0.0
    %3595 = vmatprep.subr.mxu0 0.0
    %3596 = vmatpush1.msra.mxu0 0.0
    %3597 = vmatprep.subr.mxu0 0.0
    %3598 = vmatpush1.msra.mxu0 0.0
    %3599 = vmatprep.subr.mxu0 0.0
    %3600 = vmatpush1.msra.mxu0 0.0
    %3601 = vmatprep.subr.mxu0 0.0
    %3602 = vmatpush1.msra.mxu0 0.0
    %3603 = vmatprep.subr.mxu0 0.0
    %3604 = vmatpush1.msra.mxu0 0.0
    %3605 = vmatprep.subr.mxu0 0.0
    %3606 = vmatpush1.msra.mxu0 0.0
    %3607 = vmatprep.subr.mxu0 0.0
    %3608 = vmatpush1.msra.mxu0 0.0
    %3609 = vmatprep.subr.mxu0 0.0
    %3610 = vmatpush1.msra.mxu0 0.0
    %3611 = vmatprep.subr.mxu0 0.0
    %3612 = vmatpush1.msra.mxu0 0.0
    %3613 = vmatprep.subr.mxu0 0.0
    %3614 = vmatpush1.msra.mxu0 0.0
    %3615 = vmatprep.subr.mxu0 0.0
    %3616 = vmatpush1.msra.mxu0 0.0
    %3617 = vmatprep.subr.mxu0 0.0
    %3618 = vmatpush1.msra.mxu0 0.0
    %3619 = vmatprep.subr.mxu0 0.0
    %3620 = vmatpush1.msra.mxu0 0.0
    %3621 = vmatprep.subr.mxu0 0.0
    %3622 = vmatpush1.msra.mxu0 0.0
    %3623 = vmatprep.subr.mxu0 0.0
    %3624 = vmatpush1.msra.mxu0 0.0
    %3625 = vmatprep.subr.mxu0 0.0
    %3626 = vmatpush1.msra.mxu0 0.0
    %3627 = vmatprep.subr.mxu0 0.0
    %3628 = vmatpush1.msra.mxu0 0.0
    %3629 = vmatprep.subr.mxu0 0.0
    %3630 = vmatpush1.msra.mxu0 0.0
    %3631 = vmatprep.subr.mxu0 0.0
    %3632 = vmatpush1.msra.mxu0 0.0
    %3633 = vmatprep.subr.mxu0 0.0
    %3634 = vmatpush1.msra.mxu0 0.0
    %3635 = vmatprep.subr.mxu0 0.0
    %3636 = vmatpush1.msra.mxu0 0.0
    %3637 = vmatprep.subr.mxu0 0.0
    %3638 = vmatpush1.msra.mxu0 0.0
    %3639 = vmatprep.subr.mxu0 0.0
    %3640 = vmatpush1.msra.mxu0 0.0
    %3641 = vmatprep.subr.mxu0 0.0
    %3642 = vmatpush1.msra.mxu0 0.0
    %3643 = vmatprep.subr.mxu0 0.0
    %3644 = vmatpush1.msra.mxu0 0.0
    %3645 = vmatprep.subr.mxu0 0.0
    %3646 = vmatpush1.msra.mxu0 0.0
    %3647 = vmatprep.subr.mxu0 0.0
    %3648 = vmatpush1.msra.mxu0 0.0
    %3649 = vmatprep.subr.mxu0 0.0
    %3650 = vmatpush1.msra.mxu0 0.0
    %3651 = vmatprep.subr.mxu0 0.0
    %3652 = vmatpush1.msra.mxu0 0.0
    %3653 = vmatprep.mubr.f32.mxu0 0.0
    %3654 = vmatmul.mubr.f32.gmra.mrb[0].mxu0 %v3587
    %v3655 = vpop.f32.mrb[0].mxu0
    %v3656 = vadd.f32 0.0, %v3655
    %v3657 = vpop.f32.mrb[0].mxu0
    %3658 = vdwg.mxu0
    %3659 = vrot.lane.b32.xlu0 %v2273, 32
    %v3660 = vpop.permute.xlu0 %3659
    %v3663 = vsel %vm2300, %v3347, 0
    %3665 = vmatprep.subr.mxu0 0.0
    %3666 = vmatpush1.msra.mxu0 %v3660
    %3667 = vmatprep.subr.mxu0 0.0
    %3668 = vmatpush1.msra.mxu0 0.0
    %3669 = vmatprep.subr.mxu0 0.0
    %3670 = vmatpush1.msra.mxu0 0.0
    %3671 = vmatprep.subr.mxu0 0.0
    %3672 = vmatpush1.msra.mxu0 0.0
    %3673 = vmatprep.subr.mxu0 0.0
    %3674 = vmatpush1.msra.mxu0 0.0
    %3675 = vmatprep.subr.mxu0 0.0
    %3676 = vmatpush1.msra.mxu0 0.0
    %3677 = vmatprep.subr.mxu0 0.0
    %3678 = vmatpush1.msra.mxu0 0.0
    %3679 = vmatprep.subr.mxu0 0.0
    %3680 = vmatpush1.msra.mxu0 0.0
    %3681 = vmatprep.subr.mxu0 0.0
    %3682 = vmatpush1.msra.mxu0 0.0
    %3683 = vmatprep.subr.mxu0 0.0
    %3684 = vmatpush1.msra.mxu0 0.0
    %3685 = vmatprep.subr.mxu0 0.0
    %3686 = vmatpush1.msra.mxu0 0.0
    %3687 = vmatprep.subr.mxu0 0.0
    %3688 = vmatpush1.msra.mxu0 0.0
    %3689 = vmatprep.subr.mxu0 0.0
    %3690 = vmatpush1.msra.mxu0 0.0
    %3691 = vmatprep.subr.mxu0 0.0
    %3692 = vmatpush1.msra.mxu0 0.0
    %3693 = vmatprep.subr.mxu0 0.0
    %3694 = vmatpush1.msra.mxu0 0.0
    %3695 = vmatprep.subr.mxu0 0.0
    %3696 = vmatpush1.msra.mxu0 0.0
    %3697 = vmatprep.subr.mxu0 0.0
    %3698 = vmatpush1.msra.mxu0 0.0
    %3699 = vmatprep.subr.mxu0 0.0
    %3700 = vmatpush1.msra.mxu0 0.0
    %3701 = vmatprep.subr.mxu0 0.0
    %3702 = vmatpush1.msra.mxu0 0.0
    %3703 = vmatprep.subr.mxu0 0.0
    %3704 = vmatpush1.msra.mxu0 0.0
    %3705 = vmatprep.subr.mxu0 0.0
    %3706 = vmatpush1.msra.mxu0 0.0
    %3707 = vmatprep.subr.mxu0 0.0
    %3708 = vmatpush1.msra.mxu0 0.0
    %3709 = vmatprep.subr.mxu0 0.0
    %3710 = vmatpush1.msra.mxu0 0.0
    %3711 = vmatprep.subr.mxu0 0.0
    %3712 = vmatpush1.msra.mxu0 0.0
    %3713 = vmatprep.subr.mxu0 0.0
    %3714 = vmatpush1.msra.mxu0 0.0
    %3715 = vmatprep.subr.mxu0 0.0
    %3716 = vmatpush1.msra.mxu0 0.0
    %3717 = vmatprep.subr.mxu0 0.0
    %3718 = vmatpush1.msra.mxu0 0.0
    %3719 = vmatprep.subr.mxu0 0.0
    %3720 = vmatpush1.msra.mxu0 0.0
    %3721 = vmatprep.subr.mxu0 0.0
    %3722 = vmatpush1.msra.mxu0 0.0
    %3723 = vmatprep.subr.mxu0 0.0
    %3724 = vmatpush1.msra.mxu0 0.0
    %3725 = vmatprep.subr.mxu0 0.0
    %3726 = vmatpush1.msra.mxu0 0.0
    %3727 = vmatprep.subr.mxu0 0.0
    %3728 = vmatpush1.msra.mxu0 0.0
    %3729 = vmatprep.mubr.f32.mxu0 0.0
    %3730 = vmatmul.mubr.f32.gmra.mrb[0].mxu0 %v3663
    %v3731 = vpop.f32.mrb[0].mxu0
    %v3732 = vadd.f32 0.0, %v3731
    %v3733 = vpop.f32.mrb[0].mxu0
    %3734 = vdwg.mxu0
    %3735 = vrot.lane.b32.xlu0 %v2275, 32
    %v3736 = vpop.permute.xlu0 %3735
    %v3739 = vsel %vm2300, %v3348, 0
    %3741 = vmatprep.subr.mxu0 0.0
    %3742 = vmatpush1.msra.mxu0 %v3736
    %3743 = vmatprep.subr.mxu0 0.0
    %3744 = vmatpush1.msra.mxu0 0.0
    %3745 = vmatprep.subr.mxu0 0.0
    %3746 = vmatpush1.msra.mxu0 0.0
    %3747 = vmatprep.subr.mxu0 0.0
    %3748 = vmatpush1.msra.mxu0 0.0
    %3749 = vmatprep.subr.mxu0 0.0
    %3750 = vmatpush1.msra.mxu0 0.0
    %3751 = vmatprep.subr.mxu0 0.0
    %3752 = vmatpush1.msra.mxu0 0.0
    %3753 = vmatprep.subr.mxu0 0.0
    %3754 = vmatpush1.msra.mxu0 0.0
    %3755 = vmatprep.subr.mxu0 0.0
    %3756 = vmatpush1.msra.mxu0 0.0
    %3757 = vmatprep.subr.mxu0 0.0
    %3758 = vmatpush1.msra.mxu0 0.0
    %3759 = vmatprep.subr.mxu0 0.0
    %3760 = vmatpush1.msra.mxu0 0.0
    %3761 = vmatprep.subr.mxu0 0.0
    %3762 = vmatpush1.msra.mxu0 0.0
    %3763 = vmatprep.subr.mxu0 0.0
    %3764 = vmatpush1.msra.mxu0 0.0
    %3765 = vmatprep.subr.mxu0 0.0
    %3766 = vmatpush1.msra.mxu0 0.0
    %3767 = vmatprep.subr.mxu0 0.0
    %3768 = vmatpush1.msra.mxu0 0.0
    %3769 = vmatprep.subr.mxu0 0.0
    %3770 = vmatpush1.msra.mxu0 0.0
    %3771 = vmatprep.subr.mxu0 0.0
    %3772 = vmatpush1.msra.mxu0 0.0
    %3773 = vmatprep.subr.mxu0 0.0
    %3774 = vmatpush1.msra.mxu0 0.0
    %3775 = vmatprep.subr.mxu0 0.0
    %3776 = vmatpush1.msra.mxu0 0.0
    %3777 = vmatprep.subr.mxu0 0.0
    %3778 = vmatpush1.msra.mxu0 0.0
    %3779 = vmatprep.subr.mxu0 0.0
    %3780 = vmatpush1.msra.mxu0 0.0
    %3781 = vmatprep.subr.mxu0 0.0
    %3782 = vmatpush1.msra.mxu0 0.0
    %3783 = vmatprep.subr.mxu0 0.0
    %3784 = vmatpush1.msra.mxu0 0.0
    %3785 = vmatprep.subr.mxu0 0.0
    %3786 = vmatpush1.msra.mxu0 0.0
    %3787 = vmatprep.subr.mxu0 0.0
    %3788 = vmatpush1.msra.mxu0 0.0
    %3789 = vmatprep.subr.mxu0 0.0
    %3790 = vmatpush1.msra.mxu0 0.0
    %3791 = vmatprep.subr.mxu0 0.0
    %3792 = vmatpush1.msra.mxu0 0.0
    %3793 = vmatprep.subr.mxu0 0.0
    %3794 = vmatpush1.msra.mxu0 0.0
    %3795 = vmatprep.subr.mxu0 0.0
    %3796 = vmatpush1.msra.mxu0 0.0
    %3797 = vmatprep.subr.mxu0 0.0
    %3798 = vmatpush1.msra.mxu0 0.0
    %3799 = vmatprep.subr.mxu0 0.0
    %3800 = vmatpush1.msra.mxu0 0.0
    %3801 = vmatprep.subr.mxu0 0.0
    %3802 = vmatpush1.msra.mxu0 0.0
    %3803 = vmatprep.subr.mxu0 0.0
    %3804 = vmatpush1.msra.mxu0 0.0
    %3805 = vmatprep.mubr.f32.mxu0 0.0
    %3806 = vmatmul.mubr.f32.gmra.mrb[0].mxu0 %v3739
    %v3807 = vpop.f32.mrb[0].mxu0
    %v3808 = vadd.f32 0.0, %v3807
    %v3809 = vpop.f32.mrb[0].mxu0
    %3810 = vdwg.mxu0
    %3811 = vrot.lane.b32.xlu0 %v2277, 32
    %v3812 = vpop.permute.xlu0 %3811
    %v3815 = vsel %vm2300, %v3349, 0
    %3817 = vmatprep.subr.mxu0 0.0
    %3818 = vmatpush1.msra.mxu0 %v3812
    %3819 = vmatprep.subr.mxu0 0.0
    %3820 = vmatpush1.msra.mxu0 0.0
    %3821 = vmatprep.subr.mxu0 0.0
    %3822 = vmatpush1.msra.mxu0 0.0
    %3823 = vmatprep.subr.mxu0 0.0
    %3824 = vmatpush1.msra.mxu0 0.0
    %3825 = vmatprep.subr.mxu0 0.0
    %3826 = vmatpush1.msra.mxu0 0.0
    %3827 = vmatprep.subr.mxu0 0.0
    %3828 = vmatpush1.msra.mxu0 0.0
    %3829 = vmatprep.subr.mxu0 0.0
    %3830 = vmatpush1.msra.mxu0 0.0
    %3831 = vmatprep.subr.mxu0 0.0
    %3832 = vmatpush1.msra.mxu0 0.0
    %3833 = vmatprep.subr.mxu0 0.0
    %3834 = vmatpush1.msra.mxu0 0.0
    %3835 = vmatprep.subr.mxu0 0.0
    %3836 = vmatpush1.msra.mxu0 0.0
    %3837 = vmatprep.subr.mxu0 0.0
    %3838 = vmatpush1.msra.mxu0 0.0
    %3839 = vmatprep.subr.mxu0 0.0
    %3840 = vmatpush1.msra.mxu0 0.0
    %3841 = vmatprep.subr.mxu0 0.0
    %3842 = vmatpush1.msra.mxu0 0.0
    %3843 = vmatprep.subr.mxu0 0.0
    %3844 = vmatpush1.msra.mxu0 0.0
    %3845 = vmatprep.subr.mxu0 0.0
    %3846 = vmatpush1.msra.mxu0 0.0
    %3847 = vmatprep.subr.mxu0 0.0
    %3848 = vmatpush1.msra.mxu0 0.0
    %3849 = vmatprep.subr.mxu0 0.0
    %3850 = vmatpush1.msra.mxu0 0.0
    %3851 = vmatprep.subr.mxu0 0.0
    %3852 = vmatpush1.msra.mxu0 0.0
    %3853 = vmatprep.subr.mxu0 0.0
    %3854 = vmatpush1.msra.mxu0 0.0
    %3855 = vmatprep.subr.mxu0 0.0
    %3856 = vmatpush1.msra.mxu0 0.0
    %3857 = vmatprep.subr.mxu0 0.0
    %3858 = vmatpush1.msra.mxu0 0.0
    %3859 = vmatprep.subr.mxu0 0.0
    %3860 = vmatpush1.msra.mxu0 0.0
    %3861 = vmatprep.subr.mxu0 0.0
    %3862 = vmatpush1.msra.mxu0 0.0
    %3863 = vmatprep.subr.mxu0 0.0
    %3864 = vmatpush1.msra.mxu0 0.0
    %3865 = vmatprep.subr.mxu0 0.0
    %3866 = vmatpush1.msra.mxu0 0.0
    %3867 = vmatprep.subr.mxu0 0.0
    %3868 = vmatpush1.msra.mxu0 0.0
    %3869 = vmatprep.subr.mxu0 0.0
    %3870 = vmatpush1.msra.mxu0 0.0
    %3871 = vmatprep.subr.mxu0 0.0
    %3872 = vmatpush1.msra.mxu0 0.0
    %3873 = vmatprep.subr.mxu0 0.0
    %3874 = vmatpush1.msra.mxu0 0.0
    %3875 = vmatprep.subr.mxu0 0.0
    %3876 = vmatpush1.msra.mxu0 0.0
    %3877 = vmatprep.subr.mxu0 0.0
    %3878 = vmatpush1.msra.mxu0 0.0
    %3879 = vmatprep.subr.mxu0 0.0
    %3880 = vmatpush1.msra.mxu0 0.0
    %3881 = vmatprep.mubr.f32.mxu0 0.0
    %3882 = vmatmul.mubr.f32.gmra.mrb[0].mxu0 %v3815
    %v3883 = vpop.f32.mrb[0].mxu0
    %v3884 = vadd.f32 0.0, %v3883
    %v3885 = vpop.f32.mrb[0].mxu0
    %3886 = vdwg.mxu0
    %3887 = vrot.lane.b32.xlu0 %v2279, 32
    %v3888 = vpop.permute.xlu0 %3887
    %v3891 = vsel %vm2300, %v3350, 0
    %3893 = vmatprep.subr.mxu0 0.0
    %3894 = vmatpush1.msra.mxu0 %v3888
    %3895 = vmatprep.subr.mxu0 0.0
    %3896 = vmatpush1.msra.mxu0 0.0
    %3897 = vmatprep.subr.mxu0 0.0
    %3898 = vmatpush1.msra.mxu0 0.0
    %3899 = vmatprep.subr.mxu0 0.0
    %3900 = vmatpush1.msra.mxu0 0.0
    %3901 = vmatprep.subr.mxu0 0.0
    %3902 = vmatpush1.msra.mxu0 0.0
    %3903 = vmatprep.subr.mxu0 0.0
    %3904 = vmatpush1.msra.mxu0 0.0
    %3905 = vmatprep.subr.mxu0 0.0
    %3906 = vmatpush1.msra.mxu0 0.0
    %3907 = vmatprep.subr.mxu0 0.0
    %3908 = vmatpush1.msra.mxu0 0.0
    %3909 = vmatprep.subr.mxu0 0.0
    %3910 = vmatpush1.msra.mxu0 0.0
    %3911 = vmatprep.subr.mxu0 0.0
    %3912 = vmatpush1.msra.mxu0 0.0
    %3913 = vmatprep.subr.mxu0 0.0
    %3914 = vmatpush1.msra.mxu0 0.0
    %3915 = vmatprep.subr.mxu0 0.0
    %3916 = vmatpush1.msra.mxu0 0.0
    %3917 = vmatprep.subr.mxu0 0.0
    %3918 = vmatpush1.msra.mxu0 0.0
    %3919 = vmatprep.subr.mxu0 0.0
    %3920 = vmatpush1.msra.mxu0 0.0
    %3921 = vmatprep.subr.mxu0 0.0
    %3922 = vmatpush1.msra.mxu0 0.0
    %3923 = vmatprep.subr.mxu0 0.0
    %3924 = vmatpush1.msra.mxu0 0.0
    %3925 = vmatprep.subr.mxu0 0.0
    %3926 = vmatpush1.msra.mxu0 0.0
    %3927 = vmatprep.subr.mxu0 0.0
    %3928 = vmatpush1.msra.mxu0 0.0
    %3929 = vmatprep.subr.mxu0 0.0
    %3930 = vmatpush1.msra.mxu0 0.0
    %3931 = vmatprep.subr.mxu0 0.0
    %3932 = vmatpush1.msra.mxu0 0.0
    %3933 = vmatprep.subr.mxu0 0.0
    %3934 = vmatpush1.msra.mxu0 0.0
    %3935 = vmatprep.subr.mxu0 0.0
    %3936 = vmatpush1.msra.mxu0 0.0
    %3937 = vmatprep.subr.mxu0 0.0
    %3938 = vmatpush1.msra.mxu0 0.0
    %3939 = vmatprep.subr.mxu0 0.0
    %3940 = vmatpush1.msra.mxu0 0.0
    %3941 = vmatprep.subr.mxu0 0.0
    %3942 = vmatpush1.msra.mxu0 0.0
    %3943 = vmatprep.subr.mxu0 0.0
    %3944 = vmatpush1.msra.mxu0 0.0
    %3945 = vmatprep.subr.mxu0 0.0
    %3946 = vmatpush1.msra.mxu0 0.0
    %3947 = vmatprep.subr.mxu0 0.0
    %3948 = vmatpush1.msra.mxu0 0.0
    %3949 = vmatprep.subr.mxu0 0.0
    %3950 = vmatpush1.msra.mxu0 0.0
    %3951 = vmatprep.subr.mxu0 0.0
    %3952 = vmatpush1.msra.mxu0 0.0
    %3953 = vmatprep.subr.mxu0 0.0
    %3954 = vmatpush1.msra.mxu0 0.0
    %3955 = vmatprep.subr.mxu0 0.0
    %3956 = vmatpush1.msra.mxu0 0.0
    %3957 = vmatprep.mubr.f32.mxu0 0.0
    %3958 = vmatmul.mubr.f32.gmra.mrb[0].mxu0 %v3891
    %v3959 = vpop.f32.mrb[0].mxu0
    %v3960 = vadd.f32 0.0, %v3959
    %v3961 = vpop.f32.mrb[0].mxu0
    %3962 = vdwg.mxu0
    %3963 = vrot.lane.b32.xlu0 %v2291, 32
    %v3964 = vpop.permute.xlu0 %3963
    %v3967 = vsel %vm2300, %v3351, 0
    %3969 = vmatprep.subr.mxu0 0.0
    %3970 = vmatpush1.msra.mxu0 %v3964
    %3971 = vmatprep.subr.mxu0 0.0
    %3972 = vmatpush1.msra.mxu0 0.0
    %3973 = vmatprep.subr.mxu0 0.0
    %3974 = vmatpush1.msra.mxu0 0.0
    %3975 = vmatprep.subr.mxu0 0.0
    %3976 = vmatpush1.msra.mxu0 0.0
    %3977 = vmatprep.subr.mxu0 0.0
    %3978 = vmatpush1.msra.mxu0 0.0
    %3979 = vmatprep.subr.mxu0 0.0
    %3980 = vmatpush1.msra.mxu0 0.0
    %3981 = vmatprep.subr.mxu0 0.0
    %3982 = vmatpush1.msra.mxu0 0.0
    %3983 = vmatprep.subr.mxu0 0.0
    %3984 = vmatpush1.msra.mxu0 0.0
    %3985 = vmatprep.subr.mxu0 0.0
    %3986 = vmatpush1.msra.mxu0 0.0
    %3987 = vmatprep.subr.mxu0 0.0
    %3988 = vmatpush1.msra.mxu0 0.0
    %3989 = vmatprep.subr.mxu0 0.0
    %3990 = vmatpush1.msra.mxu0 0.0
    %3991 = vmatprep.subr.mxu0 0.0
    %3992 = vmatpush1.msra.mxu0 0.0
    %3993 = vmatprep.subr.mxu0 0.0
    %3994 = vmatpush1.msra.mxu0 0.0
    %3995 = vmatprep.subr.mxu0 0.0
    %3996 = vmatpush1.msra.mxu0 0.0
    %3997 = vmatprep.subr.mxu0 0.0
    %3998 = vmatpush1.msra.mxu0 0.0
    %3999 = vmatprep.subr.mxu0 0.0
    %4000 = vmatpush1.msra.mxu0 0.0
    %4001 = vmatprep.subr.mxu0 0.0
    %4002 = vmatpush1.msra.mxu0 0.0
    %4003 = vmatprep.subr.mxu0 0.0
    %4004 = vmatpush1.msra.mxu0 0.0
    %4005 = vmatprep.subr.mxu0 0.0
    %4006 = vmatpush1.msra.mxu0 0.0
    %4007 = vmatprep.subr.mxu0 0.0
    %4008 = vmatpush1.msra.mxu0 0.0
    %4009 = vmatprep.subr.mxu0 0.0
    %4010 = vmatpush1.msra.mxu0 0.0
    %4011 = vmatprep.subr.mxu0 0.0
    %4012 = vmatpush1.msra.mxu0 0.0
    %4013 = vmatprep.subr.mxu0 0.0
    %4014 = vmatpush1.msra.mxu0 0.0
    %4015 = vmatprep.subr.mxu0 0.0
    %4016 = vmatpush1.msra.mxu0 0.0
    %4017 = vmatprep.subr.mxu0 0.0
    %4018 = vmatpush1.msra.mxu0 0.0
    %4019 = vmatprep.subr.mxu0 0.0
    %4020 = vmatpush1.msra.mxu0 0.0
    %4021 = vmatprep.subr.mxu0 0.0
    %4022 = vmatpush1.msra.mxu0 0.0
    %4023 = vmatprep.subr.mxu0 0.0
    %4024 = vmatpush1.msra.mxu0 0.0
    %4025 = vmatprep.subr.mxu0 0.0
    %4026 = vmatpush1.msra.mxu0 0.0
    %4027 = vmatprep.subr.mxu0 0.0
    %4028 = vmatpush1.msra.mxu0 0.0
    %4029 = vmatprep.subr.mxu0 0.0
    %4030 = vmatpush1.msra.mxu0 0.0
    %4031 = vmatprep.subr.mxu0 0.0
    %4032 = vmatpush1.msra.mxu0 0.0
    %4033 = vmatprep.mubr.f32.mxu0 0.0
    %4034 = vmatmul.mubr.f32.gmra.mrb[0].mxu0 %v3967
    %v4035 = vpop.f32.mrb[0].mxu0
    %v4036 = vadd.f32 0.0, %v4035
    %v4037 = vpop.f32.mrb[0].mxu0
    %4038 = vdwg.mxu0
    %4039 = vrot.lane.b32.xlu0 %v2293, 32
    %v4040 = vpop.permute.xlu0 %4039
    %v4043 = vsel %vm2300, %v3352, 0
    %4045 = vmatprep.subr.mxu0 0.0
    %4046 = vmatpush1.msra.mxu0 %v4040
    %4047 = vmatprep.subr.mxu0 0.0
    %4048 = vmatpush1.msra.mxu0 0.0
    %4049 = vmatprep.subr.mxu0 0.0
    %4050 = vmatpush1.msra.mxu0 0.0
    %4051 = vmatprep.subr.mxu0 0.0
    %4052 = vmatpush1.msra.mxu0 0.0
    %4053 = vmatprep.subr.mxu0 0.0
    %4054 = vmatpush1.msra.mxu0 0.0
    %4055 = vmatprep.subr.mxu0 0.0
    %4056 = vmatpush1.msra.mxu0 0.0
    %4057 = vmatprep.subr.mxu0 0.0
    %4058 = vmatpush1.msra.mxu0 0.0
    %4059 = vmatprep.subr.mxu0 0.0
    %4060 = vmatpush1.msra.mxu0 0.0
    %4061 = vmatprep.subr.mxu0 0.0
    %4062 = vmatpush1.msra.mxu0 0.0
    %4063 = vmatprep.subr.mxu0 0.0
    %4064 = vmatpush1.msra.mxu0 0.0
    %4065 = vmatprep.subr.mxu0 0.0
    %4066 = vmatpush1.msra.mxu0 0.0
    %4067 = vmatprep.subr.mxu0 0.0
    %4068 = vmatpush1.msra.mxu0 0.0
    %4069 = vmatprep.subr.mxu0 0.0
    %4070 = vmatpush1.msra.mxu0 0.0
    %4071 = vmatprep.subr.mxu0 0.0
    %4072 = vmatpush1.msra.mxu0 0.0
    %4073 = vmatprep.subr.mxu0 0.0
    %4074 = vmatpush1.msra.mxu0 0.0
    %4075 = vmatprep.subr.mxu0 0.0
    %4076 = vmatpush1.msra.mxu0 0.0
    %4077 = vmatprep.subr.mxu0 0.0
    %4078 = vmatpush1.msra.mxu0 0.0
    %4079 = vmatprep.subr.mxu0 0.0
    %4080 = vmatpush1.msra.mxu0 0.0
    %4081 = vmatprep.subr.mxu0 0.0
    %4082 = vmatpush1.msra.mxu0 0.0
    %4083 = vmatprep.subr.mxu0 0.0
    %4084 = vmatpush1.msra.mxu0 0.0
    %4085 = vmatprep.subr.mxu0 0.0
    %4086 = vmatpush1.msra.mxu0 0.0
    %4087 = vmatprep.subr.mxu0 0.0
    %4088 = vmatpush1.msra.mxu0 0.0
    %4089 = vmatprep.subr.mxu0 0.0
    %4090 = vmatpush1.msra.mxu0 0.0
    %4091 = vmatprep.subr.mxu0 0.0
    %4092 = vmatpush1.msra.mxu0 0.0
    %4093 = vmatprep.subr.mxu0 0.0
    %4094 = vmatpush1.msra.mxu0 0.0
    %4095 = vmatprep.subr.mxu0 0.0
    %4096 = vmatpush1.msra.mxu0 0.0
    %4097 = vmatprep.subr.mxu0 0.0
    %4098 = vmatpush1.msra.mxu0 0.0
    %4099 = vmatprep.subr.mxu0 0.0
    %4100 = vmatpush1.msra.mxu0 0.0
    %4101 = vmatprep.subr.mxu0 0.0
    %4102 = vmatpush1.msra.mxu0 0.0
    %4103 = vmatprep.subr.mxu0 0.0
    %4104 = vmatpush1.msra.mxu0 0.0
    %4105 = vmatprep.subr.mxu0 0.0
    %4106 = vmatpush1.msra.mxu0 0.0
    %4107 = vmatprep.subr.mxu0 0.0
    %4108 = vmatpush1.msra.mxu0 0.0
    %4109 = vmatprep.mubr.f32.mxu0 0.0
    %4110 = vmatmul.mubr.f32.gmra.mrb[0].mxu0 %v4043
    %v4111 = vpop.f32.mrb[0].mxu0
    %v4112 = vadd.f32 0.0, %v4111
    %v4113 = vpop.f32.mrb[0].mxu0
    %4114 = vdwg.mxu0
    %4115 = vrot.lane.b32.xlu0 %v2295, 32
    %v4116 = vpop.permute.xlu0 %4115
    %v4119 = vsel %vm2300, %v3353, 0
    %4121 = vmatprep.subr.mxu0 0.0
    %4122 = vmatpush1.msra.mxu0 %v4116
    %4123 = vmatprep.subr.mxu0 0.0
    %4124 = vmatpush1.msra.mxu0 0.0
    %4125 = vmatprep.subr.mxu0 0.0
    %4126 = vmatpush1.msra.mxu0 0.0
    %4127 = vmatprep.subr.mxu0 0.0
    %4128 = vmatpush1.msra.mxu0 0.0
    %4129 = vmatprep.subr.mxu0 0.0
    %4130 = vmatpush1.msra.mxu0 0.0
    %4131 = vmatprep.subr.mxu0 0.0
    %4132 = vmatpush1.msra.mxu0 0.0
    %4133 = vmatprep.subr.mxu0 0.0
    %4134 = vmatpush1.msra.mxu0 0.0
    %4135 = vmatprep.subr.mxu0 0.0
    %4136 = vmatpush1.msra.mxu0 0.0
    %4137 = vmatprep.subr.mxu0 0.0
    %4138 = vmatpush1.msra.mxu0 0.0
    %4139 = vmatprep.subr.mxu0 0.0
    %4140 = vmatpush1.msra.mxu0 0.0
    %4141 = vmatprep.subr.mxu0 0.0
    %4142 = vmatpush1.msra.mxu0 0.0
    %4143 = vmatprep.subr.mxu0 0.0
    %4144 = vmatpush1.msra.mxu0 0.0
    %4145 = vmatprep.subr.mxu0 0.0
    %4146 = vmatpush1.msra.mxu0 0.0
    %4147 = vmatprep.subr.mxu0 0.0
    %4148 = vmatpush1.msra.mxu0 0.0
    %4149 = vmatprep.subr.mxu0 0.0
    %4150 = vmatpush1.msra.mxu0 0.0
    %4151 = vmatprep.subr.mxu0 0.0
    %4152 = vmatpush1.msra.mxu0 0.0
    %4153 = vmatprep.subr.mxu0 0.0
    %4154 = vmatpush1.msra.mxu0 0.0
    %4155 = vmatprep.subr.mxu0 0.0
    %4156 = vmatpush1.msra.mxu0 0.0
    %4157 = vmatprep.subr.mxu0 0.0
    %4158 = vmatpush1.msra.mxu0 0.0
    %4159 = vmatprep.subr.mxu0 0.0
    %4160 = vmatpush1.msra.mxu0 0.0
    %4161 = vmatprep.subr.mxu0 0.0
    %4162 = vmatpush1.msra.mxu0 0.0
    %4163 = vmatprep.subr.mxu0 0.0
    %4164 = vmatpush1.msra.mxu0 0.0
    %4165 = vmatprep.subr.mxu0 0.0
    %4166 = vmatpush1.msra.mxu0 0.0
    %4167 = vmatprep.subr.mxu0 0.0
    %4168 = vmatpush1.msra.mxu0 0.0
    %4169 = vmatprep.subr.mxu0 0.0
    %4170 = vmatpush1.msra.mxu0 0.0
    %4171 = vmatprep.subr.mxu0 0.0
    %4172 = vmatpush1.msra.mxu0 0.0
    %4173 = vmatprep.subr.mxu0 0.0
    %4174 = vmatpush1.msra.mxu0 0.0
    %4175 = vmatprep.subr.mxu0 0.0
    %4176 = vmatpush1.msra.mxu0 0.0
    %4177 = vmatprep.subr.mxu0 0.0
    %4178 = vmatpush1.msra.mxu0 0.0
    %4179 = vmatprep.subr.mxu0 0.0
    %4180 = vmatpush1.msra.mxu0 0.0
    %4181 = vmatprep.subr.mxu0 0.0
    %4182 = vmatpush1.msra.mxu0 0.0
    %4183 = vmatprep.subr.mxu0 0.0
    %4184 = vmatpush1.msra.mxu0 0.0
    %4185 = vmatprep.mubr.f32.mxu0 0.0
    %4186 = vmatmul.mubr.f32.gmra.mrb[0].mxu0 %v4119
    %v4187 = vpop.f32.mrb[0].mxu0
    %v4188 = vadd.f32 0.0, %v4187
    %v4189 = vpop.f32.mrb[0].mxu0
    %4190 = vdwg.mxu0
    %4191 = vrot.lane.b32.xlu0 %v2297, 32
    %v4192 = vpop.permute.xlu0 %4191
    %v4195 = vsel %vm2300, %v3354, 0
    %4197 = vmatprep.subr.mxu0 0.0
    %4198 = vmatpush1.msra.mxu0 %v4192
    %4199 = vmatprep.subr.mxu0 0.0
    %4200 = vmatpush1.msra.mxu0 0.0
    %4201 = vmatprep.subr.mxu0 0.0
    %4202 = vmatpush1.msra.mxu0 0.0
    %4203 = vmatprep.subr.mxu0 0.0
    %4204 = vmatpush1.msra.mxu0 0.0
    %4205 = vmatprep.subr.mxu0 0.0
    %4206 = vmatpush1.msra.mxu0 0.0
    %4207 = vmatprep.subr.mxu0 0.0
    %4208 = vmatpush1.msra.mxu0 0.0
    %4209 = vmatprep.subr.mxu0 0.0
    %4210 = vmatpush1.msra.mxu0 0.0
    %4211 = vmatprep.subr.mxu0 0.0
    %4212 = vmatpush1.msra.mxu0 0.0
    %4213 = vmatprep.subr.mxu0 0.0
    %4214 = vmatpush1.msra.mxu0 0.0
    %4215 = vmatprep.subr.mxu0 0.0
    %4216 = vmatpush1.msra.mxu0 0.0
    %4217 = vmatprep.subr.mxu0 0.0
    %4218 = vmatpush1.msra.mxu0 0.0
    %4219 = vmatprep.subr.mxu0 0.0
    %4220 = vmatpush1.msra.mxu0 0.0
    %4221 = vmatprep.subr.mxu0 0.0
    %4222 = vmatpush1.msra.mxu0 0.0
    %4223 = vmatprep.subr.mxu0 0.0
    %4224 = vmatpush1.msra.mxu0 0.0
    %4225 = vmatprep.subr.mxu0 0.0
    %4226 = vmatpush1.msra.mxu0 0.0
    %4227 = vmatprep.subr.mxu0 0.0
    %4228 = vmatpush1.msra.mxu0 0.0
    %4229 = vmatprep.subr.mxu0 0.0
    %4230 = vmatpush1.msra.mxu0 0.0
    %4231 = vmatprep.subr.mxu0 0.0
    %4232 = vmatpush1.msra.mxu0 0.0
    %4233 = vmatprep.subr.mxu0 0.0
    %4234 = vmatpush1.msra.mxu0 0.0
    %4235 = vmatprep.subr.mxu0 0.0
    %4236 = vmatpush1.msra.mxu0 0.0
    %4237 = vmatprep.subr.mxu0 0.0
    %4238 = vmatpush1.msra.mxu0 0.0
    %4239 = vmatprep.subr.mxu0 0.0
    %4240 = vmatpush1.msra.mxu0 0.0
    %4241 = vmatprep.subr.mxu0 0.0
    %4242 = vmatpush1.msra.mxu0 0.0
    %4243 = vmatprep.subr.mxu0 0.0
    %4244 = vmatpush1.msra.mxu0 0.0
    %4245 = vmatprep.subr.mxu0 0.0
    %4246 = vmatpush1.msra.mxu0 0.0
    %4247 = vmatprep.subr.mxu0 0.0
    %4248 = vmatpush1.msra.mxu0 0.0
    %4249 = vmatprep.subr.mxu0 0.0
    %4250 = vmatpush1.msra.mxu0 0.0
    %4251 = vmatprep.subr.mxu0 0.0
    %4252 = vmatpush1.msra.mxu0 0.0
    %4253 = vmatprep.subr.mxu0 0.0
    %4254 = vmatpush1.msra.mxu0 0.0
    %4255 = vmatprep.subr.mxu0 0.0
    %4256 = vmatpush1.msra.mxu0 0.0
    %4257 = vmatprep.subr.mxu0 0.0
    %4258 = vmatpush1.msra.mxu0 0.0
    %4259 = vmatprep.subr.mxu0 0.0
    %4260 = vmatpush1.msra.mxu0 0.0
    %4261 = vmatprep.mubr.f32.mxu0 0.0
    %4262 = vmatmul.mubr.f32.gmra.mrb[0].mxu0 %v4195
    %v4263 = vpop.f32.mrb[0].mxu0
    %v4264 = vadd.f32 0.0, %v4263
    %v4265 = vpop.f32.mrb[0].mxu0
    %4266 = vdwg.mxu0
    %4269 = vrot.lane.b32.xlu0 %v3580, 8
    %v4270 = vpop.permute.xlu0 %4269
    %4271 = vrot.lane.b32.xlu0 %v3656, 8
    %v4272 = vpop.permute.xlu0 %4271
    %4277 = vrot.lane.b32.xlu0 %v3732, 16
    %v4278 = vpop.permute.xlu0 %4277
    %4279 = vrot.lane.b32.xlu0 %v3808, 16
    %v4280 = vpop.permute.xlu0 %4279
    %4285 = vrot.lane.b32.xlu0 %v3884, 24
    %v4286 = vpop.permute.xlu0 %4285
    %4287 = vrot.lane.b32.xlu0 %v3960, 24
    %v4288 = vpop.permute.xlu0 %4287
    %4293 = vrot.lane.b32.xlu0 %v4036, 32
    %v4294 = vpop.permute.xlu0 %4293
    %4295 = vrot.lane.b32.xlu0 %v4112, 32
    %v4296 = vpop.permute.xlu0 %4295
    %4301 = vrot.lane.b32.xlu0 %v4188, 40
    %v4302 = vpop.permute.xlu0 %4301
    %4303 = vrot.lane.b32.xlu0 %v4264, 40
    %v4304 = vpop.permute.xlu0 %4303
    %v4307 = vsel %vm2300, %v3428, %v4270
    %v4308 = vsel %vm2300, %v3504, %v4272
    %vm4309 = vcmask 130048
    %v4310 = vsel %vm4309, %v4307, %v4278
    %v4311 = vsel %vm4309, %v4308, %v4280
    %vm4312 = vcmask 195584
    %v4313 = vsel %vm4312, %v4310, %v4286
    %v4314 = vsel %vm4312, %v4311, %v4288
    %v4315 = vsel %vm96, %v4313, %v4294
    %v4316 = vsel %vm96, %v4314, %v4296
    %vm4317 = vcmask 326656
    %v4318 = vsel %vm4317, %v4315, %v4302
    %v4319 = vsel %vm4317, %v4316, %v4304
    %v4320 = vadd.f32 %v4318, %v2169
    %v4321 = vadd.f32 %v4319, %v2170
    %v4322 = vsel %vm202, %v4320, 0.0
    %4323 = vadd.xlane.f32.xlu0 %v4322
    %v4324 = vpop.xlane.xlu0 %4323
    %v4325 = vsel %vm202, %v4321, 0.0
    %4326 = vadd.xlane.f32.xlu0 %v4325
    %v4327 = vpop.xlane.xlu0 %4326
    %v4328 = vrcp.pop 48.0
    %v4329 = vmul.f32 %v4324, %v4328
    %v4330 = vmul.f32 %v4327, %v4328
    %v4331 = vsub.f32 %v4320, %v4329
    %v4332 = vsub.f32 %v4321, %v4330
    %v4333 = vmul.f32 %v4331, %v4331
    %v4334 = vmul.f32 %v4332, %v4332
    %v4335 = vsel %vm202, %v4333, 0.0
    %4336 = vadd.xlane.f32.xlu0 %v4335
    %v4337 = vpop.xlane.xlu0 %4336
    %v4338 = vsel %vm202, %v4334, 0.0
    %4339 = vadd.xlane.f32.xlu0 %v4338
    %v4340 = vpop.xlane.xlu0 %4339
    %v4341 = vmul.f32 %v4337, %v4328
    %v4342 = vmul.f32 %v4340, %v4328
    %v4343 = vadd.f32 %v4341, 1e-05
    %v4344 = vadd.f32 %v4342, 1e-05
    %v4345 = vrsqrt.pop %v4343
    %v4346 = vrsqrt.pop %v4344
    %v4347 = vmul.f32 %v4331, %v4345
    %v4348 = vmul.f32 %v4332, %v4346
    %v4350 = vlaneseq
    %v4351 = vshrl.u32 %v4350, 7
    %v4352 = vsub.s32 0, %v4351
    %v4353 = vrot.slane %v81, %v4352
    %v4355 = vmul.f32 %v4347, %v4353
    %v4356 = vmul.f32 %v4348, %v4353
    %v4358 = vlaneseq
    %v4359 = vshrl.u32 %v4358, 7
    %v4360 = vsub.s32 0, %v4359
    %v4361 = vrot.slane %v82, %v4360
    %v4363 = vadd.f32 %v4355, %v4361
    %v4364 = vadd.f32 %v4356, %v4361
    %v4365 = vld [vmem:[%s10] sm:$0xff]
    %v4366 = vld [vmem:[%s10 + $0x8] sm:$0xff]
    %v4367 = vld [vmem:[%s10 + $0x10] sm:$0xff]
    %v4368 = vld [vmem:[%s10 + $0x18] sm:$0xff]
    %v4369 = vld [vmem:[%s10 + $0x20] sm:$0xff]
    %v4370 = vld [vmem:[%s10 + $0x28] sm:$0xff]
    %v4371 = vld [vmem:[%s10 + $0x30] sm:$0xff]
    %v4372 = vld [vmem:[%s10 + $0x38] sm:$0xff]
    %v4373 = vld [vmem:[%s10 + $0x40] sm:$0xff]
    %v4374 = vld [vmem:[%s10 + $0x48] sm:$0xff]
    %v4375 = vld [vmem:[%s10 + $0x50] sm:$0xff]
    %v4376 = vld [vmem:[%s10 + $0x58] sm:$0xff]
    %v4378 = vsel %vm202, %v4363, 0
    %v4381 = vsel %vm202, %v4364, 0
    %4383 = vmatprep.subr.mxu0 %v4366
    %4384 = vmatpush1.msra.mxu0 %v4365
    %4385 = vmatprep.subr.mxu0 %v4368
    %4386 = vmatpush1.msra.mxu0 %v4367
    %4387 = vmatprep.subr.mxu0 %v4370
    %4388 = vmatpush1.msra.mxu0 %v4369
    %4389 = vmatprep.subr.mxu0 %v4372
    %4390 = vmatpush1.msra.mxu0 %v4371
    %4391 = vmatprep.subr.mxu0 %v4374
    %4392 = vmatpush1.msra.mxu0 %v4373
    %4393 = vmatprep.subr.mxu0 %v4376
    %4394 = vmatpush1.msra.mxu0 %v4375
    %4395 = vmatprep.subr.mxu0 0.0
    %4396 = vmatpush1.msra.mxu0 0.0
    %4397 = vmatprep.subr.mxu0 0.0
    %4398 = vmatpush1.msra.mxu0 0.0
    %4399 = vmatprep.subr.mxu0 0.0
    %4400 = vmatpush1.msra.mxu0 0.0
    %4401 = vmatprep.subr.mxu0 0.0
    %4402 = vmatpush1.msra.mxu0 0.0
    %4403 = vmatprep.subr.mxu0 0.0
    %4404 = vmatpush1.msra.mxu0 0.0
    %4405 = vmatprep.subr.mxu0 0.0
    %4406 = vmatpush1.msra.mxu0 0.0
    %4407 = vmatprep.subr.mxu0 0.0
    %4408 = vmatpush1.msra.mxu0 0.0
    %4409 = vmatprep.subr.mxu0 0.0
    %4410 = vmatpush1.msra.mxu0 0.0
    %4411 = vmatprep.subr.mxu0 0.0
    %4412 = vmatpush1.msra.mxu0 0.0
    %4413 = vmatprep.subr.mxu0 0.0
    %4414 = vmatpush1.msra.mxu0 0.0
    %4415 = vmatprep.subr.mxu0 0.0
    %4416 = vmatpush1.msra.mxu0 0.0
    %4417 = vmatprep.subr.mxu0 0.0
    %4418 = vmatpush1.msra.mxu0 0.0
    %4419 = vmatprep.subr.mxu0 0.0
    %4420 = vmatpush1.msra.mxu0 0.0
    %4421 = vmatprep.subr.mxu0 0.0
    %4422 = vmatpush1.msra.mxu0 0.0
    %4423 = vmatprep.subr.mxu0 0.0
    %4424 = vmatpush1.msra.mxu0 0.0
    %4425 = vmatprep.subr.mxu0 0.0
    %4426 = vmatpush1.msra.mxu0 0.0
    %4427 = vmatprep.subr.mxu0 0.0
    %4428 = vmatpush1.msra.mxu0 0.0
    %4429 = vmatprep.subr.mxu0 0.0
    %4430 = vmatpush1.msra.mxu0 0.0
    %4431 = vmatprep.subr.mxu0 0.0
    %4432 = vmatpush1.msra.mxu0 0.0
    %4433 = vmatprep.subr.mxu0 0.0
    %4434 = vmatpush1.msra.mxu0 0.0
    %4435 = vmatprep.subr.mxu0 0.0
    %4436 = vmatpush1.msra.mxu0 0.0
    %4437 = vmatprep.subr.mxu0 0.0
    %4438 = vmatpush1.msra.mxu0 0.0
    %4439 = vmatprep.subr.mxu0 0.0
    %4440 = vmatpush1.msra.mxu0 0.0
    %4441 = vmatprep.subr.mxu0 0.0
    %4442 = vmatpush1.msra.mxu0 0.0
    %4443 = vmatprep.subr.mxu0 0.0
    %4444 = vmatpush1.msra.mxu0 0.0
    %4445 = vmatprep.subr.mxu0 0.0
    %4446 = vmatpush1.msra.mxu0 0.0
    %4447 = vmatprep.mubr.f32.mxu0 0.0
    %4448 = vmatmul.mubr.f32.gmra.mrb[0].mxu0 %v4378
    %v4449 = vpop.f32.mrb[0].mxu0
    %v4450 = vadd.f32 0.0, %v4449
    %v4451 = vpop.f32.mrb[0].mxu0
    %v4452 = vadd.f32 0.0, %v4451
    %4453 = vmatprep.mubr.f32.mxu0 0.0
    %4454 = vmatmul.mubr.f32.gmra.mrb[0].mxu0 %v4381
    %v4455 = vpop.f32.mrb[0].mxu0
    %v4456 = vadd.f32 0.0, %v4455
    %v4457 = vpop.f32.mrb[0].mxu0
    %v4458 = vadd.f32 0.0, %v4457
    %4459 = vdwg.mxu0
    %4462 = vrot.lane.b32.xlu0 %v4450, 120
    %v4463 = vpop.permute.xlu0 %4462
    %4464 = vrot.lane.b32.xlu0 %v4456, 120
    %v4465 = vpop.permute.xlu0 %4464
    %4466 = vrot.lane.b32.xlu0 %v4450, 112
    %v4467 = vpop.permute.xlu0 %4466
    %4468 = vrot.lane.b32.xlu0 %v4456, 112
    %v4469 = vpop.permute.xlu0 %4468
    %4470 = vrot.lane.b32.xlu0 %v4450, 104
    %v4471 = vpop.permute.xlu0 %4470
    %4472 = vrot.lane.b32.xlu0 %v4456, 104
    %v4473 = vpop.permute.xlu0 %4472
    %4474 = vrot.lane.b32.xlu0 %v4450, 96
    %v4475 = vpop.permute.xlu0 %4474
    %4476 = vrot.lane.b32.xlu0 %v4456, 96
    %v4477 = vpop.permute.xlu0 %4476
    %4478 = vrot.lane.b32.xlu0 %v4450, 88
    %v4479 = vpop.permute.xlu0 %4478
    %4480 = vrot.lane.b32.xlu0 %v4456, 88
    %v4481 = vpop.permute.xlu0 %4480
    %4484 = vrot.lane.b32.xlu0 %v4452, 96
    %v4485 = vpop.permute.xlu0 %4484
    %4486 = vrot.lane.b32.xlu0 %v4458, 96
    %v4487 = vpop.permute.xlu0 %4486
    %4488 = vrot.lane.b32.xlu0 %v4452, 88
    %v4489 = vpop.permute.xlu0 %4488
    %4490 = vrot.lane.b32.xlu0 %v4458, 88
    %v4491 = vpop.permute.xlu0 %4490
    %4492 = vrot.lane.b32.xlu0 %v4450, 80
    %v4493 = vpop.permute.xlu0 %4492
    %v4494 = vsel %vm2300, %v4450, 0
    %v4496 = vsel %vm2300, %v4493, 0
    %4498 = vmatprep.subr.mxu0 0.0
    %4499 = vmatpush1.xpose.msra.mxu0 %v4496
    %4500 = vmatprep.subr.mxu0 0.0
    %4501 = vmatpush1.xpose.msra.mxu0 0.0
    %4502 = vmatprep.subr.mxu0 0.0
    %4503 = vmatpush1.xpose.msra.mxu0 0.0
    %4504 = vmatprep.subr.mxu0 0.0
    %4505 = vmatpush1.xpose.msra.mxu0 0.0
    %4506 = vmatprep.subr.mxu0 0.0
    %4507 = vmatpush1.xpose.msra.mxu0 0.0
    %4508 = vmatprep.subr.mxu0 0.0
    %4509 = vmatpush1.xpose.msra.mxu0 0.0
    %4510 = vmatprep.subr.mxu0 0.0
    %4511 = vmatpush1.xpose.msra.mxu0 0.0
    %4512 = vmatprep.subr.mxu0 0.0
    %4513 = vmatpush1.xpose.msra.mxu0 0.0
    %4514 = vmatprep.subr.mxu0 0.0
    %4515 = vmatpush1.xpose.msra.mxu0 0.0
    %4516 = vmatprep.subr.mxu0 0.0
    %4517 = vmatpush1.xpose.msra.mxu0 0.0
    %4518 = vmatprep.subr.mxu0 0.0
    %4519 = vmatpush1.xpose.msra.mxu0 0.0
    %4520 = vmatprep.subr.mxu0 0.0
    %4521 = vmatpush1.xpose.msra.mxu0 0.0
    %4522 = vmatprep.subr.mxu0 0.0
    %4523 = vmatpush1.xpose.msra.mxu0 0.0
    %4524 = vmatprep.subr.mxu0 0.0
    %4525 = vmatpush1.xpose.msra.mxu0 0.0
    %4526 = vmatprep.subr.mxu0 0.0
    %4527 = vmatpush1.xpose.msra.mxu0 0.0
    %4528 = vmatprep.subr.mxu0 0.0
    %4529 = vmatpush1.xpose.msra.mxu0 0.0
    %4530 = vmatprep.subr.mxu0 0.0
    %4531 = vmatpush1.xpose.msra.mxu0 0.0
    %4532 = vmatprep.subr.mxu0 0.0
    %4533 = vmatpush1.xpose.msra.mxu0 0.0
    %4534 = vmatprep.subr.mxu0 0.0
    %4535 = vmatpush1.xpose.msra.mxu0 0.0
    %4536 = vmatprep.subr.mxu0 0.0
    %4537 = vmatpush1.xpose.msra.mxu0 0.0
    %4538 = vmatprep.subr.mxu0 0.0
    %4539 = vmatpush1.xpose.msra.mxu0 0.0
    %4540 = vmatprep.subr.mxu0 0.0
    %4541 = vmatpush1.xpose.msra.mxu0 0.0
    %4542 = vmatprep.subr.mxu0 0.0
    %4543 = vmatpush1.xpose.msra.mxu0 0.0
    %4544 = vmatprep.subr.mxu0 0.0
    %4545 = vmatpush1.xpose.msra.mxu0 0.0
    %4546 = vmatprep.subr.mxu0 0.0
    %4547 = vmatpush1.xpose.msra.mxu0 0.0
    %4548 = vmatprep.subr.mxu0 0.0
    %4549 = vmatpush1.xpose.msra.mxu0 0.0
    %4550 = vmatprep.subr.mxu0 0.0
    %4551 = vmatpush1.xpose.msra.mxu0 0.0
    %4552 = vmatprep.subr.mxu0 0.0
    %4553 = vmatpush1.xpose.msra.mxu0 0.0
    %4554 = vmatprep.subr.mxu0 0.0
    %4555 = vmatpush1.xpose.msra.mxu0 0.0
    %4556 = vmatprep.subr.mxu0 0.0
    %4557 = vmatpush1.xpose.msra.mxu0 0.0
    %4558 = vmatprep.subr.mxu0 0.0
    %4559 = vmatpush1.xpose.msra.mxu0 0.0
    %4560 = vmatprep.subr.mxu0 0.0
    %4561 = vmatpush1.xpose.msra.mxu0 0.0
    %4562 = vmatprep.mubr.f32.mxu0 0.0
    %4563 = vmatmul.mubr.f32.gmra.mrb[0].mxu0 %v4494
    %v4564 = vpop.f32.mrb[0].mxu0
    %v4565 = vadd.f32 0.0, %v4564
    %v4566 = vpop.f32.mrb[0].mxu0
    %4567 = vdwg.mxu0
    %4568 = vrot.lane.b32.xlu0 %v4456, 80
    %v4569 = vpop.permute.xlu0 %4568
    %v4570 = vsel %vm2300, %v4456, 0
    %v4572 = vsel %vm2300, %v4569, 0
    %4574 = vmatprep.subr.mxu0 0.0
    %4575 = vmatpush1.xpose.msra.mxu0 %v4572
    %4576 = vmatprep.subr.mxu0 0.0
    %4577 = vmatpush1.xpose.msra.mxu0 0.0
    %4578 = vmatprep.subr.mxu0 0.0
    %4579 = vmatpush1.xpose.msra.mxu0 0.0
    %4580 = vmatprep.subr.mxu0 0.0
    %4581 = vmatpush1.xpose.msra.mxu0 0.0
    %4582 = vmatprep.subr.mxu0 0.0
    %4583 = vmatpush1.xpose.msra.mxu0 0.0
    %4584 = vmatprep.subr.mxu0 0.0
    %4585 = vmatpush1.xpose.msra.mxu0 0.0
    %4586 = vmatprep.subr.mxu0 0.0
    %4587 = vmatpush1.xpose.msra.mxu0 0.0
    %4588 = vmatprep.subr.mxu0 0.0
    %4589 = vmatpush1.xpose.msra.mxu0 0.0
    %4590 = vmatprep.subr.mxu0 0.0
    %4591 = vmatpush1.xpose.msra.mxu0 0.0
    %4592 = vmatprep.subr.mxu0 0.0
    %4593 = vmatpush1.xpose.msra.mxu0 0.0
    %4594 = vmatprep.subr.mxu0 0.0
    %4595 = vmatpush1.xpose.msra.mxu0 0.0
    %4596 = vmatprep.subr.mxu0 0.0
    %4597 = vmatpush1.xpose.msra.mxu0 0.0
    %4598 = vmatprep.subr.mxu0 0.0
    %4599 = vmatpush1.xpose.msra.mxu0 0.0
    %4600 = vmatprep.subr.mxu0 0.0
    %4601 = vmatpush1.xpose.msra.mxu0 0.0
    %4602 = vmatprep.subr.mxu0 0.0
    %4603 = vmatpush1.xpose.msra.mxu0 0.0
    %4604 = vmatprep.subr.mxu0 0.0
    %4605 = vmatpush1.xpose.msra.mxu0 0.0
    %4606 = vmatprep.subr.mxu0 0.0
    %4607 = vmatpush1.xpose.msra.mxu0 0.0
    %4608 = vmatprep.subr.mxu0 0.0
    %4609 = vmatpush1.xpose.msra.mxu0 0.0
    %4610 = vmatprep.subr.mxu0 0.0
    %4611 = vmatpush1.xpose.msra.mxu0 0.0
    %4612 = vmatprep.subr.mxu0 0.0
    %4613 = vmatpush1.xpose.msra.mxu0 0.0
    %4614 = vmatprep.subr.mxu0 0.0
    %4615 = vmatpush1.xpose.msra.mxu0 0.0
    %4616 = vmatprep.subr.mxu0 0.0
    %4617 = vmatpush1.xpose.msra.mxu0 0.0
    %4618 = vmatprep.subr.mxu0 0.0
    %4619 = vmatpush1.xpose.msra.mxu0 0.0
    %4620 = vmatprep.subr.mxu0 0.0
    %4621 = vmatpush1.xpose.msra.mxu0 0.0
    %4622 = vmatprep.subr.mxu0 0.0
    %4623 = vmatpush1.xpose.msra.mxu0 0.0
    %4624 = vmatprep.subr.mxu0 0.0
    %4625 = vmatpush1.xpose.msra.mxu0 0.0
    %4626 = vmatprep.subr.mxu0 0.0
    %4627 = vmatpush1.xpose.msra.mxu0 0.0
    %4628 = vmatprep.subr.mxu0 0.0
    %4629 = vmatpush1.xpose.msra.mxu0 0.0
    %4630 = vmatprep.subr.mxu0 0.0
    %4631 = vmatpush1.xpose.msra.mxu0 0.0
    %4632 = vmatprep.subr.mxu0 0.0
    %4633 = vmatpush1.xpose.msra.mxu0 0.0
    %4634 = vmatprep.subr.mxu0 0.0
    %4635 = vmatpush1.xpose.msra.mxu0 0.0
    %4636 = vmatprep.subr.mxu0 0.0
    %4637 = vmatpush1.xpose.msra.mxu0 0.0
    %4638 = vmatprep.mubr.f32.mxu0 0.0
    %4639 = vmatmul.mubr.f32.gmra.mrb[0].mxu0 %v4570
    %v4640 = vpop.f32.mrb[0].mxu0
    %v4641 = vadd.f32 0.0, %v4640
    %v4642 = vpop.f32.mrb[0].mxu0
    %4643 = vdwg.mxu0
    %4644 = vrot.lane.b32.xlu0 %v4463, 80
    %v4645 = vpop.permute.xlu0 %4644
    %v4646 = vsel %vm2300, %v4463, 0
    %v4648 = vsel %vm2300, %v4645, 0
    %4650 = vmatprep.subr.mxu0 0.0
    %4651 = vmatpush1.xpose.msra.mxu0 %v4648
    %4652 = vmatprep.subr.mxu0 0.0
    %4653 = vmatpush1.xpose.msra.mxu0 0.0
    %4654 = vmatprep.subr.mxu0 0.0
    %4655 = vmatpush1.xpose.msra.mxu0 0.0
    %4656 = vmatprep.subr.mxu0 0.0
    %4657 = vmatpush1.xpose.msra.mxu0 0.0
    %4658 = vmatprep.subr.mxu0 0.0
    %4659 = vmatpush1.xpose.msra.mxu0 0.0
    %4660 = vmatprep.subr.mxu0 0.0
    %4661 = vmatpush1.xpose.msra.mxu0 0.0
    %4662 = vmatprep.subr.mxu0 0.0
    %4663 = vmatpush1.xpose.msra.mxu0 0.0
    %4664 = vmatprep.subr.mxu0 0.0
    %4665 = vmatpush1.xpose.msra.mxu0 0.0
    %4666 = vmatprep.subr.mxu0 0.0
    %4667 = vmatpush1.xpose.msra.mxu0 0.0
    %4668 = vmatprep.subr.mxu0 0.0
    %4669 = vmatpush1.xpose.msra.mxu0 0.0
    %4670 = vmatprep.subr.mxu0 0.0
    %4671 = vmatpush1.xpose.msra.mxu0 0.0
    %4672 = vmatprep.subr.mxu0 0.0
    %4673 = vmatpush1.xpose.msra.mxu0 0.0
    %4674 = vmatprep.subr.mxu0 0.0
    %4675 = vmatpush1.xpose.msra.mxu0 0.0
    %4676 = vmatprep.subr.mxu0 0.0
    %4677 = vmatpush1.xpose.msra.mxu0 0.0
    %4678 = vmatprep.subr.mxu0 0.0
    %4679 = vmatpush1.xpose.msra.mxu0 0.0
    %4680 = vmatprep.subr.mxu0 0.0
    %4681 = vmatpush1.xpose.msra.mxu0 0.0
    %4682 = vmatprep.subr.mxu0 0.0
    %4683 = vmatpush1.xpose.msra.mxu0 0.0
    %4684 = vmatprep.subr.mxu0 0.0
    %4685 = vmatpush1.xpose.msra.mxu0 0.0
    %4686 = vmatprep.subr.mxu0 0.0
    %4687 = vmatpush1.xpose.msra.mxu0 0.0
    %4688 = vmatprep.subr.mxu0 0.0
    %4689 = vmatpush1.xpose.msra.mxu0 0.0
    %4690 = vmatprep.subr.mxu0 0.0
    %4691 = vmatpush1.xpose.msra.mxu0 0.0
    %4692 = vmatprep.subr.mxu0 0.0
    %4693 = vmatpush1.xpose.msra.mxu0 0.0
    %4694 = vmatprep.subr.mxu0 0.0
    %4695 = vmatpush1.xpose.msra.mxu0 0.0
    %4696 = vmatprep.subr.mxu0 0.0
    %4697 = vmatpush1.xpose.msra.mxu0 0.0
    %4698 = vmatprep.subr.mxu0 0.0
    %4699 = vmatpush1.xpose.msra.mxu0 0.0
    %4700 = vmatprep.subr.mxu0 0.0
    %4701 = vmatpush1.xpose.msra.mxu0 0.0
    %4702 = vmatprep.subr.mxu0 0.0
    %4703 = vmatpush1.xpose.msra.mxu0 0.0
    %4704 = vmatprep.subr.mxu0 0.0
    %4705 = vmatpush1.xpose.msra.mxu0 0.0
    %4706 = vmatprep.subr.mxu0 0.0
    %4707 = vmatpush1.xpose.msra.mxu0 0.0
    %4708 = vmatprep.subr.mxu0 0.0
    %4709 = vmatpush1.xpose.msra.mxu0 0.0
    %4710 = vmatprep.subr.mxu0 0.0
    %4711 = vmatpush1.xpose.msra.mxu0 0.0
    %4712 = vmatprep.subr.mxu0 0.0
    %4713 = vmatpush1.xpose.msra.mxu0 0.0
    %4714 = vmatprep.mubr.f32.mxu0 0.0
    %4715 = vmatmul.mubr.f32.gmra.mrb[0].mxu0 %v4646
    %v4716 = vpop.f32.mrb[0].mxu0
    %v4717 = vadd.f32 0.0, %v4716
    %v4718 = vpop.f32.mrb[0].mxu0
    %4719 = vdwg.mxu0
    %4720 = vrot.lane.b32.xlu0 %v4465, 80
    %v4721 = vpop.permute.xlu0 %4720
    %v4722 = vsel %vm2300, %v4465, 0
    %v4724 = vsel %vm2300, %v4721, 0
    %4726 = vmatprep.subr.mxu0 0.0
    %4727 = vmatpush1.xpose.msra.mxu0 %v4724
    %4728 = vmatprep.subr.mxu0 0.0
    %4729 = vmatpush1.xpose.msra.mxu0 0.0
    %4730 = vmatprep.subr.mxu0 0.0
    %4731 = vmatpush1.xpose.msra.mxu0 0.0
    %4732 = vmatprep.subr.mxu0 0.0
    %4733 = vmatpush1.xpose.msra.mxu0 0.0
    %4734 = vmatprep.subr.mxu0 0.0
    %4735 = vmatpush1.xpose.msra.mxu0 0.0
    %4736 = vmatprep.subr.mxu0 0.0
    %4737 = vmatpush1.xpose.msra.mxu0 0.0
    %4738 = vmatprep.subr.mxu0 0.0
    %4739 = vmatpush1.xpose.msra.mxu0 0.0
    %4740 = vmatprep.subr.mxu0 0.0
    %4741 = vmatpush1.xpose.msra.mxu0 0.0
    %4742 = vmatprep.subr.mxu0 0.0
    %4743 = vmatpush1.xpose.msra.mxu0 0.0
    %4744 = vmatprep.subr.mxu0 0.0
    %4745 = vmatpush1.xpose.msra.mxu0 0.0
    %4746 = vmatprep.subr.mxu0 0.0
    %4747 = vmatpush1.xpose.msra.mxu0 0.0
    %4748 = vmatprep.subr.mxu0 0.0
    %4749 = vmatpush1.xpose.msra.mxu0 0.0
    %4750 = vmatprep.subr.mxu0 0.0
    %4751 = vmatpush1.xpose.msra.mxu0 0.0
    %4752 = vmatprep.subr.mxu0 0.0
    %4753 = vmatpush1.xpose.msra.mxu0 0.0
    %4754 = vmatprep.subr.mxu0 0.0
    %4755 = vmatpush1.xpose.msra.mxu0 0.0
    %4756 = vmatprep.subr.mxu0 0.0
    %4757 = vmatpush1.xpose.msra.mxu0 0.0
    %4758 = vmatprep.subr.mxu0 0.0
    %4759 = vmatpush1.xpose.msra.mxu0 0.0
    %4760 = vmatprep.subr.mxu0 0.0
    %4761 = vmatpush1.xpose.msra.mxu0 0.0
    %4762 = vmatprep.subr.mxu0 0.0
    %4763 = vmatpush1.xpose.msra.mxu0 0.0
    %4764 = vmatprep.subr.mxu0 0.0
    %4765 = vmatpush1.xpose.msra.mxu0 0.0
    %4766 = vmatprep.subr.mxu0 0.0
    %4767 = vmatpush1.xpose.msra.mxu0 0.0
    %4768 = vmatprep.subr.mxu0 0.0
    %4769 = vmatpush1.xpose.msra.mxu0 0.0
    %4770 = vmatprep.subr.mxu0 0.0
    %4771 = vmatpush1.xpose.msra.mxu0 0.0
    %4772 = vmatprep.subr.mxu0 0.0
    %4773 = vmatpush1.xpose.msra.mxu0 0.0
    %4774 = vmatprep.subr.mxu0 0.0
    %4775 = vmatpush1.xpose.msra.mxu0 0.0
    %4776 = vmatprep.subr.mxu0 0.0
    %4777 = vmatpush1.xpose.msra.mxu0 0.0
    %4778 = vmatprep.subr.mxu0 0.0
    %4779 = vmatpush1.xpose.msra.mxu0 0.0
    %4780 = vmatprep.subr.mxu0 0.0
    %4781 = vmatpush1.xpose.msra.mxu0 0.0
    %4782 = vmatprep.subr.mxu0 0.0
    %4783 = vmatpush1.xpose.msra.mxu0 0.0
    %4784 = vmatprep.subr.mxu0 0.0
    %4785 = vmatpush1.xpose.msra.mxu0 0.0
    %4786 = vmatprep.subr.mxu0 0.0
    %4787 = vmatpush1.xpose.msra.mxu0 0.0
    %4788 = vmatprep.subr.mxu0 0.0
    %4789 = vmatpush1.xpose.msra.mxu0 0.0
    %4790 = vmatprep.mubr.f32.mxu0 0.0
    %4791 = vmatmul.mubr.f32.gmra.mrb[0].mxu0 %v4722
    %v4792 = vpop.f32.mrb[0].mxu0
    %v4793 = vadd.f32 0.0, %v4792
    %v4794 = vpop.f32.mrb[0].mxu0
    %4795 = vdwg.mxu0
    %4796 = vrot.lane.b32.xlu0 %v4467, 80
    %v4797 = vpop.permute.xlu0 %4796
    %v4798 = vsel %vm2300, %v4467, 0
    %v4800 = vsel %vm2300, %v4797, 0
    %4802 = vmatprep.subr.mxu0 0.0
    %4803 = vmatpush1.xpose.msra.mxu0 %v4800
    %4804 = vmatprep.subr.mxu0 0.0
    %4805 = vmatpush1.xpose.msra.mxu0 0.0
    %4806 = vmatprep.subr.mxu0 0.0
    %4807 = vmatpush1.xpose.msra.mxu0 0.0
    %4808 = vmatprep.subr.mxu0 0.0
    %4809 = vmatpush1.xpose.msra.mxu0 0.0
    %4810 = vmatprep.subr.mxu0 0.0
    %4811 = vmatpush1.xpose.msra.mxu0 0.0
    %4812 = vmatprep.subr.mxu0 0.0
    %4813 = vmatpush1.xpose.msra.mxu0 0.0
    %4814 = vmatprep.subr.mxu0 0.0
    %4815 = vmatpush1.xpose.msra.mxu0 0.0
    %4816 = vmatprep.subr.mxu0 0.0
    %4817 = vmatpush1.xpose.msra.mxu0 0.0
    %4818 = vmatprep.subr.mxu0 0.0
    %4819 = vmatpush1.xpose.msra.mxu0 0.0
    %4820 = vmatprep.subr.mxu0 0.0
    %4821 = vmatpush1.xpose.msra.mxu0 0.0
    %4822 = vmatprep.subr.mxu0 0.0
    %4823 = vmatpush1.xpose.msra.mxu0 0.0
    %4824 = vmatprep.subr.mxu0 0.0
    %4825 = vmatpush1.xpose.msra.mxu0 0.0
    %4826 = vmatprep.subr.mxu0 0.0
    %4827 = vmatpush1.xpose.msra.mxu0 0.0
    %4828 = vmatprep.subr.mxu0 0.0
    %4829 = vmatpush1.xpose.msra.mxu0 0.0
    %4830 = vmatprep.subr.mxu0 0.0
    %4831 = vmatpush1.xpose.msra.mxu0 0.0
    %4832 = vmatprep.subr.mxu0 0.0
    %4833 = vmatpush1.xpose.msra.mxu0 0.0
    %4834 = vmatprep.subr.mxu0 0.0
    %4835 = vmatpush1.xpose.msra.mxu0 0.0
    %4836 = vmatprep.subr.mxu0 0.0
    %4837 = vmatpush1.xpose.msra.mxu0 0.0
    %4838 = vmatprep.subr.mxu0 0.0
    %4839 = vmatpush1.xpose.msra.mxu0 0.0
    %4840 = vmatprep.subr.mxu0 0.0
    %4841 = vmatpush1.xpose.msra.mxu0 0.0
    %4842 = vmatprep.subr.mxu0 0.0
    %4843 = vmatpush1.xpose.msra.mxu0 0.0
    %4844 = vmatprep.subr.mxu0 0.0
    %4845 = vmatpush1.xpose.msra.mxu0 0.0
    %4846 = vmatprep.subr.mxu0 0.0
    %4847 = vmatpush1.xpose.msra.mxu0 0.0
    %4848 = vmatprep.subr.mxu0 0.0
    %4849 = vmatpush1.xpose.msra.mxu0 0.0
    %4850 = vmatprep.subr.mxu0 0.0
    %4851 = vmatpush1.xpose.msra.mxu0 0.0
    %4852 = vmatprep.subr.mxu0 0.0
    %4853 = vmatpush1.xpose.msra.mxu0 0.0
    %4854 = vmatprep.subr.mxu0 0.0
    %4855 = vmatpush1.xpose.msra.mxu0 0.0
    %4856 = vmatprep.subr.mxu0 0.0
    %4857 = vmatpush1.xpose.msra.mxu0 0.0
    %4858 = vmatprep.subr.mxu0 0.0
    %4859 = vmatpush1.xpose.msra.mxu0 0.0
    %4860 = vmatprep.subr.mxu0 0.0
    %4861 = vmatpush1.xpose.msra.mxu0 0.0
    %4862 = vmatprep.subr.mxu0 0.0
    %4863 = vmatpush1.xpose.msra.mxu0 0.0
    %4864 = vmatprep.subr.mxu0 0.0
    %4865 = vmatpush1.xpose.msra.mxu0 0.0
    %4866 = vmatprep.mubr.f32.mxu0 0.0
    %4867 = vmatmul.mubr.f32.gmra.mrb[0].mxu0 %v4798
    %v4868 = vpop.f32.mrb[0].mxu0
    %v4869 = vadd.f32 0.0, %v4868
    %v4870 = vpop.f32.mrb[0].mxu0
    %4871 = vdwg.mxu0
    %4872 = vrot.lane.b32.xlu0 %v4469, 80
    %v4873 = vpop.permute.xlu0 %4872
    %v4874 = vsel %vm2300, %v4469, 0
    %v4876 = vsel %vm2300, %v4873, 0
    %4878 = vmatprep.subr.mxu0 0.0
    %4879 = vmatpush1.xpose.msra.mxu0 %v4876
    %4880 = vmatprep.subr.mxu0 0.0
    %4881 = vmatpush1.xpose.msra.mxu0 0.0
    %4882 = vmatprep.subr.mxu0 0.0
    %4883 = vmatpush1.xpose.msra.mxu0 0.0
    %4884 = vmatprep.subr.mxu0 0.0
    %4885 = vmatpush1.xpose.msra.mxu0 0.0
    %4886 = vmatprep.subr.mxu0 0.0
    %4887 = vmatpush1.xpose.msra.mxu0 0.0
    %4888 = vmatprep.subr.mxu0 0.0
    %4889 = vmatpush1.xpose.msra.mxu0 0.0
    %4890 = vmatprep.subr.mxu0 0.0
    %4891 = vmatpush1.xpose.msra.mxu0 0.0
    %4892 = vmatprep.subr.mxu0 0.0
    %4893 = vmatpush1.xpose.msra.mxu0 0.0
    %4894 = vmatprep.subr.mxu0 0.0
    %4895 = vmatpush1.xpose.msra.mxu0 0.0
    %4896 = vmatprep.subr.mxu0 0.0
    %4897 = vmatpush1.xpose.msra.mxu0 0.0
    %4898 = vmatprep.subr.mxu0 0.0
    %4899 = vmatpush1.xpose.msra.mxu0 0.0
    %4900 = vmatprep.subr.mxu0 0.0
    %4901 = vmatpush1.xpose.msra.mxu0 0.0
    %4902 = vmatprep.subr.mxu0 0.0
    %4903 = vmatpush1.xpose.msra.mxu0 0.0
    %4904 = vmatprep.subr.mxu0 0.0
    %4905 = vmatpush1.xpose.msra.mxu0 0.0
    %4906 = vmatprep.subr.mxu0 0.0
    %4907 = vmatpush1.xpose.msra.mxu0 0.0
    %4908 = vmatprep.subr.mxu0 0.0
    %4909 = vmatpush1.xpose.msra.mxu0 0.0
    %4910 = vmatprep.subr.mxu0 0.0
    %4911 = vmatpush1.xpose.msra.mxu0 0.0
    %4912 = vmatprep.subr.mxu0 0.0
    %4913 = vmatpush1.xpose.msra.mxu0 0.0
    %4914 = vmatprep.subr.mxu0 0.0
    %4915 = vmatpush1.xpose.msra.mxu0 0.0
    %4916 = vmatprep.subr.mxu0 0.0
    %4917 = vmatpush1.xpose.msra.mxu0 0.0
    %4918 = vmatprep.subr.mxu0 0.0
    %4919 = vmatpush1.xpose.msra.mxu0 0.0
    %4920 = vmatprep.subr.mxu0 0.0
    %4921 = vmatpush1.xpose.msra.mxu0 0.0
    %4922 = vmatprep.subr.mxu0 0.0
    %4923 = vmatpush1.xpose.msra.mxu0 0.0
    %4924 = vmatprep.subr.mxu0 0.0
    %4925 = vmatpush1.xpose.msra.mxu0 0.0
    %4926 = vmatprep.subr.mxu0 0.0
    %4927 = vmatpush1.xpose.msra.mxu0 0.0
    %4928 = vmatprep.subr.mxu0 0.0
    %4929 = vmatpush1.xpose.msra.mxu0 0.0
    %4930 = vmatprep.subr.mxu0 0.0
    %4931 = vmatpush1.xpose.msra.mxu0 0.0
    %4932 = vmatprep.subr.mxu0 0.0
    %4933 = vmatpush1.xpose.msra.mxu0 0.0
    %4934 = vmatprep.subr.mxu0 0.0
    %4935 = vmatpush1.xpose.msra.mxu0 0.0
    %4936 = vmatprep.subr.mxu0 0.0
    %4937 = vmatpush1.xpose.msra.mxu0 0.0
    %4938 = vmatprep.subr.mxu0 0.0
    %4939 = vmatpush1.xpose.msra.mxu0 0.0
    %4940 = vmatprep.subr.mxu0 0.0
    %4941 = vmatpush1.xpose.msra.mxu0 0.0
    %4942 = vmatprep.mubr.f32.mxu0 0.0
    %4943 = vmatmul.mubr.f32.gmra.mrb[0].mxu0 %v4874
    %v4944 = vpop.f32.mrb[0].mxu0
    %v4945 = vadd.f32 0.0, %v4944
    %v4946 = vpop.f32.mrb[0].mxu0
    %4947 = vdwg.mxu0
    %4948 = vrot.lane.b32.xlu0 %v4471, 80
    %v4949 = vpop.permute.xlu0 %4948
    %v4950 = vsel %vm2300, %v4471, 0
    %v4952 = vsel %vm2300, %v4949, 0
    %4954 = vmatprep.subr.mxu0 0.0
    %4955 = vmatpush1.xpose.msra.mxu0 %v4952
    %4956 = vmatprep.subr.mxu0 0.0
    %4957 = vmatpush1.xpose.msra.mxu0 0.0
    %4958 = vmatprep.subr.mxu0 0.0
    %4959 = vmatpush1.xpose.msra.mxu0 0.0
    %4960 = vmatprep.subr.mxu0 0.0
    %4961 = vmatpush1.xpose.msra.mxu0 0.0
    %4962 = vmatprep.subr.mxu0 0.0
    %4963 = vmatpush1.xpose.msra.mxu0 0.0
    %4964 = vmatprep.subr.mxu0 0.0
    %4965 = vmatpush1.xpose.msra.mxu0 0.0
    %4966 = vmatprep.subr.mxu0 0.0
    %4967 = vmatpush1.xpose.msra.mxu0 0.0
    %4968 = vmatprep.subr.mxu0 0.0
    %4969 = vmatpush1.xpose.msra.mxu0 0.0
    %4970 = vmatprep.subr.mxu0 0.0
    %4971 = vmatpush1.xpose.msra.mxu0 0.0
    %4972 = vmatprep.subr.mxu0 0.0
    %4973 = vmatpush1.xpose.msra.mxu0 0.0
    %4974 = vmatprep.subr.mxu0 0.0
    %4975 = vmatpush1.xpose.msra.mxu0 0.0
    %4976 = vmatprep.subr.mxu0 0.0
    %4977 = vmatpush1.xpose.msra.mxu0 0.0
    %4978 = vmatprep.subr.mxu0 0.0
    %4979 = vmatpush1.xpose.msra.mxu0 0.0
    %4980 = vmatprep.subr.mxu0 0.0
    %4981 = vmatpush1.xpose.msra.mxu0 0.0
    %4982 = vmatprep.subr.mxu0 0.0
    %4983 = vmatpush1.xpose.msra.mxu0 0.0
    %4984 = vmatprep.subr.mxu0 0.0
    %4985 = vmatpush1.xpose.msra.mxu0 0.0
    %4986 = vmatprep.subr.mxu0 0.0
    %4987 = vmatpush1.xpose.msra.mxu0 0.0
    %4988 = vmatprep.subr.mxu0 0.0
    %4989 = vmatpush1.xpose.msra.mxu0 0.0
    %4990 = vmatprep.subr.mxu0 0.0
    %4991 = vmatpush1.xpose.msra.mxu0 0.0
    %4992 = vmatprep.subr.mxu0 0.0
    %4993 = vmatpush1.xpose.msra.mxu0 0.0
    %4994 = vmatprep.subr.mxu0 0.0
    %4995 = vmatpush1.xpose.msra.mxu0 0.0
    %4996 = vmatprep.subr.mxu0 0.0
    %4997 = vmatpush1.xpose.msra.mxu0 0.0
    %4998 = vmatprep.subr.mxu0 0.0
    %4999 = vmatpush1.xpose.msra.mxu0 0.0
    %5000 = vmatprep.subr.mxu0 0.0
    %5001 = vmatpush1.xpose.msra.mxu0 0.0
    %5002 = vmatprep.subr.mxu0 0.0
    %5003 = vmatpush1.xpose.msra.mxu0 0.0
    %5004 = vmatprep.subr.mxu0 0.0
    %5005 = vmatpush1.xpose.msra.mxu0 0.0
    %5006 = vmatprep.subr.mxu0 0.0
    %5007 = vmatpush1.xpose.msra.mxu0 0.0
    %5008 = vmatprep.subr.mxu0 0.0
    %5009 = vmatpush1.xpose.msra.mxu0 0.0
    %5010 = vmatprep.subr.mxu0 0.0
    %5011 = vmatpush1.xpose.msra.mxu0 0.0
    %5012 = vmatprep.subr.mxu0 0.0
    %5013 = vmatpush1.xpose.msra.mxu0 0.0
    %5014 = vmatprep.subr.mxu0 0.0
    %5015 = vmatpush1.xpose.msra.mxu0 0.0
    %5016 = vmatprep.subr.mxu0 0.0
    %5017 = vmatpush1.xpose.msra.mxu0 0.0
    %5018 = vmatprep.mubr.f32.mxu0 0.0
    %5019 = vmatmul.mubr.f32.gmra.mrb[0].mxu0 %v4950
    %v5020 = vpop.f32.mrb[0].mxu0
    %v5021 = vadd.f32 0.0, %v5020
    %v5022 = vpop.f32.mrb[0].mxu0
    %5023 = vdwg.mxu0
    %5024 = vrot.lane.b32.xlu0 %v4473, 80
    %v5025 = vpop.permute.xlu0 %5024
    %v5026 = vsel %vm2300, %v4473, 0
    %v5028 = vsel %vm2300, %v5025, 0
    %5030 = vmatprep.subr.mxu0 0.0
    %5031 = vmatpush1.xpose.msra.mxu0 %v5028
    %5032 = vmatprep.subr.mxu0 0.0
    %5033 = vmatpush1.xpose.msra.mxu0 0.0
    %5034 = vmatprep.subr.mxu0 0.0
    %5035 = vmatpush1.xpose.msra.mxu0 0.0
    %5036 = vmatprep.subr.mxu0 0.0
    %5037 = vmatpush1.xpose.msra.mxu0 0.0
    %5038 = vmatprep.subr.mxu0 0.0
    %5039 = vmatpush1.xpose.msra.mxu0 0.0
    %5040 = vmatprep.subr.mxu0 0.0
    %5041 = vmatpush1.xpose.msra.mxu0 0.0
    %5042 = vmatprep.subr.mxu0 0.0
    %5043 = vmatpush1.xpose.msra.mxu0 0.0
    %5044 = vmatprep.subr.mxu0 0.0
    %5045 = vmatpush1.xpose.msra.mxu0 0.0
    %5046 = vmatprep.subr.mxu0 0.0
    %5047 = vmatpush1.xpose.msra.mxu0 0.0
    %5048 = vmatprep.subr.mxu0 0.0
    %5049 = vmatpush1.xpose.msra.mxu0 0.0
    %5050 = vmatprep.subr.mxu0 0.0
    %5051 = vmatpush1.xpose.msra.mxu0 0.0
    %5052 = vmatprep.subr.mxu0 0.0
    %5053 = vmatpush1.xpose.msra.mxu0 0.0
    %5054 = vmatprep.subr.mxu0 0.0
    %5055 = vmatpush1.xpose.msra.mxu0 0.0
    %5056 = vmatprep.subr.mxu0 0.0
    %5057 = vmatpush1.xpose.msra.mxu0 0.0
    %5058 = vmatprep.subr.mxu0 0.0
    %5059 = vmatpush1.xpose.msra.mxu0 0.0
    %5060 = vmatprep.subr.mxu0 0.0
    %5061 = vmatpush1.xpose.msra.mxu0 0.0
    %5062 = vmatprep.subr.mxu0 0.0
    %5063 = vmatpush1.xpose.msra.mxu0 0.0
    %5064 = vmatprep.subr.mxu0 0.0
    %5065 = vmatpush1.xpose.msra.mxu0 0.0
    %5066 = vmatprep.subr.mxu0 0.0
    %5067 = vmatpush1.xpose.msra.mxu0 0.0
    %5068 = vmatprep.subr.mxu0 0.0
    %5069 = vmatpush1.xpose.msra.mxu0 0.0
    %5070 = vmatprep.subr.mxu0 0.0
    %5071 = vmatpush1.xpose.msra.mxu0 0.0
    %5072 = vmatprep.subr.mxu0 0.0
    %5073 = vmatpush1.xpose.msra.mxu0 0.0
    %5074 = vmatprep.subr.mxu0 0.0
    %5075 = vmatpush1.xpose.msra.mxu0 0.0
    %5076 = vmatprep.subr.mxu0 0.0
    %5077 = vmatpush1.xpose.msra.mxu0 0.0
    %5078 = vmatprep.subr.mxu0 0.0
    %5079 = vmatpush1.xpose.msra.mxu0 0.0
    %5080 = vmatprep.subr.mxu0 0.0
    %5081 = vmatpush1.xpose.msra.mxu0 0.0
    %5082 = vmatprep.subr.mxu0 0.0
    %5083 = vmatpush1.xpose.msra.mxu0 0.0
    %5084 = vmatprep.subr.mxu0 0.0
    %5085 = vmatpush1.xpose.msra.mxu0 0.0
    %5086 = vmatprep.subr.mxu0 0.0
    %5087 = vmatpush1.xpose.msra.mxu0 0.0
    %5088 = vmatprep.subr.mxu0 0.0
    %5089 = vmatpush1.xpose.msra.mxu0 0.0
    %5090 = vmatprep.subr.mxu0 0.0
    %5091 = vmatpush1.xpose.msra.mxu0 0.0
    %5092 = vmatprep.subr.mxu0 0.0
    %5093 = vmatpush1.xpose.msra.mxu0 0.0
    %5094 = vmatprep.mubr.f32.mxu0 0.0
    %5095 = vmatmul.mubr.f32.gmra.mrb[0].mxu0 %v5026
    %v5096 = vpop.f32.mrb[0].mxu0
    %v5097 = vadd.f32 0.0, %v5096
    %v5098 = vpop.f32.mrb[0].mxu0
    %5099 = vdwg.mxu0
    %5100 = vrot.lane.b32.xlu0 %v4475, 80
    %v5101 = vpop.permute.xlu0 %5100
    %v5102 = vsel %vm2300, %v4475, 0
    %v5104 = vsel %vm2300, %v5101, 0
    %5106 = vmatprep.subr.mxu0 0.0
    %5107 = vmatpush1.xpose.msra.mxu0 %v5104
    %5108 = vmatprep.subr.mxu0 0.0
    %5109 = vmatpush1.xpose.msra.mxu0 0.0
    %5110 = vmatprep.subr.mxu0 0.0
    %5111 = vmatpush1.xpose.msra.mxu0 0.0
    %5112 = vmatprep.subr.mxu0 0.0
    %5113 = vmatpush1.xpose.msra.mxu0 0.0
    %5114 = vmatprep.subr.mxu0 0.0
    %5115 = vmatpush1.xpose.msra.mxu0 0.0
    %5116 = vmatprep.subr.mxu0 0.0
    %5117 = vmatpush1.xpose.msra.mxu0 0.0
    %5118 = vmatprep.subr.mxu0 0.0
    %5119 = vmatpush1.xpose.msra.mxu0 0.0
    %5120 = vmatprep.subr.mxu0 0.0
    %5121 = vmatpush1.xpose.msra.mxu0 0.0
    %5122 = vmatprep.subr.mxu0 0.0
    %5123 = vmatpush1.xpose.msra.mxu0 0.0
    %5124 = vmatprep.subr.mxu0 0.0
    %5125 = vmatpush1.xpose.msra.mxu0 0.0
    %5126 = vmatprep.subr.mxu0 0.0
    %5127 = vmatpush1.xpose.msra.mxu0 0.0
    %5128 = vmatprep.subr.mxu0 0.0
    %5129 = vmatpush1.xpose.msra.mxu0 0.0
    %5130 = vmatprep.subr.mxu0 0.0
    %5131 = vmatpush1.xpose.msra.mxu0 0.0
    %5132 = vmatprep.subr.mxu0 0.0
    %5133 = vmatpush1.xpose.msra.mxu0 0.0
    %5134 = vmatprep.subr.mxu0 0.0
    %5135 = vmatpush1.xpose.msra.mxu0 0.0
    %5136 = vmatprep.subr.mxu0 0.0
    %5137 = vmatpush1.xpose.msra.mxu0 0.0
    %5138 = vmatprep.subr.mxu0 0.0
    %5139 = vmatpush1.xpose.msra.mxu0 0.0
    %5140 = vmatprep.subr.mxu0 0.0
    %5141 = vmatpush1.xpose.msra.mxu0 0.0
    %5142 = vmatprep.subr.mxu0 0.0
    %5143 = vmatpush1.xpose.msra.mxu0 0.0
    %5144 = vmatprep.subr.mxu0 0.0
    %5145 = vmatpush1.xpose.msra.mxu0 0.0
    %5146 = vmatprep.subr.mxu0 0.0
    %5147 = vmatpush1.xpose.msra.mxu0 0.0
    %5148 = vmatprep.subr.mxu0 0.0
    %5149 = vmatpush1.xpose.msra.mxu0 0.0
    %5150 = vmatprep.subr.mxu0 0.0
    %5151 = vmatpush1.xpose.msra.mxu0 0.0
    %5152 = vmatprep.subr.mxu0 0.0
    %5153 = vmatpush1.xpose.msra.mxu0 0.0
    %5154 = vmatprep.subr.mxu0 0.0
    %5155 = vmatpush1.xpose.msra.mxu0 0.0
    %5156 = vmatprep.subr.mxu0 0.0
    %5157 = vmatpush1.xpose.msra.mxu0 0.0
    %5158 = vmatprep.subr.mxu0 0.0
    %5159 = vmatpush1.xpose.msra.mxu0 0.0
    %5160 = vmatprep.subr.mxu0 0.0
    %5161 = vmatpush1.xpose.msra.mxu0 0.0
    %5162 = vmatprep.subr.mxu0 0.0
    %5163 = vmatpush1.xpose.msra.mxu0 0.0
    %5164 = vmatprep.subr.mxu0 0.0
    %5165 = vmatpush1.xpose.msra.mxu0 0.0
    %5166 = vmatprep.subr.mxu0 0.0
    %5167 = vmatpush1.xpose.msra.mxu0 0.0
    %5168 = vmatprep.subr.mxu0 0.0
    %5169 = vmatpush1.xpose.msra.mxu0 0.0
    %5170 = vmatprep.mubr.f32.mxu0 0.0
    %5171 = vmatmul.mubr.f32.gmra.mrb[0].mxu0 %v5102
    %v5172 = vpop.f32.mrb[0].mxu0
    %v5173 = vadd.f32 0.0, %v5172
    %v5174 = vpop.f32.mrb[0].mxu0
    %5175 = vdwg.mxu0
    %5176 = vrot.lane.b32.xlu0 %v4477, 80
    %v5177 = vpop.permute.xlu0 %5176
    %v5178 = vsel %vm2300, %v4477, 0
    %v5180 = vsel %vm2300, %v5177, 0
    %5182 = vmatprep.subr.mxu0 0.0
    %5183 = vmatpush1.xpose.msra.mxu0 %v5180
    %5184 = vmatprep.subr.mxu0 0.0
    %5185 = vmatpush1.xpose.msra.mxu0 0.0
    %5186 = vmatprep.subr.mxu0 0.0
    %5187 = vmatpush1.xpose.msra.mxu0 0.0
    %5188 = vmatprep.subr.mxu0 0.0
    %5189 = vmatpush1.xpose.msra.mxu0 0.0
    %5190 = vmatprep.subr.mxu0 0.0
    %5191 = vmatpush1.xpose.msra.mxu0 0.0
    %5192 = vmatprep.subr.mxu0 0.0
    %5193 = vmatpush1.xpose.msra.mxu0 0.0
    %5194 = vmatprep.subr.mxu0 0.0
    %5195 = vmatpush1.xpose.msra.mxu0 0.0
    %5196 = vmatprep.subr.mxu0 0.0
    %5197 = vmatpush1.xpose.msra.mxu0 0.0
    %5198 = vmatprep.subr.mxu0 0.0
    %5199 = vmatpush1.xpose.msra.mxu0 0.0
    %5200 = vmatprep.subr.mxu0 0.0
    %5201 = vmatpush1.xpose.msra.mxu0 0.0
    %5202 = vmatprep.subr.mxu0 0.0
    %5203 = vmatpush1.xpose.msra.mxu0 0.0
    %5204 = vmatprep.subr.mxu0 0.0
    %5205 = vmatpush1.xpose.msra.mxu0 0.0
    %5206 = vmatprep.subr.mxu0 0.0
    %5207 = vmatpush1.xpose.msra.mxu0 0.0
    %5208 = vmatprep.subr.mxu0 0.0
    %5209 = vmatpush1.xpose.msra.mxu0 0.0
    %5210 = vmatprep.subr.mxu0 0.0
    %5211 = vmatpush1.xpose.msra.mxu0 0.0
    %5212 = vmatprep.subr.mxu0 0.0
    %5213 = vmatpush1.xpose.msra.mxu0 0.0
    %5214 = vmatprep.subr.mxu0 0.0
    %5215 = vmatpush1.xpose.msra.mxu0 0.0
    %5216 = vmatprep.subr.mxu0 0.0
    %5217 = vmatpush1.xpose.msra.mxu0 0.0
    %5218 = vmatprep.subr.mxu0 0.0
    %5219 = vmatpush1.xpose.msra.mxu0 0.0
    %5220 = vmatprep.subr.mxu0 0.0
    %5221 = vmatpush1.xpose.msra.mxu0 0.0
    %5222 = vmatprep.subr.mxu0 0.0
    %5223 = vmatpush1.xpose.msra.mxu0 0.0
    %5224 = vmatprep.subr.mxu0 0.0
    %5225 = vmatpush1.xpose.msra.mxu0 0.0
    %5226 = vmatprep.subr.mxu0 0.0
    %5227 = vmatpush1.xpose.msra.mxu0 0.0
    %5228 = vmatprep.subr.mxu0 0.0
    %5229 = vmatpush1.xpose.msra.mxu0 0.0
    %5230 = vmatprep.subr.mxu0 0.0
    %5231 = vmatpush1.xpose.msra.mxu0 0.0
    %5232 = vmatprep.subr.mxu0 0.0
    %5233 = vmatpush1.xpose.msra.mxu0 0.0
    %5234 = vmatprep.subr.mxu0 0.0
    %5235 = vmatpush1.xpose.msra.mxu0 0.0
    %5236 = vmatprep.subr.mxu0 0.0
    %5237 = vmatpush1.xpose.msra.mxu0 0.0
    %5238 = vmatprep.subr.mxu0 0.0
    %5239 = vmatpush1.xpose.msra.mxu0 0.0
    %5240 = vmatprep.subr.mxu0 0.0
    %5241 = vmatpush1.xpose.msra.mxu0 0.0
    %5242 = vmatprep.subr.mxu0 0.0
    %5243 = vmatpush1.xpose.msra.mxu0 0.0
    %5244 = vmatprep.subr.mxu0 0.0
    %5245 = vmatpush1.xpose.msra.mxu0 0.0
    %5246 = vmatprep.mubr.f32.mxu0 0.0
    %5247 = vmatmul.mubr.f32.gmra.mrb[0].mxu0 %v5178
    %v5248 = vpop.f32.mrb[0].mxu0
    %v5249 = vadd.f32 0.0, %v5248
    %v5250 = vpop.f32.mrb[0].mxu0
    %5251 = vdwg.mxu0
    %5252 = vrot.lane.b32.xlu0 %v4479, 80
    %v5253 = vpop.permute.xlu0 %5252
    %v5254 = vsel %vm2300, %v4479, 0
    %v5256 = vsel %vm2300, %v5253, 0
    %5258 = vmatprep.subr.mxu0 0.0
    %5259 = vmatpush1.xpose.msra.mxu0 %v5256
    %5260 = vmatprep.subr.mxu0 0.0
    %5261 = vmatpush1.xpose.msra.mxu0 0.0
    %5262 = vmatprep.subr.mxu0 0.0
    %5263 = vmatpush1.xpose.msra.mxu0 0.0
    %5264 = vmatprep.subr.mxu0 0.0
    %5265 = vmatpush1.xpose.msra.mxu0 0.0
    %5266 = vmatprep.subr.mxu0 0.0
    %5267 = vmatpush1.xpose.msra.mxu0 0.0
    %5268 = vmatprep.subr.mxu0 0.0
    %5269 = vmatpush1.xpose.msra.mxu0 0.0
    %5270 = vmatprep.subr.mxu0 0.0
    %5271 = vmatpush1.xpose.msra.mxu0 0.0
    %5272 = vmatprep.subr.mxu0 0.0
    %5273 = vmatpush1.xpose.msra.mxu0 0.0
    %5274 = vmatprep.subr.mxu0 0.0
    %5275 = vmatpush1.xpose.msra.mxu0 0.0
    %5276 = vmatprep.subr.mxu0 0.0
    %5277 = vmatpush1.xpose.msra.mxu0 0.0
    %5278 = vmatprep.subr.mxu0 0.0
    %5279 = vmatpush1.xpose.msra.mxu0 0.0
    %5280 = vmatprep.subr.mxu0 0.0
    %5281 = vmatpush1.xpose.msra.mxu0 0.0
    %5282 = vmatprep.subr.mxu0 0.0
    %5283 = vmatpush1.xpose.msra.mxu0 0.0
    %5284 = vmatprep.subr.mxu0 0.0
    %5285 = vmatpush1.xpose.msra.mxu0 0.0
    %5286 = vmatprep.subr.mxu0 0.0
    %5287 = vmatpush1.xpose.msra.mxu0 0.0
    %5288 = vmatprep.subr.mxu0 0.0
    %5289 = vmatpush1.xpose.msra.mxu0 0.0
    %5290 = vmatprep.subr.mxu0 0.0
    %5291 = vmatpush1.xpose.msra.mxu0 0.0
    %5292 = vmatprep.subr.mxu0 0.0
    %5293 = vmatpush1.xpose.msra.mxu0 0.0
    %5294 = vmatprep.subr.mxu0 0.0
    %5295 = vmatpush1.xpose.msra.mxu0 0.0
    %5296 = vmatprep.subr.mxu0 0.0
    %5297 = vmatpush1.xpose.msra.mxu0 0.0
    %5298 = vmatprep.subr.mxu0 0.0
    %5299 = vmatpush1.xpose.msra.mxu0 0.0
    %5300 = vmatprep.subr.mxu0 0.0
    %5301 = vmatpush1.xpose.msra.mxu0 0.0
    %5302 = vmatprep.subr.mxu0 0.0
    %5303 = vmatpush1.xpose.msra.mxu0 0.0
    %5304 = vmatprep.subr.mxu0 0.0
    %5305 = vmatpush1.xpose.msra.mxu0 0.0
    %5306 = vmatprep.subr.mxu0 0.0
    %5307 = vmatpush1.xpose.msra.mxu0 0.0
    %5308 = vmatprep.subr.mxu0 0.0
    %5309 = vmatpush1.xpose.msra.mxu0 0.0
    %5310 = vmatprep.subr.mxu0 0.0
    %5311 = vmatpush1.xpose.msra.mxu0 0.0
    %5312 = vmatprep.subr.mxu0 0.0
    %5313 = vmatpush1.xpose.msra.mxu0 0.0
    %5314 = vmatprep.subr.mxu0 0.0
    %5315 = vmatpush1.xpose.msra.mxu0 0.0
    %5316 = vmatprep.subr.mxu0 0.0
    %5317 = vmatpush1.xpose.msra.mxu0 0.0
    %5318 = vmatprep.subr.mxu0 0.0
    %5319 = vmatpush1.xpose.msra.mxu0 0.0
    %5320 = vmatprep.subr.mxu0 0.0
    %5321 = vmatpush1.xpose.msra.mxu0 0.0
    %5322 = vmatprep.mubr.f32.mxu0 0.0
    %5323 = vmatmul.mubr.f32.gmra.mrb[0].mxu0 %v5254
    %v5324 = vpop.f32.mrb[0].mxu0
    %v5325 = vadd.f32 0.0, %v5324
    %v5326 = vpop.f32.mrb[0].mxu0
    %5327 = vdwg.mxu0
    %5328 = vrot.lane.b32.xlu0 %v4481, 80
    %v5329 = vpop.permute.xlu0 %5328
    %v5330 = vsel %vm2300, %v4481, 0
    %v5332 = vsel %vm2300, %v5329, 0
    %5334 = vmatprep.subr.mxu0 0.0
    %5335 = vmatpush1.xpose.msra.mxu0 %v5332
    %5336 = vmatprep.subr.mxu0 0.0
    %5337 = vmatpush1.xpose.msra.mxu0 0.0
    %5338 = vmatprep.subr.mxu0 0.0
    %5339 = vmatpush1.xpose.msra.mxu0 0.0
    %5340 = vmatprep.subr.mxu0 0.0
    %5341 = vmatpush1.xpose.msra.mxu0 0.0
    %5342 = vmatprep.subr.mxu0 0.0
    %5343 = vmatpush1.xpose.msra.mxu0 0.0
    %5344 = vmatprep.subr.mxu0 0.0
    %5345 = vmatpush1.xpose.msra.mxu0 0.0
    %5346 = vmatprep.subr.mxu0 0.0
    %5347 = vmatpush1.xpose.msra.mxu0 0.0
    %5348 = vmatprep.subr.mxu0 0.0
    %5349 = vmatpush1.xpose.msra.mxu0 0.0
    %5350 = vmatprep.subr.mxu0 0.0
    %5351 = vmatpush1.xpose.msra.mxu0 0.0
    %5352 = vmatprep.subr.mxu0 0.0
    %5353 = vmatpush1.xpose.msra.mxu0 0.0
    %5354 = vmatprep.subr.mxu0 0.0
    %5355 = vmatpush1.xpose.msra.mxu0 0.0
    %5356 = vmatprep.subr.mxu0 0.0
    %5357 = vmatpush1.xpose.msra.mxu0 0.0
    %5358 = vmatprep.subr.mxu0 0.0
    %5359 = vmatpush1.xpose.msra.mxu0 0.0
    %5360 = vmatprep.subr.mxu0 0.0
    %5361 = vmatpush1.xpose.msra.mxu0 0.0
    %5362 = vmatprep.subr.mxu0 0.0
    %5363 = vmatpush1.xpose.msra.mxu0 0.0
    %5364 = vmatprep.subr.mxu0 0.0
    %5365 = vmatpush1.xpose.msra.mxu0 0.0
    %5366 = vmatprep.subr.mxu0 0.0
    %5367 = vmatpush1.xpose.msra.mxu0 0.0
    %5368 = vmatprep.subr.mxu0 0.0
    %5369 = vmatpush1.xpose.msra.mxu0 0.0
    %5370 = vmatprep.subr.mxu0 0.0
    %5371 = vmatpush1.xpose.msra.mxu0 0.0
    %5372 = vmatprep.subr.mxu0 0.0
    %5373 = vmatpush1.xpose.msra.mxu0 0.0
    %5374 = vmatprep.subr.mxu0 0.0
    %5375 = vmatpush1.xpose.msra.mxu0 0.0
    %5376 = vmatprep.subr.mxu0 0.0
    %5377 = vmatpush1.xpose.msra.mxu0 0.0
    %5378 = vmatprep.subr.mxu0 0.0
    %5379 = vmatpush1.xpose.msra.mxu0 0.0
    %5380 = vmatprep.subr.mxu0 0.0
    %5381 = vmatpush1.xpose.msra.mxu0 0.0
    %5382 = vmatprep.subr.mxu0 0.0
    %5383 = vmatpush1.xpose.msra.mxu0 0.0
    %5384 = vmatprep.subr.mxu0 0.0
    %5385 = vmatpush1.xpose.msra.mxu0 0.0
    %5386 = vmatprep.subr.mxu0 0.0
    %5387 = vmatpush1.xpose.msra.mxu0 0.0
    %5388 = vmatprep.subr.mxu0 0.0
    %5389 = vmatpush1.xpose.msra.mxu0 0.0
    %5390 = vmatprep.subr.mxu0 0.0
    %5391 = vmatpush1.xpose.msra.mxu0 0.0
    %5392 = vmatprep.subr.mxu0 0.0
    %5393 = vmatpush1.xpose.msra.mxu0 0.0
    %5394 = vmatprep.subr.mxu0 0.0
    %5395 = vmatpush1.xpose.msra.mxu0 0.0
    %5396 = vmatprep.subr.mxu0 0.0
    %5397 = vmatpush1.xpose.msra.mxu0 0.0
    %5398 = vmatprep.mubr.f32.mxu0 0.0
    %5399 = vmatmul.mubr.f32.gmra.mrb[0].mxu0 %v5330
    %v5400 = vpop.f32.mrb[0].mxu0
    %v5401 = vadd.f32 0.0, %v5400
    %v5402 = vpop.f32.mrb[0].mxu0
    %5403 = vdwg.mxu0
    %v5404 = vmul.f32 %v4565, 0.35355338
    %v5405 = vmul.f32 %v4641, 0.35355338
    %v5406 = vmul.f32 %v4717, 0.35355338
    %v5407 = vmul.f32 %v4793, 0.35355338
    %v5408 = vmul.f32 %v4869, 0.35355338
    %v5409 = vmul.f32 %v4945, 0.35355338
    %v5410 = vmul.f32 %v5021, 0.35355338
    %v5411 = vmul.f32 %v5097, 0.35355338
    %v5412 = vmul.f32 %v5173, 0.35355338
    %v5413 = vmul.f32 %v5249, 0.35355338
    %v5414 = vmul.f32 %v5325, 0.35355338
    %v5415 = vmul.f32 %v5401, 0.35355338
    %v5416 = vsel %vm2300, %v5404, -inf
    %5417 = vmax.xlane.f32.xlu0 %v5416
    %v5418 = vpop.xlane.xlu0 %5417
    %v5419 = vsel %vm2300, %v5405, -inf
    %5420 = vmax.xlane.f32.xlu0 %v5419
    %v5421 = vpop.xlane.xlu0 %5420
    %v5422 = vsel %vm2300, %v5406, -inf
    %5423 = vmax.xlane.f32.xlu0 %v5422
    %v5424 = vpop.xlane.xlu0 %5423
    %v5425 = vsel %vm2300, %v5407, -inf
    %5426 = vmax.xlane.f32.xlu0 %v5425
    %v5427 = vpop.xlane.xlu0 %5426
    %v5428 = vsel %vm2300, %v5408, -inf
    %5429 = vmax.xlane.f32.xlu0 %v5428
    %v5430 = vpop.xlane.xlu0 %5429
    %v5431 = vsel %vm2300, %v5409, -inf
    %5432 = vmax.xlane.f32.xlu0 %v5431
    %v5433 = vpop.xlane.xlu0 %5432
    %v5434 = vsel %vm2300, %v5410, -inf
    %5435 = vmax.xlane.f32.xlu0 %v5434
    %v5436 = vpop.xlane.xlu0 %5435
    %v5437 = vsel %vm2300, %v5411, -inf
    %5438 = vmax.xlane.f32.xlu0 %v5437
    %v5439 = vpop.xlane.xlu0 %5438
    %v5440 = vsel %vm2300, %v5412, -inf
    %5441 = vmax.xlane.f32.xlu0 %v5440
    %v5442 = vpop.xlane.xlu0 %5441
    %v5443 = vsel %vm2300, %v5413, -inf
    %5444 = vmax.xlane.f32.xlu0 %v5443
    %v5445 = vpop.xlane.xlu0 %5444
    %v5446 = vsel %vm2300, %v5414, -inf
    %5447 = vmax.xlane.f32.xlu0 %v5446
    %v5448 = vpop.xlane.xlu0 %5447
    %v5449 = vsel %vm2300, %v5415, -inf
    %5450 = vmax.xlane.f32.xlu0 %v5449
    %v5451 = vpop.xlane.xlu0 %5450
    %v5452 = vsub.f32 %v5404, %v5418
    %v5453 = vsub.f32 %v5405, %v5421
    %v5454 = vsub.f32 %v5406, %v5424
    %v5455 = vsub.f32 %v5407, %v5427
    %v5456 = vsub.f32 %v5408, %v5430
    %v5457 = vsub.f32 %v5409, %v5433
    %v5458 = vsub.f32 %v5410, %v5436
    %v5459 = vsub.f32 %v5411, %v5439
    %v5460 = vsub.f32 %v5412, %v5442
    %v5461 = vsub.f32 %v5413, %v5445
    %v5462 = vsub.f32 %v5414, %v5448
    %v5463 = vsub.f32 %v5415, %v5451
    %v5464 = vmul.f32 %v5452, 1.442695
    %v5465 = vpow.pop %v5464
    %v5466 = vmul.f32 %v5453, 1.442695
    %v5467 = vpow.pop %v5466
    %v5468 = vmul.f32 %v5454, 1.442695
    %v5469 = vpow.pop %v5468
    %v5470 = vmul.f32 %v5455, 1.442695
    %v5471 = vpow.pop %v5470
    %v5472 = vmul.f32 %v5456, 1.442695
    %v5473 = vpow.pop %v5472
    %v5474 = vmul.f32 %v5457, 1.442695
    %v5475 = vpow.pop %v5474
    %v5476 = vmul.f32 %v5458, 1.442695
    %v5477 = vpow.pop %v5476
    %v5478 = vmul.f32 %v5459, 1.442695
    %v5479 = vpow.pop %v5478
    %v5480 = vmul.f32 %v5460, 1.442695
    %v5481 = vpow.pop %v5480
    %v5482 = vmul.f32 %v5461, 1.442695
    %v5483 = vpow.pop %v5482
    %v5484 = vmul.f32 %v5462, 1.442695
    %v5485 = vpow.pop %v5484
    %v5486 = vmul.f32 %v5463, 1.442695
    %v5487 = vpow.pop %v5486
    %v5488 = vsel %vm2300, %v5465, 0.0
    %5489 = vadd.xlane.f32.xlu0 %v5488
    %v5490 = vpop.xlane.xlu0 %5489
    %v5491 = vsel %vm2300, %v5467, 0.0
    %5492 = vadd.xlane.f32.xlu0 %v5491
    %v5493 = vpop.xlane.xlu0 %5492
    %v5494 = vsel %vm2300, %v5469, 0.0
    %5495 = vadd.xlane.f32.xlu0 %v5494
    %v5496 = vpop.xlane.xlu0 %5495
    %v5497 = vsel %vm2300, %v5471, 0.0
    %5498 = vadd.xlane.f32.xlu0 %v5497
    %v5499 = vpop.xlane.xlu0 %5498
    %v5500 = vsel %vm2300, %v5473, 0.0
    %5501 = vadd.xlane.f32.xlu0 %v5500
    %v5502 = vpop.xlane.xlu0 %5501
    %v5503 = vsel %vm2300, %v5475, 0.0
    %5504 = vadd.xlane.f32.xlu0 %v5503
    %v5505 = vpop.xlane.xlu0 %5504
    %v5506 = vsel %vm2300, %v5477, 0.0
    %5507 = vadd.xlane.f32.xlu0 %v5506
    %v5508 = vpop.xlane.xlu0 %5507
    %v5509 = vsel %vm2300, %v5479, 0.0
    %5510 = vadd.xlane.f32.xlu0 %v5509
    %v5511 = vpop.xlane.xlu0 %5510
    %v5512 = vsel %vm2300, %v5481, 0.0
    %5513 = vadd.xlane.f32.xlu0 %v5512
    %v5514 = vpop.xlane.xlu0 %5513
    %v5515 = vsel %vm2300, %v5483, 0.0
    %5516 = vadd.xlane.f32.xlu0 %v5515
    %v5517 = vpop.xlane.xlu0 %5516
    %v5518 = vsel %vm2300, %v5485, 0.0
    %5519 = vadd.xlane.f32.xlu0 %v5518
    %v5520 = vpop.xlane.xlu0 %5519
    %v5521 = vsel %vm2300, %v5487, 0.0
    %5522 = vadd.xlane.f32.xlu0 %v5521
    %v5523 = vpop.xlane.xlu0 %5522
    %v5524 = vrcp.pop %v5490
    %v5525 = vrcp.pop %v5493
    %v5526 = vrcp.pop %v5496
    %v5527 = vrcp.pop %v5499
    %v5528 = vrcp.pop %v5502
    %v5529 = vrcp.pop %v5505
    %v5530 = vrcp.pop %v5508
    %v5531 = vrcp.pop %v5511
    %v5532 = vrcp.pop %v5514
    %v5533 = vrcp.pop %v5517
    %v5534 = vrcp.pop %v5520
    %v5535 = vrcp.pop %v5523
    %v5536 = vmul.f32 %v5465, %v5524
    %v5537 = vmul.f32 %v5467, %v5525
    %v5538 = vmul.f32 %v5469, %v5526
    %v5539 = vmul.f32 %v5471, %v5527
    %v5540 = vmul.f32 %v5473, %v5528
    %v5541 = vmul.f32 %v5475, %v5529
    %v5542 = vmul.f32 %v5477, %v5530
    %v5543 = vmul.f32 %v5479, %v5531
    %v5544 = vmul.f32 %v5481, %v5532
    %v5545 = vmul.f32 %v5483, %v5533
    %v5546 = vmul.f32 %v5485, %v5534
    %v5547 = vmul.f32 %v5487, %v5535
    %5548 = vrot.lane.b32.xlu0 %v4450, 32
    %v5549 = vpop.permute.xlu0 %5548
    %v5552 = vsel %vm2300, %v5536, 0
    %5554 = vmatprep.subr.mxu0 0.0
    %5555 = vmatpush1.msra.mxu0 %v5549
    %5556 = vmatprep.subr.mxu0 0.0
    %5557 = vmatpush1.msra.mxu0 0.0
    %5558 = vmatprep.subr.mxu0 0.0
    %5559 = vmatpush1.msra.mxu0 0.0
    %5560 = vmatprep.subr.mxu0 0.0
    %5561 = vmatpush1.msra.mxu0 0.0
    %5562 = vmatprep.subr.mxu0 0.0
    %5563 = vmatpush1.msra.mxu0 0.0
    %5564 = vmatprep.subr.mxu0 0.0
    %5565 = vmatpush1.msra.mxu0 0.0
    %5566 = vmatprep.subr.mxu0 0.0
    %5567 = vmatpush1.msra.mxu0 0.0
    %5568 = vmatprep.subr.mxu0 0.0
    %5569 = vmatpush1.msra.mxu0 0.0
    %5570 = vmatprep.subr.mxu0 0.0
    %5571 = vmatpush1.msra.mxu0 0.0
    %5572 = vmatprep.subr.mxu0 0.0
    %5573 = vmatpush1.msra.mxu0 0.0
    %5574 = vmatprep.subr.mxu0 0.0
    %5575 = vmatpush1.msra.mxu0 0.0
    %5576 = vmatprep.subr.mxu0 0.0
    %5577 = vmatpush1.msra.mxu0 0.0
    %5578 = vmatprep.subr.mxu0 0.0
    %5579 = vmatpush1.msra.mxu0 0.0
    %5580 = vmatprep.subr.mxu0 0.0
    %5581 = vmatpush1.msra.mxu0 0.0
    %5582 = vmatprep.subr.mxu0 0.0
    %5583 = vmatpush1.msra.mxu0 0.0
    %5584 = vmatprep.subr.mxu0 0.0
    %5585 = vmatpush1.msra.mxu0 0.0
    %5586 = vmatprep.subr.mxu0 0.0
    %5587 = vmatpush1.msra.mxu0 0.0
    %5588 = vmatprep.subr.mxu0 0.0
    %5589 = vmatpush1.msra.mxu0 0.0
    %5590 = vmatprep.subr.mxu0 0.0
    %5591 = vmatpush1.msra.mxu0 0.0
    %5592 = vmatprep.subr.mxu0 0.0
    %5593 = vmatpush1.msra.mxu0 0.0
    %5594 = vmatprep.subr.mxu0 0.0
    %5595 = vmatpush1.msra.mxu0 0.0
    %5596 = vmatprep.subr.mxu0 0.0
    %5597 = vmatpush1.msra.mxu0 0.0
    %5598 = vmatprep.subr.mxu0 0.0
    %5599 = vmatpush1.msra.mxu0 0.0
    %5600 = vmatprep.subr.mxu0 0.0
    %5601 = vmatpush1.msra.mxu0 0.0
    %5602 = vmatprep.subr.mxu0 0.0
    %5603 = vmatpush1.msra.mxu0 0.0
    %5604 = vmatprep.subr.mxu0 0.0
    %5605 = vmatpush1.msra.mxu0 0.0
    %5606 = vmatprep.subr.mxu0 0.0
    %5607 = vmatpush1.msra.mxu0 0.0
    %5608 = vmatprep.subr.mxu0 0.0
    %5609 = vmatpush1.msra.mxu0 0.0
    %5610 = vmatprep.subr.mxu0 0.0
    %5611 = vmatpush1.msra.mxu0 0.0
    %5612 = vmatprep.subr.mxu0 0.0
    %5613 = vmatpush1.msra.mxu0 0.0
    %5614 = vmatprep.subr.mxu0 0.0
    %5615 = vmatpush1.msra.mxu0 0.0
    %5616 = vmatprep.subr.mxu0 0.0
    %5617 = vmatpush1.msra.mxu0 0.0
    %5618 = vmatprep.mubr.f32.mxu0 0.0
    %5619 = vmatmul.mubr.f32.gmra.mrb[0].mxu0 %v5552
    %v5620 = vpop.f32.mrb[0].mxu0
    %v5621 = vadd.f32 0.0, %v5620
    %v5622 = vpop.f32.mrb[0].mxu0
    %5623 = vdwg.mxu0
    %5624 = vrot.lane.b32.xlu0 %v4456, 32
    %v5625 = vpop.permute.xlu0 %5624
    %v5628 = vsel %vm2300, %v5537, 0
    %5630 = vmatprep.subr.mxu0 0.0
    %5631 = vmatpush1.msra.mxu0 %v5625
    %5632 = vmatprep.subr.mxu0 0.0
    %5633 = vmatpush1.msra.mxu0 0.0
    %5634 = vmatprep.subr.mxu0 0.0
    %5635 = vmatpush1.msra.mxu0 0.0
    %5636 = vmatprep.subr.mxu0 0.0
    %5637 = vmatpush1.msra.mxu0 0.0
    %5638 = vmatprep.subr.mxu0 0.0
    %5639 = vmatpush1.msra.mxu0 0.0
    %5640 = vmatprep.subr.mxu0 0.0
    %5641 = vmatpush1.msra.mxu0 0.0
    %5642 = vmatprep.subr.mxu0 0.0
    %5643 = vmatpush1.msra.mxu0 0.0
    %5644 = vmatprep.subr.mxu0 0.0
    %5645 = vmatpush1.msra.mxu0 0.0
    %5646 = vmatprep.subr.mxu0 0.0
    %5647 = vmatpush1.msra.mxu0 0.0
    %5648 = vmatprep.subr.mxu0 0.0
    %5649 = vmatpush1.msra.mxu0 0.0
    %5650 = vmatprep.subr.mxu0 0.0
    %5651 = vmatpush1.msra.mxu0 0.0
    %5652 = vmatprep.subr.mxu0 0.0
    %5653 = vmatpush1.msra.mxu0 0.0
    %5654 = vmatprep.subr.mxu0 0.0
    %5655 = vmatpush1.msra.mxu0 0.0
    %5656 = vmatprep.subr.mxu0 0.0
    %5657 = vmatpush1.msra.mxu0 0.0
    %5658 = vmatprep.subr.mxu0 0.0
    %5659 = vmatpush1.msra.mxu0 0.0
    %5660 = vmatprep.subr.mxu0 0.0
    %5661 = vmatpush1.msra.mxu0 0.0
    %5662 = vmatprep.subr.mxu0 0.0
    %5663 = vmatpush1.msra.mxu0 0.0
    %5664 = vmatprep.subr.mxu0 0.0
    %5665 = vmatpush1.msra.mxu0 0.0
    %5666 = vmatprep.subr.mxu0 0.0
    %5667 = vmatpush1.msra.mxu0 0.0
    %5668 = vmatprep.subr.mxu0 0.0
    %5669 = vmatpush1.msra.mxu0 0.0
    %5670 = vmatprep.subr.mxu0 0.0
    %5671 = vmatpush1.msra.mxu0 0.0
    %5672 = vmatprep.subr.mxu0 0.0
    %5673 = vmatpush1.msra.mxu0 0.0
    %5674 = vmatprep.subr.mxu0 0.0
    %5675 = vmatpush1.msra.mxu0 0.0
    %5676 = vmatprep.subr.mxu0 0.0
    %5677 = vmatpush1.msra.mxu0 0.0
    %5678 = vmatprep.subr.mxu0 0.0
    %5679 = vmatpush1.msra.mxu0 0.0
    %5680 = vmatprep.subr.mxu0 0.0
    %5681 = vmatpush1.msra.mxu0 0.0
    %5682 = vmatprep.subr.mxu0 0.0
    %5683 = vmatpush1.msra.mxu0 0.0
    %5684 = vmatprep.subr.mxu0 0.0
    %5685 = vmatpush1.msra.mxu0 0.0
    %5686 = vmatprep.subr.mxu0 0.0
    %5687 = vmatpush1.msra.mxu0 0.0
    %5688 = vmatprep.subr.mxu0 0.0
    %5689 = vmatpush1.msra.mxu0 0.0
    %5690 = vmatprep.subr.mxu0 0.0
    %5691 = vmatpush1.msra.mxu0 0.0
    %5692 = vmatprep.subr.mxu0 0.0
    %5693 = vmatpush1.msra.mxu0 0.0
    %5694 = vmatprep.mubr.f32.mxu0 0.0
    %5695 = vmatmul.mubr.f32.gmra.mrb[0].mxu0 %v5628
    %v5696 = vpop.f32.mrb[0].mxu0
    %v5697 = vadd.f32 0.0, %v5696
    %v5698 = vpop.f32.mrb[0].mxu0
    %5699 = vdwg.mxu0
    %5700 = vrot.lane.b32.xlu0 %v4463, 32
    %v5701 = vpop.permute.xlu0 %5700
    %v5704 = vsel %vm2300, %v5538, 0
    %5706 = vmatprep.subr.mxu0 0.0
    %5707 = vmatpush1.msra.mxu0 %v5701
    %5708 = vmatprep.subr.mxu0 0.0
    %5709 = vmatpush1.msra.mxu0 0.0
    %5710 = vmatprep.subr.mxu0 0.0
    %5711 = vmatpush1.msra.mxu0 0.0
    %5712 = vmatprep.subr.mxu0 0.0
    %5713 = vmatpush1.msra.mxu0 0.0
    %5714 = vmatprep.subr.mxu0 0.0
    %5715 = vmatpush1.msra.mxu0 0.0
    %5716 = vmatprep.subr.mxu0 0.0
    %5717 = vmatpush1.msra.mxu0 0.0
    %5718 = vmatprep.subr.mxu0 0.0
    %5719 = vmatpush1.msra.mxu0 0.0
    %5720 = vmatprep.subr.mxu0 0.0
    %5721 = vmatpush1.msra.mxu0 0.0
    %5722 = vmatprep.subr.mxu0 0.0
    %5723 = vmatpush1.msra.mxu0 0.0
    %5724 = vmatprep.subr.mxu0 0.0
    %5725 = vmatpush1.msra.mxu0 0.0
    %5726 = vmatprep.subr.mxu0 0.0
    %5727 = vmatpush1.msra.mxu0 0.0
    %5728 = vmatprep.subr.mxu0 0.0
    %5729 = vmatpush1.msra.mxu0 0.0
    %5730 = vmatprep.subr.mxu0 0.0
    %5731 = vmatpush1.msra.mxu0 0.0
    %5732 = vmatprep.subr.mxu0 0.0
    %5733 = vmatpush1.msra.mxu0 0.0
    %5734 = vmatprep.subr.mxu0 0.0
    %5735 = vmatpush1.msra.mxu0 0.0
    %5736 = vmatprep.subr.mxu0 0.0
    %5737 = vmatpush1.msra.mxu0 0.0
    %5738 = vmatprep.subr.mxu0 0.0
    %5739 = vmatpush1.msra.mxu0 0.0
    %5740 = vmatprep.subr.mxu0 0.0
    %5741 = vmatpush1.msra.mxu0 0.0
    %5742 = vmatprep.subr.mxu0 0.0
    %5743 = vmatpush1.msra.mxu0 0.0
    %5744 = vmatprep.subr.mxu0 0.0
    %5745 = vmatpush1.msra.mxu0 0.0
    %5746 = vmatprep.subr.mxu0 0.0
    %5747 = vmatpush1.msra.mxu0 0.0
    %5748 = vmatprep.subr.mxu0 0.0
    %5749 = vmatpush1.msra.mxu0 0.0
    %5750 = vmatprep.subr.mxu0 0.0
    %5751 = vmatpush1.msra.mxu0 0.0
    %5752 = vmatprep.subr.mxu0 0.0
    %5753 = vmatpush1.msra.mxu0 0.0
    %5754 = vmatprep.subr.mxu0 0.0
    %5755 = vmatpush1.msra.mxu0 0.0
    %5756 = vmatprep.subr.mxu0 0.0
    %5757 = vmatpush1.msra.mxu0 0.0
    %5758 = vmatprep.subr.mxu0 0.0
    %5759 = vmatpush1.msra.mxu0 0.0
    %5760 = vmatprep.subr.mxu0 0.0
    %5761 = vmatpush1.msra.mxu0 0.0
    %5762 = vmatprep.subr.mxu0 0.0
    %5763 = vmatpush1.msra.mxu0 0.0
    %5764 = vmatprep.subr.mxu0 0.0
    %5765 = vmatpush1.msra.mxu0 0.0
    %5766 = vmatprep.subr.mxu0 0.0
    %5767 = vmatpush1.msra.mxu0 0.0
    %5768 = vmatprep.subr.mxu0 0.0
    %5769 = vmatpush1.msra.mxu0 0.0
    %5770 = vmatprep.mubr.f32.mxu0 0.0
    %5771 = vmatmul.mubr.f32.gmra.mrb[0].mxu0 %v5704
    %v5772 = vpop.f32.mrb[0].mxu0
    %v5773 = vadd.f32 0.0, %v5772
    %v5774 = vpop.f32.mrb[0].mxu0
    %5775 = vdwg.mxu0
    %5776 = vrot.lane.b32.xlu0 %v4465, 32
    %v5777 = vpop.permute.xlu0 %5776
    %v5780 = vsel %vm2300, %v5539, 0
    %5782 = vmatprep.subr.mxu0 0.0
    %5783 = vmatpush1.msra.mxu0 %v5777
    %5784 = vmatprep.subr.mxu0 0.0
    %5785 = vmatpush1.msra.mxu0 0.0
    %5786 = vmatprep.subr.mxu0 0.0
    %5787 = vmatpush1.msra.mxu0 0.0
    %5788 = vmatprep.subr.mxu0 0.0
    %5789 = vmatpush1.msra.mxu0 0.0
    %5790 = vmatprep.subr.mxu0 0.0
    %5791 = vmatpush1.msra.mxu0 0.0
    %5792 = vmatprep.subr.mxu0 0.0
    %5793 = vmatpush1.msra.mxu0 0.0
    %5794 = vmatprep.subr.mxu0 0.0
    %5795 = vmatpush1.msra.mxu0 0.0
    %5796 = vmatprep.subr.mxu0 0.0
    %5797 = vmatpush1.msra.mxu0 0.0
    %5798 = vmatprep.subr.mxu0 0.0
    %5799 = vmatpush1.msra.mxu0 0.0
    %5800 = vmatprep.subr.mxu0 0.0
    %5801 = vmatpush1.msra.mxu0 0.0
    %5802 = vmatprep.subr.mxu0 0.0
    %5803 = vmatpush1.msra.mxu0 0.0
    %5804 = vmatprep.subr.mxu0 0.0
    %5805 = vmatpush1.msra.mxu0 0.0
    %5806 = vmatprep.subr.mxu0 0.0
    %5807 = vmatpush1.msra.mxu0 0.0
    %5808 = vmatprep.subr.mxu0 0.0
    %5809 = vmatpush1.msra.mxu0 0.0
    %5810 = vmatprep.subr.mxu0 0.0
    %5811 = vmatpush1.msra.mxu0 0.0
    %5812 = vmatprep.subr.mxu0 0.0
    %5813 = vmatpush1.msra.mxu0 0.0
    %5814 = vmatprep.subr.mxu0 0.0
    %5815 = vmatpush1.msra.mxu0 0.0
    %5816 = vmatprep.subr.mxu0 0.0
    %5817 = vmatpush1.msra.mxu0 0.0
    %5818 = vmatprep.subr.mxu0 0.0
    %5819 = vmatpush1.msra.mxu0 0.0
    %5820 = vmatprep.subr.mxu0 0.0
    %5821 = vmatpush1.msra.mxu0 0.0
    %5822 = vmatprep.subr.mxu0 0.0
    %5823 = vmatpush1.msra.mxu0 0.0
    %5824 = vmatprep.subr.mxu0 0.0
    %5825 = vmatpush1.msra.mxu0 0.0
    %5826 = vmatprep.subr.mxu0 0.0
    %5827 = vmatpush1.msra.mxu0 0.0
    %5828 = vmatprep.subr.mxu0 0.0
    %5829 = vmatpush1.msra.mxu0 0.0
    %5830 = vmatprep.subr.mxu0 0.0
    %5831 = vmatpush1.msra.mxu0 0.0
    %5832 = vmatprep.subr.mxu0 0.0
    %5833 = vmatpush1.msra.mxu0 0.0
    %5834 = vmatprep.subr.mxu0 0.0
    %5835 = vmatpush1.msra.mxu0 0.0
    %5836 = vmatprep.subr.mxu0 0.0
    %5837 = vmatpush1.msra.mxu0 0.0
    %5838 = vmatprep.subr.mxu0 0.0
    %5839 = vmatpush1.msra.mxu0 0.0
    %5840 = vmatprep.subr.mxu0 0.0
    %5841 = vmatpush1.msra.mxu0 0.0
    %5842 = vmatprep.subr.mxu0 0.0
    %5843 = vmatpush1.msra.mxu0 0.0
    %5844 = vmatprep.subr.mxu0 0.0
    %5845 = vmatpush1.msra.mxu0 0.0
    %5846 = vmatprep.mubr.f32.mxu0 0.0
    %5847 = vmatmul.mubr.f32.gmra.mrb[0].mxu0 %v5780
    %v5848 = vpop.f32.mrb[0].mxu0
    %v5849 = vadd.f32 0.0, %v5848
    %v5850 = vpop.f32.mrb[0].mxu0
    %5851 = vdwg.mxu0
    %5852 = vrot.lane.b32.xlu0 %v4467, 32
    %v5853 = vpop.permute.xlu0 %5852
    %v5856 = vsel %vm2300, %v5540, 0
    %5858 = vmatprep.subr.mxu0 0.0
    %5859 = vmatpush1.msra.mxu0 %v5853
    %5860 = vmatprep.subr.mxu0 0.0
    %5861 = vmatpush1.msra.mxu0 0.0
    %5862 = vmatprep.subr.mxu0 0.0
    %5863 = vmatpush1.msra.mxu0 0.0
    %5864 = vmatprep.subr.mxu0 0.0
    %5865 = vmatpush1.msra.mxu0 0.0
    %5866 = vmatprep.subr.mxu0 0.0
    %5867 = vmatpush1.msra.mxu0 0.0
    %5868 = vmatprep.subr.mxu0 0.0
    %5869 = vmatpush1.msra.mxu0 0.0
    %5870 = vmatprep.subr.mxu0 0.0
    %5871 = vmatpush1.msra.mxu0 0.0
    %5872 = vmatprep.subr.mxu0 0.0
    %5873 = vmatpush1.msra.mxu0 0.0
    %5874 = vmatprep.subr.mxu0 0.0
    %5875 = vmatpush1.msra.mxu0 0.0
    %5876 = vmatprep.subr.mxu0 0.0
    %5877 = vmatpush1.msra.mxu0 0.0
    %5878 = vmatprep.subr.mxu0 0.0
    %5879 = vmatpush1.msra.mxu0 0.0
    %5880 = vmatprep.subr.mxu0 0.0
    %5881 = vmatpush1.msra.mxu0 0.0
    %5882 = vmatprep.subr.mxu0 0.0
    %5883 = vmatpush1.msra.mxu0 0.0
    %5884 = vmatprep.subr.mxu0 0.0
    %5885 = vmatpush1.msra.mxu0 0.0
    %5886 = vmatprep.subr.mxu0 0.0
    %5887 = vmatpush1.msra.mxu0 0.0
    %5888 = vmatprep.subr.mxu0 0.0
    %5889 = vmatpush1.msra.mxu0 0.0
    %5890 = vmatprep.subr.mxu0 0.0
    %5891 = vmatpush1.msra.mxu0 0.0
    %5892 = vmatprep.subr.mxu0 0.0
    %5893 = vmatpush1.msra.mxu0 0.0
    %5894 = vmatprep.subr.mxu0 0.0
    %5895 = vmatpush1.msra.mxu0 0.0
    %5896 = vmatprep.subr.mxu0 0.0
    %5897 = vmatpush1.msra.mxu0 0.0
    %5898 = vmatprep.subr.mxu0 0.0
    %5899 = vmatpush1.msra.mxu0 0.0
    %5900 = vmatprep.subr.mxu0 0.0
    %5901 = vmatpush1.msra.mxu0 0.0
    %5902 = vmatprep.subr.mxu0 0.0
    %5903 = vmatpush1.msra.mxu0 0.0
    %5904 = vmatprep.subr.mxu0 0.0
    %5905 = vmatpush1.msra.mxu0 0.0
    %5906 = vmatprep.subr.mxu0 0.0
    %5907 = vmatpush1.msra.mxu0 0.0
    %5908 = vmatprep.subr.mxu0 0.0
    %5909 = vmatpush1.msra.mxu0 0.0
    %5910 = vmatprep.subr.mxu0 0.0
    %5911 = vmatpush1.msra.mxu0 0.0
    %5912 = vmatprep.subr.mxu0 0.0
    %5913 = vmatpush1.msra.mxu0 0.0
    %5914 = vmatprep.subr.mxu0 0.0
    %5915 = vmatpush1.msra.mxu0 0.0
    %5916 = vmatprep.subr.mxu0 0.0
    %5917 = vmatpush1.msra.mxu0 0.0
    %5918 = vmatprep.subr.mxu0 0.0
    %5919 = vmatpush1.msra.mxu0 0.0
    %5920 = vmatprep.subr.mxu0 0.0
    %5921 = vmatpush1.msra.mxu0 0.0
    %5922 = vmatprep.mubr.f32.mxu0 0.0
    %5923 = vmatmul.mubr.f32.gmra.mrb[0].mxu0 %v5856
    %v5924 = vpop.f32.mrb[0].mxu0
    %v5925 = vadd.f32 0.0, %v5924
    %v5926 = vpop.f32.mrb[0].mxu0
    %5927 = vdwg.mxu0
    %5928 = vrot.lane.b32.xlu0 %v4469, 32
    %v5929 = vpop.permute.xlu0 %5928
    %v5932 = vsel %vm2300, %v5541, 0
    %5934 = vmatprep.subr.mxu0 0.0
    %5935 = vmatpush1.msra.mxu0 %v5929
    %5936 = vmatprep.subr.mxu0 0.0
    %5937 = vmatpush1.msra.mxu0 0.0
    %5938 = vmatprep.subr.mxu0 0.0
    %5939 = vmatpush1.msra.mxu0 0.0
    %5940 = vmatprep.subr.mxu0 0.0
    %5941 = vmatpush1.msra.mxu0 0.0
    %5942 = vmatprep.subr.mxu0 0.0
    %5943 = vmatpush1.msra.mxu0 0.0
    %5944 = vmatprep.subr.mxu0 0.0
    %5945 = vmatpush1.msra.mxu0 0.0
    %5946 = vmatprep.subr.mxu0 0.0
    %5947 = vmatpush1.msra.mxu0 0.0
    %5948 = vmatprep.subr.mxu0 0.0
    %5949 = vmatpush1.msra.mxu0 0.0
    %5950 = vmatprep.subr.mxu0 0.0
    %5951 = vmatpush1.msra.mxu0 0.0
    %5952 = vmatprep.subr.mxu0 0.0
    %5953 = vmatpush1.msra.mxu0 0.0
    %5954 = vmatprep.subr.mxu0 0.0
    %5955 = vmatpush1.msra.mxu0 0.0
    %5956 = vmatprep.subr.mxu0 0.0
    %5957 = vmatpush1.msra.mxu0 0.0
    %5958 = vmatprep.subr.mxu0 0.0
    %5959 = vmatpush1.msra.mxu0 0.0
    %5960 = vmatprep.subr.mxu0 0.0
    %5961 = vmatpush1.msra.mxu0 0.0
    %5962 = vmatprep.subr.mxu0 0.0
    %5963 = vmatpush1.msra.mxu0 0.0
    %5964 = vmatprep.subr.mxu0 0.0
    %5965 = vmatpush1.msra.mxu0 0.0
    %5966 = vmatprep.subr.mxu0 0.0
    %5967 = vmatpush1.msra.mxu0 0.0
    %5968 = vmatprep.subr.mxu0 0.0
    %5969 = vmatpush1.msra.mxu0 0.0
    %5970 = vmatprep.subr.mxu0 0.0
    %5971 = vmatpush1.msra.mxu0 0.0
    %5972 = vmatprep.subr.mxu0 0.0
    %5973 = vmatpush1.msra.mxu0 0.0
    %5974 = vmatprep.subr.mxu0 0.0
    %5975 = vmatpush1.msra.mxu0 0.0
    %5976 = vmatprep.subr.mxu0 0.0
    %5977 = vmatpush1.msra.mxu0 0.0
    %5978 = vmatprep.subr.mxu0 0.0
    %5979 = vmatpush1.msra.mxu0 0.0
    %5980 = vmatprep.subr.mxu0 0.0
    %5981 = vmatpush1.msra.mxu0 0.0
    %5982 = vmatprep.subr.mxu0 0.0
    %5983 = vmatpush1.msra.mxu0 0.0
    %5984 = vmatprep.subr.mxu0 0.0
    %5985 = vmatpush1.msra.mxu0 0.0
    %5986 = vmatprep.subr.mxu0 0.0
    %5987 = vmatpush1.msra.mxu0 0.0
    %5988 = vmatprep.subr.mxu0 0.0
    %5989 = vmatpush1.msra.mxu0 0.0
    %5990 = vmatprep.subr.mxu0 0.0
    %5991 = vmatpush1.msra.mxu0 0.0
    %5992 = vmatprep.subr.mxu0 0.0
    %5993 = vmatpush1.msra.mxu0 0.0
    %5994 = vmatprep.subr.mxu0 0.0
    %5995 = vmatpush1.msra.mxu0 0.0
    %5996 = vmatprep.subr.mxu0 0.0
    %5997 = vmatpush1.msra.mxu0 0.0
    %5998 = vmatprep.mubr.f32.mxu0 0.0
    %5999 = vmatmul.mubr.f32.gmra.mrb[0].mxu0 %v5932
    %v6000 = vpop.f32.mrb[0].mxu0
    %v6001 = vadd.f32 0.0, %v6000
    %v6002 = vpop.f32.mrb[0].mxu0
    %6003 = vdwg.mxu0
    %6004 = vrot.lane.b32.xlu0 %v4471, 32
    %v6005 = vpop.permute.xlu0 %6004
    %v6008 = vsel %vm2300, %v5542, 0
    %6010 = vmatprep.subr.mxu0 0.0
    %6011 = vmatpush1.msra.mxu0 %v6005
    %6012 = vmatprep.subr.mxu0 0.0
    %6013 = vmatpush1.msra.mxu0 0.0
    %6014 = vmatprep.subr.mxu0 0.0
    %6015 = vmatpush1.msra.mxu0 0.0
    %6016 = vmatprep.subr.mxu0 0.0
    %6017 = vmatpush1.msra.mxu0 0.0
    %6018 = vmatprep.subr.mxu0 0.0
    %6019 = vmatpush1.msra.mxu0 0.0
    %6020 = vmatprep.subr.mxu0 0.0
    %6021 = vmatpush1.msra.mxu0 0.0
    %6022 = vmatprep.subr.mxu0 0.0
    %6023 = vmatpush1.msra.mxu0 0.0
    %6024 = vmatprep.subr.mxu0 0.0
    %6025 = vmatpush1.msra.mxu0 0.0
    %6026 = vmatprep.subr.mxu0 0.0
    %6027 = vmatpush1.msra.mxu0 0.0
    %6028 = vmatprep.subr.mxu0 0.0
    %6029 = vmatpush1.msra.mxu0 0.0
    %6030 = vmatprep.subr.mxu0 0.0
    %6031 = vmatpush1.msra.mxu0 0.0
    %6032 = vmatprep.subr.mxu0 0.0
    %6033 = vmatpush1.msra.mxu0 0.0
    %6034 = vmatprep.subr.mxu0 0.0
    %6035 = vmatpush1.msra.mxu0 0.0
    %6036 = vmatprep.subr.mxu0 0.0
    %6037 = vmatpush1.msra.mxu0 0.0
    %6038 = vmatprep.subr.mxu0 0.0
    %6039 = vmatpush1.msra.mxu0 0.0
    %6040 = vmatprep.subr.mxu0 0.0
    %6041 = vmatpush1.msra.mxu0 0.0
    %6042 = vmatprep.subr.mxu0 0.0
    %6043 = vmatpush1.msra.mxu0 0.0
    %6044 = vmatprep.subr.mxu0 0.0
    %6045 = vmatpush1.msra.mxu0 0.0
    %6046 = vmatprep.subr.mxu0 0.0
    %6047 = vmatpush1.msra.mxu0 0.0
    %6048 = vmatprep.subr.mxu0 0.0
    %6049 = vmatpush1.msra.mxu0 0.0
    %6050 = vmatprep.subr.mxu0 0.0
    %6051 = vmatpush1.msra.mxu0 0.0
    %6052 = vmatprep.subr.mxu0 0.0
    %6053 = vmatpush1.msra.mxu0 0.0
    %6054 = vmatprep.subr.mxu0 0.0
    %6055 = vmatpush1.msra.mxu0 0.0
    %6056 = vmatprep.subr.mxu0 0.0
    %6057 = vmatpush1.msra.mxu0 0.0
    %6058 = vmatprep.subr.mxu0 0.0
    %6059 = vmatpush1.msra.mxu0 0.0
    %6060 = vmatprep.subr.mxu0 0.0
    %6061 = vmatpush1.msra.mxu0 0.0
    %6062 = vmatprep.subr.mxu0 0.0
    %6063 = vmatpush1.msra.mxu0 0.0
    %6064 = vmatprep.subr.mxu0 0.0
    %6065 = vmatpush1.msra.mxu0 0.0
    %6066 = vmatprep.subr.mxu0 0.0
    %6067 = vmatpush1.msra.mxu0 0.0
    %6068 = vmatprep.subr.mxu0 0.0
    %6069 = vmatpush1.msra.mxu0 0.0
    %6070 = vmatprep.subr.mxu0 0.0
    %6071 = vmatpush1.msra.mxu0 0.0
    %6072 = vmatprep.subr.mxu0 0.0
    %6073 = vmatpush1.msra.mxu0 0.0
    %6074 = vmatprep.mubr.f32.mxu0 0.0
    %6075 = vmatmul.mubr.f32.gmra.mrb[0].mxu0 %v6008
    %v6076 = vpop.f32.mrb[0].mxu0
    %v6077 = vadd.f32 0.0, %v6076
    %v6078 = vpop.f32.mrb[0].mxu0
    %6079 = vdwg.mxu0
    %6080 = vrot.lane.b32.xlu0 %v4473, 32
    %v6081 = vpop.permute.xlu0 %6080
    %v6084 = vsel %vm2300, %v5543, 0
    %6086 = vmatprep.subr.mxu0 0.0
    %6087 = vmatpush1.msra.mxu0 %v6081
    %6088 = vmatprep.subr.mxu0 0.0
    %6089 = vmatpush1.msra.mxu0 0.0
    %6090 = vmatprep.subr.mxu0 0.0
    %6091 = vmatpush1.msra.mxu0 0.0
    %6092 = vmatprep.subr.mxu0 0.0
    %6093 = vmatpush1.msra.mxu0 0.0
    %6094 = vmatprep.subr.mxu0 0.0
    %6095 = vmatpush1.msra.mxu0 0.0
    %6096 = vmatprep.subr.mxu0 0.0
    %6097 = vmatpush1.msra.mxu0 0.0
    %6098 = vmatprep.subr.mxu0 0.0
    %6099 = vmatpush1.msra.mxu0 0.0
    %6100 = vmatprep.subr.mxu0 0.0
    %6101 = vmatpush1.msra.mxu0 0.0
    %6102 = vmatprep.subr.mxu0 0.0
    %6103 = vmatpush1.msra.mxu0 0.0
    %6104 = vmatprep.subr.mxu0 0.0
    %6105 = vmatpush1.msra.mxu0 0.0
    %6106 = vmatprep.subr.mxu0 0.0
    %6107 = vmatpush1.msra.mxu0 0.0
    %6108 = vmatprep.subr.mxu0 0.0
    %6109 = vmatpush1.msra.mxu0 0.0
    %6110 = vmatprep.subr.mxu0 0.0
    %6111 = vmatpush1.msra.mxu0 0.0
    %6112 = vmatprep.subr.mxu0 0.0
    %6113 = vmatpush1.msra.mxu0 0.0
    %6114 = vmatprep.subr.mxu0 0.0
    %6115 = vmatpush1.msra.mxu0 0.0
    %6116 = vmatprep.subr.mxu0 0.0
    %6117 = vmatpush1.msra.mxu0 0.0
    %6118 = vmatprep.subr.mxu0 0.0
    %6119 = vmatpush1.msra.mxu0 0.0
    %6120 = vmatprep.subr.mxu0 0.0
    %6121 = vmatpush1.msra.mxu0 0.0
    %6122 = vmatprep.subr.mxu0 0.0
    %6123 = vmatpush1.msra.mxu0 0.0
    %6124 = vmatprep.subr.mxu0 0.0
    %6125 = vmatpush1.msra.mxu0 0.0
    %6126 = vmatprep.subr.mxu0 0.0
    %6127 = vmatpush1.msra.mxu0 0.0
    %6128 = vmatprep.subr.mxu0 0.0
    %6129 = vmatpush1.msra.mxu0 0.0
    %6130 = vmatprep.subr.mxu0 0.0
    %6131 = vmatpush1.msra.mxu0 0.0
    %6132 = vmatprep.subr.mxu0 0.0
    %6133 = vmatpush1.msra.mxu0 0.0
    %6134 = vmatprep.subr.mxu0 0.0
    %6135 = vmatpush1.msra.mxu0 0.0
    %6136 = vmatprep.subr.mxu0 0.0
    %6137 = vmatpush1.msra.mxu0 0.0
    %6138 = vmatprep.subr.mxu0 0.0
    %6139 = vmatpush1.msra.mxu0 0.0
    %6140 = vmatprep.subr.mxu0 0.0
    %6141 = vmatpush1.msra.mxu0 0.0
    %6142 = vmatprep.subr.mxu0 0.0
    %6143 = vmatpush1.msra.mxu0 0.0
    %6144 = vmatprep.subr.mxu0 0.0
    %6145 = vmatpush1.msra.mxu0 0.0
    %6146 = vmatprep.subr.mxu0 0.0
    %6147 = vmatpush1.msra.mxu0 0.0
    %6148 = vmatprep.subr.mxu0 0.0
    %6149 = vmatpush1.msra.mxu0 0.0
    %6150 = vmatprep.mubr.f32.mxu0 0.0
    %6151 = vmatmul.mubr.f32.gmra.mrb[0].mxu0 %v6084
    %v6152 = vpop.f32.mrb[0].mxu0
    %v6153 = vadd.f32 0.0, %v6152
    %v6154 = vpop.f32.mrb[0].mxu0
    %6155 = vdwg.mxu0
    %6156 = vrot.lane.b32.xlu0 %v4485, 32
    %v6157 = vpop.permute.xlu0 %6156
    %v6160 = vsel %vm2300, %v5544, 0
    %6162 = vmatprep.subr.mxu0 0.0
    %6163 = vmatpush1.msra.mxu0 %v6157
    %6164 = vmatprep.subr.mxu0 0.0
    %6165 = vmatpush1.msra.mxu0 0.0
    %6166 = vmatprep.subr.mxu0 0.0
    %6167 = vmatpush1.msra.mxu0 0.0
    %6168 = vmatprep.subr.mxu0 0.0
    %6169 = vmatpush1.msra.mxu0 0.0
    %6170 = vmatprep.subr.mxu0 0.0
    %6171 = vmatpush1.msra.mxu0 0.0
    %6172 = vmatprep.subr.mxu0 0.0
    %6173 = vmatpush1.msra.mxu0 0.0
    %6174 = vmatprep.subr.mxu0 0.0
    %6175 = vmatpush1.msra.mxu0 0.0
    %6176 = vmatprep.subr.mxu0 0.0
    %6177 = vmatpush1.msra.mxu0 0.0
    %6178 = vmatprep.subr.mxu0 0.0
    %6179 = vmatpush1.msra.mxu0 0.0
    %6180 = vmatprep.subr.mxu0 0.0
    %6181 = vmatpush1.msra.mxu0 0.0
    %6182 = vmatprep.subr.mxu0 0.0
    %6183 = vmatpush1.msra.mxu0 0.0
    %6184 = vmatprep.subr.mxu0 0.0
    %6185 = vmatpush1.msra.mxu0 0.0
    %6186 = vmatprep.subr.mxu0 0.0
    %6187 = vmatpush1.msra.mxu0 0.0
    %6188 = vmatprep.subr.mxu0 0.0
    %6189 = vmatpush1.msra.mxu0 0.0
    %6190 = vmatprep.subr.mxu0 0.0
    %6191 = vmatpush1.msra.mxu0 0.0
    %6192 = vmatprep.subr.mxu0 0.0
    %6193 = vmatpush1.msra.mxu0 0.0
    %6194 = vmatprep.subr.mxu0 0.0
    %6195 = vmatpush1.msra.mxu0 0.0
    %6196 = vmatprep.subr.mxu0 0.0
    %6197 = vmatpush1.msra.mxu0 0.0
    %6198 = vmatprep.subr.mxu0 0.0
    %6199 = vmatpush1.msra.mxu0 0.0
    %6200 = vmatprep.subr.mxu0 0.0
    %6201 = vmatpush1.msra.mxu0 0.0
    %6202 = vmatprep.subr.mxu0 0.0
    %6203 = vmatpush1.msra.mxu0 0.0
    %6204 = vmatprep.subr.mxu0 0.0
    %6205 = vmatpush1.msra.mxu0 0.0
    %6206 = vmatprep.subr.mxu0 0.0
    %6207 = vmatpush1.msra.mxu0 0.0
    %6208 = vmatprep.subr.mxu0 0.0
    %6209 = vmatpush1.msra.mxu0 0.0
    %6210 = vmatprep.subr.mxu0 0.0
    %6211 = vmatpush1.msra.mxu0 0.0
    %6212 = vmatprep.subr.mxu0 0.0
    %6213 = vmatpush1.msra.mxu0 0.0
    %6214 = vmatprep.subr.mxu0 0.0
    %6215 = vmatpush1.msra.mxu0 0.0
    %6216 = vmatprep.subr.mxu0 0.0
    %6217 = vmatpush1.msra.mxu0 0.0
    %6218 = vmatprep.subr.mxu0 0.0
    %6219 = vmatpush1.msra.mxu0 0.0
    %6220 = vmatprep.subr.mxu0 0.0
    %6221 = vmatpush1.msra.mxu0 0.0
    %6222 = vmatprep.subr.mxu0 0.0
    %6223 = vmatpush1.msra.mxu0 0.0
    %6224 = vmatprep.subr.mxu0 0.0
    %6225 = vmatpush1.msra.mxu0 0.0
    %6226 = vmatprep.mubr.f32.mxu0 0.0
    %6227 = vmatmul.mubr.f32.gmra.mrb[0].mxu0 %v6160
    %v6228 = vpop.f32.mrb[0].mxu0
    %v6229 = vadd.f32 0.0, %v6228
    %v6230 = vpop.f32.mrb[0].mxu0
    %6231 = vdwg.mxu0
    %6232 = vrot.lane.b32.xlu0 %v4487, 32
    %v6233 = vpop.permute.xlu0 %6232
    %v6236 = vsel %vm2300, %v5545, 0
    %6238 = vmatprep.subr.mxu0 0.0
    %6239 = vmatpush1.msra.mxu0 %v6233
    %6240 = vmatprep.subr.mxu0 0.0
    %6241 = vmatpush1.msra.mxu0 0.0
    %6242 = vmatprep.subr.mxu0 0.0
    %6243 = vmatpush1.msra.mxu0 0.0
    %6244 = vmatprep.subr.mxu0 0.0
    %6245 = vmatpush1.msra.mxu0 0.0
    %6246 = vmatprep.subr.mxu0 0.0
    %6247 = vmatpush1.msra.mxu0 0.0
    %6248 = vmatprep.subr.mxu0 0.0
    %6249 = vmatpush1.msra.mxu0 0.0
    %6250 = vmatprep.subr.mxu0 0.0
    %6251 = vmatpush1.msra.mxu0 0.0
    %6252 = vmatprep.subr.mxu0 0.0
    %6253 = vmatpush1.msra.mxu0 0.0
    %6254 = vmatprep.subr.mxu0 0.0
    %6255 = vmatpush1.msra.mxu0 0.0
    %6256 = vmatprep.subr.mxu0 0.0
    %6257 = vmatpush1.msra.mxu0 0.0
    %6258 = vmatprep.subr.mxu0 0.0
    %6259 = vmatpush1.msra.mxu0 0.0
    %6260 = vmatprep.subr.mxu0 0.0
    %6261 = vmatpush1.msra.mxu0 0.0
    %6262 = vmatprep.subr.mxu0 0.0
    %6263 = vmatpush1.msra.mxu0 0.0
    %6264 = vmatprep.subr.mxu0 0.0
    %6265 = vmatpush1.msra.mxu0 0.0
    %6266 = vmatprep.subr.mxu0 0.0
    %6267 = vmatpush1.msra.mxu0 0.0
    %6268 = vmatprep.subr.mxu0 0.0
    %6269 = vmatpush1.msra.mxu0 0.0
    %6270 = vmatprep.subr.mxu0 0.0
    %6271 = vmatpush1.msra.mxu0 0.0
    %6272 = vmatprep.subr.mxu0 0.0
    %6273 = vmatpush1.msra.mxu0 0.0
    %6274 = vmatprep.subr.mxu0 0.0
    %6275 = vmatpush1.msra.mxu0 0.0
    %6276 = vmatprep.subr.mxu0 0.0
    %6277 = vmatpush1.msra.mxu0 0.0
    %6278 = vmatprep.subr.mxu0 0.0
    %6279 = vmatpush1.msra.mxu0 0.0
    %6280 = vmatprep.subr.mxu0 0.0
    %6281 = vmatpush1.msra.mxu0 0.0
    %6282 = vmatprep.subr.mxu0 0.0
    %6283 = vmatpush1.msra.mxu0 0.0
    %6284 = vmatprep.subr.mxu0 0.0
    %6285 = vmatpush1.msra.mxu0 0.0
    %6286 = vmatprep.subr.mxu0 0.0
    %6287 = vmatpush1.msra.mxu0 0.0
    %6288 = vmatprep.subr.mxu0 0.0
    %6289 = vmatpush1.msra.mxu0 0.0
    %6290 = vmatprep.subr.mxu0 0.0
    %6291 = vmatpush1.msra.mxu0 0.0
    %6292 = vmatprep.subr.mxu0 0.0
    %6293 = vmatpush1.msra.mxu0 0.0
    %6294 = vmatprep.subr.mxu0 0.0
    %6295 = vmatpush1.msra.mxu0 0.0
    %6296 = vmatprep.subr.mxu0 0.0
    %6297 = vmatpush1.msra.mxu0 0.0
    %6298 = vmatprep.subr.mxu0 0.0
    %6299 = vmatpush1.msra.mxu0 0.0
    %6300 = vmatprep.subr.mxu0 0.0
    %6301 = vmatpush1.msra.mxu0 0.0
    %6302 = vmatprep.mubr.f32.mxu0 0.0
    %6303 = vmatmul.mubr.f32.gmra.mrb[0].mxu0 %v6236
    %v6304 = vpop.f32.mrb[0].mxu0
    %v6305 = vadd.f32 0.0, %v6304
    %v6306 = vpop.f32.mrb[0].mxu0
    %6307 = vdwg.mxu0
    %6308 = vrot.lane.b32.xlu0 %v4489, 32
    %v6309 = vpop.permute.xlu0 %6308
    %v6312 = vsel %vm2300, %v5546, 0
    %6314 = vmatprep.subr.mxu0 0.0
    %6315 = vmatpush1.msra.mxu0 %v6309
    %6316 = vmatprep.subr.mxu0 0.0
    %6317 = vmatpush1.msra.mxu0 0.0
    %6318 = vmatprep.subr.mxu0 0.0
    %6319 = vmatpush1.msra.mxu0 0.0
    %6320 = vmatprep.subr.mxu0 0.0
    %6321 = vmatpush1.msra.mxu0 0.0
    %6322 = vmatprep.subr.mxu0 0.0
    %6323 = vmatpush1.msra.mxu0 0.0
    %6324 = vmatprep.subr.mxu0 0.0
    %6325 = vmatpush1.msra.mxu0 0.0
    %6326 = vmatprep.subr.mxu0 0.0
    %6327 = vmatpush1.msra.mxu0 0.0
    %6328 = vmatprep.subr.mxu0 0.0
    %6329 = vmatpush1.msra.mxu0 0.0
    %6330 = vmatprep.subr.mxu0 0.0
    %6331 = vmatpush1.msra.mxu0 0.0
    %6332 = vmatprep.subr.mxu0 0.0
    %6333 = vmatpush1.msra.mxu0 0.0
    %6334 = vmatprep.subr.mxu0 0.0
    %6335 = vmatpush1.msra.mxu0 0.0
    %6336 = vmatprep.subr.mxu0 0.0
    %6337 = vmatpush1.msra.mxu0 0.0
    %6338 = vmatprep.subr.mxu0 0.0
    %6339 = vmatpush1.msra.mxu0 0.0
    %6340 = vmatprep.subr.mxu0 0.0
    %6341 = vmatpush1.msra.mxu0 0.0
    %6342 = vmatprep.subr.mxu0 0.0
    %6343 = vmatpush1.msra.mxu0 0.0
    %6344 = vmatprep.subr.mxu0 0.0
    %6345 = vmatpush1.msra.mxu0 0.0
    %6346 = vmatprep.subr.mxu0 0.0
    %6347 = vmatpush1.msra.mxu0 0.0
    %6348 = vmatprep.subr.mxu0 0.0
    %6349 = vmatpush1.msra.mxu0 0.0
    %6350 = vmatprep.subr.mxu0 0.0
    %6351 = vmatpush1.msra.mxu0 0.0
    %6352 = vmatprep.subr.mxu0 0.0
    %6353 = vmatpush1.msra.mxu0 0.0
    %6354 = vmatprep.subr.mxu0 0.0
    %6355 = vmatpush1.msra.mxu0 0.0
    %6356 = vmatprep.subr.mxu0 0.0
    %6357 = vmatpush1.msra.mxu0 0.0
    %6358 = vmatprep.subr.mxu0 0.0
    %6359 = vmatpush1.msra.mxu0 0.0
    %6360 = vmatprep.subr.mxu0 0.0
    %6361 = vmatpush1.msra.mxu0 0.0
    %6362 = vmatprep.subr.mxu0 0.0
    %6363 = vmatpush1.msra.mxu0 0.0
    %6364 = vmatprep.subr.mxu0 0.0
    %6365 = vmatpush1.msra.mxu0 0.0
    %6366 = vmatprep.subr.mxu0 0.0
    %6367 = vmatpush1.msra.mxu0 0.0
    %6368 = vmatprep.subr.mxu0 0.0
    %6369 = vmatpush1.msra.mxu0 0.0
    %6370 = vmatprep.subr.mxu0 0.0
    %6371 = vmatpush1.msra.mxu0 0.0
    %6372 = vmatprep.subr.mxu0 0.0
    %6373 = vmatpush1.msra.mxu0 0.0
    %6374 = vmatprep.subr.mxu0 0.0
    %6375 = vmatpush1.msra.mxu0 0.0
    %6376 = vmatprep.subr.mxu0 0.0
    %6377 = vmatpush1.msra.mxu0 0.0
    %6378 = vmatprep.mubr.f32.mxu0 0.0
    %6379 = vmatmul.mubr.f32.gmra.mrb[0].mxu0 %v6312
    %v6380 = vpop.f32.mrb[0].mxu0
    %v6381 = vadd.f32 0.0, %v6380
    %v6382 = vpop.f32.mrb[0].mxu0
    %6383 = vdwg.mxu0
    %6384 = vrot.lane.b32.xlu0 %v4491, 32
    %v6385 = vpop.permute.xlu0 %6384
    %v6388 = vsel %vm2300, %v5547, 0
    %6390 = vmatprep.subr.mxu0 0.0
    %6391 = vmatpush1.msra.mxu0 %v6385
    %6392 = vmatprep.subr.mxu0 0.0
    %6393 = vmatpush1.msra.mxu0 0.0
    %6394 = vmatprep.subr.mxu0 0.0
    %6395 = vmatpush1.msra.mxu0 0.0
    %6396 = vmatprep.subr.mxu0 0.0
    %6397 = vmatpush1.msra.mxu0 0.0
    %6398 = vmatprep.subr.mxu0 0.0
    %6399 = vmatpush1.msra.mxu0 0.0
    %6400 = vmatprep.subr.mxu0 0.0
    %6401 = vmatpush1.msra.mxu0 0.0
    %6402 = vmatprep.subr.mxu0 0.0
    %6403 = vmatpush1.msra.mxu0 0.0
    %6404 = vmatprep.subr.mxu0 0.0
    %6405 = vmatpush1.msra.mxu0 0.0
    %6406 = vmatprep.subr.mxu0 0.0
    %6407 = vmatpush1.msra.mxu0 0.0
    %6408 = vmatprep.subr.mxu0 0.0
    %6409 = vmatpush1.msra.mxu0 0.0
    %6410 = vmatprep.subr.mxu0 0.0
    %6411 = vmatpush1.msra.mxu0 0.0
    %6412 = vmatprep.subr.mxu0 0.0
    %6413 = vmatpush1.msra.mxu0 0.0
    %6414 = vmatprep.subr.mxu0 0.0
    %6415 = vmatpush1.msra.mxu0 0.0
    %6416 = vmatprep.subr.mxu0 0.0
    %6417 = vmatpush1.msra.mxu0 0.0
    %6418 = vmatprep.subr.mxu0 0.0
    %6419 = vmatpush1.msra.mxu0 0.0
    %6420 = vmatprep.subr.mxu0 0.0
    %6421 = vmatpush1.msra.mxu0 0.0
    %6422 = vmatprep.subr.mxu0 0.0
    %6423 = vmatpush1.msra.mxu0 0.0
    %6424 = vmatprep.subr.mxu0 0.0
    %6425 = vmatpush1.msra.mxu0 0.0
    %6426 = vmatprep.subr.mxu0 0.0
    %6427 = vmatpush1.msra.mxu0 0.0
    %6428 = vmatprep.subr.mxu0 0.0
    %6429 = vmatpush1.msra.mxu0 0.0
    %6430 = vmatprep.subr.mxu0 0.0
    %6431 = vmatpush1.msra.mxu0 0.0
    %6432 = vmatprep.subr.mxu0 0.0
    %6433 = vmatpush1.msra.mxu0 0.0
    %6434 = vmatprep.subr.mxu0 0.0
    %6435 = vmatpush1.msra.mxu0 0.0
    %6436 = vmatprep.subr.mxu0 0.0
    %6437 = vmatpush1.msra.mxu0 0.0
    %6438 = vmatprep.subr.mxu0 0.0
    %6439 = vmatpush1.msra.mxu0 0.0
    %6440 = vmatprep.subr.mxu0 0.0
    %6441 = vmatpush1.msra.mxu0 0.0
    %6442 = vmatprep.subr.mxu0 0.0
    %6443 = vmatpush1.msra.mxu0 0.0
    %6444 = vmatprep.subr.mxu0 0.0
    %6445 = vmatpush1.msra.mxu0 0.0
    %6446 = vmatprep.subr.mxu0 0.0
    %6447 = vmatpush1.msra.mxu0 0.0
    %6448 = vmatprep.subr.mxu0 0.0
    %6449 = vmatpush1.msra.mxu0 0.0
    %6450 = vmatprep.subr.mxu0 0.0
    %6451 = vmatpush1.msra.mxu0 0.0
    %6452 = vmatprep.subr.mxu0 0.0
    %6453 = vmatpush1.msra.mxu0 0.0
    %6454 = vmatprep.mubr.f32.mxu0 0.0
    %6455 = vmatmul.mubr.f32.gmra.mrb[0].mxu0 %v6388
    %v6456 = vpop.f32.mrb[0].mxu0
    %v6457 = vadd.f32 0.0, %v6456
    %v6458 = vpop.f32.mrb[0].mxu0
    %6459 = vdwg.mxu0
    %6462 = vrot.lane.b32.xlu0 %v5773, 8
    %v6463 = vpop.permute.xlu0 %6462
    %6464 = vrot.lane.b32.xlu0 %v5849, 8
    %v6465 = vpop.permute.xlu0 %6464
    %6470 = vrot.lane.b32.xlu0 %v5925, 16
    %v6471 = vpop.permute.xlu0 %6470
    %6472 = vrot.lane.b32.xlu0 %v6001, 16
    %v6473 = vpop.permute.xlu0 %6472
    %6478 = vrot.lane.b32.xlu0 %v6077, 24
    %v6479 = vpop.permute.xlu0 %6478
    %6480 = vrot.lane.b32.xlu0 %v6153, 24
    %v6481 = vpop.permute.xlu0 %6480
    %6486 = vrot.lane.b32.xlu0 %v6229, 32
    %v6487 = vpop.permute.xlu0 %6486
    %6488 = vrot.lane.b32.xlu0 %v6305, 32
    %v6489 = vpop.permute.xlu0 %6488
    %6494 = vrot.lane.b32.xlu0 %v6381, 40
    %v6495 = vpop.permute.xlu0 %6494
    %6496 = vrot.lane.b32.xlu0 %v6457, 40
    %v6497 = vpop.permute.xlu0 %6496
    %v6500 = vsel %vm2300, %v5621, %v6463
    %v6501 = vsel %vm2300, %v5697, %v6465
    %v6502 = vsel %vm4309, %v6500, %v6471
    %v6503 = vsel %vm4309, %v6501, %v6473
    %v6504 = vsel %vm4312, %v6502, %v6479
    %v6505 = vsel %vm4312, %v6503, %v6481
    %v6506 = vsel %vm96, %v6504, %v6487
    %v6507 = vsel %vm96, %v6505, %v6489
    %v6508 = vsel %vm4317, %v6506, %v6495
    %v6509 = vsel %vm4317, %v6507, %v6497
    %v6510 = vadd.f32 %v6508, %v4363
    %v6511 = vadd.f32 %v6509, %v4364
    %v6512 = vsel %vm202, %v6510, 0.0
    %6513 = vadd.xlane.f32.xlu0 %v6512
    %v6514 = vpop.xlane.xlu0 %6513
    %v6515 = vsel %vm202, %v6511, 0.0
    %6516 = vadd.xlane.f32.xlu0 %v6515
    %v6517 = vpop.xlane.xlu0 %6516
    %v6518 = vmul.f32 %v6514, %v4328
    %v6519 = vmul.f32 %v6517, %v4328
    %v6520 = vsub.f32 %v6510, %v6518
    %v6521 = vsub.f32 %v6511, %v6519
    %v6522 = vmul.f32 %v6520, %v6520
    %v6523 = vmul.f32 %v6521, %v6521
    %v6524 = vsel %vm202, %v6522, 0.0
    %6525 = vadd.xlane.f32.xlu0 %v6524
    %v6526 = vpop.xlane.xlu0 %6525
    %v6527 = vsel %vm202, %v6523, 0.0
    %6528 = vadd.xlane.f32.xlu0 %v6527
    %v6529 = vpop.xlane.xlu0 %6528
    %v6530 = vmul.f32 %v6526, %v4328
    %v6531 = vmul.f32 %v6529, %v4328
    %v6532 = vadd.f32 %v6530, 1e-05
    %v6533 = vadd.f32 %v6531, 1e-05
    %v6534 = vrsqrt.pop %v6532
    %v6535 = vrsqrt.pop %v6533
    %v6536 = vmul.f32 %v6520, %v6534
    %v6537 = vmul.f32 %v6521, %v6535
    %v6538 = vmul.f32 %v6536, %v4353
    %v6539 = vmul.f32 %v6537, %v4353
    %v6540 = vadd.f32 %v6538, %v4361
    %v6541 = vadd.f32 %v6539, %v4361
    %v6543 = vrot.slane %v6540, 1
    %6544 = vrot.lane.b32.xlu0 %v6543, 48
    %v6545 = vpop.permute.xlu0 %6544
    %v6547 = vrot.slane %v6540, 2
    %6548 = vrot.lane.b32.xlu0 %v6547, 96
    %v6549 = vpop.permute.xlu0 %6548
    %v6551 = vrot.slane %v6540, 3
    %6552 = vrot.lane.b32.xlu0 %v6551, 16
    %v6553 = vpop.permute.xlu0 %6552
    %v6555 = vrot.slane %v6540, 4
    %6556 = vrot.lane.b32.xlu0 %v6555, 64
    %v6557 = vpop.permute.xlu0 %6556
    %v6559 = vrot.slane %v6540, 5
    %6560 = vrot.lane.b32.xlu0 %v6559, 112
    %v6561 = vpop.permute.xlu0 %6560
    %v6563 = vrot.slane %v6540, 6
    %6564 = vrot.lane.b32.xlu0 %v6563, 32
    %v6565 = vpop.permute.xlu0 %6564
    %v6567 = vrot.slane %v6540, 7
    %6568 = vrot.lane.b32.xlu0 %v6567, 80
    %v6569 = vpop.permute.xlu0 %6568
    %v6571 = vsel %vm202, %v6540, %v6545
    %vm6572 = vcmask 785408
    %v6573 = vsel %vm6572, %v6571, %v6549
    %v6574 = vsel %vm4309, %v6549, %v6553
    %vm6575 = vcmask 523264
    %v6576 = vsel %vm6575, %v6574, %v6557
    %vm6577 = vcmask 916480
    %v6578 = vsel %vm6577, %v6576, %v6561
    %v6579 = vsel %vm96, %v6561, %v6565
    %v6580 = vsel %vm415, %v6579, %v6569
    %v6584 = vcombine.low %v6573, %v6578
    %v6586 = vunpack.c.l.s4 1966171168
    %v6587 = vunpack.c.0.s8 %v6586
    %v6588 = vlaneseq
    %v6589 = vshrl.u32 %v6588, 7
    %v6590 = vsub.s32 %v6587, %v6589
    %v6591 = vrot.slane %v6584, %v6590
    %v6593 = vunpack.c.l.s4 1966171168
    %v6594 = vunpack.c.0.s8 %v6593
    %v6595 = vlaneseq
    %v6596 = vshrl.u32 %v6595, 7
    %v6597 = vsub.s32 %v6594, %v6596
    %v6598 = vrot.slane %v6580, %v6597
    %v6599 = vcombine.low %v6591, %v6598
    %v6601 = vunpack.c.l.s4 1966171168
    %v6602 = vunpack.c.0.s8 %v6601
    %v6603 = vlaneseq
    %v6604 = vshrl.u32 %v6603, 7
    %v6605 = vsub.s32 %v6602, %v6604
    %v6606 = vrot.slane %v6599, %v6605
    %v6608 = vlaneseq
    %vm6609 = vcmp.ge.s32.totalorder %v6608, 0
    %vm6610 = vcmp.lt.s32.totalorder %v6608, 384
    %vm6611 = vmand %vm6609, %vm6610
    %6612 = vst.msk [vmem:[#allocation3] ss:$2 sm:$0x7] %vm6611, %v6606
    %v6614 = vrot.slane %v6541, 1
    %6615 = vrot.lane.b32.xlu0 %v6614, 48
    %v6616 = vpop.permute.xlu0 %6615
    %v6618 = vrot.slane %v6541, 2
    %6619 = vrot.lane.b32.xlu0 %v6618, 96
    %v6620 = vpop.permute.xlu0 %6619
    %v6622 = vrot.slane %v6541, 3
    %6623 = vrot.lane.b32.xlu0 %v6622, 16
    %v6624 = vpop.permute.xlu0 %6623
    %v6626 = vrot.slane %v6541, 4
    %6627 = vrot.lane.b32.xlu0 %v6626, 64
    %v6628 = vpop.permute.xlu0 %6627
    %v6630 = vrot.slane %v6541, 5
    %6631 = vrot.lane.b32.xlu0 %v6630, 112
    %v6632 = vpop.permute.xlu0 %6631
    %v6634 = vrot.slane %v6541, 6
    %6635 = vrot.lane.b32.xlu0 %v6634, 32
    %v6636 = vpop.permute.xlu0 %6635
    %v6638 = vrot.slane %v6541, 7
    %6639 = vrot.lane.b32.xlu0 %v6638, 80
    %v6640 = vpop.permute.xlu0 %6639
    %v6642 = vsel %vm202, %v6541, %v6616
    %v6643 = vsel %vm6572, %v6642, %v6620
    %v6644 = vsel %vm4309, %v6620, %v6624
    %v6645 = vsel %vm6575, %v6644, %v6628
    %v6646 = vsel %vm6577, %v6645, %v6632
    %v6647 = vsel %vm96, %v6632, %v6636
    %v6648 = vsel %vm415, %v6647, %v6640
    %v6652 = vcombine.low %v6643, %v6646
    %v6654 = vunpack.c.l.s4 1966171168
    %v6655 = vunpack.c.0.s8 %v6654
    %v6656 = vlaneseq
    %v6657 = vshrl.u32 %v6656, 7
    %v6658 = vsub.s32 %v6655, %v6657
    %v6659 = vrot.slane %v6652, %v6658
    %v6661 = vunpack.c.l.s4 1966171168
    %v6662 = vunpack.c.0.s8 %v6661
    %v6663 = vlaneseq
    %v6664 = vshrl.u32 %v6663, 7
    %v6665 = vsub.s32 %v6662, %v6664
    %v6666 = vrot.slane %v6648, %v6665
    %v6667 = vcombine.low %v6659, %v6666
    %v6669 = vunpack.c.l.s4 1966171168
    %v6670 = vunpack.c.0.s8 %v6669
    %v6671 = vlaneseq
    %v6672 = vshrl.u32 %v6671, 7
    %v6673 = vsub.s32 %v6670, %v6672
    %v6674 = vrot.slane %v6667, %v6673
    %s6676 = scalar_lea.vmem [#allocation3], 1
    %6677 = vst.msk [vmem:[%s6676] ss:$2 sm:$0x7] %vm6611, %v6674
    %v6678 = vld [vmem:[#allocation3] sm:$0x3f]
    %v6679 = vld [vmem:[%s11] sm:$0xff]
    %v6680 = vld [vmem:[%s11 + $0x8] sm:$0xff]
    %v6681 = vld [vmem:[%s11 + $0x10] sm:$0xff]
    %v6682 = vld [vmem:[%s11 + $0x18] sm:$0xff]
    %v6683 = vld [vmem:[%s11 + $0x20] sm:$0xff]
    %v6684 = vld [vmem:[%s11 + $0x28] sm:$0xff]
    %v6685 = vld [vmem:[%s11 + $0x30] sm:$0xff]
    %v6686 = vld [vmem:[%s11 + $0x38] sm:$0xff]
    %v6687 = vld [vmem:[%s11 + $0x40] sm:$0xff]
    %v6688 = vld [vmem:[%s11 + $0x48] sm:$0xff]
    %v6689 = vld [vmem:[%s11 + $0x50] sm:$0xff]
    %v6690 = vld [vmem:[%s11 + $0x58] sm:$0xff]
    %v6691 = vld [vmem:[%s11 + $0x60] sm:$0xff]
    %v6692 = vld [vmem:[%s11 + $0x68] sm:$0xff]
    %v6693 = vld [vmem:[%s11 + $0x70] sm:$0xff]
    %v6694 = vld [vmem:[%s11 + $0x78] sm:$0xff]
    %v6695 = vld [vmem:[%s11 + $0x80] sm:$0xff]
    %v6696 = vld [vmem:[%s11 + $0x88] sm:$0xff]
    %v6697 = vld [vmem:[%s11 + $0x90] sm:$0xff]
    %v6698 = vld [vmem:[%s11 + $0x98] sm:$0xff]
    %v6699 = vld [vmem:[%s11 + $0xa0] sm:$0xff]
    %v6700 = vld [vmem:[%s11 + $0xa8] sm:$0xff]
    %v6701 = vld [vmem:[%s11 + $0xb0] sm:$0xff]
    %v6702 = vld [vmem:[%s11 + $0xb8] sm:$0xff]
    %v6703 = vld [vmem:[%s11 + $0xc0] sm:$0xff]
    %v6704 = vld [vmem:[%s11 + $0xc8] sm:$0xff]
    %v6705 = vld [vmem:[%s11 + $0xd0] sm:$0xff]
    %v6706 = vld [vmem:[%s11 + $0xd8] sm:$0xff]
    %v6707 = vld [vmem:[%s11 + $0xe0] sm:$0xff]
    %v6708 = vld [vmem:[%s11 + $0xe8] sm:$0xff]
    %v6709 = vld [vmem:[%s11 + $0xf0] sm:$0xff]
    %v6710 = vld [vmem:[%s11 + $0xf8] sm:$0xff]
    %v6711 = vld [vmem:[%s11 + $0x100] sm:$0xff]
    %v6712 = vld [vmem:[%s11 + $0x108] sm:$0xff]
    %v6713 = vld [vmem:[%s11 + $0x110] sm:$0xff]
    %v6714 = vld [vmem:[%s11 + $0x118] sm:$0xff]
    %v6715 = vld [vmem:[%s11 + $0x120] sm:$0xff]
    %v6716 = vld [vmem:[%s11 + $0x128] sm:$0xff]
    %v6717 = vld [vmem:[%s11 + $0x130] sm:$0xff]
    %v6718 = vld [vmem:[%s11 + $0x138] sm:$0xff]
    %v6719 = vld [vmem:[%s11 + $0x140] sm:$0xff]
    %v6720 = vld [vmem:[%s11 + $0x148] sm:$0xff]
    %v6721 = vld [vmem:[%s11 + $0x150] sm:$0xff]
    %v6722 = vld [vmem:[%s11 + $0x158] sm:$0xff]
    %v6723 = vld [vmem:[%s11 + $0x160] sm:$0xff]
    %v6724 = vld [vmem:[%s11 + $0x168] sm:$0xff]
    %v6725 = vld [vmem:[%s11 + $0x170] sm:$0xff]
    %v6726 = vld [vmem:[%s11 + $0x178] sm:$0xff]
    %v6727 = vld [vmem:[%s11 + $0x180] sm:$0xff]
    %v6728 = vld [vmem:[%s11 + $0x188] sm:$0xff]
    %v6729 = vld [vmem:[%s11 + $0x190] sm:$0xff]
    %v6730 = vld [vmem:[%s11 + $0x198] sm:$0xff]
    %v6731 = vld [vmem:[%s11 + $0x1a0] sm:$0xff]
    %v6732 = vld [vmem:[%s11 + $0x1a8] sm:$0xff]
    %v6733 = vld [vmem:[%s11 + $0x1b0] sm:$0xff]
    %v6734 = vld [vmem:[%s11 + $0x1b8] sm:$0xff]
    %v6735 = vld [vmem:[%s11 + $0x1c0] sm:$0xff]
    %v6736 = vld [vmem:[%s11 + $0x1c8] sm:$0xff]
    %v6737 = vld [vmem:[%s11 + $0x1d0] sm:$0xff]
    %v6738 = vld [vmem:[%s11 + $0x1d8] sm:$0xff]
    %v6739 = vld [vmem:[%s11 + $0x1e0] sm:$0xff]
    %v6740 = vld [vmem:[%s11 + $0x1e8] sm:$0xff]
    %v6741 = vld [vmem:[%s11 + $0x1f0] sm:$0xff]
    %v6742 = vld [vmem:[%s11 + $0x1f8] sm:$0xff]
    %v6743 = vld [vmem:[%s11 + $0x200] sm:$0xff]
    %v6744 = vld [vmem:[%s11 + $0x208] sm:$0xff]
    %v6745 = vld [vmem:[%s11 + $0x210] sm:$0xff]
    %v6746 = vld [vmem:[%s11 + $0x218] sm:$0xff]
    %v6747 = vld [vmem:[%s11 + $0x220] sm:$0xff]
    %v6748 = vld [vmem:[%s11 + $0x228] sm:$0xff]
    %v6749 = vld [vmem:[%s11 + $0x230] sm:$0xff]
    %v6750 = vld [vmem:[%s11 + $0x238] sm:$0xff]
    %v6751 = vld [vmem:[%s11 + $0x240] sm:$0xff]
    %v6752 = vld [vmem:[%s11 + $0x248] sm:$0xff]
    %v6753 = vld [vmem:[%s11 + $0x250] sm:$0xff]
    %v6754 = vld [vmem:[%s11 + $0x258] sm:$0xff]
    %v6755 = vld [vmem:[%s11 + $0x260] sm:$0xff]
    %v6756 = vld [vmem:[%s11 + $0x268] sm:$0xff]
    %v6757 = vld [vmem:[%s11 + $0x270] sm:$0xff]
    %v6758 = vld [vmem:[%s11 + $0x278] sm:$0xff]
    %v6759 = vld [vmem:[%s11 + $0x280] sm:$0xff]
    %v6760 = vld [vmem:[%s11 + $0x288] sm:$0xff]
    %v6761 = vld [vmem:[%s11 + $0x290] sm:$0xff]
    %v6762 = vld [vmem:[%s11 + $0x298] sm:$0xff]
    %v6763 = vld [vmem:[%s11 + $0x2a0] sm:$0xff]
    %v6764 = vld [vmem:[%s11 + $0x2a8] sm:$0xff]
    %v6765 = vld [vmem:[%s11 + $0x2b0] sm:$0xff]
    %v6766 = vld [vmem:[%s11 + $0x2b8] sm:$0xff]
    %v6767 = vld [vmem:[%s11 + $0x2c0] sm:$0xff]
    %v6768 = vld [vmem:[%s11 + $0x2c8] sm:$0xff]
    %v6769 = vld [vmem:[%s11 + $0x2d0] sm:$0xff]
    %v6770 = vld [vmem:[%s11 + $0x2d8] sm:$0xff]
    %v6771 = vld [vmem:[%s11 + $0x2e0] sm:$0xff]
    %v6772 = vld [vmem:[%s11 + $0x2e8] sm:$0xff]
    %v6773 = vld [vmem:[%s11 + $0x2f0] sm:$0xff]
    %v6774 = vld [vmem:[%s11 + $0x2f8] sm:$0xff]
    %v6775 = vld [vmem:[%s12] sm:$0x3]
    %v6777 = vlaneseq
    %v6778 = vshrl.u32 %v6777, 7
    %v6779 = vsub.s32 0, %v6778
    %v6780 = vrot.slane %v6775, %v6779
    %v6781 = vlaneseq
    %v6782 = vshrl.u32 %v6781, 7
    %v6783 = vsub.s32 1, %v6782
    %v6784 = vrot.slane %v6775, %v6783
    %v6788 = vcombine.high %v6678, %v6678
    %v6790 = vunpack.c.l.s4 1983009808
    %v6791 = vunpack.c.0.s8 %v6790
    %v6792 = vlaneseq
    %v6793 = vshrl.u32 %v6792, 7
    %v6794 = vsub.s32 %v6791, %v6793
    %v6795 = vrot.slane %v6678, %v6794
    %v6797 = vunpack.c.l.s4 1983009808
    %v6798 = vunpack.c.0.s8 %v6797
    %v6799 = vlaneseq
    %v6800 = vshrl.u32 %v6799, 7
    %v6801 = vsub.s32 %v6798, %v6800
    %v6802 = vrot.slane %v6788, %v6801
    %v6803 = vcombine.high %v6795, %v6795
    %6807 = vmatprep.subr.mxu0 %v6680
    %6808 = vmatpush1.msra.mxu0 %v6679
    %6809 = vmatprep.subr.mxu0 %v6682
    %6810 = vmatpush1.msra.mxu0 %v6681
    %6811 = vmatprep.subr.mxu0 %v6684
    %6812 = vmatpush1.msra.mxu0 %v6683
    %6813 = vmatprep.subr.mxu0 %v6686
    %6814 = vmatpush1.msra.mxu0 %v6685
    %6815 = vmatprep.subr.mxu0 %v6688
    %6816 = vmatpush1.msra.mxu0 %v6687
    %6817 = vmatprep.subr.mxu0 %v6690
    %6818 = vmatpush1.msra.mxu0 %v6689
    %6819 = vmatprep.subr.mxu0 %v6692
    %6820 = vmatpush1.msra.mxu0 %v6691
    %6821 = vmatprep.subr.mxu0 %v6694
    %6822 = vmatpush1.msra.mxu0 %v6693
    %6823 = vmatprep.subr.mxu0 %v6696
    %6824 = vmatpush1.msra.mxu0 %v6695
    %6825 = vmatprep.subr.mxu0 %v6698
    %6826 = vmatpush1.msra.mxu0 %v6697
    %6827 = vmatprep.subr.mxu0 %v6700
    %6828 = vmatpush1.msra.mxu0 %v6699
    %6829 = vmatprep.subr.mxu0 %v6702
    %6830 = vmatpush1.msra.mxu0 %v6701
    %6831 = vmatprep.subr.mxu0 %v6704
    %6832 = vmatpush1.msra.mxu0 %v6703
    %6833 = vmatprep.subr.mxu0 %v6706
    %6834 = vmatpush1.msra.mxu0 %v6705
    %6835 = vmatprep.subr.mxu0 %v6708
    %6836 = vmatpush1.msra.mxu0 %v6707
    %6837 = vmatprep.subr.mxu0 %v6710
    %6838 = vmatpush1.msra.mxu0 %v6709
    %6839 = vmatprep.subr.mxu0 %v6712
    %6840 = vmatpush1.msra.mxu0 %v6711
    %6841 = vmatprep.subr.mxu0 %v6714
    %6842 = vmatpush1.msra.mxu0 %v6713
    %6843 = vmatprep.subr.mxu0 %v6716
    %6844 = vmatpush1.msra.mxu0 %v6715
    %6845 = vmatprep.subr.mxu0 %v6718
    %6846 = vmatpush1.msra.mxu0 %v6717
    %6847 = vmatprep.subr.mxu0 %v6720
    %6848 = vmatpush1.msra.mxu0 %v6719
    %6849 = vmatprep.subr.mxu0 %v6722
    %6850 = vmatpush1.msra.mxu0 %v6721
    %6851 = vmatprep.subr.mxu0 %v6724
    %6852 = vmatpush1.msra.mxu0 %v6723
    %6853 = vmatprep.subr.mxu0 %v6726
    %6854 = vmatpush1.msra.mxu0 %v6725
    %6855 = vmatprep.subr.mxu0 %v6728
    %6856 = vmatpush1.msra.mxu0 %v6727
    %6857 = vmatprep.subr.mxu0 %v6730
    %6858 = vmatpush1.msra.mxu0 %v6729
    %6859 = vmatprep.subr.mxu0 %v6732
    %6860 = vmatpush1.msra.mxu0 %v6731
    %6861 = vmatprep.subr.mxu0 %v6734
    %6862 = vmatpush1.msra.mxu0 %v6733
    %6863 = vmatprep.subr.mxu0 %v6736
    %6864 = vmatpush1.msra.mxu0 %v6735
    %6865 = vmatprep.subr.mxu0 %v6738
    %6866 = vmatpush1.msra.mxu0 %v6737
    %6867 = vmatprep.subr.mxu0 %v6740
    %6868 = vmatpush1.msra.mxu0 %v6739
    %6869 = vmatprep.subr.mxu0 %v6742
    %6870 = vmatpush1.msra.mxu0 %v6741
    %6871 = vmatprep.mubr.f32.mxu0 %v6803
    %6872 = vmatmul.mubr.f32.gmra.mrb[0].mxu0 %v6795
    %v6873 = vpop.f32.mrb[0].mxu0
    %v6874 = vadd.f32 %v6780, %v6873
    %v6875 = vpop.f32.mrb[0].mxu0
    %v6876 = vadd.f32 %v6784, %v6875
    %6877 = vdwg.mxu0
    %6878 = vmatprep.subr.mxu0 %v6744
    %6879 = vmatpush1.msra.mxu0 %v6743
    %6880 = vmatprep.subr.mxu0 %v6746
    %6881 = vmatpush1.msra.mxu0 %v6745
    %6882 = vmatprep.subr.mxu0 %v6748
    %6883 = vmatpush1.msra.mxu0 %v6747
    %6884 = vmatprep.subr.mxu0 %v6750
    %6885 = vmatpush1.msra.mxu0 %v6749
    %6886 = vmatprep.subr.mxu0 %v6752
    %6887 = vmatpush1.msra.mxu0 %v6751
    %6888 = vmatprep.subr.mxu0 %v6754
    %6889 = vmatpush1.msra.mxu0 %v6753
    %6890 = vmatprep.subr.mxu0 %v6756
    %6891 = vmatpush1.msra.mxu0 %v6755
    %6892 = vmatprep.subr.mxu0 %v6758
    %6893 = vmatpush1.msra.mxu0 %v6757
    %6894 = vmatprep.subr.mxu0 %v6760
    %6895 = vmatpush1.msra.mxu0 %v6759
    %6896 = vmatprep.subr.mxu0 %v6762
    %6897 = vmatpush1.msra.mxu0 %v6761
    %6898 = vmatprep.subr.mxu0 %v6764
    %6899 = vmatpush1.msra.mxu0 %v6763
    %6900 = vmatprep.subr.mxu0 %v6766
    %6901 = vmatpush1.msra.mxu0 %v6765
    %6902 = vmatprep.subr.mxu0 %v6768
    %6903 = vmatpush1.msra.mxu0 %v6767
    %6904 = vmatprep.subr.mxu0 %v6770
    %6905 = vmatpush1.msra.mxu0 %v6769
    %6906 = vmatprep.subr.mxu0 %v6772
    %6907 = vmatpush1.msra.mxu0 %v6771
    %6908 = vmatprep.subr.mxu0 %v6774
    %6909 = vmatpush1.msra.mxu0 %v6773
    %6910 = vmatprep.subr.mxu0 0.0
    %6911 = vmatpush1.msra.mxu0 0.0
    %6912 = vmatprep.subr.mxu0 0.0
    %6913 = vmatpush1.msra.mxu0 0.0
    %6914 = vmatprep.subr.mxu0 0.0
    %6915 = vmatpush1.msra.mxu0 0.0
    %6916 = vmatprep.subr.mxu0 0.0
    %6917 = vmatpush1.msra.mxu0 0.0
    %6918 = vmatprep.subr.mxu0 0.0
    %6919 = vmatpush1.msra.mxu0 0.0
    %6920 = vmatprep.subr.mxu0 0.0
    %6921 = vmatpush1.msra.mxu0 0.0
    %6922 = vmatprep.subr.mxu0 0.0
    %6923 = vmatpush1.msra.mxu0 0.0
    %6924 = vmatprep.subr.mxu0 0.0
    %6925 = vmatpush1.msra.mxu0 0.0
    %6926 = vmatprep.subr.mxu0 0.0
    %6927 = vmatpush1.msra.mxu0 0.0
    %6928 = vmatprep.subr.mxu0 0.0
    %6929 = vmatpush1.msra.mxu0 0.0
    %6930 = vmatprep.subr.mxu0 0.0
    %6931 = vmatpush1.msra.mxu0 0.0
    %6932 = vmatprep.subr.mxu0 0.0
    %6933 = vmatpush1.msra.mxu0 0.0
    %6934 = vmatprep.subr.mxu0 0.0
    %6935 = vmatpush1.msra.mxu0 0.0
    %6936 = vmatprep.subr.mxu0 0.0
    %6937 = vmatpush1.msra.mxu0 0.0
    %6938 = vmatprep.subr.mxu0 0.0
    %6939 = vmatpush1.msra.mxu0 0.0
    %6940 = vmatprep.subr.mxu0 0.0
    %6941 = vmatpush1.msra.mxu0 0.0
    %6942 = vmatprep.mubr.f32.mxu0 0.0
    %6943 = vmatmul.mubr.f32.gmra.mrb[0].mxu0 %v6802
    %v6944 = vpop.f32.mrb[0].mxu0
    %v6945 = vadd.f32 %v6874, %v6944
    %v6946 = vpop.f32.mrb[0].mxu0
    %v6947 = vadd.f32 %v6876, %v6946
    %6948 = vdwg.mxu0
    %v6949 = vmax.f32 %v6945, 0.0
    %v6950 = vmax.f32 %v6947, 0.0
    %v6951 = vld [vmem:[%s13] sm:$0x3]
    %v6953 = vlaneseq
    %v6954 = vshrl.u32 %v6953, 7
    %v6955 = vsub.s32 0, %v6954
    %v6956 = vrot.slane %v6951, %v6955
    %v6957 = vlaneseq
    %v6958 = vshrl.u32 %v6957, 7
    %v6959 = vsub.s32 1, %v6958
    %v6960 = vrot.slane %v6951, %v6959
    %v6963 = vmul.f32 %v6949, %v6956
    %v6964 = vmul.f32 %v6950, %v6960
    %v6965 = vld [vmem:[%s14] sm:$0x3]
    %v6967 = vlaneseq
    %v6968 = vshrl.u32 %v6967, 7
    %v6969 = vsub.s32 0, %v6968
    %v6970 = vrot.slane %v6965, %v6969
    %v6971 = vlaneseq
    %v6972 = vshrl.u32 %v6971, 7
    %v6973 = vsub.s32 1, %v6972
    %v6974 = vrot.slane %v6965, %v6973
    %v6977 = vadd.f32 %v6963, %v6970
    %v6978 = vadd.f32 %v6964, %v6974
    %v6979 = vld [vmem:[%s15] sm:$0xff]
    %v6980 = vld [vmem:[%s15 + $0x8] sm:$0xff]
    %v6981 = vld [vmem:[%s15 + $0x10] sm:$0xff]
    %v6982 = vld [vmem:[%s15 + $0x18] sm:$0xff]
    %v6983 = vld [vmem:[%s15 + $0x20] sm:$0xff]
    %v6984 = vld [vmem:[%s15 + $0x28] sm:$0xff]
    %v6985 = vld [vmem:[%s15 + $0x30] sm:$0xff]
    %v6986 = vld [vmem:[%s15 + $0x38] sm:$0xff]
    %v6987 = vld [vmem:[%s15 + $0x40] sm:$0xff]
    %v6988 = vld [vmem:[%s15 + $0x48] sm:$0xff]
    %v6989 = vld [vmem:[%s15 + $0x50] sm:$0xff]
    %v6990 = vld [vmem:[%s15 + $0x58] sm:$0xff]
    %v6991 = vld [vmem:[%s15 + $0x60] sm:$0xff]
    %v6992 = vld [vmem:[%s15 + $0x68] sm:$0xff]
    %v6993 = vld [vmem:[%s15 + $0x70] sm:$0xff]
    %v6994 = vld [vmem:[%s15 + $0x78] sm:$0xff]
    %v6995 = vld [vmem:[%s15 + $0x80] sm:$0xff]
    %v6996 = vld [vmem:[%s15 + $0x88] sm:$0xff]
    %v6997 = vld [vmem:[%s15 + $0x90] sm:$0xff]
    %v6998 = vld [vmem:[%s15 + $0x98] sm:$0xff]
    %v6999 = vld [vmem:[%s15 + $0xa0] sm:$0xff]
    %v7000 = vld [vmem:[%s15 + $0xa8] sm:$0xff]
    %v7001 = vld [vmem:[%s15 + $0xb0] sm:$0xff]
    %v7002 = vld [vmem:[%s15 + $0xb8] sm:$0xff]
    %v7003 = vld [vmem:[%s16] sm:$0x1]
    %v7005 = vlaneseq
    %v7006 = vshrl.u32 %v7005, 7
    %v7007 = vsub.s32 0, %v7006
    %v7008 = vrot.slane %v7003, %v7007
    %v7011 = vsel %vm6575, %v6978, 0
    %7013 = vmatprep.subr.mxu0 0.0
    %7014 = vmatpush1.msra.mxu0 %v6979
    %7015 = vmatprep.subr.mxu0 0.0
    %7016 = vmatpush1.msra.mxu0 %v6980
    %7017 = vmatprep.subr.mxu0 0.0
    %7018 = vmatpush1.msra.mxu0 %v6981
    %7019 = vmatprep.subr.mxu0 0.0
    %7020 = vmatpush1.msra.mxu0 %v6982
    %7021 = vmatprep.subr.mxu0 0.0
    %7022 = vmatpush1.msra.mxu0 %v6983
    %7023 = vmatprep.subr.mxu0 0.0
    %7024 = vmatpush1.msra.mxu0 %v6984
    %7025 = vmatprep.subr.mxu0 0.0
    %7026 = vmatpush1.msra.mxu0 %v6985
    %7027 = vmatprep.subr.mxu0 0.0
    %7028 = vmatpush1.msra.mxu0 %v6986
    %7029 = vmatprep.subr.mxu0 0.0
    %7030 = vmatpush1.msra.mxu0 %v6987
    %7031 = vmatprep.subr.mxu0 0.0
    %7032 = vmatpush1.msra.mxu0 %v6988
    %7033 = vmatprep.subr.mxu0 0.0
    %7034 = vmatpush1.msra.mxu0 %v6989
    %7035 = vmatprep.subr.mxu0 0.0
    %7036 = vmatpush1.msra.mxu0 %v6990
    %7037 = vmatprep.subr.mxu0 0.0
    %7038 = vmatpush1.msra.mxu0 %v6991
    %7039 = vmatprep.subr.mxu0 0.0
    %7040 = vmatpush1.msra.mxu0 %v6992
    %7041 = vmatprep.subr.mxu0 0.0
    %7042 = vmatpush1.msra.mxu0 %v6993
    %7043 = vmatprep.subr.mxu0 0.0
    %7044 = vmatpush1.msra.mxu0 %v6994
    %7045 = vmatprep.subr.mxu0 0.0
    %7046 = vmatpush1.msra.mxu0 %v6995
    %7047 = vmatprep.subr.mxu0 0.0
    %7048 = vmatpush1.msra.mxu0 %v6996
    %7049 = vmatprep.subr.mxu0 0.0
    %7050 = vmatpush1.msra.mxu0 %v6997
    %7051 = vmatprep.subr.mxu0 0.0
    %7052 = vmatpush1.msra.mxu0 %v6998
    %7053 = vmatprep.subr.mxu0 0.0
    %7054 = vmatpush1.msra.mxu0 %v6999
    %7055 = vmatprep.subr.mxu0 0.0
    %7056 = vmatpush1.msra.mxu0 %v7000
    %7057 = vmatprep.subr.mxu0 0.0
    %7058 = vmatpush1.msra.mxu0 %v7001
    %7059 = vmatprep.subr.mxu0 0.0
    %7060 = vmatpush1.msra.mxu0 %v7002
    %7061 = vmatprep.subr.mxu0 0.0
    %7062 = vmatpush1.msra.mxu0 0.0
    %7063 = vmatprep.subr.mxu0 0.0
    %7064 = vmatpush1.msra.mxu0 0.0
    %7065 = vmatprep.subr.mxu0 0.0
    %7066 = vmatpush1.msra.mxu0 0.0
    %7067 = vmatprep.subr.mxu0 0.0
    %7068 = vmatpush1.msra.mxu0 0.0
    %7069 = vmatprep.subr.mxu0 0.0
    %7070 = vmatpush1.msra.mxu0 0.0
    %7071 = vmatprep.subr.mxu0 0.0
    %7072 = vmatpush1.msra.mxu0 0.0
    %7073 = vmatprep.subr.mxu0 0.0
    %7074 = vmatpush1.msra.mxu0 0.0
    %7075 = vmatprep.subr.mxu0 0.0
    %7076 = vmatpush1.msra.mxu0 0.0
    %7077 = vmatprep.mubr.f32.mxu0 %v7011
    %7078 = vmatmul.mubr.f32.gmra.mrb[0].mxu0 %v6977
    %v7079 = vpop.f32.mrb[0].mxu0
    %v7080 = vadd.f32 %v7008, %v7079
    %v7081 = vpop.f32.mrb[0].mxu0
    %7082 = vdwg.mxu0
    %v7083 = vmax.f32 %v7080, 0.0
    %v7084 = vld [vmem:[%s17] sm:$0x1]
    %v7086 = vlaneseq
    %v7087 = vshrl.u32 %v7086, 7
    %v7088 = vsub.s32 0, %v7087
    %v7089 = vrot.slane %v7084, %v7088
    %v7091 = vmul.f32 %v7083, %v7089
    %v7092 = vld [vmem:[%s18] sm:$0x1]
    %v7094 = vlaneseq
    %v7095 = vshrl.u32 %v7094, 7
    %v7096 = vsub.s32 0, %v7095
    %v7097 = vrot.slane %v7092, %v7096
    %v7099 = vadd.f32 %v7091, %v7097
    %v7100 = vld [vmem:[%s19] sm:$0xff]
    %v7101 = vld [vmem:[%s19 + $0x8] sm:$0xff]
    %v7102 = vld [vmem:[%s19 + $0x10] sm:$0xff]
    %v7103 = vld [vmem:[%s19 + $0x18] sm:$0xff]
    %v7104 = vld [vmem:[%s20] sm:$0x1]
    %v7106 = vlaneseq
    %v7107 = vshrl.u32 %v7106, 7
    %v7108 = vsub.s32 0, %v7107
    %v7109 = vrot.slane %v7104, %v7108
    %v7112 = vsel %vm96, %v7099, 0
    %7114 = vmatprep.subr.mxu0 0.0
    %7115 = vmatpush1.msra.mxu0 %v7100
    %7116 = vmatprep.subr.mxu0 0.0
    %7117 = vmatpush1.msra.mxu0 %v7101
    %7118 = vmatprep.subr.mxu0 0.0
    %7119 = vmatpush1.msra.mxu0 %v7102
    %7120 = vmatprep.subr.mxu0 0.0
    %7121 = vmatpush1.msra.mxu0 %v7103
    %7122 = vmatprep.subr.mxu0 0.0
    %7123 = vmatpush1.msra.mxu0 0.0
    %7124 = vmatprep.subr.mxu0 0.0
    %7125 = vmatpush1.msra.mxu0 0.0
    %7126 = vmatprep.subr.mxu0 0.0
    %7127 = vmatpush1.msra.mxu0 0.0
    %7128 = vmatprep.subr.mxu0 0.0
    %7129 = vmatpush1.msra.mxu0 0.0
    %7130 = vmatprep.subr.mxu0 0.0
    %7131 = vmatpush1.msra.mxu0 0.0
    %7132 = vmatprep.subr.mxu0 0.0
    %7133 = vmatpush1.msra.mxu0 0.0
    %7134 = vmatprep.subr.mxu0 0.0
    %7135 = vmatpush1.msra.mxu0 0.0
    %7136 = vmatprep.subr.mxu0 0.0
    %7137 = vmatpush1.msra.mxu0 0.0
    %7138 = vmatprep.subr.mxu0 0.0
    %7139 = vmatpush1.msra.mxu0 0.0
    %7140 = vmatprep.subr.mxu0 0.0
    %7141 = vmatpush1.msra.mxu0 0.0
    %7142 = vmatprep.subr.mxu0 0.0
    %7143 = vmatpush1.msra.mxu0 0.0
    %7144 = vmatprep.subr.mxu0 0.0
    %7145 = vmatpush1.msra.mxu0 0.0
    %7146 = vmatprep.subr.mxu0 0.0
    %7147 = vmatpush1.msra.mxu0 0.0
    %7148 = vmatprep.subr.mxu0 0.0
    %7149 = vmatpush1.msra.mxu0 0.0
    %7150 = vmatprep.subr.mxu0 0.0
    %7151 = vmatpush1.msra.mxu0 0.0
    %7152 = vmatprep.subr.mxu0 0.0
    %7153 = vmatpush1.msra.mxu0 0.0
    %7154 = vmatprep.subr.mxu0 0.0
    %7155 = vmatpush1.msra.mxu0 0.0
    %7156 = vmatprep.subr.mxu0 0.0
    %7157 = vmatpush1.msra.mxu0 0.0
    %7158 = vmatprep.subr.mxu0 0.0
    %7159 = vmatpush1.msra.mxu0 0.0
    %7160 = vmatprep.subr.mxu0 0.0
    %7161 = vmatpush1.msra.mxu0 0.0
    %7162 = vmatprep.subr.mxu0 0.0
    %7163 = vmatpush1.msra.mxu0 0.0
    %7164 = vmatprep.subr.mxu0 0.0
    %7165 = vmatpush1.msra.mxu0 0.0
    %7166 = vmatprep.subr.mxu0 0.0
    %7167 = vmatpush1.msra.mxu0 0.0
    %7168 = vmatprep.subr.mxu0 0.0
    %7169 = vmatpush1.msra.mxu0 0.0
    %7170 = vmatprep.subr.mxu0 0.0
    %7171 = vmatpush1.msra.mxu0 0.0
    %7172 = vmatprep.subr.mxu0 0.0
    %7173 = vmatpush1.msra.mxu0 0.0
    %7174 = vmatprep.subr.mxu0 0.0
    %7175 = vmatpush1.msra.mxu0 0.0
    %7176 = vmatprep.subr.mxu0 0.0
    %7177 = vmatpush1.msra.mxu0 0.0
    %7178 = vmatprep.mubr.f32.mxu0 0.0
    %7179 = vmatmul.mubr.f32.gmra.mrb[0].mxu0 %v7112
    %v7180 = vpop.f32.mrb[0].mxu0
    %v7181 = vadd.f32 %v7109, %v7180
    %v7182 = vpop.f32.mrb[0].mxu0
    %7183 = vdwg.mxu0
    %v7184 = vmax.f32 %v7181, 0.0
    %v7185 = vld [vmem:[%s21] sm:$0x1]
    %v7187 = vlaneseq
    %v7188 = vshrl.u32 %v7187, 7
    %v7189 = vsub.s32 0, %v7188
    %v7190 = vrot.slane %v7185, %v7189
    %v7192 = vmul.f32 %v7184, %v7190
    %v7193 = vld [vmem:[%s22] sm:$0x1]
    %v7195 = vlaneseq
    %v7196 = vshrl.u32 %v7195, 7
    %v7197 = vsub.s32 0, %v7196
    %v7198 = vrot.slane %v7193, %v7197
    %v7200 = vadd.f32 %v7192, %v7198
    %v7201 = vld [vmem:[%s23] sm:$0xff]
    %v7202 = vld [vmem:[%s24] sm:$0x1]
    %v7204 = vlaneseq
    %v7205 = vshrl.u32 %v7204, 7
    %v7206 = vsub.s32 0, %v7205
    %v7207 = vrot.slane %v7202, %v7206
    %v7210 = vsel %vm2300, %v7200, 0
    %7212 = vmatprep.subr.mxu0 0.0
    %7213 = vmatpush1.msra.mxu0 %v7201
    %7214 = vmatprep.subr.mxu0 0.0
    %7215 = vmatpush1.msra.mxu0 0.0
    %7216 = vmatprep.subr.mxu0 0.0
    %7217 = vmatpush1.msra.mxu0 0.0
    %7218 = vmatprep.subr.mxu0 0.0
    %7219 = vmatpush1.msra.mxu0 0.0
    %7220 = vmatprep.subr.mxu0 0.0
    %7221 = vmatpush1.msra.mxu0 0.0
    %7222 = vmatprep.subr.mxu0 0.0
    %7223 = vmatpush1.msra.mxu0 0.0
    %7224 = vmatprep.subr.mxu0 0.0
    %7225 = vmatpush1.msra.mxu0 0.0
    %7226 = vmatprep.subr.mxu0 0.0
    %7227 = vmatpush1.msra.mxu0 0.0
    %7228 = vmatprep.subr.mxu0 0.0
    %7229 = vmatpush1.msra.mxu0 0.0
    %7230 = vmatprep.subr.mxu0 0.0
    %7231 = vmatpush1.msra.mxu0 0.0
    %7232 = vmatprep.subr.mxu0 0.0
    %7233 = vmatpush1.msra.mxu0 0.0
    %7234 = vmatprep.subr.mxu0 0.0
    %7235 = vmatpush1.msra.mxu0 0.0
    %7236 = vmatprep.subr.mxu0 0.0
    %7237 = vmatpush1.msra.mxu0 0.0
    %7238 = vmatprep.subr.mxu0 0.0
    %7239 = vmatpush1.msra.mxu0 0.0
    %7240 = vmatprep.subr.mxu0 0.0
    %7241 = vmatpush1.msra.mxu0 0.0
    %7242 = vmatprep.subr.mxu0 0.0
    %7243 = vmatpush1.msra.mxu0 0.0
    %7244 = vmatprep.subr.mxu0 0.0
    %7245 = vmatpush1.msra.mxu0 0.0
    %7246 = vmatprep.subr.mxu0 0.0
    %7247 = vmatpush1.msra.mxu0 0.0
    %7248 = vmatprep.subr.mxu0 0.0
    %7249 = vmatpush1.msra.mxu0 0.0
    %7250 = vmatprep.subr.mxu0 0.0
    %7251 = vmatpush1.msra.mxu0 0.0
    %7252 = vmatprep.subr.mxu0 0.0
    %7253 = vmatpush1.msra.mxu0 0.0
    %7254 = vmatprep.subr.mxu0 0.0
    %7255 = vmatpush1.msra.mxu0 0.0
    %7256 = vmatprep.subr.mxu0 0.0
    %7257 = vmatpush1.msra.mxu0 0.0
    %7258 = vmatprep.subr.mxu0 0.0
    %7259 = vmatpush1.msra.mxu0 0.0
    %7260 = vmatprep.subr.mxu0 0.0
    %7261 = vmatpush1.msra.mxu0 0.0
    %7262 = vmatprep.subr.mxu0 0.0
    %7263 = vmatpush1.msra.mxu0 0.0
    %7264 = vmatprep.subr.mxu0 0.0
    %7265 = vmatpush1.msra.mxu0 0.0
    %7266 = vmatprep.subr.mxu0 0.0
    %7267 = vmatpush1.msra.mxu0 0.0
    %7268 = vmatprep.subr.mxu0 0.0
    %7269 = vmatpush1.msra.mxu0 0.0
    %7270 = vmatprep.subr.mxu0 0.0
    %7271 = vmatpush1.msra.mxu0 0.0
    %7272 = vmatprep.subr.mxu0 0.0
    %7273 = vmatpush1.msra.mxu0 0.0
    %7274 = vmatprep.subr.mxu0 0.0
    %7275 = vmatpush1.msra.mxu0 0.0
    %7276 = vmatprep.mubr.f32.mxu0 0.0
    %7277 = vmatmul.mubr.f32.gmra.mrb[0].mxu0 %v7210
    %v7278 = vpop.f32.mrb[0].mxu0
    %v7279 = vadd.f32 %v7207, %v7278
    %v7280 = vpop.f32.mrb[0].mxu0
    %7281 = vdwg.mxu0
    %vm7282 = vcmask 9216
    %7283 = vst.msk [vmem:[#allocation4] sm:$0x3] %vm7282, %v7279
    // Predicated region
    $region102: #{mhsa_layers_forward.1} parent=1 // pred_check
      _
    $region103: #{mhsa_layers_forward.1} parent=1 // pred_check_branch
      %7285 = sbr.rel (0) target = $region105
    $region104: #{mhsa_layers_forward.1} parent=1 // pred_region
      %s7287 = ssub.s32 32, 32
      %7288 = vsyncadd [#allocation5], %s7287
      %s7290 = sshll.u32 [#allocation4], 4
      %s7291 = int_to_ptr.vmem [resolvable:$true] %s7290
      %7293 = dma.vmem_to_hbm [thread:$0]  %s7291, 32, %s25, [#allocation5]
    $region105: #{mhsa_layers_forward.1} parent=1 // pred_fallthru
      _
    // Predicated region
    $region106: #{mhsa_layers_forward.1} parent=1 // pred_check
      _
    $region107: #{mhsa_layers_forward.1} parent=1 // pred_check_branch
      %7295 = sbr.rel (0) target = $region109
    $region108: #{mhsa_layers_forward.1} parent=1 // pred_region
      %7296 = dma.done [#allocation5], 32
    $region109: #{mhsa_layers_forward.1} parent=1 // pred_fallthru
      _
    %7297 = vsyncpa [#allocation5], 1

</llo_original>
